<compile_context>
chip_gen: v7x
topology: tpu7x:2x2x1
jax: 0.10.0
libtpu: 0.0.40
codegen_flags: <defaults>
</compile_context>

<pallas_src>
import functools

import numpy as np
import jax
import jax.numpy as jnp
from jax import lax
from jax.experimental import pallas as pl
from jax.experimental.pallas import tpu as pltpu

EPS = 1e-5            # nn.BatchNorm2d default eps
NEG_SLOPE = 0.01      # nn.LeakyReLU default negative_slope
LANE = 128            # channel dims padded to a multiple of the TPU lane width
VMEM_LIMIT = 32 * 1024 * 1024


# ----------------------------- in-kernel helpers -----------------------------

def _leaky_relu(x):
    return jnp.where(x >= 0, x, NEG_SLOPE * x)


def _bn_apply(x, stats, gamma, beta, inv_n):
    """BatchNorm from accumulated (sum, sum_sq) stats: var = E[x^2] - mean^2 (biased)."""
    mean = stats[0:1, :] * inv_n                    # (1, C)
    var = stats[1:2, :] * inv_n - mean * mean       # (1, C)
    scale = lax.rsqrt(var + EPS) * gamma            # (1, C)
    return (x - mean) * scale + beta


def _accumulate_stats(st_ref, y):
    """Accumulate per-channel sum / sum-of-squares into a grid-resident (2, C) output block."""
    @pl.when(pl.program_id(0) == 0)
    def _init():
        st_ref[...] = jnp.zeros_like(st_ref)

    st_ref[0:1, :] += jnp.sum(y, axis=0, keepdims=True)
    st_ref[1:2, :] += jnp.sum(y * y, axis=0, keepdims=True)


# --------------------------------- kernels -----------------------------------

def stage_a_kernel(x_ref, w1_ref, b1_ref, y1_ref, st1_ref):
    """conv1: 1x1 conv == (TR, Cin) @ (Cin, Cmid) matmul (+bias); accumulate bn1 stats."""
    y = jnp.dot(x_ref[...].astype(jnp.bfloat16), w1_ref[...],
                preferred_element_type=jnp.float32) + b1_ref[...]
    y1_ref[...] = y
    _accumulate_stats(st1_ref, y)


def stage_b_kernel(y1_ref, st1_ref, g1_ref, be1_ref, w2_ref, b2_ref,
                   y2_ref, st2_ref, pad_ref, *, inv_rows):
    """bn1 + leaky_relu on y1; conv2 (3x3, pad=1) as 9 shifted matmuls over a zero-padded
    VMEM halo scratch (no im2col, no HBM blowup); accumulate bn1 stats of the conv2 output."""
    H, W, C = y1_ref.shape

    @pl.when(pl.program_id(0) == 0)
    def _zero_halo():
        pad_ref[...] = jnp.zeros_like(pad_ref)   # border stays zero for every image

    t1 = _leaky_relu(_bn_apply(y1_ref[...].reshape(H * W, C), st1_ref[...],
                               g1_ref[...], be1_ref[...], inv_rows))
    pad_ref[1:H + 1, 1:W + 1, :] = t1.reshape(H, W, C)

    acc = jnp.zeros((H * W, C), jnp.float32)
    for k in range(9):                            # static unroll: 9 MXU matmuls
        kh, kw = divmod(k, 3)
        win = pad_ref[kh:kh + H, kw:kw + W, :].reshape(H * W, C).astype(jnp.bfloat16)
        acc = acc + jnp.dot(win, w2_ref[k], preferred_element_type=jnp.float32)
    y2 = acc + b2_ref[...]
    y2_ref[...] = y2
    _accumulate_stats(st2_ref, y2)


def stage_c_kernel(y2_ref, st2_ref, g1_ref, be1_ref, w3_ref, st3_ref, *, inv_rows):
    """bn1 (reused gamma/beta) + leaky_relu on y2, conv3 (1x1, no bias): bn3 stats only."""
    t2 = _leaky_relu(_bn_apply(y2_ref[...], st2_ref[...], g1_ref[...],
                               be1_ref[...], inv_rows))
    y3 = jnp.dot(t2.astype(jnp.bfloat16), w3_ref[...],
                 preferred_element_type=jnp.float32)
    _accumulate_stats(st3_ref, y3)


def stage_d_kernel(y2_ref, x_ref, st2_ref, st3_ref, g1_ref, be1_ref,
                   g3_ref, be3_ref, w3_ref, o_ref, *, inv_rows):
    """bn1 + lrelu, conv3 (cheap 1x1 recompute), bn3, residual add, leaky_relu."""
    t2 = _leaky_relu(_bn_apply(y2_ref[...], st2_ref[...], g1_ref[...],
                               be1_ref[...], inv_rows))
    y3 = jnp.dot(t2.astype(jnp.bfloat16), w3_ref[...],
                 preferred_element_type=jnp.float32)
    u = _bn_apply(y3, st3_ref[...], g3_ref[...], be3_ref[...], inv_rows) + x_ref[...]
    o_ref[...] = _leaky_relu(u)


# ----------------------------- wrapper / glue ---------------------------------

def _round_up(n, m):
    return ((n + m - 1) // m) * m


def _row_tile(rows):
    # Largest row tile <= 256 that divides rows: big enough to amortize per-step overhead,
    # small enough that double-buffered tiles fit scoped VMEM on every TPU generation
    # (v7x has only 64 MiB physical VMEM).
    for t in (256, 128, 64, 32, 16, 8):
        if rows % t == 0:
            return t
    return rows


def _resident(shape):
    zeros = (0,) * len(shape)
    return pl.BlockSpec(shape, lambda *_: zeros)


def block_forward(x_nchw, params, out_channels):
    """x_nchw: (N, Cin, H, W) float32 -> (N, out_channels, H, W) float32."""
    N, Cin, H, W = x_nchw.shape
    Cinp, Cmidp = params["w1"].shape
    Coutp = params["w3"].shape[1]
    assert Cinp == Coutp, "residual add requires in_channels == out_channels"
    rows = N * H * W
    inv_rows = 1.0 / rows
    TR = _row_tile(rows)
    n_tiles = rows // TR
    f32 = jnp.float32

    # bf16 weights for the MXU (activations cast in-kernel; accumulation is f32).
    w1 = params["w1"].astype(jnp.bfloat16)
    w2 = params["w2"].astype(jnp.bfloat16)
    w3 = params["w3"].astype(jnp.bfloat16)
    g1, be1 = params["g1"], params["be1"]
    g3, be3 = params["g3"], params["be3"]
    b1, b2 = params["b1"], params["b2"]

    # NCHW -> NHWC, flatten spatial, zero-pad channels to the lane-dense width.
    x_flat = jnp.pad(jnp.transpose(x_nchw, (0, 2, 3, 1)).reshape(rows, Cin),
                     ((0, 0), (0, Cinp - Cin)))

    arb = pltpu.CompilerParams(dimension_semantics=("arbitrary",),
                               vmem_limit_bytes=VMEM_LIMIT)
    par = pltpu.CompilerParams(dimension_semantics=("parallel",),
                               vmem_limit_bytes=VMEM_LIMIT)

    # ---- stage A: conv1 (1x1) + bn1 stats --------------------------------------
    y1, st1 = pl.pallas_call(
        stage_a_kernel,
        out_shape=(jax.ShapeDtypeStruct((rows, Cmidp), f32),
                   jax.ShapeDtypeStruct((2, Cmidp), f32)),
        grid=(n_tiles,),
        in_specs=[pl.BlockSpec((TR, Cinp), lambda i: (i, 0)),
                  _resident((Cinp, Cmidp)),
                  _resident((1, Cmidp))],
        out_specs=(pl.BlockSpec((TR, Cmidp), lambda i: (i, 0)),
                   _resident((2, Cmidp))),
        compiler_params=arb,
        cost_estimate=pl.CostEstimate(
            flops=2 * rows * Cinp * Cmidp, transcendentals=0,
            bytes_accessed=4 * rows * (Cinp + Cmidp) + 2 * Cinp * Cmidp),
    )(x_flat, w1, b1)

    # ---- stage B: bn1 + lrelu + conv2 (3x3, in-kernel shifted matmuls) + bn1 stats
    y1_img = y1.reshape(N, H, W, Cmidp)
    y2, st2 = pl.pallas_call(
        functools.partial(stage_b_kernel, inv_rows=inv_rows),
        out_shape=(jax.ShapeDtypeStruct((N, H * W, Cmidp), f32),
                   jax.ShapeDtypeStruct((2, Cmidp), f32)),
        grid=(N,),
        in_specs=[pl.BlockSpec((None, H, W, Cmidp), lambda n: (n, 0, 0, 0)),
                  _resident((2, Cmidp)),
                  _resident((1, Cmidp)),
                  _resident((1, Cmidp)),
                  _resident((9, Cmidp, Cmidp)),
                  _resident((1, Cmidp))],
        out_specs=(pl.BlockSpec((None, H * W, Cmidp), lambda n: (n, 0, 0)),
                   _resident((2, Cmidp))),
        scratch_shapes=[pltpu.VMEM((H + 2, W + 2, Cmidp), f32)],
        compiler_params=arb,
        cost_estimate=pl.CostEstimate(
            flops=2 * rows * 9 * Cmidp * Cmidp, transcendentals=0,
            bytes_accessed=4 * 2 * rows * Cmidp + 2 * 9 * Cmidp * Cmidp),
    )(y1_img, st1, g1, be1, w2, b2)
    y2_flat = y2.reshape(rows, Cmidp)

    # ---- stage C: bn1(reused) + lrelu + conv3 -> bn3 stats only -----------------
    st3 = pl.pallas_call(
        functools.partial(stage_c_kernel, inv_rows=inv_rows),
        out_shape=jax.ShapeDtypeStruct((2, Coutp), f32),
        grid=(n_tiles,),
        in_specs=[pl.BlockSpec((TR, Cmidp), lambda i: (i, 0)),
                  _resident((2, Cmidp)),
                  _resident((1, Cmidp)),
                  _resident((1, Cmidp)),
                  _resident((Cmidp, Coutp))],
        out_specs=_resident((2, Coutp)),
        compiler_params=arb,
        cost_estimate=pl.CostEstimate(
            flops=2 * rows * Cmidp * Coutp, transcendentals=0,
            bytes_accessed=4 * rows * Cmidp + 2 * Cmidp * Coutp),
    )(y2_flat, st2, g1, be1, w3)

    # ---- stage D: bn1 + lrelu + conv3 (recompute) + bn3 + residual + lrelu ------
    out_flat = pl.pallas_call(
        functools.partial(stage_d_kernel, inv_rows=inv_rows),
        out_shape=jax.ShapeDtypeStruct((rows, Coutp), f32),
        grid=(n_tiles,),
        in_specs=[pl.BlockSpec((TR, Cmidp), lambda i: (i, 0)),   # y2
                  pl.BlockSpec((TR, Coutp), lambda i: (i, 0)),   # identity (x)
                  _resident((2, Cmidp)),                         # st2
                  _resident((2, Coutp)),                         # st3
                  _resident((1, Cmidp)),                         # g1
                  _resident((1, Cmidp)),                         # be1
                  _resident((1, Coutp)),                         # g3
                  _resident((1, Coutp)),                         # be3
                  _resident((Cmidp, Coutp))],                    # w3
        out_specs=pl.BlockSpec((TR, Coutp), lambda i: (i, 0)),
        compiler_params=par,
        cost_estimate=pl.CostEstimate(
            flops=2 * rows * Cmidp * Coutp, transcendentals=0,
            bytes_accessed=4 * rows * (Cmidp + 2 * Coutp) + 2 * Cmidp * Coutp),
    )(y2_flat, x_flat, st2, st3, g1, be1, g3, be3, w3)

    out = out_flat[:, :out_channels].reshape(N, H, W, out_channels)
    return jnp.transpose(out, (0, 3, 1, 2))


# ------------------------------ parameters ------------------------------------

def init_params(key, in_channels, out_channels):
    """Kaiming-normal conv weights (PyTorch OIHW), zero biases, BN gamma=1 / beta=0.
    Returns lane-padded kernel-layout params plus the torch-layout weights for the reference."""
    Cmid = in_channels // 2
    Cinp = _round_up(in_channels, LANE)
    Cmidp = _round_up(Cmid, LANE)
    Coutp = _round_up(out_channels, LANE)
    k1, k2, k3 = jax.random.split(key, 3)

    def kaiming(k, shape_oihw):
        fan_in = int(np.prod(shape_oihw[1:]))
        std = float(np.sqrt(2.0 / fan_in))
        return jax.random.normal(k, shape_oihw, dtype=jnp.float32) * std

    w1_t = kaiming(k1, (Cmid, in_channels, 1, 1))        # conv1
    w2_t = kaiming(k2, (Cmid, Cmid, 3, 3))               # conv2
    w3_t = kaiming(k3, (out_channels, Cmid, 1, 1))       # conv3 (no bias)

    def pad2(a, r, c):
        return jnp.pad(a, ((0, r - a.shape[0]), (0, c - a.shape[1])))

    w1 = pad2(jnp.transpose(w1_t[:, :, 0, 0], (1, 0)), Cinp, Cmidp)            # (Cinp, Cmidp)
    w2 = jnp.transpose(w2_t, (2, 3, 1, 0)).reshape(9, Cmid, Cmid)              # (kh*3+kw, cin, cout)
    w2 = jnp.pad(w2, ((0, 0), (0, Cmidp - Cmid), (0, Cmidp - Cmid)))           # (9, Cmidp, Cmidp)
    w3 = pad2(jnp.transpose(w3_t[:, :, 0, 0], (1, 0)), Cmidp, Coutp)           # (Cmidp, Coutp)

    def vec(val, c_real, c_pad):
        v = jnp.full((1, c_real), val, jnp.float32)
        return jnp.pad(v, ((0, 0), (0, c_pad - c_real)))

    params = dict(
        w1=w1, b1=vec(0.0, Cmid, Cmidp),
        w2=w2, b2=vec(0.0, Cmid, Cmidp),
        w3=w3,
        g1=vec(1.0, Cmid, Cmidp), be1=vec(0.0, Cmid, Cmidp),
        g3=vec(1.0, out_channels, Coutp), be3=vec(0.0, out_channels, Coutp),
    )
    torch_wts = dict(w1=w1_t, w2=w2_t, w3=w3_t)
    return params, torch_wts


# ------------------------------ pure-JAX reference -----------------------------

def reference_forward(x_nchw, params, torch_wts):
    """All-f32 (HIGHEST precision) reference of the PyTorch Block forward (training-mode BN)."""
    Cmid = torch_wts["w2"].shape[0]
    Cout = torch_wts["w3"].shape[0]

    def conv(x, w, b, pad):
        y = lax.conv_general_dilated(
            x, w, window_strides=(1, 1), padding=pad,
            dimension_numbers=("NCHW", "OIHW", "NCHW"),
            precision=lax.Precision.HIGHEST)
        if b is not None:
            y = y + b.reshape(1, -1, 1, 1)
        return y

    def bn(x, g, beta):
        mean = jnp.mean(x, axis=(0, 2, 3), keepdims=True)
        var = jnp.mean((x - mean) ** 2, axis=(0, 2, 3), keepdims=True)
        return (x - mean) * lax.rsqrt(var + EPS) * g.reshape(1, -1, 1, 1) + beta.reshape(1, -1, 1, 1)

    def lrelu(x):
        return jnp.where(x >= 0, x, NEG_SLOPE * x)

    b1 = params["b1"][0, :Cmid]
    b2 = params["b2"][0, :Cmid]
    g1, be1 = params["g1"][0, :Cmid], params["be1"][0, :Cmid]
    g3, be3 = params["g3"][0, :Cout], params["be3"][0, :Cout]

    identity = x_nchw
    out = conv(x_nchw, torch_wts["w1"], b1, [(0, 0), (0, 0)])
    out = lrelu(bn(out, g1, be1))
    out = conv(out, torch_wts["w2"], b2, [(1, 1), (1, 1)])
    out = lrelu(bn(out, g1, be1))          # bn1 intentionally reused, as in the PyTorch forward
    out = conv(out, torch_wts["w3"], None, [(0, 0), (0, 0)])
    out = bn(out, g3, be3)
    out = lrelu(out + identity)
    return out


# ----------------------------------- main --------------------------------------

if __name__ == "__main__":
    key = jax.random.PRNGKey(0)
    kx, kp = jax.random.split(key)

    N, C, H, W = 2, 8, 16, 16          # in_channels == out_channels -> valid residual add
    x = jax.random.normal(kx, (N, C, H, W), dtype=jnp.float32)
    params, torch_wts = init_params(kp, in_channels=C, out_channels=C)

    fwd = jax.jit(functools.partial(block_forward, params=params, out_channels=C))
    out = jax.block_until_ready(fwd(x))

    ref = jax.block_until_ready(reference_forward(x, params, torch_wts))

    assert out.shape == (N, C, H, W), out.shape
    out_np, ref_np = np.asarray(out), np.asarray(ref)
    # bf16 MXU inputs (f32 accumulation) vs all-f32 HIGHEST reference -> loose max tolerance,
    # plus a mean-error check to catch structural bugs.
    np.testing.assert_allclose(out_np, ref_np, rtol=1e-1, atol=1e-1)
    assert float(np.mean(np.abs(out_np - ref_np))) < 2e-2, "mean abs error too high"

    print("KERNEL_OK")
</pallas_src>

<mosaic_0001>
module attributes {stable_mosaic.version = 11 : i64} {
  func.func @stage_a_kernel(%arg0: i32, %arg1: memref<256x128xf32, #tpu.memory_space<vmem>>, %arg2: memref<128x128xbf16, #tpu.memory_space<vmem>>, %arg3: memref<1x128xf32, #tpu.memory_space<vmem>>, %arg4: memref<256x128xf32, #tpu.memory_space<vmem>>, %arg5: memref<2x128xf32, #tpu.memory_space<vmem>>) attributes {dimension_semantics = [#tpu.dimension_semantics<arbitrary>], iteration_bounds = array<i64: 2>, scalar_prefetch = 0 : i64, scratch_operands = 0 : i64, tpu.core_type = #tpu.core_type<tc>, window_params = [{transform_indices = @transform_0, window_bounds = array<i64: 256, 128>}, {pipeline_mode = #tpu.pipeline_mode<synchronous>, transform_indices = @transform_1, window_bounds = array<i64: 128, 128>}, {pipeline_mode = #tpu.pipeline_mode<synchronous>, transform_indices = @transform_2, window_bounds = array<i64: 1, 128>}, {transform_indices = @transform_3, window_bounds = array<i64: 256, 128>}, {pipeline_mode = #tpu.pipeline_mode<synchronous>, transform_indices = @transform_4, window_bounds = array<i64: 2, 128>}]} {
    %c0 = arith.constant 0 : index
    %c0_0 = arith.constant 0 : index
    %0 = vector.load %arg1[%c0, %c0_0] : memref<256x128xf32, #tpu.memory_space<vmem>>, vector<256x128xf32>
    %1 = arith.truncf %0 : vector<256x128xf32> to vector<256x128xbf16>
    %c0_1 = arith.constant 0 : index
    %c0_2 = arith.constant 0 : index
    %2 = vector.load %arg2[%c0_1, %c0_2] : memref<128x128xbf16, #tpu.memory_space<vmem>>, vector<128x128xbf16>
    %cst = arith.constant dense<0.000000e+00> : vector<256x128xf32>
    %3 = tpu.matmul %1, %2, %cst {dimension_numbers = #tpu.dot_dimension_numbers<[1], [0], [0], [1], [0, 0, 1, 1], [], []>} : vector<256x128xbf16>, vector<128x128xbf16>, vector<256x128xf32> -> vector<256x128xf32>
    %c0_3 = arith.constant 0 : index
    %c0_4 = arith.constant 0 : index
    %4 = vector.load %arg3[%c0_3, %c0_4] : memref<1x128xf32, #tpu.memory_space<vmem>>, vector<1x128xf32>
    %5 = vector.broadcast %4 : vector<1x128xf32> to vector<256x128xf32>
    %6 = arith.addf %3, %5 : vector<256x128xf32>
    %c0_5 = arith.constant 0 : index
    %c0_6 = arith.constant 0 : index
    %7 = vector.load %arg4[%c0_5, %c0_6] : memref<256x128xf32, #tpu.memory_space<vmem>>, vector<256x128xf32>
    tpu.vector_store %arg4[%c0_5, %c0_6], %6 {strides = array<i32>} : memref<256x128xf32, #tpu.memory_space<vmem>>, vector<256x128xf32>,
    %c0_i32 = arith.constant 0 : i32
    %8 = arith.cmpi eq, %arg0, %c0_i32 : i32
    %9 = arith.extui %8 : i1 to i32
    %c0_i32_7 = arith.constant 0 : i32
    %10 = arith.cmpi ne, %9, %c0_i32_7 : i32
    scf.if %10 {
      %cst_17 = arith.constant 0.000000e+00 : f32
      %22 = vector.broadcast %cst_17 : f32 to vector<2x128xf32>
      %c0_18 = arith.constant 0 : index
      %c0_19 = arith.constant 0 : index
      %23 = vector.load %arg5[%c0_18, %c0_19] : memref<2x128xf32, #tpu.memory_space<vmem>>, vector<2x128xf32>
      tpu.vector_store %arg5[%c0_18, %c0_19], %22 {strides = array<i32>} : memref<2x128xf32, #tpu.memory_space<vmem>>, vector<2x128xf32>,
    } else {
    }
    %c0_8 = arith.constant 0 : index
    %c0_9 = arith.constant 0 : index
    %11 = vector.load %arg5[%c0_8, %c0_9] : memref<2x128xf32, #tpu.memory_space<vmem>>, vector<1x128xf32>
    %cst_10 = arith.constant dense<0.000000e+00> : vector<128xf32>
    %12 = vector.multi_reduction <add>, %6, %cst_10 [0] : vector<256x128xf32> to vector<128xf32>
    %13 = vector.shape_cast %12 : vector<128xf32> to vector<1x128xf32>
    %14 = arith.addf %11, %13 : vector<1x128xf32>
    %c0_11 = arith.constant 0 : index
    %c0_12 = arith.constant 0 : index
    %15 = vector.load %arg5[%c0_11, %c0_12] : memref<2x128xf32, #tpu.memory_space<vmem>>, vector<1x128xf32>
    tpu.vector_store %arg5[%c0_11, %c0_12], %14 {strides = array<i32>} : memref<2x128xf32, #tpu.memory_space<vmem>>, vector<1x128xf32>,
    %c1 = arith.constant 1 : index
    %c0_13 = arith.constant 0 : index
    %16 = vector.load %arg5[%c1, %c0_13] : memref<2x128xf32, #tpu.memory_space<vmem>>, vector<1x128xf32>
    %17 = arith.mulf %6, %6 : vector<256x128xf32>
    %cst_14 = arith.constant dense<0.000000e+00> : vector<128xf32>
    %18 = vector.multi_reduction <add>, %17, %cst_14 [0] : vector<256x128xf32> to vector<128xf32>
    %19 = vector.shape_cast %18 : vector<128xf32> to vector<1x128xf32>
    %20 = arith.addf %16, %19 : vector<1x128xf32>
    %c1_15 = arith.constant 1 : index
    %c0_16 = arith.constant 0 : index
    %21 = vector.load %arg5[%c1_15, %c0_16] : memref<2x128xf32, #tpu.memory_space<vmem>>, vector<1x128xf32>
    tpu.vector_store %arg5[%c1_15, %c0_16], %20 {strides = array<i32>} : memref<2x128xf32, #tpu.memory_space<vmem>>, vector<1x128xf32>,
    return
  }
  func.func @transform_0(%arg0: i32) -> (i32, i32) {
    %c0_i32 = arith.constant 0 : i32
    %c0_i32_0 = arith.constant 0 : i32
    return %arg0, %c0_i32 : i32, i32
  }
  func.func @transform_1(%arg0: i32) -> (i32, i32) {
    %c0_i32 = arith.constant 0 : i32
    %c0_i32_0 = arith.constant 0 : i32
    %c0_i32_1 = arith.constant 0 : i32
    return %c0_i32, %c0_i32_0 : i32, i32
  }
  func.func @transform_2(%arg0: i32) -> (i32, i32) {
    %c0_i32 = arith.constant 0 : i32
    %c0_i32_0 = arith.constant 0 : i32
    %c0_i32_1 = arith.constant 0 : i32
    return %c0_i32, %c0_i32_0 : i32, i32
  }
  func.func @transform_3(%arg0: i32) -> (i32, i32) {
    %c0_i32 = arith.constant 0 : i32
    %c0_i32_0 = arith.constant 0 : i32
    return %arg0, %c0_i32 : i32, i32
  }
  func.func @transform_4(%arg0: i32) -> (i32, i32) {
    %c0_i32 = arith.constant 0 : i32
    %c0_i32_0 = arith.constant 0 : i32
    %c0_i32_1 = arith.constant 0 : i32
    return %c0_i32, %c0_i32_0 : i32, i32
  }
}

module attributes {stable_mosaic.version = 11 : i64} {
  func.func @stage_c_kernel(%arg0: i32, %arg1: memref<256x128xf32, #tpu.memory_space<vmem>>, %arg2: memref<2x128xf32, #tpu.memory_space<vmem>>, %arg3: memref<1x128xf32, #tpu.memory_space<vmem>>, %arg4: memref<1x128xf32, #tpu.memory_space<vmem>>, %arg5: memref<128x128xbf16, #tpu.memory_space<vmem>>, %arg6: memref<2x128xf32, #tpu.memory_space<vmem>>) attributes {dimension_semantics = [#tpu.dimension_semantics<arbitrary>], iteration_bounds = array<i64: 2>, scalar_prefetch = 0 : i64, scratch_operands = 0 : i64, tpu.core_type = #tpu.core_type<tc>, window_params = [{transform_indices = @transform_0, window_bounds = array<i64: 256, 128>}, {pipeline_mode = #tpu.pipeline_mode<synchronous>, transform_indices = @transform_1, window_bounds = array<i64: 2, 128>}, {pipeline_mode = #tpu.pipeline_mode<synchronous>, transform_indices = @transform_2, window_bounds = array<i64: 1, 128>}, {pipeline_mode = #tpu.pipeline_mode<synchronous>, transform_indices = @transform_3, window_bounds = array<i64: 1, 128>}, {pipeline_mode = #tpu.pipeline_mode<synchronous>, transform_indices = @transform_4, window_bounds = array<i64: 128, 128>}, {pipeline_mode = #tpu.pipeline_mode<synchronous>, transform_indices = @transform_5, window_bounds = array<i64: 2, 128>}]} {
    %c0 = arith.constant 0 : index
    %c0_0 = arith.constant 0 : index
    %0 = vector.load %arg1[%c0, %c0_0] : memref<256x128xf32, #tpu.memory_space<vmem>>, vector<256x128xf32>
    %c0_1 = arith.constant 0 : index
    %c0_2 = arith.constant 0 : index
    %1 = vector.load %arg2[%c0_1, %c0_2] : memref<2x128xf32, #tpu.memory_space<vmem>>, vector<2x128xf32>
    %c0_3 = arith.constant 0 : index
    %c0_4 = arith.constant 0 : index
    %2 = vector.load %arg3[%c0_3, %c0_4] : memref<1x128xf32, #tpu.memory_space<vmem>>, vector<1x128xf32>
    %c0_5 = arith.constant 0 : index
    %c0_6 = arith.constant 0 : index
    %3 = vector.load %arg4[%c0_5, %c0_6] : memref<1x128xf32, #tpu.memory_space<vmem>>, vector<1x128xf32>
    %4 = vector.extract_strided_slice %1 {offsets = [0, 0], sizes = [1, 128], strides = [1, 1]} : vector<2x128xf32> to vector<1x128xf32>
    %cst = arith.constant 0.001953125 : f32
    %5 = vector.broadcast %cst : f32 to vector<1x128xf32>
    %6 = arith.mulf %4, %5 : vector<1x128xf32>
    %7 = vector.extract_strided_slice %1 {offsets = [1, 0], sizes = [1, 128], strides = [1, 1]} : vector<2x128xf32> to vector<1x128xf32>
    %cst_7 = arith.constant 0.001953125 : f32
    %8 = vector.broadcast %cst_7 : f32 to vector<1x128xf32>
    %9 = arith.mulf %7, %8 : vector<1x128xf32>
    %10 = arith.mulf %6, %6 : vector<1x128xf32>
    %11 = arith.subf %9, %10 : vector<1x128xf32>
    %cst_8 = arith.constant 9.99999974E-6 : f32
    %12 = vector.broadcast %cst_8 : f32 to vector<1x128xf32>
    %13 = arith.addf %11, %12 : vector<1x128xf32>
    %14 = math.rsqrt %13 : vector<1x128xf32>
    %15 = arith.mulf %14, %2 : vector<1x128xf32>
    %16 = vector.broadcast %6 : vector<1x128xf32> to vector<256x128xf32>
    %17 = arith.subf %0, %16 : vector<256x128xf32>
    %18 = vector.broadcast %15 : vector<1x128xf32> to vector<256x128xf32>
    %19 = arith.mulf %17, %18 : vector<256x128xf32>
    %20 = vector.broadcast %3 : vector<1x128xf32> to vector<256x128xf32>
    %21 = arith.addf %19, %20 : vector<256x128xf32>
    %cst_9 = arith.constant 0.000000e+00 : f32
    %22 = vector.broadcast %cst_9 : f32 to vector<256x128xf32>
    %23 = arith.cmpf oge, %21, %22 : vector<256x128xf32>
    %cst_10 = arith.constant 0.00999999977 : f32
    %24 = vector.broadcast %cst_10 : f32 to vector<256x128xf32>
    %25 = arith.mulf %24, %21 : vector<256x128xf32>
    %26 = arith.select %23, %21, %25 : vector<256x128xi1>, vector<256x128xf32>
    %27 = arith.truncf %26 : vector<256x128xf32> to vector<256x128xbf16>
    %c0_11 = arith.constant 0 : index
    %c0_12 = arith.constant 0 : index
    %28 = vector.load %arg5[%c0_11, %c0_12] : memref<128x128xbf16, #tpu.memory_space<vmem>>, vector<128x128xbf16>
    %cst_13 = arith.constant dense<0.000000e+00> : vector<256x128xf32>
    %29 = tpu.matmul %27, %28, %cst_13 {dimension_numbers = #tpu.dot_dimension_numbers<[1], [0], [0], [1], [0, 0, 1, 1], [], []>} : vector<256x128xbf16>, vector<128x128xbf16>, vector<256x128xf32> -> vector<256x128xf32>
    %c0_i32 = arith.constant 0 : i32
    %30 = arith.cmpi eq, %arg0, %c0_i32 : i32
    %31 = arith.extui %30 : i1 to i32
    %c0_i32_14 = arith.constant 0 : i32
    %32 = arith.cmpi ne, %31, %c0_i32_14 : i32
    scf.if %32 {
      %cst_24 = arith.constant 0.000000e+00 : f32
      %44 = vector.broadcast %cst_24 : f32 to vector<2x128xf32>
      %c0_25 = arith.constant 0 : index
      %c0_26 = arith.constant 0 : index
      %45 = vector.load %arg6[%c0_25, %c0_26] : memref<2x128xf32, #tpu.memory_space<vmem>>, vector<2x128xf32>
      tpu.vector_store %arg6[%c0_25, %c0_26], %44 {strides = array<i32>} : memref<2x128xf32, #tpu.memory_space<vmem>>, vector<2x128xf32>,
    } else {
    }
    %c0_15 = arith.constant 0 : index
    %c0_16 = arith.constant 0 : index
    %33 = vector.load %arg6[%c0_15, %c0_16] : memref<2x128xf32, #tpu.memory_space<vmem>>, vector<1x128xf32>
    %cst_17 = arith.constant dense<0.000000e+00> : vector<128xf32>
    %34 = vector.multi_reduction <add>, %29, %cst_17 [0] : vector<256x128xf32> to vector<128xf32>
    %35 = vector.shape_cast %34 : vector<128xf32> to vector<1x128xf32>
    %36 = arith.addf %33, %35 : vector<1x128xf32>
    %c0_18 = arith.constant 0 : index
    %c0_19 = arith.constant 0 : index
    %37 = vector.load %arg6[%c0_18, %c0_19] : memref<2x128xf32, #tpu.memory_space<vmem>>, vector<1x128xf32>
    tpu.vector_store %arg6[%c0_18, %c0_19], %36 {strides = array<i32>} : memref<2x128xf32, #tpu.memory_space<vmem>>, vector<1x128xf32>,
    %c1 = arith.constant 1 : index
    %c0_20 = arith.constant 0 : index
    %38 = vector.load %arg6[%c1, %c0_20] : memref<2x128xf32, #tpu.memory_space<vmem>>, vector<1x128xf32>
    %39 = arith.mulf %29, %29 : vector<256x128xf32>
    %cst_21 = arith.constant dense<0.000000e+00> : vector<128xf32>
    %40 = vector.multi_reduction <add>, %39, %cst_21 [0] : vector<256x128xf32> to vector<128xf32>
    %41 = vector.shape_cast %40 : vector<128xf32> to vector<1x128xf32>
    %42 = arith.addf %38, %41 : vector<1x128xf32>
    %c1_22 = arith.constant 1 : index
    %c0_23 = arith.constant 0 : index
    %43 = vector.load %arg6[%c1_22, %c0_23] : memref<2x128xf32, #tpu.memory_space<vmem>>, vector<1x128xf32>
    tpu.vector_store %arg6[%c1_22, %c0_23], %42 {strides = array<i32>} : memref<2x128xf32, #tpu.memory_space<vmem>>, vector<1x128xf32>,
    return
  }
  func.func @transform_0(%arg0: i32) -> (i32, i32) {
    %c0_i32 = arith.constant 0 : i32
    %c0_i32_0 = arith.constant 0 : i32
    return %arg0, %c0_i32 : i32, i32
  }
  func.func @transform_1(%arg0: i32) -> (i32, i32) {
    %c0_i32 = arith.constant 0 : i32
    %c0_i32_0 = arith.constant 0 : i32
    %c0_i32_1 = arith.constant 0 : i32
    return %c0_i32, %c0_i32_0 : i32, i32
  }
  func.func @transform_2(%arg0: i32) -> (i32, i32) {
    %c0_i32 = arith.constant 0 : i32
    %c0_i32_0 = arith.constant 0 : i32
    %c0_i32_1 = arith.constant 0 : i32
    return %c0_i32, %c0_i32_0 : i32, i32
  }
  func.func @transform_3(%arg0: i32) -> (i32, i32) {
    %c0_i32 = arith.constant 0 : i32
    %c0_i32_0 = arith.constant 0 : i32
    %c0_i32_1 = arith.constant 0 : i32
    return %c0_i32, %c0_i32_0 : i32, i32
  }
  func.func @transform_4(%arg0: i32) -> (i32, i32) {
    %c0_i32 = arith.constant 0 : i32
    %c0_i32_0 = arith.constant 0 : i32
    %c0_i32_1 = arith.constant 0 : i32
    return %c0_i32, %c0_i32_0 : i32, i32
  }
  func.func @transform_5(%arg0: i32) -> (i32, i32) {
    %c0_i32 = arith.constant 0 : i32
    %c0_i32_0 = arith.constant 0 : i32
    %c0_i32_1 = arith.constant 0 : i32
    return %c0_i32, %c0_i32_0 : i32, i32
  }
}

module attributes {stable_mosaic.version = 11 : i64} {
  func.func @stage_b_kernel(%arg0: i32, %arg1: memref<1x16x16x128xf32, #tpu.memory_space<vmem>>, %arg2: memref<2x128xf32, #tpu.memory_space<vmem>>, %arg3: memref<1x128xf32, #tpu.memory_space<vmem>>, %arg4: memref<1x128xf32, #tpu.memory_space<vmem>>, %arg5: memref<9x128x128xbf16, #tpu.memory_space<vmem>>, %arg6: memref<1x128xf32, #tpu.memory_space<vmem>>, %arg7: memref<1x256x128xf32, #tpu.memory_space<vmem>>, %arg8: memref<2x128xf32, #tpu.memory_space<vmem>>, %arg9: memref<18x18x128xf32, #tpu.memory_space<vmem>>) attributes {dimension_semantics = [#tpu.dimension_semantics<arbitrary>], iteration_bounds = array<i64: 2>, scalar_prefetch = 0 : i64, scratch_operands = 1 : i64, tpu.core_type = #tpu.core_type<tc>, window_params = [{transform_indices = @transform_0, window_bounds = array<i64: 1, 16, 16, 128>}, {pipeline_mode = #tpu.pipeline_mode<synchronous>, transform_indices = @transform_1, window_bounds = array<i64: 2, 128>}, {pipeline_mode = #tpu.pipeline_mode<synchronous>, transform_indices = @transform_2, window_bounds = array<i64: 1, 128>}, {pipeline_mode = #tpu.pipeline_mode<synchronous>, transform_indices = @transform_3, window_bounds = array<i64: 1, 128>}, {pipeline_mode = #tpu.pipeline_mode<synchronous>, transform_indices = @transform_4, window_bounds = array<i64: 9, 128, 128>}, {pipeline_mode = #tpu.pipeline_mode<synchronous>, transform_indices = @transform_5, window_bounds = array<i64: 1, 128>}, {transform_indices = @transform_6, window_bounds = array<i64: 1, 256, 128>}, {pipeline_mode = #tpu.pipeline_mode<synchronous>, transform_indices = @transform_7, window_bounds = array<i64: 2, 128>}]} {
    %c0_i32 = arith.constant 0 : i32
    %0 = arith.cmpi eq, %arg0, %c0_i32 : i32
    %1 = arith.extui %0 : i1 to i32
    %c0_i32_0 = arith.constant 0 : i32
    %2 = arith.cmpi ne, %1, %c0_i32_0 : i32
    scf.if %2 {
      %cst_90 = arith.constant 0.000000e+00 : f32
      %118 = vector.broadcast %cst_90 : f32 to vector<18x18x128xf32>
      %c0_91 = arith.constant 0 : index
      %c0_92 = arith.constant 0 : index
      %c0_93 = arith.constant 0 : index
      %119 = vector.load %arg9[%c0_91, %c0_92, %c0_93] : memref<18x18x128xf32, #tpu.memory_space<vmem>>, vector<18x18x128xf32>
      tpu.vector_store %arg9[%c0_91, %c0_92, %c0_93], %118 {strides = array<i32>} : memref<18x18x128xf32, #tpu.memory_space<vmem>>, vector<18x18x128xf32>,
    } else {
    }
    %c0 = arith.constant 0 : index
    %c0_1 = arith.constant 0 : index
    %c0_2 = arith.constant 0 : index
    %c0_3 = arith.constant 0 : index
    %3 = vector.load %arg1[%c0, %c0_1, %c0_2, %c0_3] : memref<1x16x16x128xf32, #tpu.memory_space<vmem>>, vector<1x16x16x128xf32>
    %4 = vector.shape_cast %3 : vector<1x16x16x128xf32> to vector<16x16x128xf32>
    %5 = vector.shape_cast %4 : vector<16x16x128xf32> to vector<256x128xf32>
    %c0_4 = arith.constant 0 : index
    %c0_5 = arith.constant 0 : index
    %6 = vector.load %arg2[%c0_4, %c0_5] : memref<2x128xf32, #tpu.memory_space<vmem>>, vector<2x128xf32>
    %c0_6 = arith.constant 0 : index
    %c0_7 = arith.constant 0 : index
    %7 = vector.load %arg3[%c0_6, %c0_7] : memref<1x128xf32, #tpu.memory_space<vmem>>, vector<1x128xf32>
    %c0_8 = arith.constant 0 : index
    %c0_9 = arith.constant 0 : index
    %8 = vector.load %arg4[%c0_8, %c0_9] : memref<1x128xf32, #tpu.memory_space<vmem>>, vector<1x128xf32>
    %9 = vector.extract_strided_slice %6 {offsets = [0, 0], sizes = [1, 128], strides = [1, 1]} : vector<2x128xf32> to vector<1x128xf32>
    %cst = arith.constant 0.001953125 : f32
    %10 = vector.broadcast %cst : f32 to vector<1x128xf32>
    %11 = arith.mulf %9, %10 : vector<1x128xf32>
    %12 = vector.extract_strided_slice %6 {offsets = [1, 0], sizes = [1, 128], strides = [1, 1]} : vector<2x128xf32> to vector<1x128xf32>
    %cst_10 = arith.constant 0.001953125 : f32
    %13 = vector.broadcast %cst_10 : f32 to vector<1x128xf32>
    %14 = arith.mulf %12, %13 : vector<1x128xf32>
    %15 = arith.mulf %11, %11 : vector<1x128xf32>
    %16 = arith.subf %14, %15 : vector<1x128xf32>
    %cst_11 = arith.constant 9.99999974E-6 : f32
    %17 = vector.broadcast %cst_11 : f32 to vector<1x128xf32>
    %18 = arith.addf %16, %17 : vector<1x128xf32>
    %19 = math.rsqrt %18 : vector<1x128xf32>
    %20 = arith.mulf %19, %7 : vector<1x128xf32>
    %21 = vector.broadcast %11 : vector<1x128xf32> to vector<256x128xf32>
    %22 = arith.subf %5, %21 : vector<256x128xf32>
    %23 = vector.broadcast %20 : vector<1x128xf32> to vector<256x128xf32>
    %24 = arith.mulf %22, %23 : vector<256x128xf32>
    %25 = vector.broadcast %8 : vector<1x128xf32> to vector<256x128xf32>
    %26 = arith.addf %24, %25 : vector<256x128xf32>
    %cst_12 = arith.constant 0.000000e+00 : f32
    %27 = vector.broadcast %cst_12 : f32 to vector<256x128xf32>
    %28 = arith.cmpf oge, %26, %27 : vector<256x128xf32>
    %cst_13 = arith.constant 0.00999999977 : f32
    %29 = vector.broadcast %cst_13 : f32 to vector<256x128xf32>
    %30 = arith.mulf %29, %26 : vector<256x128xf32>
    %31 = arith.select %28, %26, %30 : vector<256x128xi1>, vector<256x128xf32>
    %32 = vector.shape_cast %31 : vector<256x128xf32> to vector<16x16x128xf32>
    %c1 = arith.constant 1 : index
    %c1_14 = arith.constant 1 : index
    %c0_15 = arith.constant 0 : index
    %33 = vector.load %arg9[%c1, %c1_14, %c0_15] : memref<18x18x128xf32, #tpu.memory_space<vmem>>, vector<16x16x128xf32>
    tpu.vector_store %arg9[%c1, %c1_14, %c0_15], %32 {strides = array<i32>} : memref<18x18x128xf32, #tpu.memory_space<vmem>>, vector<16x16x128xf32>,
    %cst_16 = arith.constant 0.000000e+00 : f32
    %34 = vector.broadcast %cst_16 : f32 to vector<256x128xf32>
    %c0_17 = arith.constant 0 : index
    %c0_18 = arith.constant 0 : index
    %c0_19 = arith.constant 0 : index
    %35 = vector.load %arg9[%c0_17, %c0_18, %c0_19] : memref<18x18x128xf32, #tpu.memory_space<vmem>>, vector<16x16x128xf32>
    %36 = vector.shape_cast %35 : vector<16x16x128xf32> to vector<256x128xf32>
    %37 = arith.truncf %36 : vector<256x128xf32> to vector<256x128xbf16>
    %c0_20 = arith.constant 0 : index
    %c0_21 = arith.constant 0 : index
    %c0_22 = arith.constant 0 : index
    %38 = vector.load %arg5[%c0_20, %c0_21, %c0_22] : memref<9x128x128xbf16, #tpu.memory_space<vmem>>, vector<1x128x128xbf16>
    %39 = vector.shape_cast %38 : vector<1x128x128xbf16> to vector<128x128xbf16>
    %cst_23 = arith.constant dense<0.000000e+00> : vector<256x128xf32>
    %40 = tpu.matmul %37, %39, %cst_23 {dimension_numbers = #tpu.dot_dimension_numbers<[1], [0], [0], [1], [0, 0, 1, 1], [], []>} : vector<256x128xbf16>, vector<128x128xbf16>, vector<256x128xf32> -> vector<256x128xf32>
    %41 = arith.addf %34, %40 : vector<256x128xf32>
    %c0_24 = arith.constant 0 : index
    %c1_25 = arith.constant 1 : index
    %c0_26 = arith.constant 0 : index
    %42 = vector.load %arg9[%c0_24, %c1_25, %c0_26] : memref<18x18x128xf32, #tpu.memory_space<vmem>>, vector<16x16x128xf32>
    %43 = vector.shape_cast %42 : vector<16x16x128xf32> to vector<256x128xf32>
    %44 = arith.truncf %43 : vector<256x128xf32> to vector<256x128xbf16>
    %c1_27 = arith.constant 1 : index
    %c0_28 = arith.constant 0 : index
    %c0_29 = arith.constant 0 : index
    %45 = vector.load %arg5[%c1_27, %c0_28, %c0_29] : memref<9x128x128xbf16, #tpu.memory_space<vmem>>, vector<1x128x128xbf16>
    %46 = vector.shape_cast %45 : vector<1x128x128xbf16> to vector<128x128xbf16>
    %cst_30 = arith.constant dense<0.000000e+00> : vector<256x128xf32>
    %47 = tpu.matmul %44, %46, %cst_30 {dimension_numbers = #tpu.dot_dimension_numbers<[1], [0], [0], [1], [0, 0, 1, 1], [], []>} : vector<256x128xbf16>, vector<128x128xbf16>, vector<256x128xf32> -> vector<256x128xf32>
    %48 = arith.addf %41, %47 : vector<256x128xf32>
    %c0_31 = arith.constant 0 : index
    %c2 = arith.constant 2 : index
    %c0_32 = arith.constant 0 : index
    %49 = vector.load %arg9[%c0_31, %c2, %c0_32] : memref<18x18x128xf32, #tpu.memory_space<vmem>>, vector<16x16x128xf32>
    %50 = vector.shape_cast %49 : vector<16x16x128xf32> to vector<256x128xf32>
    %51 = arith.truncf %50 : vector<256x128xf32> to vector<256x128xbf16>
    %c2_33 = arith.constant 2 : index
    %c0_34 = arith.constant 0 : index
    %c0_35 = arith.constant 0 : index
    %52 = vector.load %arg5[%c2_33, %c0_34, %c0_35] : memref<9x128x128xbf16, #tpu.memory_space<vmem>>, vector<1x128x128xbf16>
    %53 = vector.shape_cast %52 : vector<1x128x128xbf16> to vector<128x128xbf16>
    %cst_36 = arith.constant dense<0.000000e+00> : vector<256x128xf32>
    %54 = tpu.matmul %51, %53, %cst_36 {dimension_numbers = #tpu.dot_dimension_numbers<[1], [0], [0], [1], [0, 0, 1, 1], [], []>} : vector<256x128xbf16>, vector<128x128xbf16>, vector<256x128xf32> -> vector<256x128xf32>
    %55 = arith.addf %48, %54 : vector<256x128xf32>
    %c1_37 = arith.constant 1 : index
    %c0_38 = arith.constant 0 : index
    %c0_39 = arith.constant 0 : index
    %56 = vector.load %arg9[%c1_37, %c0_38, %c0_39] : memref<18x18x128xf32, #tpu.memory_space<vmem>>, vector<16x16x128xf32>
    %57 = vector.shape_cast %56 : vector<16x16x128xf32> to vector<256x128xf32>
    %58 = arith.truncf %57 : vector<256x128xf32> to vector<256x128xbf16>
    %c3 = arith.constant 3 : index
    %c0_40 = arith.constant 0 : index
    %c0_41 = arith.constant 0 : index
    %59 = vector.load %arg5[%c3, %c0_40, %c0_41] : memref<9x128x128xbf16, #tpu.memory_space<vmem>>, vector<1x128x128xbf16>
    %60 = vector.shape_cast %59 : vector<1x128x128xbf16> to vector<128x128xbf16>
    %cst_42 = arith.constant dense<0.000000e+00> : vector<256x128xf32>
    %61 = tpu.matmul %58, %60, %cst_42 {dimension_numbers = #tpu.dot_dimension_numbers<[1], [0], [0], [1], [0, 0, 1, 1], [], []>} : vector<256x128xbf16>, vector<128x128xbf16>, vector<256x128xf32> -> vector<256x128xf32>
    %62 = arith.addf %55, %61 : vector<256x128xf32>
    %c1_43 = arith.constant 1 : index
    %c1_44 = arith.constant 1 : index
    %c0_45 = arith.constant 0 : index
    %63 = vector.load %arg9[%c1_43, %c1_44, %c0_45] : memref<18x18x128xf32, #tpu.memory_space<vmem>>, vector<16x16x128xf32>
    %64 = vector.shape_cast %63 : vector<16x16x128xf32> to vector<256x128xf32>
    %65 = arith.truncf %64 : vector<256x128xf32> to vector<256x128xbf16>
    %c4 = arith.constant 4 : index
    %c0_46 = arith.constant 0 : index
    %c0_47 = arith.constant 0 : index
    %66 = vector.load %arg5[%c4, %c0_46, %c0_47] : memref<9x128x128xbf16, #tpu.memory_space<vmem>>, vector<1x128x128xbf16>
    %67 = vector.shape_cast %66 : vector<1x128x128xbf16> to vector<128x128xbf16>
    %cst_48 = arith.constant dense<0.000000e+00> : vector<256x128xf32>
    %68 = tpu.matmul %65, %67, %cst_48 {dimension_numbers = #tpu.dot_dimension_numbers<[1], [0], [0], [1], [0, 0, 1, 1], [], []>} : vector<256x128xbf16>, vector<128x128xbf16>, vector<256x128xf32> -> vector<256x128xf32>
    %69 = arith.addf %62, %68 : vector<256x128xf32>
    %c1_49 = arith.constant 1 : index
    %c2_50 = arith.constant 2 : index
    %c0_51 = arith.constant 0 : index
    %70 = vector.load %arg9[%c1_49, %c2_50, %c0_51] : memref<18x18x128xf32, #tpu.memory_space<vmem>>, vector<16x16x128xf32>
    %71 = vector.shape_cast %70 : vector<16x16x128xf32> to vector<256x128xf32>
    %72 = arith.truncf %71 : vector<256x128xf32> to vector<256x128xbf16>
    %c5 = arith.constant 5 : index
    %c0_52 = arith.constant 0 : index
    %c0_53 = arith.constant 0 : index
    %73 = vector.load %arg5[%c5, %c0_52, %c0_53] : memref<9x128x128xbf16, #tpu.memory_space<vmem>>, vector<1x128x128xbf16>
    %74 = vector.shape_cast %73 : vector<1x128x128xbf16> to vector<128x128xbf16>
    %cst_54 = arith.constant dense<0.000000e+00> : vector<256x128xf32>
    %75 = tpu.matmul %72, %74, %cst_54 {dimension_numbers = #tpu.dot_dimension_numbers<[1], [0], [0], [1], [0, 0, 1, 1], [], []>} : vector<256x128xbf16>, vector<128x128xbf16>, vector<256x128xf32> -> vector<256x128xf32>
    %76 = arith.addf %69, %75 : vector<256x128xf32>
    %c2_55 = arith.constant 2 : index
    %c0_56 = arith.constant 0 : index
    %c0_57 = arith.constant 0 : index
    %77 = vector.load %arg9[%c2_55, %c0_56, %c0_57] : memref<18x18x128xf32, #tpu.memory_space<vmem>>, vector<16x16x128xf32>
    %78 = vector.shape_cast %77 : vector<16x16x128xf32> to vector<256x128xf32>
    %79 = arith.truncf %78 : vector<256x128xf32> to vector<256x128xbf16>
    %c6 = arith.constant 6 : index
    %c0_58 = arith.constant 0 : index
    %c0_59 = arith.constant 0 : index
    %80 = vector.load %arg5[%c6, %c0_58, %c0_59] : memref<9x128x128xbf16, #tpu.memory_space<vmem>>, vector<1x128x128xbf16>
    %81 = vector.shape_cast %80 : vector<1x128x128xbf16> to vector<128x128xbf16>
    %cst_60 = arith.constant dense<0.000000e+00> : vector<256x128xf32>
    %82 = tpu.matmul %79, %81, %cst_60 {dimension_numbers = #tpu.dot_dimension_numbers<[1], [0], [0], [1], [0, 0, 1, 1], [], []>} : vector<256x128xbf16>, vector<128x128xbf16>, vector<256x128xf32> -> vector<256x128xf32>
    %83 = arith.addf %76, %82 : vector<256x128xf32>
    %c2_61 = arith.constant 2 : index
    %c1_62 = arith.constant 1 : index
    %c0_63 = arith.constant 0 : index
    %84 = vector.load %arg9[%c2_61, %c1_62, %c0_63] : memref<18x18x128xf32, #tpu.memory_space<vmem>>, vector<16x16x128xf32>
    %85 = vector.shape_cast %84 : vector<16x16x128xf32> to vector<256x128xf32>
    %86 = arith.truncf %85 : vector<256x128xf32> to vector<256x128xbf16>
    %c7 = arith.constant 7 : index
    %c0_64 = arith.constant 0 : index
    %c0_65 = arith.constant 0 : index
    %87 = vector.load %arg5[%c7, %c0_64, %c0_65] : memref<9x128x128xbf16, #tpu.memory_space<vmem>>, vector<1x128x128xbf16>
    %88 = vector.shape_cast %87 : vector<1x128x128xbf16> to vector<128x128xbf16>
    %cst_66 = arith.constant dense<0.000000e+00> : vector<256x128xf32>
    %89 = tpu.matmul %86, %88, %cst_66 {dimension_numbers = #tpu.dot_dimension_numbers<[1], [0], [0], [1], [0, 0, 1, 1], [], []>} : vector<256x128xbf16>, vector<128x128xbf16>, vector<256x128xf32> -> vector<256x128xf32>
    %90 = arith.addf %83, %89 : vector<256x128xf32>
    %c2_67 = arith.constant 2 : index
    %c2_68 = arith.constant 2 : index
    %c0_69 = arith.constant 0 : index
    %91 = vector.load %arg9[%c2_67, %c2_68, %c0_69] : memref<18x18x128xf32, #tpu.memory_space<vmem>>, vector<16x16x128xf32>
    %92 = vector.shape_cast %91 : vector<16x16x128xf32> to vector<256x128xf32>
    %93 = arith.truncf %92 : vector<256x128xf32> to vector<256x128xbf16>
    %c8 = arith.constant 8 : index
    %c0_70 = arith.constant 0 : index
    %c0_71 = arith.constant 0 : index
    %94 = vector.load %arg5[%c8, %c0_70, %c0_71] : memref<9x128x128xbf16, #tpu.memory_space<vmem>>, vector<1x128x128xbf16>
    %95 = vector.shape_cast %94 : vector<1x128x128xbf16> to vector<128x128xbf16>
    %cst_72 = arith.constant dense<0.000000e+00> : vector<256x128xf32>
    %96 = tpu.matmul %93, %95, %cst_72 {dimension_numbers = #tpu.dot_dimension_numbers<[1], [0], [0], [1], [0, 0, 1, 1], [], []>} : vector<256x128xbf16>, vector<128x128xbf16>, vector<256x128xf32> -> vector<256x128xf32>
    %97 = arith.addf %90, %96 : vector<256x128xf32>
    %c0_73 = arith.constant 0 : index
    %c0_74 = arith.constant 0 : index
    %98 = vector.load %arg6[%c0_73, %c0_74] : memref<1x128xf32, #tpu.memory_space<vmem>>, vector<1x128xf32>
    %99 = vector.broadcast %98 : vector<1x128xf32> to vector<256x128xf32>
    %100 = arith.addf %97, %99 : vector<256x128xf32>
    %c0_75 = arith.constant 0 : index
    %c0_76 = arith.constant 0 : index
    %c0_77 = arith.constant 0 : index
    %101 = vector.load %arg7[%c0_75, %c0_76, %c0_77] : memref<1x256x128xf32, #tpu.memory_space<vmem>>, vector<1x256x128xf32>
    %102 = vector.shape_cast %101 : vector<1x256x128xf32> to vector<256x128xf32>
    %103 = vector.shape_cast %100 : vector<256x128xf32> to vector<1x256x128xf32>
    tpu.vector_store %arg7[%c0_75, %c0_76, %c0_77], %103 {strides = array<i32>} : memref<1x256x128xf32, #tpu.memory_space<vmem>>, vector<1x256x128xf32>,
    %c0_i32_78 = arith.constant 0 : i32
    %104 = arith.cmpi eq, %arg0, %c0_i32_78 : i32
    %105 = arith.extui %104 : i1 to i32
    %c0_i32_79 = arith.constant 0 : i32
    %106 = arith.cmpi ne, %105, %c0_i32_79 : i32
    scf.if %106 {
      %cst_90 = arith.constant 0.000000e+00 : f32
      %118 = vector.broadcast %cst_90 : f32 to vector<2x128xf32>
      %c0_91 = arith.constant 0 : index
      %c0_92 = arith.constant 0 : index
      %119 = vector.load %arg8[%c0_91, %c0_92] : memref<2x128xf32, #tpu.memory_space<vmem>>, vector<2x128xf32>
      tpu.vector_store %arg8[%c0_91, %c0_92], %118 {strides = array<i32>} : memref<2x128xf32, #tpu.memory_space<vmem>>, vector<2x128xf32>,
    } else {
    }
    %c0_80 = arith.constant 0 : index
    %c0_81 = arith.constant 0 : index
    %107 = vector.load %arg8[%c0_80, %c0_81] : memref<2x128xf32, #tpu.memory_space<vmem>>, vector<1x128xf32>
    %cst_82 = arith.constant dense<0.000000e+00> : vector<128xf32>
    %108 = vector.multi_reduction <add>, %100, %cst_82 [0] : vector<256x128xf32> to vector<128xf32>
    %109 = vector.shape_cast %108 : vector<128xf32> to vector<1x128xf32>
    %110 = arith.addf %107, %109 : vector<1x128xf32>
    %c0_83 = arith.constant 0 : index
    %c0_84 = arith.constant 0 : index
    %111 = vector.load %arg8[%c0_83, %c0_84] : memref<2x128xf32, #tpu.memory_space<vmem>>, vector<1x128xf32>
    tpu.vector_store %arg8[%c0_83, %c0_84], %110 {strides = array<i32>} : memref<2x128xf32, #tpu.memory_space<vmem>>, vector<1x128xf32>,
    %c1_85 = arith.constant 1 : index
    %c0_86 = arith.constant 0 : index
    %112 = vector.load %arg8[%c1_85, %c0_86] : memref<2x128xf32, #tpu.memory_space<vmem>>, vector<1x128xf32>
    %113 = arith.mulf %100, %100 : vector<256x128xf32>
    %cst_87 = arith.constant dense<0.000000e+00> : vector<128xf32>
    %114 = vector.multi_reduction <add>, %113, %cst_87 [0] : vector<256x128xf32> to vector<128xf32>
    %115 = vector.shape_cast %114 : vector<128xf32> to vector<1x128xf32>
    %116 = arith.addf %112, %115 : vector<1x128xf32>
    %c1_88 = arith.constant 1 : index
    %c0_89 = arith.constant 0 : index
    %117 = vector.load %arg8[%c1_88, %c0_89] : memref<2x128xf32, #tpu.memory_space<vmem>>, vector<1x128xf32>
    tpu.vector_store %arg8[%c1_88, %c0_89], %116 {strides = array<i32>} : memref<2x128xf32, #tpu.memory_space<vmem>>, vector<1x128xf32>,
    return
  }
  func.func @transform_0(%arg0: i32) -> (i32, i32, i32, i32) {
    %c0_i32 = arith.constant 0 : i32
    %c0_i32_0 = arith.constant 0 : i32
    %c0_i32_1 = arith.constant 0 : i32
    %c0_i32_2 = arith.constant 0 : i32
    return %arg0, %c0_i32, %c0_i32_0, %c0_i32_1 : i32, i32, i32, i32
  }
  func.func @transform_1(%arg0: i32) -> (i32, i32) {
    %c0_i32 = arith.constant 0 : i32
    %c0_i32_0 = arith.constant 0 : i32
    %c0_i32_1 = arith.constant 0 : i32
    return %c0_i32, %c0_i32_0 : i32, i32
  }
  func.func @transform_2(%arg0: i32) -> (i32, i32) {
    %c0_i32 = arith.constant 0 : i32
    %c0_i32_0 = arith.constant 0 : i32
    %c0_i32_1 = arith.constant 0 : i32
    return %c0_i32, %c0_i32_0 : i32, i32
  }
  func.func @transform_3(%arg0: i32) -> (i32, i32) {
    %c0_i32 = arith.constant 0 : i32
    %c0_i32_0 = arith.constant 0 : i32
    %c0_i32_1 = arith.constant 0 : i32
    return %c0_i32, %c0_i32_0 : i32, i32
  }
  func.func @transform_4(%arg0: i32) -> (i32, i32, i32) {
    %c0_i32 = arith.constant 0 : i32
    %c0_i32_0 = arith.constant 0 : i32
    %c0_i32_1 = arith.constant 0 : i32
    %c0_i32_2 = arith.constant 0 : i32
    return %c0_i32, %c0_i32_0, %c0_i32_1 : i32, i32, i32
  }
  func.func @transform_5(%arg0: i32) -> (i32, i32) {
    %c0_i32 = arith.constant 0 : i32
    %c0_i32_0 = arith.constant 0 : i32
    %c0_i32_1 = arith.constant 0 : i32
    return %c0_i32, %c0_i32_0 : i32, i32
  }
  func.func @transform_6(%arg0: i32) -> (i32, i32, i32) {
    %c0_i32 = arith.constant 0 : i32
    %c0_i32_0 = arith.constant 0 : i32
    %c0_i32_1 = arith.constant 0 : i32
    return %arg0, %c0_i32, %c0_i32_0 : i32, i32, i32
  }
  func.func @transform_7(%arg0: i32) -> (i32, i32) {
    %c0_i32 = arith.constant 0 : i32
    %c0_i32_0 = arith.constant 0 : i32
    %c0_i32_1 = arith.constant 0 : i32
    return %c0_i32, %c0_i32_0 : i32, i32
  }
}

module attributes {stable_mosaic.version = 11 : i64} {
  func.func @stage_d_kernel(%arg0: i32, %arg1: memref<256x128xf32, #tpu.memory_space<vmem>>, %arg2: memref<256x128xf32, #tpu.memory_space<vmem>>, %arg3: memref<2x128xf32, #tpu.memory_space<vmem>>, %arg4: memref<2x128xf32, #tpu.memory_space<vmem>>, %arg5: memref<1x128xf32, #tpu.memory_space<vmem>>, %arg6: memref<1x128xf32, #tpu.memory_space<vmem>>, %arg7: memref<1x128xf32, #tpu.memory_space<vmem>>, %arg8: memref<1x128xf32, #tpu.memory_space<vmem>>, %arg9: memref<128x128xbf16, #tpu.memory_space<vmem>>, %arg10: memref<256x128xf32, #tpu.memory_space<vmem>>) attributes {dimension_semantics = [#tpu.dimension_semantics<parallel>], iteration_bounds = array<i64: 2>, scalar_prefetch = 0 : i64, scratch_operands = 0 : i64, tpu.core_type = #tpu.core_type<tc>, window_params = [{transform_indices = @transform_0, window_bounds = array<i64: 256, 128>}, {transform_indices = @transform_1, window_bounds = array<i64: 256, 128>}, {pipeline_mode = #tpu.pipeline_mode<synchronous>, transform_indices = @transform_2, window_bounds = array<i64: 2, 128>}, {pipeline_mode = #tpu.pipeline_mode<synchronous>, transform_indices = @transform_3, window_bounds = array<i64: 2, 128>}, {pipeline_mode = #tpu.pipeline_mode<synchronous>, transform_indices = @transform_4, window_bounds = array<i64: 1, 128>}, {pipeline_mode = #tpu.pipeline_mode<synchronous>, transform_indices = @transform_5, window_bounds = array<i64: 1, 128>}, {pipeline_mode = #tpu.pipeline_mode<synchronous>, transform_indices = @transform_6, window_bounds = array<i64: 1, 128>}, {pipeline_mode = #tpu.pipeline_mode<synchronous>, transform_indices = @transform_7, window_bounds = array<i64: 1, 128>}, {pipeline_mode = #tpu.pipeline_mode<synchronous>, transform_indices = @transform_8, window_bounds = array<i64: 128, 128>}, {transform_indices = @transform_9, window_bounds = array<i64: 256, 128>}]} {
    %c0 = arith.constant 0 : index
    %c0_0 = arith.constant 0 : index
    %0 = vector.load %arg1[%c0, %c0_0] : memref<256x128xf32, #tpu.memory_space<vmem>>, vector<256x128xf32>
    %c0_1 = arith.constant 0 : index
    %c0_2 = arith.constant 0 : index
    %1 = vector.load %arg3[%c0_1, %c0_2] : memref<2x128xf32, #tpu.memory_space<vmem>>, vector<2x128xf32>
    %c0_3 = arith.constant 0 : index
    %c0_4 = arith.constant 0 : index
    %2 = vector.load %arg5[%c0_3, %c0_4] : memref<1x128xf32, #tpu.memory_space<vmem>>, vector<1x128xf32>
    %c0_5 = arith.constant 0 : index
    %c0_6 = arith.constant 0 : index
    %3 = vector.load %arg6[%c0_5, %c0_6] : memref<1x128xf32, #tpu.memory_space<vmem>>, vector<1x128xf32>
    %4 = vector.extract_strided_slice %1 {offsets = [0, 0], sizes = [1, 128], strides = [1, 1]} : vector<2x128xf32> to vector<1x128xf32>
    %cst = arith.constant 0.001953125 : f32
    %5 = vector.broadcast %cst : f32 to vector<1x128xf32>
    %6 = arith.mulf %4, %5 : vector<1x128xf32>
    %7 = vector.extract_strided_slice %1 {offsets = [1, 0], sizes = [1, 128], strides = [1, 1]} : vector<2x128xf32> to vector<1x128xf32>
    %cst_7 = arith.constant 0.001953125 : f32
    %8 = vector.broadcast %cst_7 : f32 to vector<1x128xf32>
    %9 = arith.mulf %7, %8 : vector<1x128xf32>
    %10 = arith.mulf %6, %6 : vector<1x128xf32>
    %11 = arith.subf %9, %10 : vector<1x128xf32>
    %cst_8 = arith.constant 9.99999974E-6 : f32
    %12 = vector.broadcast %cst_8 : f32 to vector<1x128xf32>
    %13 = arith.addf %11, %12 : vector<1x128xf32>
    %14 = math.rsqrt %13 : vector<1x128xf32>
    %15 = arith.mulf %14, %2 : vector<1x128xf32>
    %16 = vector.broadcast %6 : vector<1x128xf32> to vector<256x128xf32>
    %17 = arith.subf %0, %16 : vector<256x128xf32>
    %18 = vector.broadcast %15 : vector<1x128xf32> to vector<256x128xf32>
    %19 = arith.mulf %17, %18 : vector<256x128xf32>
    %20 = vector.broadcast %3 : vector<1x128xf32> to vector<256x128xf32>
    %21 = arith.addf %19, %20 : vector<256x128xf32>
    %cst_9 = arith.constant 0.000000e+00 : f32
    %22 = vector.broadcast %cst_9 : f32 to vector<256x128xf32>
    %23 = arith.cmpf oge, %21, %22 : vector<256x128xf32>
    %cst_10 = arith.constant 0.00999999977 : f32
    %24 = vector.broadcast %cst_10 : f32 to vector<256x128xf32>
    %25 = arith.mulf %24, %21 : vector<256x128xf32>
    %26 = arith.select %23, %21, %25 : vector<256x128xi1>, vector<256x128xf32>
    %27 = arith.truncf %26 : vector<256x128xf32> to vector<256x128xbf16>
    %c0_11 = arith.constant 0 : index
    %c0_12 = arith.constant 0 : index
    %28 = vector.load %arg9[%c0_11, %c0_12] : memref<128x128xbf16, #tpu.memory_space<vmem>>, vector<128x128xbf16>
    %cst_13 = arith.constant dense<0.000000e+00> : vector<256x128xf32>
    %29 = tpu.matmul %27, %28, %cst_13 {dimension_numbers = #tpu.dot_dimension_numbers<[1], [0], [0], [1], [0, 0, 1, 1], [], []>} : vector<256x128xbf16>, vector<128x128xbf16>, vector<256x128xf32> -> vector<256x128xf32>
    %c0_14 = arith.constant 0 : index
    %c0_15 = arith.constant 0 : index
    %30 = vector.load %arg4[%c0_14, %c0_15] : memref<2x128xf32, #tpu.memory_space<vmem>>, vector<2x128xf32>
    %c0_16 = arith.constant 0 : index
    %c0_17 = arith.constant 0 : index
    %31 = vector.load %arg7[%c0_16, %c0_17] : memref<1x128xf32, #tpu.memory_space<vmem>>, vector<1x128xf32>
    %c0_18 = arith.constant 0 : index
    %c0_19 = arith.constant 0 : index
    %32 = vector.load %arg8[%c0_18, %c0_19] : memref<1x128xf32, #tpu.memory_space<vmem>>, vector<1x128xf32>
    %33 = vector.extract_strided_slice %30 {offsets = [0, 0], sizes = [1, 128], strides = [1, 1]} : vector<2x128xf32> to vector<1x128xf32>
    %cst_20 = arith.constant 0.001953125 : f32
    %34 = vector.broadcast %cst_20 : f32 to vector<1x128xf32>
    %35 = arith.mulf %33, %34 : vector<1x128xf32>
    %36 = vector.extract_strided_slice %30 {offsets = [1, 0], sizes = [1, 128], strides = [1, 1]} : vector<2x128xf32> to vector<1x128xf32>
    %cst_21 = arith.constant 0.001953125 : f32
    %37 = vector.broadcast %cst_21 : f32 to vector<1x128xf32>
    %38 = arith.mulf %36, %37 : vector<1x128xf32>
    %39 = arith.mulf %35, %35 : vector<1x128xf32>
    %40 = arith.subf %38, %39 : vector<1x128xf32>
    %cst_22 = arith.constant 9.99999974E-6 : f32
    %41 = vector.broadcast %cst_22 : f32 to vector<1x128xf32>
    %42 = arith.addf %40, %41 : vector<1x128xf32>
    %43 = math.rsqrt %42 : vector<1x128xf32>
    %44 = arith.mulf %43, %31 : vector<1x128xf32>
    %45 = vector.broadcast %35 : vector<1x128xf32> to vector<256x128xf32>
    %46 = arith.subf %29, %45 : vector<256x128xf32>
    %47 = vector.broadcast %44 : vector<1x128xf32> to vector<256x128xf32>
    %48 = arith.mulf %46, %47 : vector<256x128xf32>
    %49 = vector.broadcast %32 : vector<1x128xf32> to vector<256x128xf32>
    %50 = arith.addf %48, %49 : vector<256x128xf32>
    %c0_23 = arith.constant 0 : index
    %c0_24 = arith.constant 0 : index
    %51 = vector.load %arg2[%c0_23, %c0_24] : memref<256x128xf32, #tpu.memory_space<vmem>>, vector<256x128xf32>
    %52 = arith.addf %50, %51 : vector<256x128xf32>
    %cst_25 = arith.constant 0.000000e+00 : f32
    %53 = vector.broadcast %cst_25 : f32 to vector<256x128xf32>
    %54 = arith.cmpf oge, %52, %53 : vector<256x128xf32>
    %cst_26 = arith.constant 0.00999999977 : f32
    %55 = vector.broadcast %cst_26 : f32 to vector<256x128xf32>
    %56 = arith.mulf %55, %52 : vector<256x128xf32>
    %57 = arith.select %54, %52, %56 : vector<256x128xi1>, vector<256x128xf32>
    %c0_27 = arith.constant 0 : index
    %c0_28 = arith.constant 0 : index
    %58 = vector.load %arg10[%c0_27, %c0_28] : memref<256x128xf32, #tpu.memory_space<vmem>>, vector<256x128xf32>
    tpu.vector_store %arg10[%c0_27, %c0_28], %57 {strides = array<i32>} : memref<256x128xf32, #tpu.memory_space<vmem>>, vector<256x128xf32>,
    return
  }
  func.func @transform_0(%arg0: i32) -> (i32, i32) {
    %c0_i32 = arith.constant 0 : i32
    %c0_i32_0 = arith.constant 0 : i32
    return %arg0, %c0_i32 : i32, i32
  }
  func.func @transform_1(%arg0: i32) -> (i32, i32) {
    %c0_i32 = arith.constant 0 : i32
    %c0_i32_0 = arith.constant 0 : i32
    return %arg0, %c0_i32 : i32, i32
  }
  func.func @transform_2(%arg0: i32) -> (i32, i32) {
    %c0_i32 = arith.constant 0 : i32
    %c0_i32_0 = arith.constant 0 : i32
    %c0_i32_1 = arith.constant 0 : i32
    return %c0_i32, %c0_i32_0 : i32, i32
  }
  func.func @transform_3(%arg0: i32) -> (i32, i32) {
    %c0_i32 = arith.constant 0 : i32
    %c0_i32_0 = arith.constant 0 : i32
    %c0_i32_1 = arith.constant 0 : i32
    return %c0_i32, %c0_i32_0 : i32, i32
  }
  func.func @transform_4(%arg0: i32) -> (i32, i32) {
    %c0_i32 = arith.constant 0 : i32
    %c0_i32_0 = arith.constant 0 : i32
    %c0_i32_1 = arith.constant 0 : i32
    return %c0_i32, %c0_i32_0 : i32, i32
  }
  func.func @transform_5(%arg0: i32) -> (i32, i32) {
    %c0_i32 = arith.constant 0 : i32
    %c0_i32_0 = arith.constant 0 : i32
    %c0_i32_1 = arith.constant 0 : i32
    return %c0_i32, %c0_i32_0 : i32, i32
  }
  func.func @transform_6(%arg0: i32) -> (i32, i32) {
    %c0_i32 = arith.constant 0 : i32
    %c0_i32_0 = arith.constant 0 : i32
    %c0_i32_1 = arith.constant 0 : i32
    return %c0_i32, %c0_i32_0 : i32, i32
  }
  func.func @transform_7(%arg0: i32) -> (i32, i32) {
    %c0_i32 = arith.constant 0 : i32
    %c0_i32_0 = arith.constant 0 : i32
    %c0_i32_1 = arith.constant 0 : i32
    return %c0_i32, %c0_i32_0 : i32, i32
  }
  func.func @transform_8(%arg0: i32) -> (i32, i32) {
    %c0_i32 = arith.constant 0 : i32
    %c0_i32_0 = arith.constant 0 : i32
    %c0_i32_1 = arith.constant 0 : i32
    return %c0_i32, %c0_i32_0 : i32, i32
  }
  func.func @transform_9(%arg0: i32) -> (i32, i32) {
    %c0_i32 = arith.constant 0 : i32
    %c0_i32_0 = arith.constant 0 : i32
    return %arg0, %c0_i32 : i32, i32
  }
}

</mosaic_0001>

<llo_original>
// kernel: block_forward.4
$region0: #{block_forward.4}
  #allocation0 [shape = 'u32[]', space=smem, size = 0x4, offset = 0x4, fixed_abs, tag = 'smem constant byte address 0x4 - core index']
  #allocation1 [shape = 'u32[144,128]{1,0:T(1,128)}', space=vmem, size = 0x12000, scoped, tag = 'internal scratch']
  %s0 = inlined_call_operand.vmem [shape: f32[512,128], index: 0, kind: input, shape index: {}]
  %s1 = inlined_call_operand.vmem [shape: bf16[128,128], index: 1, kind: input, shape index: {}]
  %s2 = inlined_call_operand.vmem [shape: f32[1,128], index: 2, kind: input, shape index: {}]
  %s3 = inlined_call_operand.vmem [shape: f32[512,128], index: 3, kind: output, shape index: {0}]
  %s4 = inlined_call_operand.vmem [shape: f32[2,128], index: 4, kind: output, shape index: {1}]
  %5 = xla_tuple %s3, %s4
  %s6 = sld [smem:[#allocation0]]
  $region57: #{block_forward.4} parent=0
    _
  %s8 = ssub.s32 1, %s6
  %s9 = scalar_select 0, %s8, %s6
  loop: start=0, step=1, limit=4
  $region2: #{block_forward.4} parent=0 // loop_pre_header
    _
  $region3: #{block_forward.4} parent=0 // loop_header
    %s11 = sphi 0, %s15
    %p12 = scmp.ge.s32.totalorder %s11, 4
    %s21 = sphi 0, %s23
    %s24 = sphi 0, %s21
    %s25 = sphi 0, %s24
    %s41 = sphi 0, %s25
    %s45 = sphi 0, %s45
    %s47 = sphi 0, %s45
    %s48 = sphi 0, %s47
    %s62 = sphi 0, %s48
    %s66 = sphi 0, %s66
    %s68 = sphi 0, %s66
    %s69 = sphi 0, %s68
    %s83 = sphi 0, %s69
    %s89 = sphi 0, %s91
    %s92 = sphi 0, %s89
    %s93 = sphi 0, %s92
    %s109 = sphi 0, %s93
    %s113 = sphi 0, %s113
    %s115 = sphi 0, %s113
    %s116 = sphi 0, %s115
    %s130 = sphi 0, %s116
  $region4: #{block_forward.4} parent=0 // loop_header_branch
    %14 = sbr.rel (%p12) target = $region8
  $region5: #{block_forward.4} parent=0 // loop_body
    %s16 = ssub.s32 %s11, 1
    %s17 = ssub.s32 %s11, 2
    %s18 = sadd.s32 %s11, 1
    %s19 = ssub.s32 %s11, %s18
    %p20 = scmp.eq.s32.totalorder %s19, 0
    %s22 = sadd.s32 %s21, 1
    %s23 = scalar_select %p20, %s21, %s22
    %p26 = pneg %p20
    %p27 = scmp.eq.s32.totalorder %s11, 1
    %p28 = por %p26, %p27
    %p29 = scmp.ne.s32.totalorder %s21, %s24
    %p30 = scmp.eq.s32.totalorder %s11, 0
    %p31 = por %p29, %p30
    %p32 = scmp.ne.s32.totalorder %s21, %s24
    %p33 = scmp.eq.s32.totalorder %s16, 1
    %p34 = por %p32, %p33
    %p35 = scmp.ne.s32.totalorder %s24, %s25
    %p36 = scmp.eq.s32.totalorder %s16, 0
    %p37 = por %p35, %p36
    %p38 = scmp.ne.s32.totalorder %s24, %s25
    %p39 = scmp.eq.s32.totalorder %s17, 1
    %p40 = por %p38, %p39
    %p42 = scmp.ne.s32.totalorder %s25, %s41
    %p43 = scmp.eq.s32.totalorder %s17, 0
    %p44 = por %p42, %p43
    %s46 = sadd.s32 %s45, 1
    %p49 = scmp.eq.s32.totalorder %s11, 1
    %p50 = scmp.ne.s32.totalorder %s45, %s47
    %p51 = scmp.eq.s32.totalorder %s11, 0
    %p52 = por %p50, %p51
    %p53 = scmp.ne.s32.totalorder %s45, %s47
    %p54 = scmp.eq.s32.totalorder %s16, 1
    %p55 = por %p53, %p54
    %p56 = scmp.ne.s32.totalorder %s47, %s48
    %p57 = scmp.eq.s32.totalorder %s16, 0
    %p58 = por %p56, %p57
    %p59 = scmp.ne.s32.totalorder %s47, %s48
    %p60 = scmp.eq.s32.totalorder %s17, 1
    %p61 = por %p59, %p60
    %p63 = scmp.ne.s32.totalorder %s48, %s62
    %p64 = scmp.eq.s32.totalorder %s17, 0
    %p65 = por %p63, %p64
    %s67 = sadd.s32 %s66, 1
    %p70 = scmp.eq.s32.totalorder %s11, 1
    %p71 = scmp.ne.s32.totalorder %s66, %s68
    %p72 = scmp.eq.s32.totalorder %s11, 0
    %p73 = por %p71, %p72
    %p74 = scmp.ne.s32.totalorder %s66, %s68
    %p75 = scmp.eq.s32.totalorder %s16, 1
    %p76 = por %p74, %p75
    %p77 = scmp.ne.s32.totalorder %s68, %s69
    %p78 = scmp.eq.s32.totalorder %s16, 0
    %p79 = por %p77, %p78
    %p80 = scmp.ne.s32.totalorder %s68, %s69
    %p81 = scmp.eq.s32.totalorder %s17, 1
    %p82 = por %p80, %p81
    %p84 = scmp.ne.s32.totalorder %s69, %s83
    %p85 = scmp.eq.s32.totalorder %s17, 0
    %p86 = por %p84, %p85
    %s87 = ssub.s32 %s11, %s18
    %p88 = scmp.eq.s32.totalorder %s87, 0
    %s90 = sadd.s32 %s89, 1
    %s91 = scalar_select %p88, %s89, %s90
    %p94 = pneg %p88
    %p95 = scmp.eq.s32.totalorder %s11, 1
    %p96 = por %p94, %p95
    %p97 = scmp.ne.s32.totalorder %s89, %s92
    %p98 = scmp.eq.s32.totalorder %s11, 0
    %p99 = por %p97, %p98
    %p100 = scmp.ne.s32.totalorder %s89, %s92
    %p101 = scmp.eq.s32.totalorder %s16, 1
    %p102 = por %p100, %p101
    %p103 = scmp.ne.s32.totalorder %s92, %s93
    %p104 = scmp.eq.s32.totalorder %s16, 0
    %p105 = por %p103, %p104
    %p106 = scmp.ne.s32.totalorder %s92, %s93
    %p107 = scmp.eq.s32.totalorder %s17, 1
    %p108 = por %p106, %p107
    %p110 = scmp.ne.s32.totalorder %s93, %s109
    %p111 = scmp.eq.s32.totalorder %s17, 0
    %p112 = por %p110, %p111
    %s114 = sadd.s32 %s113, 1
    %p117 = scmp.eq.s32.totalorder %s11, 1
    %p118 = scmp.ne.s32.totalorder %s113, %s115
    %p119 = scmp.eq.s32.totalorder %s11, 0
    %p120 = por %p118, %p119
    %p121 = scmp.ne.s32.totalorder %s113, %s115
    %p122 = scmp.eq.s32.totalorder %s16, 1
    %p123 = por %p121, %p122
    %p124 = scmp.ne.s32.totalorder %s115, %s116
    %p125 = scmp.eq.s32.totalorder %s16, 0
    %p126 = por %p124, %p125
    %p127 = scmp.ne.s32.totalorder %s115, %s116
    %p128 = scmp.eq.s32.totalorder %s17, 1
    %p129 = por %p127, %p128
    %p131 = scmp.ne.s32.totalorder %s116, %s130
    %p132 = scmp.eq.s32.totalorder %s17, 0
    %p133 = por %p131, %p132
    %p134 = scmp.le.s32.totalorder 1, %s11
    %p135 = scmp.lt.s32.totalorder %s11, 3
    %p136 = pnand %p134, %p135
    %p137 = pneg %p136
    // Predicated region
    $region9: #{block_forward.4} parent=5 // pred_check
      _
    $region10: #{block_forward.4} parent=5 // pred_check_branch
      %139 = sbr.rel (%p136) target = $region12
    $region11: #{block_forward.4} parent=5 // pred_region
      %s140 = ssub.s32 %s11, 1
      // Predicated region
      $region13: #{block_forward.4} parent=11 // pred_check
        %p141 = pneg %p58
      $region14: #{block_forward.4} parent=11 // pred_check_branch
        %143 = sbr.rel (%p141) target = $region16
      $region15: #{block_forward.4} parent=11 // pred_region
        _
      $region16: #{block_forward.4} parent=11 // pred_fallthru
        _
      // Predicated region
      $region17: #{block_forward.4} parent=11 // pred_check
        %p144 = pneg %p79
      $region18: #{block_forward.4} parent=11 // pred_check_branch
        %146 = sbr.rel (%p144) target = $region20
      $region19: #{block_forward.4} parent=11 // pred_region
        _
      $region20: #{block_forward.4} parent=11 // pred_fallthru
        _
    $region12: #{block_forward.4} parent=5 // pred_fallthru
      _
    %p147 = scmp.lt.s32.totalorder %s11, 2
    // Predicated region
    $region21: #{block_forward.4} parent=5 // pred_check
      %p148 = pneg %p147
    $region22: #{block_forward.4} parent=5 // pred_check_branch
      %150 = sbr.rel (%p148) target = $region24
    $region23: #{block_forward.4} parent=5 // pred_region
      // Predicated region
      $region25: #{block_forward.4} parent=23 // pred_check
        %p151 = pneg %p31
      $region26: #{block_forward.4} parent=23 // pred_check_branch
        %153 = sbr.rel (%p151) target = $region28
      $region27: #{block_forward.4} parent=23 // pred_region
        %s154 = smul.u32 32, %s11
        %p155 = scmp.lt.s32.totalorder %s154, 63
        %s156 = scalar_select %p155, %s154, 63
        %s157 = smul.addr %s156, 8
        %s158 = scalar_lea.vmem %s0, %s157
        %s159 = smul.u32 32, %s11
      $region28: #{block_forward.4} parent=23 // pred_fallthru
        _
    $region24: #{block_forward.4} parent=5 // pred_fallthru
      _
    %p160 = scmp.le.s32.totalorder 1, %s11
    %p161 = scmp.lt.s32.totalorder %s11, 3
    %p162 = pnand %p160, %p161
    %p163 = pneg %p162
    // Predicated region
    $region29: #{block_forward.4} parent=5 // pred_check
      _
    $region30: #{block_forward.4} parent=5 // pred_check_branch
      %165 = sbr.rel (%p162) target = $region32
    $region31: #{block_forward.4} parent=5 // pred_region
      %s166 = ssub.s32 %s11, 1
      %s167 = smul.u32 32, %s16
      %p168 = scmp.lt.s32.totalorder %s167, 63
      %s169 = scalar_select %p168, %s167, 63
      %s170 = smul.addr %s169, 8
      %s171 = scalar_lea.vmem %s0, %s170
      %p172 = pneg %p37
      %p173 = pneg %p34
      %p174 = pneg %p58
      %p175 = pneg %p55
      %p176 = pneg %p79
      %p177 = pneg %p76
      %p178 = pneg %p105
      %p179 = pneg %p102
      %s180 = smul.u32 32, %s16
      %p181 = scmp.lt.s32.totalorder %s180, 63
      %s182 = scalar_select %p181, %s180, 63
      %s183 = smul.addr %s182, 8
      %s184 = scalar_lea.vmem %s3, %s183
      %p185 = pneg %p126
      %p186 = pneg %p123
      %s187 = smul.u32 32, %s16
      %p188 = scmp.lt.s32.totalorder %s187, 63
      %s189 = scalar_select %p188, %s187, 63
      %s190 = smul.addr %s189, 8
      %s191 = scalar_lea.vmem %s0, %s190
      %s192 = smul.u32 32, %s16
      %s193 = smul.u32 32, %s16
      %p194 = scmp.lt.s32.totalorder %s193, 63
      %s195 = scalar_select %p194, %s193, 63
      %s196 = smul.addr %s195, 8
      %s197 = scalar_lea.vmem %s3, %s196
      %s198 = smul.u32 32, %s16
      %v200 = vld [vmem:[%s191] sm:$0xff]
      %v201 = vld [vmem:[%s191 + $0x8] sm:$0xff]
      %v202 = vld [vmem:[%s191 + $0x10] sm:$0xff]
      %v203 = vld [vmem:[%s191 + $0x18] sm:$0xff]
      %v204 = vld [vmem:[%s191 + $0x20] sm:$0xff]
      %v205 = vld [vmem:[%s191 + $0x28] sm:$0xff]
      %v206 = vld [vmem:[%s191 + $0x30] sm:$0xff]
      %v207 = vld [vmem:[%s191 + $0x38] sm:$0xff]
      %v208 = vld [vmem:[%s191 + $0x40] sm:$0xff]
      %v209 = vld [vmem:[%s191 + $0x48] sm:$0xff]
      %v210 = vld [vmem:[%s191 + $0x50] sm:$0xff]
      %v211 = vld [vmem:[%s191 + $0x58] sm:$0xff]
      %v212 = vld [vmem:[%s191 + $0x60] sm:$0xff]
      %v213 = vld [vmem:[%s191 + $0x68] sm:$0xff]
      %v214 = vld [vmem:[%s191 + $0x70] sm:$0xff]
      %v215 = vld [vmem:[%s191 + $0x78] sm:$0xff]
      %v216 = vld [vmem:[%s191 + $0x80] sm:$0xff]
      %v217 = vld [vmem:[%s191 + $0x88] sm:$0xff]
      %v218 = vld [vmem:[%s191 + $0x90] sm:$0xff]
      %v219 = vld [vmem:[%s191 + $0x98] sm:$0xff]
      %v220 = vld [vmem:[%s191 + $0xa0] sm:$0xff]
      %v221 = vld [vmem:[%s191 + $0xa8] sm:$0xff]
      %v222 = vld [vmem:[%s191 + $0xb0] sm:$0xff]
      %v223 = vld [vmem:[%s191 + $0xb8] sm:$0xff]
      %v224 = vld [vmem:[%s191 + $0xc0] sm:$0xff]
      %v225 = vld [vmem:[%s191 + $0xc8] sm:$0xff]
      %v226 = vld [vmem:[%s191 + $0xd0] sm:$0xff]
      %v227 = vld [vmem:[%s191 + $0xd8] sm:$0xff]
      %v228 = vld [vmem:[%s191 + $0xe0] sm:$0xff]
      %v229 = vld [vmem:[%s191 + $0xe8] sm:$0xff]
      %v230 = vld [vmem:[%s191 + $0xf0] sm:$0xff]
      %v231 = vld [vmem:[%s191 + $0xf8] sm:$0xff]
      %v232 = vpack.c.bf16 %v201, %v200
      %v233 = vpack.c.bf16 %v203, %v202
      %v234 = vpack.c.bf16 %v205, %v204
      %v235 = vpack.c.bf16 %v207, %v206
      %v236 = vpack.c.bf16 %v209, %v208
      %v237 = vpack.c.bf16 %v211, %v210
      %v238 = vpack.c.bf16 %v213, %v212
      %v239 = vpack.c.bf16 %v215, %v214
      %v240 = vpack.c.bf16 %v217, %v216
      %v241 = vpack.c.bf16 %v219, %v218
      %v242 = vpack.c.bf16 %v221, %v220
      %v243 = vpack.c.bf16 %v223, %v222
      %v244 = vpack.c.bf16 %v225, %v224
      %v245 = vpack.c.bf16 %v227, %v226
      %v246 = vpack.c.bf16 %v229, %v228
      %v247 = vpack.c.bf16 %v231, %v230
      %v248 = vld [vmem:[%s1] sm:$0xf]
      %v249 = vld [vmem:[%s1 + $0x4] sm:$0xf]
      %v250 = vld [vmem:[%s1 + $0x8] sm:$0xf]
      %v251 = vld [vmem:[%s1 + $0xc] sm:$0xf]
      %v252 = vld [vmem:[%s1 + $0x10] sm:$0xf]
      %v253 = vld [vmem:[%s1 + $0x14] sm:$0xf]
      %v254 = vld [vmem:[%s1 + $0x18] sm:$0xf]
      %v255 = vld [vmem:[%s1 + $0x1c] sm:$0xf]
      %v256 = vld [vmem:[%s1 + $0x20] sm:$0xf]
      %v257 = vld [vmem:[%s1 + $0x24] sm:$0xf]
      %v258 = vld [vmem:[%s1 + $0x28] sm:$0xf]
      %v259 = vld [vmem:[%s1 + $0x2c] sm:$0xf]
      %v260 = vld [vmem:[%s1 + $0x30] sm:$0xf]
      %v261 = vld [vmem:[%s1 + $0x34] sm:$0xf]
      %v262 = vld [vmem:[%s1 + $0x38] sm:$0xf]
      %v263 = vld [vmem:[%s1 + $0x3c] sm:$0xf]
      %v264 = vld [vmem:[%s2] sm:$0x1]
      %v266 = vlaneseq
      %v267 = vshrl.u32 %v266, 7
      %v268 = vsub.s32 0, %v267
      %v269 = vrot.slane %v264, %v268
      %v287 = vunpack.c.l.b16 %v248
      %v288 = vunpack.c.l.b16 %v249
      %v289 = vunpack.c.l.b16 %v250
      %v290 = vunpack.c.l.b16 %v251
      %v291 = vunpack.c.l.b16 %v252
      %v292 = vunpack.c.l.b16 %v253
      %v293 = vunpack.c.l.b16 %v254
      %v294 = vunpack.c.l.b16 %v255
      %v295 = vunpack.c.l.b16 %v256
      %v296 = vunpack.c.l.b16 %v257
      %v297 = vunpack.c.l.b16 %v258
      %v298 = vunpack.c.l.b16 %v259
      %v299 = vunpack.c.l.b16 %v260
      %v300 = vunpack.c.l.b16 %v261
      %v301 = vunpack.c.l.b16 %v262
      %v302 = vunpack.c.l.b16 %v263
      %v303 = vpack.c.b16 %v288, %v287
      %v304 = vpack.c.b16 %v290, %v289
      %v305 = vpack.c.b16 %v292, %v291
      %v306 = vpack.c.b16 %v294, %v293
      %v307 = vpack.c.b16 %v296, %v295
      %v308 = vpack.c.b16 %v298, %v297
      %v309 = vpack.c.b16 %v300, %v299
      %v310 = vpack.c.b16 %v302, %v301
      %319 = vmatprep.subr.bf16.mxu0 0
      %320 = vmatpush1.bf16.msra.mxu0 %v303
      %321 = vmatprep.subr.bf16.mxu0 0
      %322 = vmatpush1.bf16.msra.mxu0 %v304
      %323 = vmatprep.subr.bf16.mxu0 0
      %324 = vmatpush1.bf16.msra.mxu0 %v305
      %325 = vmatprep.subr.bf16.mxu0 0
      %326 = vmatpush1.bf16.msra.mxu0 %v306
      %327 = vmatprep.subr.bf16.mxu0 0
      %328 = vmatpush1.bf16.msra.mxu0 %v307
      %329 = vmatprep.subr.bf16.mxu0 0
      %330 = vmatpush1.bf16.msra.mxu0 %v308
      %331 = vmatprep.subr.bf16.mxu0 0
      %332 = vmatpush1.bf16.msra.mxu0 %v309
      %333 = vmatprep.subr.bf16.mxu0 0
      %334 = vmatpush1.bf16.msra.mxu0 %v310
      %335 = vmatprep.subr.bf16.mxu0 0
      %336 = vmatpush1.bf16.msra.mxu0 0
      %337 = vmatprep.subr.bf16.mxu0 0
      %338 = vmatpush1.bf16.msra.mxu0 0
      %339 = vmatprep.subr.bf16.mxu0 0
      %340 = vmatpush1.bf16.msra.mxu0 0
      %341 = vmatprep.subr.bf16.mxu0 0
      %342 = vmatpush1.bf16.msra.mxu0 0
      %343 = vmatprep.subr.bf16.mxu0 0
      %344 = vmatpush1.bf16.msra.mxu0 0
      %345 = vmatprep.subr.bf16.mxu0 0
      %346 = vmatpush1.bf16.msra.mxu0 0
      %347 = vmatprep.subr.bf16.mxu0 0
      %348 = vmatpush1.bf16.msra.mxu0 0
      %349 = vmatprep.subr.bf16.mxu0 0
      %350 = vmatpush1.bf16.msra.mxu0 0
      %351 = vmatprep.mubr.bf16.mxu0 0
      %352 = vmatmul.mubr.bf16.gmra.mrb[0].mxu0 %v232
      %v353 = vpop.f32.mrb[0].mxu0
      %v354 = vadd.f32 %v269, %v353
      %v355 = vpop.f32.mrb[0].mxu0
      %v356 = vpop.f32.mrb[0].mxu0
      %v357 = vadd.f32 %v269, %v356
      %v358 = vpop.f32.mrb[0].mxu0
      %359 = vmatprep.mubr.bf16.mxu0 0
      %360 = vmatmul.mubr.bf16.gmra.mrb[0].mxu0 %v233
      %v361 = vpop.f32.mrb[0].mxu0
      %v362 = vadd.f32 %v269, %v361
      %v363 = vpop.f32.mrb[0].mxu0
      %v364 = vpop.f32.mrb[0].mxu0
      %v365 = vadd.f32 %v269, %v364
      %v366 = vpop.f32.mrb[0].mxu0
      %367 = vmatprep.mubr.bf16.mxu0 0
      %368 = vmatmul.mubr.bf16.gmra.mrb[0].mxu0 %v234
      %v369 = vpop.f32.mrb[0].mxu0
      %v370 = vadd.f32 %v269, %v369
      %v371 = vpop.f32.mrb[0].mxu0
      %v372 = vpop.f32.mrb[0].mxu0
      %v373 = vadd.f32 %v269, %v372
      %v374 = vpop.f32.mrb[0].mxu0
      %375 = vmatprep.mubr.bf16.mxu0 0
      %376 = vmatmul.mubr.bf16.gmra.mrb[0].mxu0 %v235
      %v377 = vpop.f32.mrb[0].mxu0
      %v378 = vadd.f32 %v269, %v377
      %v379 = vpop.f32.mrb[0].mxu0
      %v380 = vpop.f32.mrb[0].mxu0
      %v381 = vadd.f32 %v269, %v380
      %v382 = vpop.f32.mrb[0].mxu0
      %383 = vmatprep.mubr.bf16.mxu0 0
      %384 = vmatmul.mubr.bf16.gmra.mrb[0].mxu0 %v236
      %v385 = vpop.f32.mrb[0].mxu0
      %v386 = vadd.f32 %v269, %v385
      %v387 = vpop.f32.mrb[0].mxu0
      %v388 = vpop.f32.mrb[0].mxu0
      %v389 = vadd.f32 %v269, %v388
      %v390 = vpop.f32.mrb[0].mxu0
      %391 = vmatprep.mubr.bf16.mxu0 0
      %392 = vmatmul.mubr.bf16.gmra.mrb[0].mxu0 %v237
      %v393 = vpop.f32.mrb[0].mxu0
      %v394 = vadd.f32 %v269, %v393
      %v395 = vpop.f32.mrb[0].mxu0
      %v396 = vpop.f32.mrb[0].mxu0
      %v397 = vadd.f32 %v269, %v396
      %v398 = vpop.f32.mrb[0].mxu0
      %399 = vmatprep.mubr.bf16.mxu0 0
      %400 = vmatmul.mubr.bf16.gmra.mrb[0].mxu0 %v238
      %v401 = vpop.f32.mrb[0].mxu0
      %v402 = vadd.f32 %v269, %v401
      %v403 = vpop.f32.mrb[0].mxu0
      %v404 = vpop.f32.mrb[0].mxu0
      %v405 = vadd.f32 %v269, %v404
      %v406 = vpop.f32.mrb[0].mxu0
      %407 = vmatprep.mubr.bf16.mxu0 0
      %408 = vmatmul.mubr.bf16.gmra.mrb[0].mxu0 %v239
      %v409 = vpop.f32.mrb[0].mxu0
      %v410 = vadd.f32 %v269, %v409
      %v411 = vpop.f32.mrb[0].mxu0
      %v412 = vpop.f32.mrb[0].mxu0
      %v413 = vadd.f32 %v269, %v412
      %v414 = vpop.f32.mrb[0].mxu0
      %415 = vmatprep.mubr.bf16.mxu0 0
      %416 = vmatmul.mubr.bf16.gmra.mrb[0].mxu0 %v240
      %v417 = vpop.f32.mrb[0].mxu0
      %v418 = vadd.f32 %v269, %v417
      %v419 = vpop.f32.mrb[0].mxu0
      %v420 = vpop.f32.mrb[0].mxu0
      %v421 = vadd.f32 %v269, %v420
      %v422 = vpop.f32.mrb[0].mxu0
      %423 = vmatprep.mubr.bf16.mxu0 0
      %424 = vmatmul.mubr.bf16.gmra.mrb[0].mxu0 %v241
      %v425 = vpop.f32.mrb[0].mxu0
      %v426 = vadd.f32 %v269, %v425
      %v427 = vpop.f32.mrb[0].mxu0
      %v428 = vpop.f32.mrb[0].mxu0
      %v429 = vadd.f32 %v269, %v428
      %v430 = vpop.f32.mrb[0].mxu0
      %431 = vmatprep.mubr.bf16.mxu0 0
      %432 = vmatmul.mubr.bf16.gmra.mrb[0].mxu0 %v242
      %v433 = vpop.f32.mrb[0].mxu0
      %v434 = vadd.f32 %v269, %v433
      %v435 = vpop.f32.mrb[0].mxu0
      %v436 = vpop.f32.mrb[0].mxu0
      %v437 = vadd.f32 %v269, %v436
      %v438 = vpop.f32.mrb[0].mxu0
      %439 = vmatprep.mubr.bf16.mxu0 0
      %440 = vmatmul.mubr.bf16.gmra.mrb[0].mxu0 %v243
      %v441 = vpop.f32.mrb[0].mxu0
      %v442 = vadd.f32 %v269, %v441
      %v443 = vpop.f32.mrb[0].mxu0
      %v444 = vpop.f32.mrb[0].mxu0
      %v445 = vadd.f32 %v269, %v444
      %v446 = vpop.f32.mrb[0].mxu0
      %447 = vmatprep.mubr.bf16.mxu0 0
      %448 = vmatmul.mubr.bf16.gmra.mrb[0].mxu0 %v244
      %v449 = vpop.f32.mrb[0].mxu0
      %v450 = vadd.f32 %v269, %v449
      %v451 = vpop.f32.mrb[0].mxu0
      %v452 = vpop.f32.mrb[0].mxu0
      %v453 = vadd.f32 %v269, %v452
      %v454 = vpop.f32.mrb[0].mxu0
      %455 = vmatprep.mubr.bf16.mxu0 0
      %456 = vmatmul.mubr.bf16.gmra.mrb[0].mxu0 %v245
      %v457 = vpop.f32.mrb[0].mxu0
      %v458 = vadd.f32 %v269, %v457
      %v459 = vpop.f32.mrb[0].mxu0
      %v460 = vpop.f32.mrb[0].mxu0
      %v461 = vadd.f32 %v269, %v460
      %v462 = vpop.f32.mrb[0].mxu0
      %463 = vmatprep.mubr.bf16.mxu0 0
      %464 = vmatmul.mubr.bf16.gmra.mrb[0].mxu0 %v246
      %v465 = vpop.f32.mrb[0].mxu0
      %v466 = vadd.f32 %v269, %v465
      %v467 = vpop.f32.mrb[0].mxu0
      %v468 = vpop.f32.mrb[0].mxu0
      %v469 = vadd.f32 %v269, %v468
      %v470 = vpop.f32.mrb[0].mxu0
      %471 = vmatprep.mubr.bf16.mxu0 0
      %472 = vmatmul.mubr.bf16.gmra.mrb[0].mxu0 %v247
      %v473 = vpop.f32.mrb[0].mxu0
      %v474 = vadd.f32 %v269, %v473
      %v475 = vpop.f32.mrb[0].mxu0
      %v476 = vpop.f32.mrb[0].mxu0
      %v477 = vadd.f32 %v269, %v476
      %v478 = vpop.f32.mrb[0].mxu0
      %479 = vdwg.mxu0
      %480 = vst [vmem:[%s197] sm:$0xff] %v354
      %481 = vst [vmem:[%s197 + $0x8] sm:$0xff] %v357
      %482 = vst [vmem:[%s197 + $0x10] sm:$0xff] %v362
      %483 = vst [vmem:[%s197 + $0x18] sm:$0xff] %v365
      %484 = vst [vmem:[%s197 + $0x20] sm:$0xff] %v370
      %485 = vst [vmem:[%s197 + $0x28] sm:$0xff] %v373
      %486 = vst [vmem:[%s197 + $0x30] sm:$0xff] %v378
      %487 = vst [vmem:[%s197 + $0x38] sm:$0xff] %v381
      %488 = vst [vmem:[%s197 + $0x40] sm:$0xff] %v386
      %489 = vst [vmem:[%s197 + $0x48] sm:$0xff] %v389
      %490 = vst [vmem:[%s197 + $0x50] sm:$0xff] %v394
      %491 = vst [vmem:[%s197 + $0x58] sm:$0xff] %v397
      %492 = vst [vmem:[%s197 + $0x60] sm:$0xff] %v402
      %493 = vst [vmem:[%s197 + $0x68] sm:$0xff] %v405
      %494 = vst [vmem:[%s197 + $0x70] sm:$0xff] %v410
      %495 = vst [vmem:[%s197 + $0x78] sm:$0xff] %v413
      %496 = vst [vmem:[%s197 + $0x80] sm:$0xff] %v418
      %497 = vst [vmem:[%s197 + $0x88] sm:$0xff] %v421
      %498 = vst [vmem:[%s197 + $0x90] sm:$0xff] %v426
      %499 = vst [vmem:[%s197 + $0x98] sm:$0xff] %v429
      %500 = vst [vmem:[%s197 + $0xa0] sm:$0xff] %v434
      %501 = vst [vmem:[%s197 + $0xa8] sm:$0xff] %v437
      %502 = vst [vmem:[%s197 + $0xb0] sm:$0xff] %v442
      %503 = vst [vmem:[%s197 + $0xb8] sm:$0xff] %v445
      %504 = vst [vmem:[%s197 + $0xc0] sm:$0xff] %v450
      %505 = vst [vmem:[%s197 + $0xc8] sm:$0xff] %v453
      %506 = vst [vmem:[%s197 + $0xd0] sm:$0xff] %v458
      %507 = vst [vmem:[%s197 + $0xd8] sm:$0xff] %v461
      %508 = vst [vmem:[%s197 + $0xe0] sm:$0xff] %v466
      %509 = vst [vmem:[%s197 + $0xe8] sm:$0xff] %v469
      %510 = vst [vmem:[%s197 + $0xf0] sm:$0xff] %v474
      %511 = vst [vmem:[%s197 + $0xf8] sm:$0xff] %v477
      %p512 = scmp.eq.s32.totalorder %s16, 0
      // Predicated region
      $region33: #{block_forward.4} parent=31 // pred_check
        %p513 = pneg %p512
      $region34: #{block_forward.4} parent=31 // pred_check_branch
        %515 = sbr.rel (%p513) target = $region36
      $region35: #{block_forward.4} parent=31 // pred_region
        %516 = vst [vmem:[%s4] sm:$0x3] 0.0
      $region36: #{block_forward.4} parent=31 // pred_fallthru
        _
      %v517 = vld [vmem:[%s4] sm:$0x1]
      %v518 = vadd.f32 %v354, %v357
      %v519 = vadd.f32 %v518, %v362
      %v520 = vadd.f32 %v519, %v365
      %v521 = vadd.f32 %v520, %v370
      %v522 = vadd.f32 %v521, %v373
      %v523 = vadd.f32 %v522, %v378
      %v524 = vadd.f32 %v523, %v381
      %v525 = vadd.f32 %v524, %v386
      %v526 = vadd.f32 %v525, %v389
      %v527 = vadd.f32 %v526, %v394
      %v528 = vadd.f32 %v527, %v397
      %v529 = vadd.f32 %v528, %v402
      %v530 = vadd.f32 %v529, %v405
      %v531 = vadd.f32 %v530, %v410
      %v532 = vadd.f32 %v531, %v413
      %v533 = vadd.f32 %v532, %v418
      %v534 = vadd.f32 %v533, %v421
      %v535 = vadd.f32 %v534, %v426
      %v536 = vadd.f32 %v535, %v429
      %v537 = vadd.f32 %v536, %v434
      %v538 = vadd.f32 %v537, %v437
      %v539 = vadd.f32 %v538, %v442
      %v540 = vadd.f32 %v539, %v445
      %v541 = vadd.f32 %v540, %v450
      %v542 = vadd.f32 %v541, %v453
      %v543 = vadd.f32 %v542, %v458
      %v544 = vadd.f32 %v543, %v461
      %v545 = vadd.f32 %v544, %v466
      %v546 = vadd.f32 %v545, %v469
      %v547 = vadd.f32 %v546, %v474
      %v548 = vadd.f32 %v547, %v477
      %v549 = vrot.slane %v548, 4
      %v550 = vadd.f32 %v548, %v549
      %v551 = vrot.slane %v550, 2
      %v552 = vadd.f32 %v550, %v551
      %v553 = vrot.slane %v552, 1
      %v554 = vadd.f32 %v552, %v553
      %v555 = vadd.f32 %v517, %v554
      %556 = vst [vmem:[%s4] sm:$0x1] %v555
      %v557 = vld [vmem:[%s4 + $0x1] sm:$0x1]
      %v558 = vmul.f32 %v354, %v354
      %v559 = vmul.f32 %v357, %v357
      %v560 = vmul.f32 %v362, %v362
      %v561 = vmul.f32 %v365, %v365
      %v562 = vmul.f32 %v370, %v370
      %v563 = vmul.f32 %v373, %v373
      %v564 = vmul.f32 %v378, %v378
      %v565 = vmul.f32 %v381, %v381
      %v566 = vmul.f32 %v386, %v386
      %v567 = vmul.f32 %v389, %v389
      %v568 = vmul.f32 %v394, %v394
      %v569 = vmul.f32 %v397, %v397
      %v570 = vmul.f32 %v402, %v402
      %v571 = vmul.f32 %v405, %v405
      %v572 = vmul.f32 %v410, %v410
      %v573 = vmul.f32 %v413, %v413
      %v574 = vmul.f32 %v418, %v418
      %v575 = vmul.f32 %v421, %v421
      %v576 = vmul.f32 %v426, %v426
      %v577 = vmul.f32 %v429, %v429
      %v578 = vmul.f32 %v434, %v434
      %v579 = vmul.f32 %v437, %v437
      %v580 = vmul.f32 %v442, %v442
      %v581 = vmul.f32 %v445, %v445
      %v582 = vmul.f32 %v450, %v450
      %v583 = vmul.f32 %v453, %v453
      %v584 = vmul.f32 %v458, %v458
      %v585 = vmul.f32 %v461, %v461
      %v586 = vmul.f32 %v466, %v466
      %v587 = vmul.f32 %v469, %v469
      %v588 = vmul.f32 %v474, %v474
      %v589 = vmul.f32 %v477, %v477
      %v590 = vadd.f32 %v558, %v559
      %v591 = vadd.f32 %v590, %v560
      %v592 = vadd.f32 %v591, %v561
      %v593 = vadd.f32 %v592, %v562
      %v594 = vadd.f32 %v593, %v563
      %v595 = vadd.f32 %v594, %v564
      %v596 = vadd.f32 %v595, %v565
      %v597 = vadd.f32 %v596, %v566
      %v598 = vadd.f32 %v597, %v567
      %v599 = vadd.f32 %v598, %v568
      %v600 = vadd.f32 %v599, %v569
      %v601 = vadd.f32 %v600, %v570
      %v602 = vadd.f32 %v601, %v571
      %v603 = vadd.f32 %v602, %v572
      %v604 = vadd.f32 %v603, %v573
      %v605 = vadd.f32 %v604, %v574
      %v606 = vadd.f32 %v605, %v575
      %v607 = vadd.f32 %v606, %v576
      %v608 = vadd.f32 %v607, %v577
      %v609 = vadd.f32 %v608, %v578
      %v610 = vadd.f32 %v609, %v579
      %v611 = vadd.f32 %v610, %v580
      %v612 = vadd.f32 %v611, %v581
      %v613 = vadd.f32 %v612, %v582
      %v614 = vadd.f32 %v613, %v583
      %v615 = vadd.f32 %v614, %v584
      %v616 = vadd.f32 %v615, %v585
      %v617 = vadd.f32 %v616, %v586
      %v618 = vadd.f32 %v617, %v587
      %v619 = vadd.f32 %v618, %v588
      %v620 = vadd.f32 %v619, %v589
      %v621 = vrot.slane %v620, 4
      %v622 = vadd.f32 %v620, %v621
      %v623 = vrot.slane %v622, 2
      %v624 = vadd.f32 %v622, %v623
      %v625 = vrot.slane %v624, 1
      %v626 = vadd.f32 %v624, %v625
      %v627 = vadd.f32 %v557, %v626
      %628 = vst [vmem:[%s4 + $0x1] sm:$0x1] %v627
      %s629 = smul.u32 32, %s16
      %p630 = scmp.lt.s32.totalorder %s629, 63
      %s631 = scalar_select %p630, %s629, 63
      %s632 = smul.addr %s631, 8
      %s633 = scalar_lea.vmem %s3, %s632
      // Predicated region
      $region37: #{block_forward.4} parent=31 // pred_check
        %p634 = pneg %p102
      $region38: #{block_forward.4} parent=31 // pred_check_branch
        %636 = sbr.rel (%p634) target = $region40
      $region39: #{block_forward.4} parent=31 // pred_region
        %s637 = smul.u32 32, %s16
      $region40: #{block_forward.4} parent=31 // pred_fallthru
        _
      // Predicated region
      $region41: #{block_forward.4} parent=31 // pred_check
        %p638 = pneg %p123
      $region42: #{block_forward.4} parent=31 // pred_check_branch
        %640 = sbr.rel (%p638) target = $region44
      $region43: #{block_forward.4} parent=31 // pred_region
        _
      $region44: #{block_forward.4} parent=31 // pred_fallthru
        _
      // Predicated region
      $region45: #{block_forward.4} parent=31 // pred_check
        %p641 = pneg %p123
      $region46: #{block_forward.4} parent=31 // pred_check_branch
        %643 = sbr.rel (%p641) target = $region48
      $region47: #{block_forward.4} parent=31 // pred_region
        _
      $region48: #{block_forward.4} parent=31 // pred_fallthru
        _
    $region32: #{block_forward.4} parent=5 // pred_fallthru
      _
    %p644 = scmp.le.s32.totalorder 2, %s11
    // Predicated region
    $region49: #{block_forward.4} parent=5 // pred_check
      %p645 = pneg %p644
    $region50: #{block_forward.4} parent=5 // pred_check_branch
      %647 = sbr.rel (%p645) target = $region52
    $region51: #{block_forward.4} parent=5 // pred_region
      %s648 = ssub.s32 %s11, 2
      // Predicated region
      $region53: #{block_forward.4} parent=51 // pred_check
        %p649 = pneg %p108
      $region54: #{block_forward.4} parent=51 // pred_check_branch
        %651 = sbr.rel (%p649) target = $region56
      $region55: #{block_forward.4} parent=51 // pred_region
        %s652 = smul.u32 32, %s17
        %p653 = scmp.lt.s32.totalorder %s652, 63
        %s654 = scalar_select %p653, %s652, 63
        %s655 = smul.addr %s654, 8
        %s656 = scalar_lea.vmem %s3, %s655
      $region56: #{block_forward.4} parent=51 // pred_fallthru
        _
    $region52: #{block_forward.4} parent=5 // pred_fallthru
      _
  $region6: #{block_forward.4} parent=0 // loop_footer
    %s15 = sadd.s32 1, %s11
  $region7: #{block_forward.4} parent=0 // loop_footer_branch
    %10 = sbr.rel target = $region3
  $region8: #{block_forward.4} parent=0 // loop_exit
    _

// kernel: block_forward.6
$region0: #{block_forward.6}
  #allocation0 [shape = 'u32[]', space=smem, size = 0x4, offset = 0x4, fixed_abs, tag = 'smem constant byte address 0x4 - core index']
  #allocation1 [shape = 'u32[144,128]{1,0:T(1,128)}', space=vmem, size = 0x12000, scoped, tag = 'internal scratch']
  %s0 = inlined_call_operand.vmem [shape: f32[512,128], index: 0, kind: input, shape index: {}]
  %s1 = inlined_call_operand.vmem [shape: f32[2,128], index: 1, kind: input, shape index: {}]
  %s2 = inlined_call_operand.vmem [shape: f32[1,128], index: 2, kind: input, shape index: {}]
  %s3 = inlined_call_operand.vmem [shape: f32[1,128], index: 3, kind: input, shape index: {}]
  %s4 = inlined_call_operand.vmem [shape: bf16[128,128], index: 4, kind: input, shape index: {}]
  %s5 = inlined_call_operand.vmem [shape: f32[2,128], index: 5, kind: output, shape index: {}]
  %s6 = sld [smem:[#allocation0]]
  $region57: #{block_forward.6} parent=0
    _
  %s8 = ssub.s32 1, %s6
  %s9 = scalar_select 0, %s8, %s6
  loop: start=0, step=1, limit=4
  $region2: #{block_forward.6} parent=0 // loop_pre_header
    _
  $region3: #{block_forward.6} parent=0 // loop_header
    %s11 = sphi 0, %s15
    %p12 = scmp.ge.s32.totalorder %s11, 4
    %s21 = sphi 0, %s23
    %s24 = sphi 0, %s21
    %s25 = sphi 0, %s24
    %s41 = sphi 0, %s25
    %s45 = sphi 0, %s45
    %s47 = sphi 0, %s45
    %s48 = sphi 0, %s47
    %s62 = sphi 0, %s48
    %s66 = sphi 0, %s66
    %s68 = sphi 0, %s66
    %s69 = sphi 0, %s68
    %s83 = sphi 0, %s69
    %s87 = sphi 0, %s87
    %s89 = sphi 0, %s87
    %s90 = sphi 0, %s89
    %s104 = sphi 0, %s90
    %s108 = sphi 0, %s108
    %s110 = sphi 0, %s108
    %s111 = sphi 0, %s110
    %s125 = sphi 0, %s111
    %s129 = sphi 0, %s129
    %s131 = sphi 0, %s129
    %s132 = sphi 0, %s131
    %s146 = sphi 0, %s132
  $region4: #{block_forward.6} parent=0 // loop_header_branch
    %14 = sbr.rel (%p12) target = $region8
  $region5: #{block_forward.6} parent=0 // loop_body
    %s16 = ssub.s32 %s11, 1
    %s17 = ssub.s32 %s11, 2
    %s18 = sadd.s32 %s11, 1
    %s19 = ssub.s32 %s11, %s18
    %p20 = scmp.eq.s32.totalorder %s19, 0
    %s22 = sadd.s32 %s21, 1
    %s23 = scalar_select %p20, %s21, %s22
    %p26 = pneg %p20
    %p27 = scmp.eq.s32.totalorder %s11, 1
    %p28 = por %p26, %p27
    %p29 = scmp.ne.s32.totalorder %s21, %s24
    %p30 = scmp.eq.s32.totalorder %s11, 0
    %p31 = por %p29, %p30
    %p32 = scmp.ne.s32.totalorder %s21, %s24
    %p33 = scmp.eq.s32.totalorder %s16, 1
    %p34 = por %p32, %p33
    %p35 = scmp.ne.s32.totalorder %s24, %s25
    %p36 = scmp.eq.s32.totalorder %s16, 0
    %p37 = por %p35, %p36
    %p38 = scmp.ne.s32.totalorder %s24, %s25
    %p39 = scmp.eq.s32.totalorder %s17, 1
    %p40 = por %p38, %p39
    %p42 = scmp.ne.s32.totalorder %s25, %s41
    %p43 = scmp.eq.s32.totalorder %s17, 0
    %p44 = por %p42, %p43
    %s46 = sadd.s32 %s45, 1
    %p49 = scmp.eq.s32.totalorder %s11, 1
    %p50 = scmp.ne.s32.totalorder %s45, %s47
    %p51 = scmp.eq.s32.totalorder %s11, 0
    %p52 = por %p50, %p51
    %p53 = scmp.ne.s32.totalorder %s45, %s47
    %p54 = scmp.eq.s32.totalorder %s16, 1
    %p55 = por %p53, %p54
    %p56 = scmp.ne.s32.totalorder %s47, %s48
    %p57 = scmp.eq.s32.totalorder %s16, 0
    %p58 = por %p56, %p57
    %p59 = scmp.ne.s32.totalorder %s47, %s48
    %p60 = scmp.eq.s32.totalorder %s17, 1
    %p61 = por %p59, %p60
    %p63 = scmp.ne.s32.totalorder %s48, %s62
    %p64 = scmp.eq.s32.totalorder %s17, 0
    %p65 = por %p63, %p64
    %s67 = sadd.s32 %s66, 1
    %p70 = scmp.eq.s32.totalorder %s11, 1
    %p71 = scmp.ne.s32.totalorder %s66, %s68
    %p72 = scmp.eq.s32.totalorder %s11, 0
    %p73 = por %p71, %p72
    %p74 = scmp.ne.s32.totalorder %s66, %s68
    %p75 = scmp.eq.s32.totalorder %s16, 1
    %p76 = por %p74, %p75
    %p77 = scmp.ne.s32.totalorder %s68, %s69
    %p78 = scmp.eq.s32.totalorder %s16, 0
    %p79 = por %p77, %p78
    %p80 = scmp.ne.s32.totalorder %s68, %s69
    %p81 = scmp.eq.s32.totalorder %s17, 1
    %p82 = por %p80, %p81
    %p84 = scmp.ne.s32.totalorder %s69, %s83
    %p85 = scmp.eq.s32.totalorder %s17, 0
    %p86 = por %p84, %p85
    %s88 = sadd.s32 %s87, 1
    %p91 = scmp.eq.s32.totalorder %s11, 1
    %p92 = scmp.ne.s32.totalorder %s87, %s89
    %p93 = scmp.eq.s32.totalorder %s11, 0
    %p94 = por %p92, %p93
    %p95 = scmp.ne.s32.totalorder %s87, %s89
    %p96 = scmp.eq.s32.totalorder %s16, 1
    %p97 = por %p95, %p96
    %p98 = scmp.ne.s32.totalorder %s89, %s90
    %p99 = scmp.eq.s32.totalorder %s16, 0
    %p100 = por %p98, %p99
    %p101 = scmp.ne.s32.totalorder %s89, %s90
    %p102 = scmp.eq.s32.totalorder %s17, 1
    %p103 = por %p101, %p102
    %p105 = scmp.ne.s32.totalorder %s90, %s104
    %p106 = scmp.eq.s32.totalorder %s17, 0
    %p107 = por %p105, %p106
    %s109 = sadd.s32 %s108, 1
    %p112 = scmp.eq.s32.totalorder %s11, 1
    %p113 = scmp.ne.s32.totalorder %s108, %s110
    %p114 = scmp.eq.s32.totalorder %s11, 0
    %p115 = por %p113, %p114
    %p116 = scmp.ne.s32.totalorder %s108, %s110
    %p117 = scmp.eq.s32.totalorder %s16, 1
    %p118 = por %p116, %p117
    %p119 = scmp.ne.s32.totalorder %s110, %s111
    %p120 = scmp.eq.s32.totalorder %s16, 0
    %p121 = por %p119, %p120
    %p122 = scmp.ne.s32.totalorder %s110, %s111
    %p123 = scmp.eq.s32.totalorder %s17, 1
    %p124 = por %p122, %p123
    %p126 = scmp.ne.s32.totalorder %s111, %s125
    %p127 = scmp.eq.s32.totalorder %s17, 0
    %p128 = por %p126, %p127
    %s130 = sadd.s32 %s129, 1
    %p133 = scmp.eq.s32.totalorder %s11, 1
    %p134 = scmp.ne.s32.totalorder %s129, %s131
    %p135 = scmp.eq.s32.totalorder %s11, 0
    %p136 = por %p134, %p135
    %p137 = scmp.ne.s32.totalorder %s129, %s131
    %p138 = scmp.eq.s32.totalorder %s16, 1
    %p139 = por %p137, %p138
    %p140 = scmp.ne.s32.totalorder %s131, %s132
    %p141 = scmp.eq.s32.totalorder %s16, 0
    %p142 = por %p140, %p141
    %p143 = scmp.ne.s32.totalorder %s131, %s132
    %p144 = scmp.eq.s32.totalorder %s17, 1
    %p145 = por %p143, %p144
    %p147 = scmp.ne.s32.totalorder %s132, %s146
    %p148 = scmp.eq.s32.totalorder %s17, 0
    %p149 = por %p147, %p148
    %p150 = scmp.le.s32.totalorder 1, %s11
    %p151 = scmp.lt.s32.totalorder %s11, 3
    %p152 = pnand %p150, %p151
    %p153 = pneg %p152
    // Predicated region
    $region9: #{block_forward.6} parent=5 // pred_check
      _
    $region10: #{block_forward.6} parent=5 // pred_check_branch
      %155 = sbr.rel (%p152) target = $region12
    $region11: #{block_forward.6} parent=5 // pred_region
      %s156 = ssub.s32 %s11, 1
      // Predicated region
      $region13: #{block_forward.6} parent=11 // pred_check
        %p157 = pneg %p58
      $region14: #{block_forward.6} parent=11 // pred_check_branch
        %159 = sbr.rel (%p157) target = $region16
      $region15: #{block_forward.6} parent=11 // pred_region
        _
      $region16: #{block_forward.6} parent=11 // pred_fallthru
        _
      // Predicated region
      $region17: #{block_forward.6} parent=11 // pred_check
        %p160 = pneg %p79
      $region18: #{block_forward.6} parent=11 // pred_check_branch
        %162 = sbr.rel (%p160) target = $region20
      $region19: #{block_forward.6} parent=11 // pred_region
        _
      $region20: #{block_forward.6} parent=11 // pred_fallthru
        _
      // Predicated region
      $region21: #{block_forward.6} parent=11 // pred_check
        %p163 = pneg %p100
      $region22: #{block_forward.6} parent=11 // pred_check_branch
        %165 = sbr.rel (%p163) target = $region24
      $region23: #{block_forward.6} parent=11 // pred_region
        _
      $region24: #{block_forward.6} parent=11 // pred_fallthru
        _
      // Predicated region
      $region25: #{block_forward.6} parent=11 // pred_check
        %p166 = pneg %p121
      $region26: #{block_forward.6} parent=11 // pred_check_branch
        %168 = sbr.rel (%p166) target = $region28
      $region27: #{block_forward.6} parent=11 // pred_region
        _
      $region28: #{block_forward.6} parent=11 // pred_fallthru
        _
    $region12: #{block_forward.6} parent=5 // pred_fallthru
      _
    %p169 = scmp.lt.s32.totalorder %s11, 2
    // Predicated region
    $region29: #{block_forward.6} parent=5 // pred_check
      %p170 = pneg %p169
    $region30: #{block_forward.6} parent=5 // pred_check_branch
      %172 = sbr.rel (%p170) target = $region32
    $region31: #{block_forward.6} parent=5 // pred_region
      // Predicated region
      $region33: #{block_forward.6} parent=31 // pred_check
        %p173 = pneg %p31
      $region34: #{block_forward.6} parent=31 // pred_check_branch
        %175 = sbr.rel (%p173) target = $region36
      $region35: #{block_forward.6} parent=31 // pred_region
        %s176 = smul.u32 32, %s11
        %p177 = scmp.lt.s32.totalorder %s176, 63
        %s178 = scalar_select %p177, %s176, 63
        %s179 = smul.addr %s178, 8
        %s180 = scalar_lea.vmem %s0, %s179
        %s181 = smul.u32 32, %s11
      $region36: #{block_forward.6} parent=31 // pred_fallthru
        _
    $region32: #{block_forward.6} parent=5 // pred_fallthru
      _
    %p182 = scmp.le.s32.totalorder 1, %s11
    %p183 = scmp.lt.s32.totalorder %s11, 3
    %p184 = pnand %p182, %p183
    %p185 = pneg %p184
    // Predicated region
    $region37: #{block_forward.6} parent=5 // pred_check
      _
    $region38: #{block_forward.6} parent=5 // pred_check_branch
      %187 = sbr.rel (%p184) target = $region40
    $region39: #{block_forward.6} parent=5 // pred_region
      %s188 = ssub.s32 %s11, 1
      %s189 = smul.u32 32, %s16
      %p190 = scmp.lt.s32.totalorder %s189, 63
      %s191 = scalar_select %p190, %s189, 63
      %s192 = smul.addr %s191, 8
      %s193 = scalar_lea.vmem %s0, %s192
      %p194 = pneg %p37
      %p195 = pneg %p34
      %p196 = pneg %p58
      %p197 = pneg %p55
      %p198 = pneg %p79
      %p199 = pneg %p76
      %p200 = pneg %p100
      %p201 = pneg %p97
      %p202 = pneg %p121
      %p203 = pneg %p118
      %p204 = pneg %p142
      %p205 = pneg %p139
      %s206 = smul.u32 32, %s16
      %p207 = scmp.lt.s32.totalorder %s206, 63
      %s208 = scalar_select %p207, %s206, 63
      %s209 = smul.addr %s208, 8
      %s210 = scalar_lea.vmem %s0, %s209
      %s211 = smul.u32 32, %s16
      %v213 = vld [vmem:[%s210] sm:$0xff]
      %v214 = vld [vmem:[%s210 + $0x8] sm:$0xff]
      %v215 = vld [vmem:[%s210 + $0x10] sm:$0xff]
      %v216 = vld [vmem:[%s210 + $0x18] sm:$0xff]
      %v217 = vld [vmem:[%s210 + $0x20] sm:$0xff]
      %v218 = vld [vmem:[%s210 + $0x28] sm:$0xff]
      %v219 = vld [vmem:[%s210 + $0x30] sm:$0xff]
      %v220 = vld [vmem:[%s210 + $0x38] sm:$0xff]
      %v221 = vld [vmem:[%s210 + $0x40] sm:$0xff]
      %v222 = vld [vmem:[%s210 + $0x48] sm:$0xff]
      %v223 = vld [vmem:[%s210 + $0x50] sm:$0xff]
      %v224 = vld [vmem:[%s210 + $0x58] sm:$0xff]
      %v225 = vld [vmem:[%s210 + $0x60] sm:$0xff]
      %v226 = vld [vmem:[%s210 + $0x68] sm:$0xff]
      %v227 = vld [vmem:[%s210 + $0x70] sm:$0xff]
      %v228 = vld [vmem:[%s210 + $0x78] sm:$0xff]
      %v229 = vld [vmem:[%s210 + $0x80] sm:$0xff]
      %v230 = vld [vmem:[%s210 + $0x88] sm:$0xff]
      %v231 = vld [vmem:[%s210 + $0x90] sm:$0xff]
      %v232 = vld [vmem:[%s210 + $0x98] sm:$0xff]
      %v233 = vld [vmem:[%s210 + $0xa0] sm:$0xff]
      %v234 = vld [vmem:[%s210 + $0xa8] sm:$0xff]
      %v235 = vld [vmem:[%s210 + $0xb0] sm:$0xff]
      %v236 = vld [vmem:[%s210 + $0xb8] sm:$0xff]
      %v237 = vld [vmem:[%s210 + $0xc0] sm:$0xff]
      %v238 = vld [vmem:[%s210 + $0xc8] sm:$0xff]
      %v239 = vld [vmem:[%s210 + $0xd0] sm:$0xff]
      %v240 = vld [vmem:[%s210 + $0xd8] sm:$0xff]
      %v241 = vld [vmem:[%s210 + $0xe0] sm:$0xff]
      %v242 = vld [vmem:[%s210 + $0xe8] sm:$0xff]
      %v243 = vld [vmem:[%s210 + $0xf0] sm:$0xff]
      %v244 = vld [vmem:[%s210 + $0xf8] sm:$0xff]
      %v245 = vld [vmem:[%s1] sm:$0x3]
      %v246 = vld [vmem:[%s2] sm:$0x1]
      %v247 = vld [vmem:[%s3] sm:$0x1]
      %v248 = vmul.f32 %v245, 0.001953125
      %v249 = vmul.f32 %v248, %v248
      %v251 = vrot.slane %v249, 7
      %v253 = vsub.f32 %v248, %v251
      %v254 = vadd.f32 %v253, 1e-05
      %v255 = vrsqrt.pop %v254
      %v257 = vlaneseq
      %v258 = vshrl.u32 %v257, 7
      %v259 = vsub.s32 0, %v258
      %v260 = vrot.slane %v246, %v259
      %v262 = vmul.f32 %v255, %v260
      %v263 = vlaneseq
      %v264 = vshrl.u32 %v263, 7
      %v265 = vsub.s32 0, %v264
      %v266 = vrot.slane %v248, %v265
      %v267 = vsub.f32 %v213, %v266
      %v268 = vsub.f32 %v214, %v266
      %v269 = vsub.f32 %v215, %v266
      %v270 = vsub.f32 %v216, %v266
      %v271 = vsub.f32 %v217, %v266
      %v272 = vsub.f32 %v218, %v266
      %v273 = vsub.f32 %v219, %v266
      %v274 = vsub.f32 %v220, %v266
      %v275 = vsub.f32 %v221, %v266
      %v276 = vsub.f32 %v222, %v266
      %v277 = vsub.f32 %v223, %v266
      %v278 = vsub.f32 %v224, %v266
      %v279 = vsub.f32 %v225, %v266
      %v280 = vsub.f32 %v226, %v266
      %v281 = vsub.f32 %v227, %v266
      %v282 = vsub.f32 %v228, %v266
      %v283 = vsub.f32 %v229, %v266
      %v284 = vsub.f32 %v230, %v266
      %v285 = vsub.f32 %v231, %v266
      %v286 = vsub.f32 %v232, %v266
      %v287 = vsub.f32 %v233, %v266
      %v288 = vsub.f32 %v234, %v266
      %v289 = vsub.f32 %v235, %v266
      %v290 = vsub.f32 %v236, %v266
      %v291 = vsub.f32 %v237, %v266
      %v292 = vsub.f32 %v238, %v266
      %v293 = vsub.f32 %v239, %v266
      %v294 = vsub.f32 %v240, %v266
      %v295 = vsub.f32 %v241, %v266
      %v296 = vsub.f32 %v242, %v266
      %v297 = vsub.f32 %v243, %v266
      %v298 = vsub.f32 %v244, %v266
      %v299 = vlaneseq
      %v300 = vshrl.u32 %v299, 7
      %v301 = vsub.s32 1, %v300
      %v302 = vrot.slane %v262, %v301
      %v303 = vmul.f32 %v267, %v302
      %v304 = vmul.f32 %v268, %v302
      %v305 = vmul.f32 %v269, %v302
      %v306 = vmul.f32 %v270, %v302
      %v307 = vmul.f32 %v271, %v302
      %v308 = vmul.f32 %v272, %v302
      %v309 = vmul.f32 %v273, %v302
      %v310 = vmul.f32 %v274, %v302
      %v311 = vmul.f32 %v275, %v302
      %v312 = vmul.f32 %v276, %v302
      %v313 = vmul.f32 %v277, %v302
      %v314 = vmul.f32 %v278, %v302
      %v315 = vmul.f32 %v279, %v302
      %v316 = vmul.f32 %v280, %v302
      %v317 = vmul.f32 %v281, %v302
      %v318 = vmul.f32 %v282, %v302
      %v319 = vmul.f32 %v283, %v302
      %v320 = vmul.f32 %v284, %v302
      %v321 = vmul.f32 %v285, %v302
      %v322 = vmul.f32 %v286, %v302
      %v323 = vmul.f32 %v287, %v302
      %v324 = vmul.f32 %v288, %v302
      %v325 = vmul.f32 %v289, %v302
      %v326 = vmul.f32 %v290, %v302
      %v327 = vmul.f32 %v291, %v302
      %v328 = vmul.f32 %v292, %v302
      %v329 = vmul.f32 %v293, %v302
      %v330 = vmul.f32 %v294, %v302
      %v331 = vmul.f32 %v295, %v302
      %v332 = vmul.f32 %v296, %v302
      %v333 = vmul.f32 %v297, %v302
      %v334 = vmul.f32 %v298, %v302
      %v336 = vlaneseq
      %v337 = vshrl.u32 %v336, 7
      %v338 = vsub.s32 0, %v337
      %v339 = vrot.slane %v247, %v338
      %v341 = vadd.f32 %v303, %v339
      %v342 = vadd.f32 %v304, %v339
      %v343 = vadd.f32 %v305, %v339
      %v344 = vadd.f32 %v306, %v339
      %v345 = vadd.f32 %v307, %v339
      %v346 = vadd.f32 %v308, %v339
      %v347 = vadd.f32 %v309, %v339
      %v348 = vadd.f32 %v310, %v339
      %v349 = vadd.f32 %v311, %v339
      %v350 = vadd.f32 %v312, %v339
      %v351 = vadd.f32 %v313, %v339
      %v352 = vadd.f32 %v314, %v339
      %v353 = vadd.f32 %v315, %v339
      %v354 = vadd.f32 %v316, %v339
      %v355 = vadd.f32 %v317, %v339
      %v356 = vadd.f32 %v318, %v339
      %v357 = vadd.f32 %v319, %v339
      %v358 = vadd.f32 %v320, %v339
      %v359 = vadd.f32 %v321, %v339
      %v360 = vadd.f32 %v322, %v339
      %v361 = vadd.f32 %v323, %v339
      %v362 = vadd.f32 %v324, %v339
      %v363 = vadd.f32 %v325, %v339
      %v364 = vadd.f32 %v326, %v339
      %v365 = vadd.f32 %v327, %v339
      %v366 = vadd.f32 %v328, %v339
      %v367 = vadd.f32 %v329, %v339
      %v368 = vadd.f32 %v330, %v339
      %v369 = vadd.f32 %v331, %v339
      %v370 = vadd.f32 %v332, %v339
      %v371 = vadd.f32 %v333, %v339
      %v372 = vadd.f32 %v334, %v339
      %vm373 = vcmp.ge.f32.partialorder %v341, 0.0
      %vm374 = vcmp.ge.f32.partialorder %v342, 0.0
      %vm375 = vcmp.ge.f32.partialorder %v343, 0.0
      %vm376 = vcmp.ge.f32.partialorder %v344, 0.0
      %vm377 = vcmp.ge.f32.partialorder %v345, 0.0
      %vm378 = vcmp.ge.f32.partialorder %v346, 0.0
      %vm379 = vcmp.ge.f32.partialorder %v347, 0.0
      %vm380 = vcmp.ge.f32.partialorder %v348, 0.0
      %vm381 = vcmp.ge.f32.partialorder %v349, 0.0
      %vm382 = vcmp.ge.f32.partialorder %v350, 0.0
      %vm383 = vcmp.ge.f32.partialorder %v351, 0.0
      %vm384 = vcmp.ge.f32.partialorder %v352, 0.0
      %vm385 = vcmp.ge.f32.partialorder %v353, 0.0
      %vm386 = vcmp.ge.f32.partialorder %v354, 0.0
      %vm387 = vcmp.ge.f32.partialorder %v355, 0.0
      %vm388 = vcmp.ge.f32.partialorder %v356, 0.0
      %vm389 = vcmp.ge.f32.partialorder %v357, 0.0
      %vm390 = vcmp.ge.f32.partialorder %v358, 0.0
      %vm391 = vcmp.ge.f32.partialorder %v359, 0.0
      %vm392 = vcmp.ge.f32.partialorder %v360, 0.0
      %vm393 = vcmp.ge.f32.partialorder %v361, 0.0
      %vm394 = vcmp.ge.f32.partialorder %v362, 0.0
      %vm395 = vcmp.ge.f32.partialorder %v363, 0.0
      %vm396 = vcmp.ge.f32.partialorder %v364, 0.0
      %vm397 = vcmp.ge.f32.partialorder %v365, 0.0
      %vm398 = vcmp.ge.f32.partialorder %v366, 0.0
      %vm399 = vcmp.ge.f32.partialorder %v367, 0.0
      %vm400 = vcmp.ge.f32.partialorder %v368, 0.0
      %vm401 = vcmp.ge.f32.partialorder %v369, 0.0
      %vm402 = vcmp.ge.f32.partialorder %v370, 0.0
      %vm403 = vcmp.ge.f32.partialorder %v371, 0.0
      %vm404 = vcmp.ge.f32.partialorder %v372, 0.0
      %v405 = vmul.f32 %v341, 0.01
      %v406 = vmul.f32 %v342, 0.01
      %v407 = vmul.f32 %v343, 0.01
      %v408 = vmul.f32 %v344, 0.01
      %v409 = vmul.f32 %v345, 0.01
      %v410 = vmul.f32 %v346, 0.01
      %v411 = vmul.f32 %v347, 0.01
      %v412 = vmul.f32 %v348, 0.01
      %v413 = vmul.f32 %v349, 0.01
      %v414 = vmul.f32 %v350, 0.01
      %v415 = vmul.f32 %v351, 0.01
      %v416 = vmul.f32 %v352, 0.01
      %v417 = vmul.f32 %v353, 0.01
      %v418 = vmul.f32 %v354, 0.01
      %v419 = vmul.f32 %v355, 0.01
      %v420 = vmul.f32 %v356, 0.01
      %v421 = vmul.f32 %v357, 0.01
      %v422 = vmul.f32 %v358, 0.01
      %v423 = vmul.f32 %v359, 0.01
      %v424 = vmul.f32 %v360, 0.01
      %v425 = vmul.f32 %v361, 0.01
      %v426 = vmul.f32 %v362, 0.01
      %v427 = vmul.f32 %v363, 0.01
      %v428 = vmul.f32 %v364, 0.01
      %v429 = vmul.f32 %v365, 0.01
      %v430 = vmul.f32 %v366, 0.01
      %v431 = vmul.f32 %v367, 0.01
      %v432 = vmul.f32 %v368, 0.01
      %v433 = vmul.f32 %v369, 0.01
      %v434 = vmul.f32 %v370, 0.01
      %v435 = vmul.f32 %v371, 0.01
      %v436 = vmul.f32 %v372, 0.01
      %v437 = vsel %vm373, %v341, %v405
      %v438 = vsel %vm374, %v342, %v406
      %v439 = vsel %vm375, %v343, %v407
      %v440 = vsel %vm376, %v344, %v408
      %v441 = vsel %vm377, %v345, %v409
      %v442 = vsel %vm378, %v346, %v410
      %v443 = vsel %vm379, %v347, %v411
      %v444 = vsel %vm380, %v348, %v412
      %v445 = vsel %vm381, %v349, %v413
      %v446 = vsel %vm382, %v350, %v414
      %v447 = vsel %vm383, %v351, %v415
      %v448 = vsel %vm384, %v352, %v416
      %v449 = vsel %vm385, %v353, %v417
      %v450 = vsel %vm386, %v354, %v418
      %v451 = vsel %vm387, %v355, %v419
      %v452 = vsel %vm388, %v356, %v420
      %v453 = vsel %vm389, %v357, %v421
      %v454 = vsel %vm390, %v358, %v422
      %v455 = vsel %vm391, %v359, %v423
      %v456 = vsel %vm392, %v360, %v424
      %v457 = vsel %vm393, %v361, %v425
      %v458 = vsel %vm394, %v362, %v426
      %v459 = vsel %vm395, %v363, %v427
      %v460 = vsel %vm396, %v364, %v428
      %v461 = vsel %vm397, %v365, %v429
      %v462 = vsel %vm398, %v366, %v430
      %v463 = vsel %vm399, %v367, %v431
      %v464 = vsel %vm400, %v368, %v432
      %v465 = vsel %vm401, %v369, %v433
      %v466 = vsel %vm402, %v370, %v434
      %v467 = vsel %vm403, %v371, %v435
      %v468 = vsel %vm404, %v372, %v436
      %v469 = vpack.c.bf16 %v438, %v437
      %v470 = vpack.c.bf16 %v440, %v439
      %v471 = vpack.c.bf16 %v442, %v441
      %v472 = vpack.c.bf16 %v444, %v443
      %v473 = vpack.c.bf16 %v446, %v445
      %v474 = vpack.c.bf16 %v448, %v447
      %v475 = vpack.c.bf16 %v450, %v449
      %v476 = vpack.c.bf16 %v452, %v451
      %v477 = vpack.c.bf16 %v454, %v453
      %v478 = vpack.c.bf16 %v456, %v455
      %v479 = vpack.c.bf16 %v458, %v457
      %v480 = vpack.c.bf16 %v460, %v459
      %v481 = vpack.c.bf16 %v462, %v461
      %v482 = vpack.c.bf16 %v464, %v463
      %v483 = vpack.c.bf16 %v466, %v465
      %v484 = vpack.c.bf16 %v468, %v467
      %v485 = vld [vmem:[%s4] sm:$0xf]
      %v486 = vld [vmem:[%s4 + $0x4] sm:$0xf]
      %v487 = vld [vmem:[%s4 + $0x8] sm:$0xf]
      %v488 = vld [vmem:[%s4 + $0xc] sm:$0xf]
      %v489 = vld [vmem:[%s4 + $0x10] sm:$0xf]
      %v490 = vld [vmem:[%s4 + $0x14] sm:$0xf]
      %v491 = vld [vmem:[%s4 + $0x18] sm:$0xf]
      %v492 = vld [vmem:[%s4 + $0x1c] sm:$0xf]
      %v493 = vld [vmem:[%s4 + $0x20] sm:$0xf]
      %v494 = vld [vmem:[%s4 + $0x24] sm:$0xf]
      %v495 = vld [vmem:[%s4 + $0x28] sm:$0xf]
      %v496 = vld [vmem:[%s4 + $0x2c] sm:$0xf]
      %v497 = vld [vmem:[%s4 + $0x30] sm:$0xf]
      %v498 = vld [vmem:[%s4 + $0x34] sm:$0xf]
      %v499 = vld [vmem:[%s4 + $0x38] sm:$0xf]
      %v500 = vld [vmem:[%s4 + $0x3c] sm:$0xf]
      %v517 = vunpack.c.l.b16 %v485
      %v518 = vunpack.c.l.b16 %v486
      %v519 = vunpack.c.l.b16 %v487
      %v520 = vunpack.c.l.b16 %v488
      %v521 = vunpack.c.l.b16 %v489
      %v522 = vunpack.c.l.b16 %v490
      %v523 = vunpack.c.l.b16 %v491
      %v524 = vunpack.c.l.b16 %v492
      %v525 = vunpack.c.l.b16 %v493
      %v526 = vunpack.c.l.b16 %v494
      %v527 = vunpack.c.l.b16 %v495
      %v528 = vunpack.c.l.b16 %v496
      %v529 = vunpack.c.l.b16 %v497
      %v530 = vunpack.c.l.b16 %v498
      %v531 = vunpack.c.l.b16 %v499
      %v532 = vunpack.c.l.b16 %v500
      %v533 = vpack.c.b16 %v518, %v517
      %v534 = vpack.c.b16 %v520, %v519
      %v535 = vpack.c.b16 %v522, %v521
      %v536 = vpack.c.b16 %v524, %v523
      %v537 = vpack.c.b16 %v526, %v525
      %v538 = vpack.c.b16 %v528, %v527
      %v539 = vpack.c.b16 %v530, %v529
      %v540 = vpack.c.b16 %v532, %v531
      %549 = vmatprep.subr.bf16.mxu0 0
      %550 = vmatpush1.bf16.msra.mxu0 %v533
      %551 = vmatprep.subr.bf16.mxu0 0
      %552 = vmatpush1.bf16.msra.mxu0 %v534
      %553 = vmatprep.subr.bf16.mxu0 0
      %554 = vmatpush1.bf16.msra.mxu0 %v535
      %555 = vmatprep.subr.bf16.mxu0 0
      %556 = vmatpush1.bf16.msra.mxu0 %v536
      %557 = vmatprep.subr.bf16.mxu0 0
      %558 = vmatpush1.bf16.msra.mxu0 %v537
      %559 = vmatprep.subr.bf16.mxu0 0
      %560 = vmatpush1.bf16.msra.mxu0 %v538
      %561 = vmatprep.subr.bf16.mxu0 0
      %562 = vmatpush1.bf16.msra.mxu0 %v539
      %563 = vmatprep.subr.bf16.mxu0 0
      %564 = vmatpush1.bf16.msra.mxu0 %v540
      %565 = vmatprep.subr.bf16.mxu0 0
      %566 = vmatpush1.bf16.msra.mxu0 0
      %567 = vmatprep.subr.bf16.mxu0 0
      %568 = vmatpush1.bf16.msra.mxu0 0
      %569 = vmatprep.subr.bf16.mxu0 0
      %570 = vmatpush1.bf16.msra.mxu0 0
      %571 = vmatprep.subr.bf16.mxu0 0
      %572 = vmatpush1.bf16.msra.mxu0 0
      %573 = vmatprep.subr.bf16.mxu0 0
      %574 = vmatpush1.bf16.msra.mxu0 0
      %575 = vmatprep.subr.bf16.mxu0 0
      %576 = vmatpush1.bf16.msra.mxu0 0
      %577 = vmatprep.subr.bf16.mxu0 0
      %578 = vmatpush1.bf16.msra.mxu0 0
      %579 = vmatprep.subr.bf16.mxu0 0
      %580 = vmatpush1.bf16.msra.mxu0 0
      %581 = vmatprep.mubr.bf16.mxu0 0
      %582 = vmatmul.mubr.bf16.gmra.mrb[0].mxu0 %v469
      %v583 = vpop.f32.mrb[0].mxu0
      %v584 = vadd.f32 0.0, %v583
      %v585 = vpop.f32.mrb[0].mxu0
      %v586 = vpop.f32.mrb[0].mxu0
      %v587 = vadd.f32 0.0, %v586
      %v588 = vpop.f32.mrb[0].mxu0
      %589 = vmatprep.mubr.bf16.mxu0 0
      %590 = vmatmul.mubr.bf16.gmra.mrb[0].mxu0 %v470
      %v591 = vpop.f32.mrb[0].mxu0
      %v592 = vadd.f32 0.0, %v591
      %v593 = vpop.f32.mrb[0].mxu0
      %v594 = vpop.f32.mrb[0].mxu0
      %v595 = vadd.f32 0.0, %v594
      %v596 = vpop.f32.mrb[0].mxu0
      %597 = vmatprep.mubr.bf16.mxu0 0
      %598 = vmatmul.mubr.bf16.gmra.mrb[0].mxu0 %v471
      %v599 = vpop.f32.mrb[0].mxu0
      %v600 = vadd.f32 0.0, %v599
      %v601 = vpop.f32.mrb[0].mxu0
      %v602 = vpop.f32.mrb[0].mxu0
      %v603 = vadd.f32 0.0, %v602
      %v604 = vpop.f32.mrb[0].mxu0
      %605 = vmatprep.mubr.bf16.mxu0 0
      %606 = vmatmul.mubr.bf16.gmra.mrb[0].mxu0 %v472
      %v607 = vpop.f32.mrb[0].mxu0
      %v608 = vadd.f32 0.0, %v607
      %v609 = vpop.f32.mrb[0].mxu0
      %v610 = vpop.f32.mrb[0].mxu0
      %v611 = vadd.f32 0.0, %v610
      %v612 = vpop.f32.mrb[0].mxu0
      %613 = vmatprep.mubr.bf16.mxu0 0
      %614 = vmatmul.mubr.bf16.gmra.mrb[0].mxu0 %v473
      %v615 = vpop.f32.mrb[0].mxu0
      %v616 = vadd.f32 0.0, %v615
      %v617 = vpop.f32.mrb[0].mxu0
      %v618 = vpop.f32.mrb[0].mxu0
      %v619 = vadd.f32 0.0, %v618
      %v620 = vpop.f32.mrb[0].mxu0
      %621 = vmatprep.mubr.bf16.mxu0 0
      %622 = vmatmul.mubr.bf16.gmra.mrb[0].mxu0 %v474
      %v623 = vpop.f32.mrb[0].mxu0
      %v624 = vadd.f32 0.0, %v623
      %v625 = vpop.f32.mrb[0].mxu0
      %v626 = vpop.f32.mrb[0].mxu0
      %v627 = vadd.f32 0.0, %v626
      %v628 = vpop.f32.mrb[0].mxu0
      %629 = vmatprep.mubr.bf16.mxu0 0
      %630 = vmatmul.mubr.bf16.gmra.mrb[0].mxu0 %v475
      %v631 = vpop.f32.mrb[0].mxu0
      %v632 = vadd.f32 0.0, %v631
      %v633 = vpop.f32.mrb[0].mxu0
      %v634 = vpop.f32.mrb[0].mxu0
      %v635 = vadd.f32 0.0, %v634
      %v636 = vpop.f32.mrb[0].mxu0
      %637 = vmatprep.mubr.bf16.mxu0 0
      %638 = vmatmul.mubr.bf16.gmra.mrb[0].mxu0 %v476
      %v639 = vpop.f32.mrb[0].mxu0
      %v640 = vadd.f32 0.0, %v639
      %v641 = vpop.f32.mrb[0].mxu0
      %v642 = vpop.f32.mrb[0].mxu0
      %v643 = vadd.f32 0.0, %v642
      %v644 = vpop.f32.mrb[0].mxu0
      %645 = vmatprep.mubr.bf16.mxu0 0
      %646 = vmatmul.mubr.bf16.gmra.mrb[0].mxu0 %v477
      %v647 = vpop.f32.mrb[0].mxu0
      %v648 = vadd.f32 0.0, %v647
      %v649 = vpop.f32.mrb[0].mxu0
      %v650 = vpop.f32.mrb[0].mxu0
      %v651 = vadd.f32 0.0, %v650
      %v652 = vpop.f32.mrb[0].mxu0
      %653 = vmatprep.mubr.bf16.mxu0 0
      %654 = vmatmul.mubr.bf16.gmra.mrb[0].mxu0 %v478
      %v655 = vpop.f32.mrb[0].mxu0
      %v656 = vadd.f32 0.0, %v655
      %v657 = vpop.f32.mrb[0].mxu0
      %v658 = vpop.f32.mrb[0].mxu0
      %v659 = vadd.f32 0.0, %v658
      %v660 = vpop.f32.mrb[0].mxu0
      %661 = vmatprep.mubr.bf16.mxu0 0
      %662 = vmatmul.mubr.bf16.gmra.mrb[0].mxu0 %v479
      %v663 = vpop.f32.mrb[0].mxu0
      %v664 = vadd.f32 0.0, %v663
      %v665 = vpop.f32.mrb[0].mxu0
      %v666 = vpop.f32.mrb[0].mxu0
      %v667 = vadd.f32 0.0, %v666
      %v668 = vpop.f32.mrb[0].mxu0
      %669 = vmatprep.mubr.bf16.mxu0 0
      %670 = vmatmul.mubr.bf16.gmra.mrb[0].mxu0 %v480
      %v671 = vpop.f32.mrb[0].mxu0
      %v672 = vadd.f32 0.0, %v671
      %v673 = vpop.f32.mrb[0].mxu0
      %v674 = vpop.f32.mrb[0].mxu0
      %v675 = vadd.f32 0.0, %v674
      %v676 = vpop.f32.mrb[0].mxu0
      %677 = vmatprep.mubr.bf16.mxu0 0
      %678 = vmatmul.mubr.bf16.gmra.mrb[0].mxu0 %v481
      %v679 = vpop.f32.mrb[0].mxu0
      %v680 = vadd.f32 0.0, %v679
      %v681 = vpop.f32.mrb[0].mxu0
      %v682 = vpop.f32.mrb[0].mxu0
      %v683 = vadd.f32 0.0, %v682
      %v684 = vpop.f32.mrb[0].mxu0
      %685 = vmatprep.mubr.bf16.mxu0 0
      %686 = vmatmul.mubr.bf16.gmra.mrb[0].mxu0 %v482
      %v687 = vpop.f32.mrb[0].mxu0
      %v688 = vadd.f32 0.0, %v687
      %v689 = vpop.f32.mrb[0].mxu0
      %v690 = vpop.f32.mrb[0].mxu0
      %v691 = vadd.f32 0.0, %v690
      %v692 = vpop.f32.mrb[0].mxu0
      %693 = vmatprep.mubr.bf16.mxu0 0
      %694 = vmatmul.mubr.bf16.gmra.mrb[0].mxu0 %v483
      %v695 = vpop.f32.mrb[0].mxu0
      %v696 = vadd.f32 0.0, %v695
      %v697 = vpop.f32.mrb[0].mxu0
      %v698 = vpop.f32.mrb[0].mxu0
      %v699 = vadd.f32 0.0, %v698
      %v700 = vpop.f32.mrb[0].mxu0
      %701 = vmatprep.mubr.bf16.mxu0 0
      %702 = vmatmul.mubr.bf16.gmra.mrb[0].mxu0 %v484
      %v703 = vpop.f32.mrb[0].mxu0
      %v704 = vadd.f32 0.0, %v703
      %v705 = vpop.f32.mrb[0].mxu0
      %v706 = vpop.f32.mrb[0].mxu0
      %v707 = vadd.f32 0.0, %v706
      %v708 = vpop.f32.mrb[0].mxu0
      %709 = vdwg.mxu0
      %p710 = scmp.eq.s32.totalorder %s16, 0
      // Predicated region
      $region41: #{block_forward.6} parent=39 // pred_check
        %p711 = pneg %p710
      $region42: #{block_forward.6} parent=39 // pred_check_branch
        %713 = sbr.rel (%p711) target = $region44
      $region43: #{block_forward.6} parent=39 // pred_region
        %714 = vst [vmem:[%s5] sm:$0x3] 0.0
      $region44: #{block_forward.6} parent=39 // pred_fallthru
        _
      %v715 = vld [vmem:[%s5] sm:$0x1]
      %v716 = vadd.f32 %v584, %v587
      %v717 = vadd.f32 %v716, %v592
      %v718 = vadd.f32 %v717, %v595
      %v719 = vadd.f32 %v718, %v600
      %v720 = vadd.f32 %v719, %v603
      %v721 = vadd.f32 %v720, %v608
      %v722 = vadd.f32 %v721, %v611
      %v723 = vadd.f32 %v722, %v616
      %v724 = vadd.f32 %v723, %v619
      %v725 = vadd.f32 %v724, %v624
      %v726 = vadd.f32 %v725, %v627
      %v727 = vadd.f32 %v726, %v632
      %v728 = vadd.f32 %v727, %v635
      %v729 = vadd.f32 %v728, %v640
      %v730 = vadd.f32 %v729, %v643
      %v731 = vadd.f32 %v730, %v648
      %v732 = vadd.f32 %v731, %v651
      %v733 = vadd.f32 %v732, %v656
      %v734 = vadd.f32 %v733, %v659
      %v735 = vadd.f32 %v734, %v664
      %v736 = vadd.f32 %v735, %v667
      %v737 = vadd.f32 %v736, %v672
      %v738 = vadd.f32 %v737, %v675
      %v739 = vadd.f32 %v738, %v680
      %v740 = vadd.f32 %v739, %v683
      %v741 = vadd.f32 %v740, %v688
      %v742 = vadd.f32 %v741, %v691
      %v743 = vadd.f32 %v742, %v696
      %v744 = vadd.f32 %v743, %v699
      %v745 = vadd.f32 %v744, %v704
      %v746 = vadd.f32 %v745, %v707
      %v747 = vrot.slane %v746, 4
      %v748 = vadd.f32 %v746, %v747
      %v749 = vrot.slane %v748, 2
      %v750 = vadd.f32 %v748, %v749
      %v751 = vrot.slane %v750, 1
      %v752 = vadd.f32 %v750, %v751
      %v753 = vadd.f32 %v715, %v752
      %754 = vst [vmem:[%s5] sm:$0x1] %v753
      %v755 = vld [vmem:[%s5 + $0x1] sm:$0x1]
      %v756 = vmul.f32 %v584, %v584
      %v757 = vmul.f32 %v587, %v587
      %v758 = vmul.f32 %v592, %v592
      %v759 = vmul.f32 %v595, %v595
      %v760 = vmul.f32 %v600, %v600
      %v761 = vmul.f32 %v603, %v603
      %v762 = vmul.f32 %v608, %v608
      %v763 = vmul.f32 %v611, %v611
      %v764 = vmul.f32 %v616, %v616
      %v765 = vmul.f32 %v619, %v619
      %v766 = vmul.f32 %v624, %v624
      %v767 = vmul.f32 %v627, %v627
      %v768 = vmul.f32 %v632, %v632
      %v769 = vmul.f32 %v635, %v635
      %v770 = vmul.f32 %v640, %v640
      %v771 = vmul.f32 %v643, %v643
      %v772 = vmul.f32 %v648, %v648
      %v773 = vmul.f32 %v651, %v651
      %v774 = vmul.f32 %v656, %v656
      %v775 = vmul.f32 %v659, %v659
      %v776 = vmul.f32 %v664, %v664
      %v777 = vmul.f32 %v667, %v667
      %v778 = vmul.f32 %v672, %v672
      %v779 = vmul.f32 %v675, %v675
      %v780 = vmul.f32 %v680, %v680
      %v781 = vmul.f32 %v683, %v683
      %v782 = vmul.f32 %v688, %v688
      %v783 = vmul.f32 %v691, %v691
      %v784 = vmul.f32 %v696, %v696
      %v785 = vmul.f32 %v699, %v699
      %v786 = vmul.f32 %v704, %v704
      %v787 = vmul.f32 %v707, %v707
      %v788 = vadd.f32 %v756, %v757
      %v789 = vadd.f32 %v788, %v758
      %v790 = vadd.f32 %v789, %v759
      %v791 = vadd.f32 %v790, %v760
      %v792 = vadd.f32 %v791, %v761
      %v793 = vadd.f32 %v792, %v762
      %v794 = vadd.f32 %v793, %v763
      %v795 = vadd.f32 %v794, %v764
      %v796 = vadd.f32 %v795, %v765
      %v797 = vadd.f32 %v796, %v766
      %v798 = vadd.f32 %v797, %v767
      %v799 = vadd.f32 %v798, %v768
      %v800 = vadd.f32 %v799, %v769
      %v801 = vadd.f32 %v800, %v770
      %v802 = vadd.f32 %v801, %v771
      %v803 = vadd.f32 %v802, %v772
      %v804 = vadd.f32 %v803, %v773
      %v805 = vadd.f32 %v804, %v774
      %v806 = vadd.f32 %v805, %v775
      %v807 = vadd.f32 %v806, %v776
      %v808 = vadd.f32 %v807, %v777
      %v809 = vadd.f32 %v808, %v778
      %v810 = vadd.f32 %v809, %v779
      %v811 = vadd.f32 %v810, %v780
      %v812 = vadd.f32 %v811, %v781
      %v813 = vadd.f32 %v812, %v782
      %v814 = vadd.f32 %v813, %v783
      %v815 = vadd.f32 %v814, %v784
      %v816 = vadd.f32 %v815, %v785
      %v817 = vadd.f32 %v816, %v786
      %v818 = vadd.f32 %v817, %v787
      %v819 = vrot.slane %v818, 4
      %v820 = vadd.f32 %v818, %v819
      %v821 = vrot.slane %v820, 2
      %v822 = vadd.f32 %v820, %v821
      %v823 = vrot.slane %v822, 1
      %v824 = vadd.f32 %v822, %v823
      %v825 = vadd.f32 %v755, %v824
      %826 = vst [vmem:[%s5 + $0x1] sm:$0x1] %v825
      // Predicated region
      $region45: #{block_forward.6} parent=39 // pred_check
        %p827 = pneg %p139
      $region46: #{block_forward.6} parent=39 // pred_check_branch
        %829 = sbr.rel (%p827) target = $region48
      $region47: #{block_forward.6} parent=39 // pred_region
        _
      $region48: #{block_forward.6} parent=39 // pred_fallthru
        _
      // Predicated region
      $region49: #{block_forward.6} parent=39 // pred_check
        %p830 = pneg %p139
      $region50: #{block_forward.6} parent=39 // pred_check_branch
        %832 = sbr.rel (%p830) target = $region52
      $region51: #{block_forward.6} parent=39 // pred_region
        _
      $region52: #{block_forward.6} parent=39 // pred_fallthru
        _
    $region40: #{block_forward.6} parent=5 // pred_fallthru
      _
    %p833 = scmp.le.s32.totalorder 2, %s11
    // Predicated region
    $region53: #{block_forward.6} parent=5 // pred_check
      %p834 = pneg %p833
    $region54: #{block_forward.6} parent=5 // pred_check_branch
      %836 = sbr.rel (%p834) target = $region56
    $region55: #{block_forward.6} parent=5 // pred_region
      %s837 = ssub.s32 %s11, 2
    $region56: #{block_forward.6} parent=5 // pred_fallthru
      _
  $region6: #{block_forward.6} parent=0 // loop_footer
    %s15 = sadd.s32 1, %s11
  $region7: #{block_forward.6} parent=0 // loop_footer_branch
    %10 = sbr.rel target = $region3
  $region8: #{block_forward.6} parent=0 // loop_exit
    _

// kernel: block_forward.7
$region0: #{block_forward.7}
  #allocation0 [shape = 'u32[]', space=smem, size = 0x4, offset = 0x4, fixed_abs, tag = 'smem constant byte address 0x4 - core index']
  #allocation1 [shape = 'u32[144,128]{1,0:T(1,128)}', space=vmem, size = 0x12000, scoped, tag = 'internal scratch']
  %s0 = inlined_call_operand.vmem [shape: f32[512,128], index: 0, kind: input, shape index: {}]
  %s1 = inlined_call_operand.vmem [shape: f32[512,128], index: 1, kind: input, shape index: {}]
  %s2 = inlined_call_operand.vmem [shape: f32[2,128], index: 2, kind: input, shape index: {}]
  %s3 = inlined_call_operand.vmem [shape: f32[2,128], index: 3, kind: input, shape index: {}]
  %s4 = inlined_call_operand.vmem [shape: f32[1,128], index: 4, kind: input, shape index: {}]
  %s5 = inlined_call_operand.vmem [shape: f32[1,128], index: 5, kind: input, shape index: {}, may-alias: {5,7}]
  %s6 = inlined_call_operand.vmem [shape: f32[1,128], index: 6, kind: input, shape index: {}]
  %s7 = inlined_call_operand.vmem [shape: f32[1,128], index: 7, kind: input, shape index: {}, may-alias: {5,7}]
  %s8 = inlined_call_operand.vmem [shape: bf16[128,128], index: 8, kind: input, shape index: {}]
  %s9 = inlined_call_operand.vmem [shape: f32[512,128], index: 9, kind: output, shape index: {}]
  %s10 = sld [smem:[#allocation0]]
  $region69: #{block_forward.7} parent=0
    _
  %s12 = ssub.s32 1, %s10
  %s13 = scalar_select 0, %s12, %s10
  loop: start=0, step=1, limit=4
  $region2: #{block_forward.7} parent=0 // loop_pre_header
    _
  $region3: #{block_forward.7} parent=0 // loop_header
    %s15 = sphi 0, %s19
    %p16 = scmp.ge.s32.totalorder %s15, 4
    %s25 = sphi 0, %s27
    %s28 = sphi 0, %s25
    %s29 = sphi 0, %s28
    %s45 = sphi 0, %s29
    %s51 = sphi 0, %s53
    %s54 = sphi 0, %s51
    %s55 = sphi 0, %s54
    %s71 = sphi 0, %s55
    %s75 = sphi 0, %s75
    %s77 = sphi 0, %s75
    %s78 = sphi 0, %s77
    %s92 = sphi 0, %s78
    %s96 = sphi 0, %s96
    %s98 = sphi 0, %s96
    %s99 = sphi 0, %s98
    %s113 = sphi 0, %s99
    %s117 = sphi 0, %s117
    %s119 = sphi 0, %s117
    %s120 = sphi 0, %s119
    %s134 = sphi 0, %s120
    %s138 = sphi 0, %s138
    %s140 = sphi 0, %s138
    %s141 = sphi 0, %s140
    %s155 = sphi 0, %s141
    %s159 = sphi 0, %s159
    %s161 = sphi 0, %s159
    %s162 = sphi 0, %s161
    %s176 = sphi 0, %s162
    %s180 = sphi 0, %s180
    %s182 = sphi 0, %s180
    %s183 = sphi 0, %s182
    %s197 = sphi 0, %s183
    %s201 = sphi 0, %s201
    %s203 = sphi 0, %s201
    %s204 = sphi 0, %s203
    %s218 = sphi 0, %s204
    %s224 = sphi 0, %s226
    %s227 = sphi 0, %s224
    %s228 = sphi 0, %s227
    %s244 = sphi 0, %s228
  $region4: #{block_forward.7} parent=0 // loop_header_branch
    %18 = sbr.rel (%p16) target = $region8
  $region5: #{block_forward.7} parent=0 // loop_body
    %s20 = ssub.s32 %s15, 1
    %s21 = ssub.s32 %s15, 2
    %s22 = sadd.s32 %s15, 1
    %s23 = ssub.s32 %s15, %s22
    %p24 = scmp.eq.s32.totalorder %s23, 0
    %s26 = sadd.s32 %s25, 1
    %s27 = scalar_select %p24, %s25, %s26
    %p30 = pneg %p24
    %p31 = scmp.eq.s32.totalorder %s15, 1
    %p32 = por %p30, %p31
    %p33 = scmp.ne.s32.totalorder %s25, %s28
    %p34 = scmp.eq.s32.totalorder %s15, 0
    %p35 = por %p33, %p34
    %p36 = scmp.ne.s32.totalorder %s25, %s28
    %p37 = scmp.eq.s32.totalorder %s20, 1
    %p38 = por %p36, %p37
    %p39 = scmp.ne.s32.totalorder %s28, %s29
    %p40 = scmp.eq.s32.totalorder %s20, 0
    %p41 = por %p39, %p40
    %p42 = scmp.ne.s32.totalorder %s28, %s29
    %p43 = scmp.eq.s32.totalorder %s21, 1
    %p44 = por %p42, %p43
    %p46 = scmp.ne.s32.totalorder %s29, %s45
    %p47 = scmp.eq.s32.totalorder %s21, 0
    %p48 = por %p46, %p47
    %s49 = ssub.s32 %s15, %s22
    %p50 = scmp.eq.s32.totalorder %s49, 0
    %s52 = sadd.s32 %s51, 1
    %s53 = scalar_select %p50, %s51, %s52
    %p56 = pneg %p50
    %p57 = scmp.eq.s32.totalorder %s15, 1
    %p58 = por %p56, %p57
    %p59 = scmp.ne.s32.totalorder %s51, %s54
    %p60 = scmp.eq.s32.totalorder %s15, 0
    %p61 = por %p59, %p60
    %p62 = scmp.ne.s32.totalorder %s51, %s54
    %p63 = scmp.eq.s32.totalorder %s20, 1
    %p64 = por %p62, %p63
    %p65 = scmp.ne.s32.totalorder %s54, %s55
    %p66 = scmp.eq.s32.totalorder %s20, 0
    %p67 = por %p65, %p66
    %p68 = scmp.ne.s32.totalorder %s54, %s55
    %p69 = scmp.eq.s32.totalorder %s21, 1
    %p70 = por %p68, %p69
    %p72 = scmp.ne.s32.totalorder %s55, %s71
    %p73 = scmp.eq.s32.totalorder %s21, 0
    %p74 = por %p72, %p73
    %s76 = sadd.s32 %s75, 1
    %p79 = scmp.eq.s32.totalorder %s15, 1
    %p80 = scmp.ne.s32.totalorder %s75, %s77
    %p81 = scmp.eq.s32.totalorder %s15, 0
    %p82 = por %p80, %p81
    %p83 = scmp.ne.s32.totalorder %s75, %s77
    %p84 = scmp.eq.s32.totalorder %s20, 1
    %p85 = por %p83, %p84
    %p86 = scmp.ne.s32.totalorder %s77, %s78
    %p87 = scmp.eq.s32.totalorder %s20, 0
    %p88 = por %p86, %p87
    %p89 = scmp.ne.s32.totalorder %s77, %s78
    %p90 = scmp.eq.s32.totalorder %s21, 1
    %p91 = por %p89, %p90
    %p93 = scmp.ne.s32.totalorder %s78, %s92
    %p94 = scmp.eq.s32.totalorder %s21, 0
    %p95 = por %p93, %p94
    %s97 = sadd.s32 %s96, 1
    %p100 = scmp.eq.s32.totalorder %s15, 1
    %p101 = scmp.ne.s32.totalorder %s96, %s98
    %p102 = scmp.eq.s32.totalorder %s15, 0
    %p103 = por %p101, %p102
    %p104 = scmp.ne.s32.totalorder %s96, %s98
    %p105 = scmp.eq.s32.totalorder %s20, 1
    %p106 = por %p104, %p105
    %p107 = scmp.ne.s32.totalorder %s98, %s99
    %p108 = scmp.eq.s32.totalorder %s20, 0
    %p109 = por %p107, %p108
    %p110 = scmp.ne.s32.totalorder %s98, %s99
    %p111 = scmp.eq.s32.totalorder %s21, 1
    %p112 = por %p110, %p111
    %p114 = scmp.ne.s32.totalorder %s99, %s113
    %p115 = scmp.eq.s32.totalorder %s21, 0
    %p116 = por %p114, %p115
    %s118 = sadd.s32 %s117, 1
    %p121 = scmp.eq.s32.totalorder %s15, 1
    %p122 = scmp.ne.s32.totalorder %s117, %s119
    %p123 = scmp.eq.s32.totalorder %s15, 0
    %p124 = por %p122, %p123
    %p125 = scmp.ne.s32.totalorder %s117, %s119
    %p126 = scmp.eq.s32.totalorder %s20, 1
    %p127 = por %p125, %p126
    %p128 = scmp.ne.s32.totalorder %s119, %s120
    %p129 = scmp.eq.s32.totalorder %s20, 0
    %p130 = por %p128, %p129
    %p131 = scmp.ne.s32.totalorder %s119, %s120
    %p132 = scmp.eq.s32.totalorder %s21, 1
    %p133 = por %p131, %p132
    %p135 = scmp.ne.s32.totalorder %s120, %s134
    %p136 = scmp.eq.s32.totalorder %s21, 0
    %p137 = por %p135, %p136
    %s139 = sadd.s32 %s138, 1
    %p142 = scmp.eq.s32.totalorder %s15, 1
    %p143 = scmp.ne.s32.totalorder %s138, %s140
    %p144 = scmp.eq.s32.totalorder %s15, 0
    %p145 = por %p143, %p144
    %p146 = scmp.ne.s32.totalorder %s138, %s140
    %p147 = scmp.eq.s32.totalorder %s20, 1
    %p148 = por %p146, %p147
    %p149 = scmp.ne.s32.totalorder %s140, %s141
    %p150 = scmp.eq.s32.totalorder %s20, 0
    %p151 = por %p149, %p150
    %p152 = scmp.ne.s32.totalorder %s140, %s141
    %p153 = scmp.eq.s32.totalorder %s21, 1
    %p154 = por %p152, %p153
    %p156 = scmp.ne.s32.totalorder %s141, %s155
    %p157 = scmp.eq.s32.totalorder %s21, 0
    %p158 = por %p156, %p157
    %s160 = sadd.s32 %s159, 1
    %p163 = scmp.eq.s32.totalorder %s15, 1
    %p164 = scmp.ne.s32.totalorder %s159, %s161
    %p165 = scmp.eq.s32.totalorder %s15, 0
    %p166 = por %p164, %p165
    %p167 = scmp.ne.s32.totalorder %s159, %s161
    %p168 = scmp.eq.s32.totalorder %s20, 1
    %p169 = por %p167, %p168
    %p170 = scmp.ne.s32.totalorder %s161, %s162
    %p171 = scmp.eq.s32.totalorder %s20, 0
    %p172 = por %p170, %p171
    %p173 = scmp.ne.s32.totalorder %s161, %s162
    %p174 = scmp.eq.s32.totalorder %s21, 1
    %p175 = por %p173, %p174
    %p177 = scmp.ne.s32.totalorder %s162, %s176
    %p178 = scmp.eq.s32.totalorder %s21, 0
    %p179 = por %p177, %p178
    %s181 = sadd.s32 %s180, 1
    %p184 = scmp.eq.s32.totalorder %s15, 1
    %p185 = scmp.ne.s32.totalorder %s180, %s182
    %p186 = scmp.eq.s32.totalorder %s15, 0
    %p187 = por %p185, %p186
    %p188 = scmp.ne.s32.totalorder %s180, %s182
    %p189 = scmp.eq.s32.totalorder %s20, 1
    %p190 = por %p188, %p189
    %p191 = scmp.ne.s32.totalorder %s182, %s183
    %p192 = scmp.eq.s32.totalorder %s20, 0
    %p193 = por %p191, %p192
    %p194 = scmp.ne.s32.totalorder %s182, %s183
    %p195 = scmp.eq.s32.totalorder %s21, 1
    %p196 = por %p194, %p195
    %p198 = scmp.ne.s32.totalorder %s183, %s197
    %p199 = scmp.eq.s32.totalorder %s21, 0
    %p200 = por %p198, %p199
    %s202 = sadd.s32 %s201, 1
    %p205 = scmp.eq.s32.totalorder %s15, 1
    %p206 = scmp.ne.s32.totalorder %s201, %s203
    %p207 = scmp.eq.s32.totalorder %s15, 0
    %p208 = por %p206, %p207
    %p209 = scmp.ne.s32.totalorder %s201, %s203
    %p210 = scmp.eq.s32.totalorder %s20, 1
    %p211 = por %p209, %p210
    %p212 = scmp.ne.s32.totalorder %s203, %s204
    %p213 = scmp.eq.s32.totalorder %s20, 0
    %p214 = por %p212, %p213
    %p215 = scmp.ne.s32.totalorder %s203, %s204
    %p216 = scmp.eq.s32.totalorder %s21, 1
    %p217 = por %p215, %p216
    %p219 = scmp.ne.s32.totalorder %s204, %s218
    %p220 = scmp.eq.s32.totalorder %s21, 0
    %p221 = por %p219, %p220
    %s222 = ssub.s32 %s15, %s22
    %p223 = scmp.eq.s32.totalorder %s222, 0
    %s225 = sadd.s32 %s224, 1
    %s226 = scalar_select %p223, %s224, %s225
    %p229 = pneg %p223
    %p230 = scmp.eq.s32.totalorder %s15, 1
    %p231 = por %p229, %p230
    %p232 = scmp.ne.s32.totalorder %s224, %s227
    %p233 = scmp.eq.s32.totalorder %s15, 0
    %p234 = por %p232, %p233
    %p235 = scmp.ne.s32.totalorder %s224, %s227
    %p236 = scmp.eq.s32.totalorder %s20, 1
    %p237 = por %p235, %p236
    %p238 = scmp.ne.s32.totalorder %s227, %s228
    %p239 = scmp.eq.s32.totalorder %s20, 0
    %p240 = por %p238, %p239
    %p241 = scmp.ne.s32.totalorder %s227, %s228
    %p242 = scmp.eq.s32.totalorder %s21, 1
    %p243 = por %p241, %p242
    %p245 = scmp.ne.s32.totalorder %s228, %s244
    %p246 = scmp.eq.s32.totalorder %s21, 0
    %p247 = por %p245, %p246
    %p248 = scmp.le.s32.totalorder 1, %s15
    %p249 = scmp.lt.s32.totalorder %s15, 3
    %p250 = pnand %p248, %p249
    %p251 = pneg %p250
    // Predicated region
    $region9: #{block_forward.7} parent=5 // pred_check
      _
    $region10: #{block_forward.7} parent=5 // pred_check_branch
      %253 = sbr.rel (%p250) target = $region12
    $region11: #{block_forward.7} parent=5 // pred_region
      %s254 = ssub.s32 %s15, 1
      // Predicated region
      $region13: #{block_forward.7} parent=11 // pred_check
        %p255 = pneg %p88
      $region14: #{block_forward.7} parent=11 // pred_check_branch
        %257 = sbr.rel (%p255) target = $region16
      $region15: #{block_forward.7} parent=11 // pred_region
        _
      $region16: #{block_forward.7} parent=11 // pred_fallthru
        _
      // Predicated region
      $region17: #{block_forward.7} parent=11 // pred_check
        %p258 = pneg %p109
      $region18: #{block_forward.7} parent=11 // pred_check_branch
        %260 = sbr.rel (%p258) target = $region20
      $region19: #{block_forward.7} parent=11 // pred_region
        _
      $region20: #{block_forward.7} parent=11 // pred_fallthru
        _
      // Predicated region
      $region21: #{block_forward.7} parent=11 // pred_check
        %p261 = pneg %p130
      $region22: #{block_forward.7} parent=11 // pred_check_branch
        %263 = sbr.rel (%p261) target = $region24
      $region23: #{block_forward.7} parent=11 // pred_region
        _
      $region24: #{block_forward.7} parent=11 // pred_fallthru
        _
      // Predicated region
      $region25: #{block_forward.7} parent=11 // pred_check
        %p264 = pneg %p151
      $region26: #{block_forward.7} parent=11 // pred_check_branch
        %266 = sbr.rel (%p264) target = $region28
      $region27: #{block_forward.7} parent=11 // pred_region
        _
      $region28: #{block_forward.7} parent=11 // pred_fallthru
        _
      // Predicated region
      $region29: #{block_forward.7} parent=11 // pred_check
        %p267 = pneg %p172
      $region30: #{block_forward.7} parent=11 // pred_check_branch
        %269 = sbr.rel (%p267) target = $region32
      $region31: #{block_forward.7} parent=11 // pred_region
        _
      $region32: #{block_forward.7} parent=11 // pred_fallthru
        _
      // Predicated region
      $region33: #{block_forward.7} parent=11 // pred_check
        %p270 = pneg %p193
      $region34: #{block_forward.7} parent=11 // pred_check_branch
        %272 = sbr.rel (%p270) target = $region36
      $region35: #{block_forward.7} parent=11 // pred_region
        _
      $region36: #{block_forward.7} parent=11 // pred_fallthru
        _
      // Predicated region
      $region37: #{block_forward.7} parent=11 // pred_check
        %p273 = pneg %p214
      $region38: #{block_forward.7} parent=11 // pred_check_branch
        %275 = sbr.rel (%p273) target = $region40
      $region39: #{block_forward.7} parent=11 // pred_region
        _
      $region40: #{block_forward.7} parent=11 // pred_fallthru
        _
    $region12: #{block_forward.7} parent=5 // pred_fallthru
      _
    %p276 = scmp.lt.s32.totalorder %s15, 2
    // Predicated region
    $region41: #{block_forward.7} parent=5 // pred_check
      %p277 = pneg %p276
    $region42: #{block_forward.7} parent=5 // pred_check_branch
      %279 = sbr.rel (%p277) target = $region44
    $region43: #{block_forward.7} parent=5 // pred_region
      // Predicated region
      $region45: #{block_forward.7} parent=43 // pred_check
        %p280 = pneg %p35
      $region46: #{block_forward.7} parent=43 // pred_check_branch
        %282 = sbr.rel (%p280) target = $region48
      $region47: #{block_forward.7} parent=43 // pred_region
        %s283 = smul.u32 32, %s15
        %p284 = scmp.lt.s32.totalorder %s283, 63
        %s285 = scalar_select %p284, %s283, 63
        %s286 = smul.addr %s285, 8
        %s287 = scalar_lea.vmem %s0, %s286
        %s288 = smul.u32 32, %s15
      $region48: #{block_forward.7} parent=43 // pred_fallthru
        _
      // Predicated region
      $region49: #{block_forward.7} parent=43 // pred_check
        %p289 = pneg %p61
      $region50: #{block_forward.7} parent=43 // pred_check_branch
        %291 = sbr.rel (%p289) target = $region52
      $region51: #{block_forward.7} parent=43 // pred_region
        %s292 = smul.u32 32, %s15
        %p293 = scmp.lt.s32.totalorder %s292, 63
        %s294 = scalar_select %p293, %s292, 63
        %s295 = smul.addr %s294, 8
        %s296 = scalar_lea.vmem %s1, %s295
        %s297 = smul.u32 32, %s15
      $region52: #{block_forward.7} parent=43 // pred_fallthru
        _
    $region44: #{block_forward.7} parent=5 // pred_fallthru
      _
    %p298 = scmp.le.s32.totalorder 1, %s15
    %p299 = scmp.lt.s32.totalorder %s15, 3
    %p300 = pnand %p298, %p299
    %p301 = pneg %p300
    // Predicated region
    $region53: #{block_forward.7} parent=5 // pred_check
      _
    $region54: #{block_forward.7} parent=5 // pred_check_branch
      %303 = sbr.rel (%p300) target = $region56
    $region55: #{block_forward.7} parent=5 // pred_region
      %s304 = ssub.s32 %s15, 1
      %s305 = smul.u32 32, %s20
      %p306 = scmp.lt.s32.totalorder %s305, 63
      %s307 = scalar_select %p306, %s305, 63
      %s308 = smul.addr %s307, 8
      %s309 = scalar_lea.vmem %s0, %s308
      %p310 = pneg %p41
      %p311 = pneg %p38
      %s312 = smul.u32 32, %s20
      %p313 = scmp.lt.s32.totalorder %s312, 63
      %s314 = scalar_select %p313, %s312, 63
      %s315 = smul.addr %s314, 8
      %s316 = scalar_lea.vmem %s1, %s315
      %p317 = pneg %p67
      %p318 = pneg %p64
      %p319 = pneg %p88
      %p320 = pneg %p85
      %p321 = pneg %p109
      %p322 = pneg %p106
      %p323 = pneg %p130
      %p324 = pneg %p127
      %p325 = pneg %p151
      %p326 = pneg %p148
      %p327 = pneg %p172
      %p328 = pneg %p169
      %p329 = pneg %p193
      %p330 = pneg %p190
      %p331 = pneg %p214
      %p332 = pneg %p211
      %p333 = pneg %p240
      %p334 = pneg %p237
      %s335 = smul.u32 32, %s20
      %p336 = scmp.lt.s32.totalorder %s335, 63
      %s337 = scalar_select %p336, %s335, 63
      %s338 = smul.addr %s337, 8
      %s339 = scalar_lea.vmem %s9, %s338
      %s340 = smul.u32 32, %s20
      %p341 = scmp.lt.s32.totalorder %s340, 63
      %s342 = scalar_select %p341, %s340, 63
      %s343 = smul.addr %s342, 8
      %s344 = scalar_lea.vmem %s0, %s343
      %s345 = smul.u32 32, %s20
      %s346 = smul.u32 32, %s20
      %p347 = scmp.lt.s32.totalorder %s346, 63
      %s348 = scalar_select %p347, %s346, 63
      %s349 = smul.addr %s348, 8
      %s350 = scalar_lea.vmem %s1, %s349
      %s351 = smul.u32 32, %s20
      %s352 = smul.u32 32, %s20
      %p353 = scmp.lt.s32.totalorder %s352, 63
      %s354 = scalar_select %p353, %s352, 63
      %s355 = smul.addr %s354, 8
      %s356 = scalar_lea.vmem %s9, %s355
      %s357 = smul.u32 32, %s20
      %v359 = vld [vmem:[%s344] sm:$0xff]
      %v360 = vld [vmem:[%s344 + $0x8] sm:$0xff]
      %v361 = vld [vmem:[%s344 + $0x10] sm:$0xff]
      %v362 = vld [vmem:[%s344 + $0x18] sm:$0xff]
      %v363 = vld [vmem:[%s344 + $0x20] sm:$0xff]
      %v364 = vld [vmem:[%s344 + $0x28] sm:$0xff]
      %v365 = vld [vmem:[%s344 + $0x30] sm:$0xff]
      %v366 = vld [vmem:[%s344 + $0x38] sm:$0xff]
      %v367 = vld [vmem:[%s344 + $0x40] sm:$0xff]
      %v368 = vld [vmem:[%s344 + $0x48] sm:$0xff]
      %v369 = vld [vmem:[%s344 + $0x50] sm:$0xff]
      %v370 = vld [vmem:[%s344 + $0x58] sm:$0xff]
      %v371 = vld [vmem:[%s344 + $0x60] sm:$0xff]
      %v372 = vld [vmem:[%s344 + $0x68] sm:$0xff]
      %v373 = vld [vmem:[%s344 + $0x70] sm:$0xff]
      %v374 = vld [vmem:[%s344 + $0x78] sm:$0xff]
      %v375 = vld [vmem:[%s344 + $0x80] sm:$0xff]
      %v376 = vld [vmem:[%s344 + $0x88] sm:$0xff]
      %v377 = vld [vmem:[%s344 + $0x90] sm:$0xff]
      %v378 = vld [vmem:[%s344 + $0x98] sm:$0xff]
      %v379 = vld [vmem:[%s344 + $0xa0] sm:$0xff]
      %v380 = vld [vmem:[%s344 + $0xa8] sm:$0xff]
      %v381 = vld [vmem:[%s344 + $0xb0] sm:$0xff]
      %v382 = vld [vmem:[%s344 + $0xb8] sm:$0xff]
      %v383 = vld [vmem:[%s344 + $0xc0] sm:$0xff]
      %v384 = vld [vmem:[%s344 + $0xc8] sm:$0xff]
      %v385 = vld [vmem:[%s344 + $0xd0] sm:$0xff]
      %v386 = vld [vmem:[%s344 + $0xd8] sm:$0xff]
      %v387 = vld [vmem:[%s344 + $0xe0] sm:$0xff]
      %v388 = vld [vmem:[%s344 + $0xe8] sm:$0xff]
      %v389 = vld [vmem:[%s344 + $0xf0] sm:$0xff]
      %v390 = vld [vmem:[%s344 + $0xf8] sm:$0xff]
      %v391 = vld [vmem:[%s2] sm:$0x3]
      %v392 = vld [vmem:[%s4] sm:$0x1]
      %v393 = vld [vmem:[%s5] sm:$0x1]
      %v394 = vmul.f32 %v391, 0.001953125
      %v395 = vmul.f32 %v394, %v394
      %v397 = vrot.slane %v395, 7
      %v399 = vsub.f32 %v394, %v397
      %v400 = vadd.f32 %v399, 1e-05
      %v401 = vrsqrt.pop %v400
      %v403 = vlaneseq
      %v404 = vshrl.u32 %v403, 7
      %v405 = vsub.s32 0, %v404
      %v406 = vrot.slane %v392, %v405
      %v408 = vmul.f32 %v401, %v406
      %v409 = vlaneseq
      %v410 = vshrl.u32 %v409, 7
      %v411 = vsub.s32 0, %v410
      %v412 = vrot.slane %v394, %v411
      %v413 = vsub.f32 %v359, %v412
      %v414 = vsub.f32 %v360, %v412
      %v415 = vsub.f32 %v361, %v412
      %v416 = vsub.f32 %v362, %v412
      %v417 = vsub.f32 %v363, %v412
      %v418 = vsub.f32 %v364, %v412
      %v419 = vsub.f32 %v365, %v412
      %v420 = vsub.f32 %v366, %v412
      %v421 = vsub.f32 %v367, %v412
      %v422 = vsub.f32 %v368, %v412
      %v423 = vsub.f32 %v369, %v412
      %v424 = vsub.f32 %v370, %v412
      %v425 = vsub.f32 %v371, %v412
      %v426 = vsub.f32 %v372, %v412
      %v427 = vsub.f32 %v373, %v412
      %v428 = vsub.f32 %v374, %v412
      %v429 = vsub.f32 %v375, %v412
      %v430 = vsub.f32 %v376, %v412
      %v431 = vsub.f32 %v377, %v412
      %v432 = vsub.f32 %v378, %v412
      %v433 = vsub.f32 %v379, %v412
      %v434 = vsub.f32 %v380, %v412
      %v435 = vsub.f32 %v381, %v412
      %v436 = vsub.f32 %v382, %v412
      %v437 = vsub.f32 %v383, %v412
      %v438 = vsub.f32 %v384, %v412
      %v439 = vsub.f32 %v385, %v412
      %v440 = vsub.f32 %v386, %v412
      %v441 = vsub.f32 %v387, %v412
      %v442 = vsub.f32 %v388, %v412
      %v443 = vsub.f32 %v389, %v412
      %v444 = vsub.f32 %v390, %v412
      %v445 = vlaneseq
      %v446 = vshrl.u32 %v445, 7
      %v447 = vsub.s32 1, %v446
      %v448 = vrot.slane %v408, %v447
      %v449 = vmul.f32 %v413, %v448
      %v450 = vmul.f32 %v414, %v448
      %v451 = vmul.f32 %v415, %v448
      %v452 = vmul.f32 %v416, %v448
      %v453 = vmul.f32 %v417, %v448
      %v454 = vmul.f32 %v418, %v448
      %v455 = vmul.f32 %v419, %v448
      %v456 = vmul.f32 %v420, %v448
      %v457 = vmul.f32 %v421, %v448
      %v458 = vmul.f32 %v422, %v448
      %v459 = vmul.f32 %v423, %v448
      %v460 = vmul.f32 %v424, %v448
      %v461 = vmul.f32 %v425, %v448
      %v462 = vmul.f32 %v426, %v448
      %v463 = vmul.f32 %v427, %v448
      %v464 = vmul.f32 %v428, %v448
      %v465 = vmul.f32 %v429, %v448
      %v466 = vmul.f32 %v430, %v448
      %v467 = vmul.f32 %v431, %v448
      %v468 = vmul.f32 %v432, %v448
      %v469 = vmul.f32 %v433, %v448
      %v470 = vmul.f32 %v434, %v448
      %v471 = vmul.f32 %v435, %v448
      %v472 = vmul.f32 %v436, %v448
      %v473 = vmul.f32 %v437, %v448
      %v474 = vmul.f32 %v438, %v448
      %v475 = vmul.f32 %v439, %v448
      %v476 = vmul.f32 %v440, %v448
      %v477 = vmul.f32 %v441, %v448
      %v478 = vmul.f32 %v442, %v448
      %v479 = vmul.f32 %v443, %v448
      %v480 = vmul.f32 %v444, %v448
      %v482 = vlaneseq
      %v483 = vshrl.u32 %v482, 7
      %v484 = vsub.s32 0, %v483
      %v485 = vrot.slane %v393, %v484
      %v487 = vadd.f32 %v449, %v485
      %v488 = vadd.f32 %v450, %v485
      %v489 = vadd.f32 %v451, %v485
      %v490 = vadd.f32 %v452, %v485
      %v491 = vadd.f32 %v453, %v485
      %v492 = vadd.f32 %v454, %v485
      %v493 = vadd.f32 %v455, %v485
      %v494 = vadd.f32 %v456, %v485
      %v495 = vadd.f32 %v457, %v485
      %v496 = vadd.f32 %v458, %v485
      %v497 = vadd.f32 %v459, %v485
      %v498 = vadd.f32 %v460, %v485
      %v499 = vadd.f32 %v461, %v485
      %v500 = vadd.f32 %v462, %v485
      %v501 = vadd.f32 %v463, %v485
      %v502 = vadd.f32 %v464, %v485
      %v503 = vadd.f32 %v465, %v485
      %v504 = vadd.f32 %v466, %v485
      %v505 = vadd.f32 %v467, %v485
      %v506 = vadd.f32 %v468, %v485
      %v507 = vadd.f32 %v469, %v485
      %v508 = vadd.f32 %v470, %v485
      %v509 = vadd.f32 %v471, %v485
      %v510 = vadd.f32 %v472, %v485
      %v511 = vadd.f32 %v473, %v485
      %v512 = vadd.f32 %v474, %v485
      %v513 = vadd.f32 %v475, %v485
      %v514 = vadd.f32 %v476, %v485
      %v515 = vadd.f32 %v477, %v485
      %v516 = vadd.f32 %v478, %v485
      %v517 = vadd.f32 %v479, %v485
      %v518 = vadd.f32 %v480, %v485
      %vm519 = vcmp.ge.f32.partialorder %v487, 0.0
      %vm520 = vcmp.ge.f32.partialorder %v488, 0.0
      %vm521 = vcmp.ge.f32.partialorder %v489, 0.0
      %vm522 = vcmp.ge.f32.partialorder %v490, 0.0
      %vm523 = vcmp.ge.f32.partialorder %v491, 0.0
      %vm524 = vcmp.ge.f32.partialorder %v492, 0.0
      %vm525 = vcmp.ge.f32.partialorder %v493, 0.0
      %vm526 = vcmp.ge.f32.partialorder %v494, 0.0
      %vm527 = vcmp.ge.f32.partialorder %v495, 0.0
      %vm528 = vcmp.ge.f32.partialorder %v496, 0.0
      %vm529 = vcmp.ge.f32.partialorder %v497, 0.0
      %vm530 = vcmp.ge.f32.partialorder %v498, 0.0
      %vm531 = vcmp.ge.f32.partialorder %v499, 0.0
      %vm532 = vcmp.ge.f32.partialorder %v500, 0.0
      %vm533 = vcmp.ge.f32.partialorder %v501, 0.0
      %vm534 = vcmp.ge.f32.partialorder %v502, 0.0
      %vm535 = vcmp.ge.f32.partialorder %v503, 0.0
      %vm536 = vcmp.ge.f32.partialorder %v504, 0.0
      %vm537 = vcmp.ge.f32.partialorder %v505, 0.0
      %vm538 = vcmp.ge.f32.partialorder %v506, 0.0
      %vm539 = vcmp.ge.f32.partialorder %v507, 0.0
      %vm540 = vcmp.ge.f32.partialorder %v508, 0.0
      %vm541 = vcmp.ge.f32.partialorder %v509, 0.0
      %vm542 = vcmp.ge.f32.partialorder %v510, 0.0
      %vm543 = vcmp.ge.f32.partialorder %v511, 0.0
      %vm544 = vcmp.ge.f32.partialorder %v512, 0.0
      %vm545 = vcmp.ge.f32.partialorder %v513, 0.0
      %vm546 = vcmp.ge.f32.partialorder %v514, 0.0
      %vm547 = vcmp.ge.f32.partialorder %v515, 0.0
      %vm548 = vcmp.ge.f32.partialorder %v516, 0.0
      %vm549 = vcmp.ge.f32.partialorder %v517, 0.0
      %vm550 = vcmp.ge.f32.partialorder %v518, 0.0
      %v551 = vmul.f32 %v487, 0.01
      %v552 = vmul.f32 %v488, 0.01
      %v553 = vmul.f32 %v489, 0.01
      %v554 = vmul.f32 %v490, 0.01
      %v555 = vmul.f32 %v491, 0.01
      %v556 = vmul.f32 %v492, 0.01
      %v557 = vmul.f32 %v493, 0.01
      %v558 = vmul.f32 %v494, 0.01
      %v559 = vmul.f32 %v495, 0.01
      %v560 = vmul.f32 %v496, 0.01
      %v561 = vmul.f32 %v497, 0.01
      %v562 = vmul.f32 %v498, 0.01
      %v563 = vmul.f32 %v499, 0.01
      %v564 = vmul.f32 %v500, 0.01
      %v565 = vmul.f32 %v501, 0.01
      %v566 = vmul.f32 %v502, 0.01
      %v567 = vmul.f32 %v503, 0.01
      %v568 = vmul.f32 %v504, 0.01
      %v569 = vmul.f32 %v505, 0.01
      %v570 = vmul.f32 %v506, 0.01
      %v571 = vmul.f32 %v507, 0.01
      %v572 = vmul.f32 %v508, 0.01
      %v573 = vmul.f32 %v509, 0.01
      %v574 = vmul.f32 %v510, 0.01
      %v575 = vmul.f32 %v511, 0.01
      %v576 = vmul.f32 %v512, 0.01
      %v577 = vmul.f32 %v513, 0.01
      %v578 = vmul.f32 %v514, 0.01
      %v579 = vmul.f32 %v515, 0.01
      %v580 = vmul.f32 %v516, 0.01
      %v581 = vmul.f32 %v517, 0.01
      %v582 = vmul.f32 %v518, 0.01
      %v583 = vsel %vm519, %v487, %v551
      %v584 = vsel %vm520, %v488, %v552
      %v585 = vsel %vm521, %v489, %v553
      %v586 = vsel %vm522, %v490, %v554
      %v587 = vsel %vm523, %v491, %v555
      %v588 = vsel %vm524, %v492, %v556
      %v589 = vsel %vm525, %v493, %v557
      %v590 = vsel %vm526, %v494, %v558
      %v591 = vsel %vm527, %v495, %v559
      %v592 = vsel %vm528, %v496, %v560
      %v593 = vsel %vm529, %v497, %v561
      %v594 = vsel %vm530, %v498, %v562
      %v595 = vsel %vm531, %v499, %v563
      %v596 = vsel %vm532, %v500, %v564
      %v597 = vsel %vm533, %v501, %v565
      %v598 = vsel %vm534, %v502, %v566
      %v599 = vsel %vm535, %v503, %v567
      %v600 = vsel %vm536, %v504, %v568
      %v601 = vsel %vm537, %v505, %v569
      %v602 = vsel %vm538, %v506, %v570
      %v603 = vsel %vm539, %v507, %v571
      %v604 = vsel %vm540, %v508, %v572
      %v605 = vsel %vm541, %v509, %v573
      %v606 = vsel %vm542, %v510, %v574
      %v607 = vsel %vm543, %v511, %v575
      %v608 = vsel %vm544, %v512, %v576
      %v609 = vsel %vm545, %v513, %v577
      %v610 = vsel %vm546, %v514, %v578
      %v611 = vsel %vm547, %v515, %v579
      %v612 = vsel %vm548, %v516, %v580
      %v613 = vsel %vm549, %v517, %v581
      %v614 = vsel %vm550, %v518, %v582
      %v615 = vpack.c.bf16 %v584, %v583
      %v616 = vpack.c.bf16 %v586, %v585
      %v617 = vpack.c.bf16 %v588, %v587
      %v618 = vpack.c.bf16 %v590, %v589
      %v619 = vpack.c.bf16 %v592, %v591
      %v620 = vpack.c.bf16 %v594, %v593
      %v621 = vpack.c.bf16 %v596, %v595
      %v622 = vpack.c.bf16 %v598, %v597
      %v623 = vpack.c.bf16 %v600, %v599
      %v624 = vpack.c.bf16 %v602, %v601
      %v625 = vpack.c.bf16 %v604, %v603
      %v626 = vpack.c.bf16 %v606, %v605
      %v627 = vpack.c.bf16 %v608, %v607
      %v628 = vpack.c.bf16 %v610, %v609
      %v629 = vpack.c.bf16 %v612, %v611
      %v630 = vpack.c.bf16 %v614, %v613
      %v631 = vld [vmem:[%s8] sm:$0xf]
      %v632 = vld [vmem:[%s8 + $0x4] sm:$0xf]
      %v633 = vld [vmem:[%s8 + $0x8] sm:$0xf]
      %v634 = vld [vmem:[%s8 + $0xc] sm:$0xf]
      %v635 = vld [vmem:[%s8 + $0x10] sm:$0xf]
      %v636 = vld [vmem:[%s8 + $0x14] sm:$0xf]
      %v637 = vld [vmem:[%s8 + $0x18] sm:$0xf]
      %v638 = vld [vmem:[%s8 + $0x1c] sm:$0xf]
      %v639 = vld [vmem:[%s8 + $0x20] sm:$0xf]
      %v640 = vld [vmem:[%s8 + $0x24] sm:$0xf]
      %v641 = vld [vmem:[%s8 + $0x28] sm:$0xf]
      %v642 = vld [vmem:[%s8 + $0x2c] sm:$0xf]
      %v643 = vld [vmem:[%s8 + $0x30] sm:$0xf]
      %v644 = vld [vmem:[%s8 + $0x34] sm:$0xf]
      %v645 = vld [vmem:[%s8 + $0x38] sm:$0xf]
      %v646 = vld [vmem:[%s8 + $0x3c] sm:$0xf]
      %v663 = vunpack.c.l.b16 %v631
      %v664 = vunpack.c.l.b16 %v632
      %v665 = vunpack.c.l.b16 %v633
      %v666 = vunpack.c.l.b16 %v634
      %v667 = vunpack.c.l.b16 %v635
      %v668 = vunpack.c.l.b16 %v636
      %v669 = vunpack.c.l.b16 %v637
      %v670 = vunpack.c.l.b16 %v638
      %v671 = vunpack.c.l.b16 %v639
      %v672 = vunpack.c.l.b16 %v640
      %v673 = vunpack.c.l.b16 %v641
      %v674 = vunpack.c.l.b16 %v642
      %v675 = vunpack.c.l.b16 %v643
      %v676 = vunpack.c.l.b16 %v644
      %v677 = vunpack.c.l.b16 %v645
      %v678 = vunpack.c.l.b16 %v646
      %v679 = vpack.c.b16 %v664, %v663
      %v680 = vpack.c.b16 %v666, %v665
      %v681 = vpack.c.b16 %v668, %v667
      %v682 = vpack.c.b16 %v670, %v669
      %v683 = vpack.c.b16 %v672, %v671
      %v684 = vpack.c.b16 %v674, %v673
      %v685 = vpack.c.b16 %v676, %v675
      %v686 = vpack.c.b16 %v678, %v677
      %695 = vmatprep.subr.bf16.mxu0 0
      %696 = vmatpush1.bf16.msra.mxu0 %v679
      %697 = vmatprep.subr.bf16.mxu0 0
      %698 = vmatpush1.bf16.msra.mxu0 %v680
      %699 = vmatprep.subr.bf16.mxu0 0
      %700 = vmatpush1.bf16.msra.mxu0 %v681
      %701 = vmatprep.subr.bf16.mxu0 0
      %702 = vmatpush1.bf16.msra.mxu0 %v682
      %703 = vmatprep.subr.bf16.mxu0 0
      %704 = vmatpush1.bf16.msra.mxu0 %v683
      %705 = vmatprep.subr.bf16.mxu0 0
      %706 = vmatpush1.bf16.msra.mxu0 %v684
      %707 = vmatprep.subr.bf16.mxu0 0
      %708 = vmatpush1.bf16.msra.mxu0 %v685
      %709 = vmatprep.subr.bf16.mxu0 0
      %710 = vmatpush1.bf16.msra.mxu0 %v686
      %711 = vmatprep.subr.bf16.mxu0 0
      %712 = vmatpush1.bf16.msra.mxu0 0
      %713 = vmatprep.subr.bf16.mxu0 0
      %714 = vmatpush1.bf16.msra.mxu0 0
      %715 = vmatprep.subr.bf16.mxu0 0
      %716 = vmatpush1.bf16.msra.mxu0 0
      %717 = vmatprep.subr.bf16.mxu0 0
      %718 = vmatpush1.bf16.msra.mxu0 0
      %719 = vmatprep.subr.bf16.mxu0 0
      %720 = vmatpush1.bf16.msra.mxu0 0
      %721 = vmatprep.subr.bf16.mxu0 0
      %722 = vmatpush1.bf16.msra.mxu0 0
      %723 = vmatprep.subr.bf16.mxu0 0
      %724 = vmatpush1.bf16.msra.mxu0 0
      %725 = vmatprep.subr.bf16.mxu0 0
      %726 = vmatpush1.bf16.msra.mxu0 0
      %727 = vmatprep.mubr.bf16.mxu0 0
      %728 = vmatmul.mubr.bf16.gmra.mrb[0].mxu0 %v615
      %v729 = vpop.f32.mrb[0].mxu0
      %v730 = vadd.f32 0.0, %v729
      %v731 = vpop.f32.mrb[0].mxu0
      %v732 = vpop.f32.mrb[0].mxu0
      %v733 = vadd.f32 0.0, %v732
      %v734 = vpop.f32.mrb[0].mxu0
      %735 = vmatprep.mubr.bf16.mxu0 0
      %736 = vmatmul.mubr.bf16.gmra.mrb[0].mxu0 %v616
      %v737 = vpop.f32.mrb[0].mxu0
      %v738 = vadd.f32 0.0, %v737
      %v739 = vpop.f32.mrb[0].mxu0
      %v740 = vpop.f32.mrb[0].mxu0
      %v741 = vadd.f32 0.0, %v740
      %v742 = vpop.f32.mrb[0].mxu0
      %743 = vmatprep.mubr.bf16.mxu0 0
      %744 = vmatmul.mubr.bf16.gmra.mrb[0].mxu0 %v617
      %v745 = vpop.f32.mrb[0].mxu0
      %v746 = vadd.f32 0.0, %v745
      %v747 = vpop.f32.mrb[0].mxu0
      %v748 = vpop.f32.mrb[0].mxu0
      %v749 = vadd.f32 0.0, %v748
      %v750 = vpop.f32.mrb[0].mxu0
      %751 = vmatprep.mubr.bf16.mxu0 0
      %752 = vmatmul.mubr.bf16.gmra.mrb[0].mxu0 %v618
      %v753 = vpop.f32.mrb[0].mxu0
      %v754 = vadd.f32 0.0, %v753
      %v755 = vpop.f32.mrb[0].mxu0
      %v756 = vpop.f32.mrb[0].mxu0
      %v757 = vadd.f32 0.0, %v756
      %v758 = vpop.f32.mrb[0].mxu0
      %759 = vmatprep.mubr.bf16.mxu0 0
      %760 = vmatmul.mubr.bf16.gmra.mrb[0].mxu0 %v619
      %v761 = vpop.f32.mrb[0].mxu0
      %v762 = vadd.f32 0.0, %v761
      %v763 = vpop.f32.mrb[0].mxu0
      %v764 = vpop.f32.mrb[0].mxu0
      %v765 = vadd.f32 0.0, %v764
      %v766 = vpop.f32.mrb[0].mxu0
      %767 = vmatprep.mubr.bf16.mxu0 0
      %768 = vmatmul.mubr.bf16.gmra.mrb[0].mxu0 %v620
      %v769 = vpop.f32.mrb[0].mxu0
      %v770 = vadd.f32 0.0, %v769
      %v771 = vpop.f32.mrb[0].mxu0
      %v772 = vpop.f32.mrb[0].mxu0
      %v773 = vadd.f32 0.0, %v772
      %v774 = vpop.f32.mrb[0].mxu0
      %775 = vmatprep.mubr.bf16.mxu0 0
      %776 = vmatmul.mubr.bf16.gmra.mrb[0].mxu0 %v621
      %v777 = vpop.f32.mrb[0].mxu0
      %v778 = vadd.f32 0.0, %v777
      %v779 = vpop.f32.mrb[0].mxu0
      %v780 = vpop.f32.mrb[0].mxu0
      %v781 = vadd.f32 0.0, %v780
      %v782 = vpop.f32.mrb[0].mxu0
      %783 = vmatprep.mubr.bf16.mxu0 0
      %784 = vmatmul.mubr.bf16.gmra.mrb[0].mxu0 %v622
      %v785 = vpop.f32.mrb[0].mxu0
      %v786 = vadd.f32 0.0, %v785
      %v787 = vpop.f32.mrb[0].mxu0
      %v788 = vpop.f32.mrb[0].mxu0
      %v789 = vadd.f32 0.0, %v788
      %v790 = vpop.f32.mrb[0].mxu0
      %791 = vmatprep.mubr.bf16.mxu0 0
      %792 = vmatmul.mubr.bf16.gmra.mrb[0].mxu0 %v623
      %v793 = vpop.f32.mrb[0].mxu0
      %v794 = vadd.f32 0.0, %v793
      %v795 = vpop.f32.mrb[0].mxu0
      %v796 = vpop.f32.mrb[0].mxu0
      %v797 = vadd.f32 0.0, %v796
      %v798 = vpop.f32.mrb[0].mxu0
      %799 = vmatprep.mubr.bf16.mxu0 0
      %800 = vmatmul.mubr.bf16.gmra.mrb[0].mxu0 %v624
      %v801 = vpop.f32.mrb[0].mxu0
      %v802 = vadd.f32 0.0, %v801
      %v803 = vpop.f32.mrb[0].mxu0
      %v804 = vpop.f32.mrb[0].mxu0
      %v805 = vadd.f32 0.0, %v804
      %v806 = vpop.f32.mrb[0].mxu0
      %807 = vmatprep.mubr.bf16.mxu0 0
      %808 = vmatmul.mubr.bf16.gmra.mrb[0].mxu0 %v625
      %v809 = vpop.f32.mrb[0].mxu0
      %v810 = vadd.f32 0.0, %v809
      %v811 = vpop.f32.mrb[0].mxu0
      %v812 = vpop.f32.mrb[0].mxu0
      %v813 = vadd.f32 0.0, %v812
      %v814 = vpop.f32.mrb[0].mxu0
      %815 = vmatprep.mubr.bf16.mxu0 0
      %816 = vmatmul.mubr.bf16.gmra.mrb[0].mxu0 %v626
      %v817 = vpop.f32.mrb[0].mxu0
      %v818 = vadd.f32 0.0, %v817
      %v819 = vpop.f32.mrb[0].mxu0
      %v820 = vpop.f32.mrb[0].mxu0
      %v821 = vadd.f32 0.0, %v820
      %v822 = vpop.f32.mrb[0].mxu0
      %823 = vmatprep.mubr.bf16.mxu0 0
      %824 = vmatmul.mubr.bf16.gmra.mrb[0].mxu0 %v627
      %v825 = vpop.f32.mrb[0].mxu0
      %v826 = vadd.f32 0.0, %v825
      %v827 = vpop.f32.mrb[0].mxu0
      %v828 = vpop.f32.mrb[0].mxu0
      %v829 = vadd.f32 0.0, %v828
      %v830 = vpop.f32.mrb[0].mxu0
      %831 = vmatprep.mubr.bf16.mxu0 0
      %832 = vmatmul.mubr.bf16.gmra.mrb[0].mxu0 %v628
      %v833 = vpop.f32.mrb[0].mxu0
      %v834 = vadd.f32 0.0, %v833
      %v835 = vpop.f32.mrb[0].mxu0
      %v836 = vpop.f32.mrb[0].mxu0
      %v837 = vadd.f32 0.0, %v836
      %v838 = vpop.f32.mrb[0].mxu0
      %839 = vmatprep.mubr.bf16.mxu0 0
      %840 = vmatmul.mubr.bf16.gmra.mrb[0].mxu0 %v629
      %v841 = vpop.f32.mrb[0].mxu0
      %v842 = vadd.f32 0.0, %v841
      %v843 = vpop.f32.mrb[0].mxu0
      %v844 = vpop.f32.mrb[0].mxu0
      %v845 = vadd.f32 0.0, %v844
      %v846 = vpop.f32.mrb[0].mxu0
      %847 = vmatprep.mubr.bf16.mxu0 0
      %848 = vmatmul.mubr.bf16.gmra.mrb[0].mxu0 %v630
      %v849 = vpop.f32.mrb[0].mxu0
      %v850 = vadd.f32 0.0, %v849
      %v851 = vpop.f32.mrb[0].mxu0
      %v852 = vpop.f32.mrb[0].mxu0
      %v853 = vadd.f32 0.0, %v852
      %v854 = vpop.f32.mrb[0].mxu0
      %855 = vdwg.mxu0
      %v856 = vld [vmem:[%s3] sm:$0x3]
      %v857 = vld [vmem:[%s6] sm:$0x1]
      %v858 = vld [vmem:[%s7] sm:$0x1]
      %v859 = vmul.f32 %v856, 0.001953125
      %v860 = vmul.f32 %v859, %v859
      %v862 = vrot.slane %v860, 7
      %v864 = vsub.f32 %v859, %v862
      %v865 = vadd.f32 %v864, 1e-05
      %v866 = vrsqrt.pop %v865
      %v868 = vlaneseq
      %v869 = vshrl.u32 %v868, 7
      %v870 = vsub.s32 0, %v869
      %v871 = vrot.slane %v857, %v870
      %v873 = vmul.f32 %v866, %v871
      %v874 = vlaneseq
      %v875 = vshrl.u32 %v874, 7
      %v876 = vsub.s32 0, %v875
      %v877 = vrot.slane %v859, %v876
      %v878 = vsub.f32 %v730, %v877
      %v879 = vsub.f32 %v733, %v877
      %v880 = vsub.f32 %v738, %v877
      %v881 = vsub.f32 %v741, %v877
      %v882 = vsub.f32 %v746, %v877
      %v883 = vsub.f32 %v749, %v877
      %v884 = vsub.f32 %v754, %v877
      %v885 = vsub.f32 %v757, %v877
      %v886 = vsub.f32 %v762, %v877
      %v887 = vsub.f32 %v765, %v877
      %v888 = vsub.f32 %v770, %v877
      %v889 = vsub.f32 %v773, %v877
      %v890 = vsub.f32 %v778, %v877
      %v891 = vsub.f32 %v781, %v877
      %v892 = vsub.f32 %v786, %v877
      %v893 = vsub.f32 %v789, %v877
      %v894 = vsub.f32 %v794, %v877
      %v895 = vsub.f32 %v797, %v877
      %v896 = vsub.f32 %v802, %v877
      %v897 = vsub.f32 %v805, %v877
      %v898 = vsub.f32 %v810, %v877
      %v899 = vsub.f32 %v813, %v877
      %v900 = vsub.f32 %v818, %v877
      %v901 = vsub.f32 %v821, %v877
      %v902 = vsub.f32 %v826, %v877
      %v903 = vsub.f32 %v829, %v877
      %v904 = vsub.f32 %v834, %v877
      %v905 = vsub.f32 %v837, %v877
      %v906 = vsub.f32 %v842, %v877
      %v907 = vsub.f32 %v845, %v877
      %v908 = vsub.f32 %v850, %v877
      %v909 = vsub.f32 %v853, %v877
      %v910 = vlaneseq
      %v911 = vshrl.u32 %v910, 7
      %v912 = vsub.s32 1, %v911
      %v913 = vrot.slane %v873, %v912
      %v914 = vmul.f32 %v878, %v913
      %v915 = vmul.f32 %v879, %v913
      %v916 = vmul.f32 %v880, %v913
      %v917 = vmul.f32 %v881, %v913
      %v918 = vmul.f32 %v882, %v913
      %v919 = vmul.f32 %v883, %v913
      %v920 = vmul.f32 %v884, %v913
      %v921 = vmul.f32 %v885, %v913
      %v922 = vmul.f32 %v886, %v913
      %v923 = vmul.f32 %v887, %v913
      %v924 = vmul.f32 %v888, %v913
      %v925 = vmul.f32 %v889, %v913
      %v926 = vmul.f32 %v890, %v913
      %v927 = vmul.f32 %v891, %v913
      %v928 = vmul.f32 %v892, %v913
      %v929 = vmul.f32 %v893, %v913
      %v930 = vmul.f32 %v894, %v913
      %v931 = vmul.f32 %v895, %v913
      %v932 = vmul.f32 %v896, %v913
      %v933 = vmul.f32 %v897, %v913
      %v934 = vmul.f32 %v898, %v913
      %v935 = vmul.f32 %v899, %v913
      %v936 = vmul.f32 %v900, %v913
      %v937 = vmul.f32 %v901, %v913
      %v938 = vmul.f32 %v902, %v913
      %v939 = vmul.f32 %v903, %v913
      %v940 = vmul.f32 %v904, %v913
      %v941 = vmul.f32 %v905, %v913
      %v942 = vmul.f32 %v906, %v913
      %v943 = vmul.f32 %v907, %v913
      %v944 = vmul.f32 %v908, %v913
      %v945 = vmul.f32 %v909, %v913
      %v947 = vlaneseq
      %v948 = vshrl.u32 %v947, 7
      %v949 = vsub.s32 0, %v948
      %v950 = vrot.slane %v858, %v949
      %v952 = vadd.f32 %v914, %v950
      %v953 = vadd.f32 %v915, %v950
      %v954 = vadd.f32 %v916, %v950
      %v955 = vadd.f32 %v917, %v950
      %v956 = vadd.f32 %v918, %v950
      %v957 = vadd.f32 %v919, %v950
      %v958 = vadd.f32 %v920, %v950
      %v959 = vadd.f32 %v921, %v950
      %v960 = vadd.f32 %v922, %v950
      %v961 = vadd.f32 %v923, %v950
      %v962 = vadd.f32 %v924, %v950
      %v963 = vadd.f32 %v925, %v950
      %v964 = vadd.f32 %v926, %v950
      %v965 = vadd.f32 %v927, %v950
      %v966 = vadd.f32 %v928, %v950
      %v967 = vadd.f32 %v929, %v950
      %v968 = vadd.f32 %v930, %v950
      %v969 = vadd.f32 %v931, %v950
      %v970 = vadd.f32 %v932, %v950
      %v971 = vadd.f32 %v933, %v950
      %v972 = vadd.f32 %v934, %v950
      %v973 = vadd.f32 %v935, %v950
      %v974 = vadd.f32 %v936, %v950
      %v975 = vadd.f32 %v937, %v950
      %v976 = vadd.f32 %v938, %v950
      %v977 = vadd.f32 %v939, %v950
      %v978 = vadd.f32 %v940, %v950
      %v979 = vadd.f32 %v941, %v950
      %v980 = vadd.f32 %v942, %v950
      %v981 = vadd.f32 %v943, %v950
      %v982 = vadd.f32 %v944, %v950
      %v983 = vadd.f32 %v945, %v950
      %v984 = vld [vmem:[%s350] sm:$0xff]
      %v985 = vld [vmem:[%s350 + $0x8] sm:$0xff]
      %v986 = vld [vmem:[%s350 + $0x10] sm:$0xff]
      %v987 = vld [vmem:[%s350 + $0x18] sm:$0xff]
      %v988 = vld [vmem:[%s350 + $0x20] sm:$0xff]
      %v989 = vld [vmem:[%s350 + $0x28] sm:$0xff]
      %v990 = vld [vmem:[%s350 + $0x30] sm:$0xff]
      %v991 = vld [vmem:[%s350 + $0x38] sm:$0xff]
      %v992 = vld [vmem:[%s350 + $0x40] sm:$0xff]
      %v993 = vld [vmem:[%s350 + $0x48] sm:$0xff]
      %v994 = vld [vmem:[%s350 + $0x50] sm:$0xff]
      %v995 = vld [vmem:[%s350 + $0x58] sm:$0xff]
      %v996 = vld [vmem:[%s350 + $0x60] sm:$0xff]
      %v997 = vld [vmem:[%s350 + $0x68] sm:$0xff]
      %v998 = vld [vmem:[%s350 + $0x70] sm:$0xff]
      %v999 = vld [vmem:[%s350 + $0x78] sm:$0xff]
      %v1000 = vld [vmem:[%s350 + $0x80] sm:$0xff]
      %v1001 = vld [vmem:[%s350 + $0x88] sm:$0xff]
      %v1002 = vld [vmem:[%s350 + $0x90] sm:$0xff]
      %v1003 = vld [vmem:[%s350 + $0x98] sm:$0xff]
      %v1004 = vld [vmem:[%s350 + $0xa0] sm:$0xff]
      %v1005 = vld [vmem:[%s350 + $0xa8] sm:$0xff]
      %v1006 = vld [vmem:[%s350 + $0xb0] sm:$0xff]
      %v1007 = vld [vmem:[%s350 + $0xb8] sm:$0xff]
      %v1008 = vld [vmem:[%s350 + $0xc0] sm:$0xff]
      %v1009 = vld [vmem:[%s350 + $0xc8] sm:$0xff]
      %v1010 = vld [vmem:[%s350 + $0xd0] sm:$0xff]
      %v1011 = vld [vmem:[%s350 + $0xd8] sm:$0xff]
      %v1012 = vld [vmem:[%s350 + $0xe0] sm:$0xff]
      %v1013 = vld [vmem:[%s350 + $0xe8] sm:$0xff]
      %v1014 = vld [vmem:[%s350 + $0xf0] sm:$0xff]
      %v1015 = vld [vmem:[%s350 + $0xf8] sm:$0xff]
      %v1016 = vadd.f32 %v952, %v984
      %v1017 = vadd.f32 %v953, %v985
      %v1018 = vadd.f32 %v954, %v986
      %v1019 = vadd.f32 %v955, %v987
      %v1020 = vadd.f32 %v956, %v988
      %v1021 = vadd.f32 %v957, %v989
      %v1022 = vadd.f32 %v958, %v990
      %v1023 = vadd.f32 %v959, %v991
      %v1024 = vadd.f32 %v960, %v992
      %v1025 = vadd.f32 %v961, %v993
      %v1026 = vadd.f32 %v962, %v994
      %v1027 = vadd.f32 %v963, %v995
      %v1028 = vadd.f32 %v964, %v996
      %v1029 = vadd.f32 %v965, %v997
      %v1030 = vadd.f32 %v966, %v998
      %v1031 = vadd.f32 %v967, %v999
      %v1032 = vadd.f32 %v968, %v1000
      %v1033 = vadd.f32 %v969, %v1001
      %v1034 = vadd.f32 %v970, %v1002
      %v1035 = vadd.f32 %v971, %v1003
      %v1036 = vadd.f32 %v972, %v1004
      %v1037 = vadd.f32 %v973, %v1005
      %v1038 = vadd.f32 %v974, %v1006
      %v1039 = vadd.f32 %v975, %v1007
      %v1040 = vadd.f32 %v976, %v1008
      %v1041 = vadd.f32 %v977, %v1009
      %v1042 = vadd.f32 %v978, %v1010
      %v1043 = vadd.f32 %v979, %v1011
      %v1044 = vadd.f32 %v980, %v1012
      %v1045 = vadd.f32 %v981, %v1013
      %v1046 = vadd.f32 %v982, %v1014
      %v1047 = vadd.f32 %v983, %v1015
      %vm1048 = vcmp.ge.f32.partialorder %v1016, 0.0
      %vm1049 = vcmp.ge.f32.partialorder %v1017, 0.0
      %vm1050 = vcmp.ge.f32.partialorder %v1018, 0.0
      %vm1051 = vcmp.ge.f32.partialorder %v1019, 0.0
      %vm1052 = vcmp.ge.f32.partialorder %v1020, 0.0
      %vm1053 = vcmp.ge.f32.partialorder %v1021, 0.0
      %vm1054 = vcmp.ge.f32.partialorder %v1022, 0.0
      %vm1055 = vcmp.ge.f32.partialorder %v1023, 0.0
      %vm1056 = vcmp.ge.f32.partialorder %v1024, 0.0
      %vm1057 = vcmp.ge.f32.partialorder %v1025, 0.0
      %vm1058 = vcmp.ge.f32.partialorder %v1026, 0.0
      %vm1059 = vcmp.ge.f32.partialorder %v1027, 0.0
      %vm1060 = vcmp.ge.f32.partialorder %v1028, 0.0
      %vm1061 = vcmp.ge.f32.partialorder %v1029, 0.0
      %vm1062 = vcmp.ge.f32.partialorder %v1030, 0.0
      %vm1063 = vcmp.ge.f32.partialorder %v1031, 0.0
      %vm1064 = vcmp.ge.f32.partialorder %v1032, 0.0
      %vm1065 = vcmp.ge.f32.partialorder %v1033, 0.0
      %vm1066 = vcmp.ge.f32.partialorder %v1034, 0.0
      %vm1067 = vcmp.ge.f32.partialorder %v1035, 0.0
      %vm1068 = vcmp.ge.f32.partialorder %v1036, 0.0
      %vm1069 = vcmp.ge.f32.partialorder %v1037, 0.0
      %vm1070 = vcmp.ge.f32.partialorder %v1038, 0.0
      %vm1071 = vcmp.ge.f32.partialorder %v1039, 0.0
      %vm1072 = vcmp.ge.f32.partialorder %v1040, 0.0
      %vm1073 = vcmp.ge.f32.partialorder %v1041, 0.0
      %vm1074 = vcmp.ge.f32.partialorder %v1042, 0.0
      %vm1075 = vcmp.ge.f32.partialorder %v1043, 0.0
      %vm1076 = vcmp.ge.f32.partialorder %v1044, 0.0
      %vm1077 = vcmp.ge.f32.partialorder %v1045, 0.0
      %vm1078 = vcmp.ge.f32.partialorder %v1046, 0.0
      %vm1079 = vcmp.ge.f32.partialorder %v1047, 0.0
      %v1080 = vmul.f32 %v1016, 0.01
      %v1081 = vmul.f32 %v1017, 0.01
      %v1082 = vmul.f32 %v1018, 0.01
      %v1083 = vmul.f32 %v1019, 0.01
      %v1084 = vmul.f32 %v1020, 0.01
      %v1085 = vmul.f32 %v1021, 0.01
      %v1086 = vmul.f32 %v1022, 0.01
      %v1087 = vmul.f32 %v1023, 0.01
      %v1088 = vmul.f32 %v1024, 0.01
      %v1089 = vmul.f32 %v1025, 0.01
      %v1090 = vmul.f32 %v1026, 0.01
      %v1091 = vmul.f32 %v1027, 0.01
      %v1092 = vmul.f32 %v1028, 0.01
      %v1093 = vmul.f32 %v1029, 0.01
      %v1094 = vmul.f32 %v1030, 0.01
      %v1095 = vmul.f32 %v1031, 0.01
      %v1096 = vmul.f32 %v1032, 0.01
      %v1097 = vmul.f32 %v1033, 0.01
      %v1098 = vmul.f32 %v1034, 0.01
      %v1099 = vmul.f32 %v1035, 0.01
      %v1100 = vmul.f32 %v1036, 0.01
      %v1101 = vmul.f32 %v1037, 0.01
      %v1102 = vmul.f32 %v1038, 0.01
      %v1103 = vmul.f32 %v1039, 0.01
      %v1104 = vmul.f32 %v1040, 0.01
      %v1105 = vmul.f32 %v1041, 0.01
      %v1106 = vmul.f32 %v1042, 0.01
      %v1107 = vmul.f32 %v1043, 0.01
      %v1108 = vmul.f32 %v1044, 0.01
      %v1109 = vmul.f32 %v1045, 0.01
      %v1110 = vmul.f32 %v1046, 0.01
      %v1111 = vmul.f32 %v1047, 0.01
      %v1112 = vsel %vm1048, %v1016, %v1080
      %v1113 = vsel %vm1049, %v1017, %v1081
      %v1114 = vsel %vm1050, %v1018, %v1082
      %v1115 = vsel %vm1051, %v1019, %v1083
      %v1116 = vsel %vm1052, %v1020, %v1084
      %v1117 = vsel %vm1053, %v1021, %v1085
      %v1118 = vsel %vm1054, %v1022, %v1086
      %v1119 = vsel %vm1055, %v1023, %v1087
      %v1120 = vsel %vm1056, %v1024, %v1088
      %v1121 = vsel %vm1057, %v1025, %v1089
      %v1122 = vsel %vm1058, %v1026, %v1090
      %v1123 = vsel %vm1059, %v1027, %v1091
      %v1124 = vsel %vm1060, %v1028, %v1092
      %v1125 = vsel %vm1061, %v1029, %v1093
      %v1126 = vsel %vm1062, %v1030, %v1094
      %v1127 = vsel %vm1063, %v1031, %v1095
      %v1128 = vsel %vm1064, %v1032, %v1096
      %v1129 = vsel %vm1065, %v1033, %v1097
      %v1130 = vsel %vm1066, %v1034, %v1098
      %v1131 = vsel %vm1067, %v1035, %v1099
      %v1132 = vsel %vm1068, %v1036, %v1100
      %v1133 = vsel %vm1069, %v1037, %v1101
      %v1134 = vsel %vm1070, %v1038, %v1102
      %v1135 = vsel %vm1071, %v1039, %v1103
      %v1136 = vsel %vm1072, %v1040, %v1104
      %v1137 = vsel %vm1073, %v1041, %v1105
      %v1138 = vsel %vm1074, %v1042, %v1106
      %v1139 = vsel %vm1075, %v1043, %v1107
      %v1140 = vsel %vm1076, %v1044, %v1108
      %v1141 = vsel %vm1077, %v1045, %v1109
      %v1142 = vsel %vm1078, %v1046, %v1110
      %v1143 = vsel %vm1079, %v1047, %v1111
      %1144 = vst [vmem:[%s356] sm:$0xff] %v1112
      %1145 = vst [vmem:[%s356 + $0x8] sm:$0xff] %v1113
      %1146 = vst [vmem:[%s356 + $0x10] sm:$0xff] %v1114
      %1147 = vst [vmem:[%s356 + $0x18] sm:$0xff] %v1115
      %1148 = vst [vmem:[%s356 + $0x20] sm:$0xff] %v1116
      %1149 = vst [vmem:[%s356 + $0x28] sm:$0xff] %v1117
      %1150 = vst [vmem:[%s356 + $0x30] sm:$0xff] %v1118
      %1151 = vst [vmem:[%s356 + $0x38] sm:$0xff] %v1119
      %1152 = vst [vmem:[%s356 + $0x40] sm:$0xff] %v1120
      %1153 = vst [vmem:[%s356 + $0x48] sm:$0xff] %v1121
      %1154 = vst [vmem:[%s356 + $0x50] sm:$0xff] %v1122
      %1155 = vst [vmem:[%s356 + $0x58] sm:$0xff] %v1123
      %1156 = vst [vmem:[%s356 + $0x60] sm:$0xff] %v1124
      %1157 = vst [vmem:[%s356 + $0x68] sm:$0xff] %v1125
      %1158 = vst [vmem:[%s356 + $0x70] sm:$0xff] %v1126
      %1159 = vst [vmem:[%s356 + $0x78] sm:$0xff] %v1127
      %1160 = vst [vmem:[%s356 + $0x80] sm:$0xff] %v1128
      %1161 = vst [vmem:[%s356 + $0x88] sm:$0xff] %v1129
      %1162 = vst [vmem:[%s356 + $0x90] sm:$0xff] %v1130
      %1163 = vst [vmem:[%s356 + $0x98] sm:$0xff] %v1131
      %1164 = vst [vmem:[%s356 + $0xa0] sm:$0xff] %v1132
      %1165 = vst [vmem:[%s356 + $0xa8] sm:$0xff] %v1133
      %1166 = vst [vmem:[%s356 + $0xb0] sm:$0xff] %v1134
      %1167 = vst [vmem:[%s356 + $0xb8] sm:$0xff] %v1135
      %1168 = vst [vmem:[%s356 + $0xc0] sm:$0xff] %v1136
      %1169 = vst [vmem:[%s356 + $0xc8] sm:$0xff] %v1137
      %1170 = vst [vmem:[%s356 + $0xd0] sm:$0xff] %v1138
      %1171 = vst [vmem:[%s356 + $0xd8] sm:$0xff] %v1139
      %1172 = vst [vmem:[%s356 + $0xe0] sm:$0xff] %v1140
      %1173 = vst [vmem:[%s356 + $0xe8] sm:$0xff] %v1141
      %1174 = vst [vmem:[%s356 + $0xf0] sm:$0xff] %v1142
      %1175 = vst [vmem:[%s356 + $0xf8] sm:$0xff] %v1143
      %s1176 = smul.u32 32, %s20
      %p1177 = scmp.lt.s32.totalorder %s1176, 63
      %s1178 = scalar_select %p1177, %s1176, 63
      %s1179 = smul.addr %s1178, 8
      %s1180 = scalar_lea.vmem %s9, %s1179
      // Predicated region
      $region57: #{block_forward.7} parent=55 // pred_check
        %p1181 = pneg %p237
      $region58: #{block_forward.7} parent=55 // pred_check_branch
        %1183 = sbr.rel (%p1181) target = $region60
      $region59: #{block_forward.7} parent=55 // pred_region
        %s1184 = smul.u32 32, %s20
      $region60: #{block_forward.7} parent=55 // pred_fallthru
        _
    $region56: #{block_forward.7} parent=5 // pred_fallthru
      _
    %p1185 = scmp.le.s32.totalorder 2, %s15
    // Predicated region
    $region61: #{block_forward.7} parent=5 // pred_check
      %p1186 = pneg %p1185
    $region62: #{block_forward.7} parent=5 // pred_check_branch
      %1188 = sbr.rel (%p1186) target = $region64
    $region63: #{block_forward.7} parent=5 // pred_region
      %s1189 = ssub.s32 %s15, 2
      // Predicated region
      $region65: #{block_forward.7} parent=63 // pred_check
        %p1190 = pneg %p243
      $region66: #{block_forward.7} parent=63 // pred_check_branch
        %1192 = sbr.rel (%p1190) target = $region68
      $region67: #{block_forward.7} parent=63 // pred_region
        %s1193 = smul.u32 32, %s21
        %p1194 = scmp.lt.s32.totalorder %s1193, 63
        %s1195 = scalar_select %p1194, %s1193, 63
        %s1196 = smul.addr %s1195, 8
        %s1197 = scalar_lea.vmem %s9, %s1196
      $region68: #{block_forward.7} parent=63 // pred_fallthru
        _
    $region64: #{block_forward.7} parent=5 // pred_fallthru
      _
  $region6: #{block_forward.7} parent=0 // loop_footer
    %s19 = sadd.s32 1, %s15
  $region7: #{block_forward.7} parent=0 // loop_footer_branch
    %14 = sbr.rel target = $region3
  $region8: #{block_forward.7} parent=0 // loop_exit
    _

// kernel: block_forward.5
$region0: #{block_forward.5}
  #allocation0 [shape = 'u32[]', space=smem, size = 0x4, offset = 0x4, fixed_abs, tag = 'smem constant byte address 0x4 - core index']
  #allocation1 [shape = 'u32[144,128]{1,0:T(1,128)}', space=vmem, size = 0x12000, scoped, tag = 'internal scratch']
  #allocation2 [shape = 'f32[18,18,128]{2,1,0:T(8,128)}', space=vmem, size = 0x36000, scoped, tag = 'scratch operand']
  %s0 = inlined_call_operand.vmem [shape: f32[2,16,16,128], index: 0, kind: input, shape index: {}]
  %s1 = inlined_call_operand.vmem [shape: f32[2,128], index: 1, kind: input, shape index: {}]
  %s2 = inlined_call_operand.vmem [shape: f32[1,128], index: 2, kind: input, shape index: {}]
  %s3 = inlined_call_operand.vmem [shape: f32[1,128], index: 3, kind: input, shape index: {}, may-alias: {3,5}]
  %s4 = inlined_call_operand.vmem [shape: bf16[9,128,128], index: 4, kind: input, shape index: {}]
  %s5 = inlined_call_operand.vmem [shape: f32[1,128], index: 5, kind: input, shape index: {}, may-alias: {3,5}]
  %s6 = inlined_call_operand.vmem [shape: f32[2,256,128], index: 6, kind: output, shape index: {0}]
  %s7 = inlined_call_operand.vmem [shape: f32[2,128], index: 7, kind: output, shape index: {1}]
  %8 = xla_tuple %s6, %s7
  %s9 = sld [smem:[#allocation0]]
  $region73: #{block_forward.5} parent=0
    _
  %s11 = ssub.s32 1, %s9
  %s12 = scalar_select 0, %s11, %s9
  loop: start=0, step=1, limit=4
  $region2: #{block_forward.5} parent=0 // loop_pre_header
    _
  $region3: #{block_forward.5} parent=0 // loop_header
    %s14 = sphi 0, %s18
    %p15 = scmp.ge.s32.totalorder %s14, 4
    %s24 = sphi 0, %s26
    %s27 = sphi 0, %s24
    %s28 = sphi 0, %s27
    %s44 = sphi 0, %s28
    %s48 = sphi 0, %s48
    %s50 = sphi 0, %s48
    %s51 = sphi 0, %s50
    %s65 = sphi 0, %s51
    %s69 = sphi 0, %s69
    %s71 = sphi 0, %s69
    %s72 = sphi 0, %s71
    %s86 = sphi 0, %s72
    %s90 = sphi 0, %s90
    %s92 = sphi 0, %s90
    %s93 = sphi 0, %s92
    %s107 = sphi 0, %s93
    %s111 = sphi 0, %s111
    %s113 = sphi 0, %s111
    %s114 = sphi 0, %s113
    %s128 = sphi 0, %s114
    %s132 = sphi 0, %s132
    %s134 = sphi 0, %s132
    %s135 = sphi 0, %s134
    %s149 = sphi 0, %s135
    %s155 = sphi 0, %s157
    %s158 = sphi 0, %s155
    %s159 = sphi 0, %s158
    %s175 = sphi 0, %s159
    %s179 = sphi 0, %s179
    %s181 = sphi 0, %s179
    %s182 = sphi 0, %s181
    %s196 = sphi 0, %s182
  $region4: #{block_forward.5} parent=0 // loop_header_branch
    %17 = sbr.rel (%p15) target = $region8
  $region5: #{block_forward.5} parent=0 // loop_body
    %s19 = ssub.s32 %s14, 1
    %s20 = ssub.s32 %s14, 2
    %s21 = sadd.s32 %s14, 1
    %s22 = ssub.s32 %s14, %s21
    %p23 = scmp.eq.s32.totalorder %s22, 0
    %s25 = sadd.s32 %s24, 1
    %s26 = scalar_select %p23, %s24, %s25
    %p29 = pneg %p23
    %p30 = scmp.eq.s32.totalorder %s14, 1
    %p31 = por %p29, %p30
    %p32 = scmp.ne.s32.totalorder %s24, %s27
    %p33 = scmp.eq.s32.totalorder %s14, 0
    %p34 = por %p32, %p33
    %p35 = scmp.ne.s32.totalorder %s24, %s27
    %p36 = scmp.eq.s32.totalorder %s19, 1
    %p37 = por %p35, %p36
    %p38 = scmp.ne.s32.totalorder %s27, %s28
    %p39 = scmp.eq.s32.totalorder %s19, 0
    %p40 = por %p38, %p39
    %p41 = scmp.ne.s32.totalorder %s27, %s28
    %p42 = scmp.eq.s32.totalorder %s20, 1
    %p43 = por %p41, %p42
    %p45 = scmp.ne.s32.totalorder %s28, %s44
    %p46 = scmp.eq.s32.totalorder %s20, 0
    %p47 = por %p45, %p46
    %s49 = sadd.s32 %s48, 1
    %p52 = scmp.eq.s32.totalorder %s14, 1
    %p53 = scmp.ne.s32.totalorder %s48, %s50
    %p54 = scmp.eq.s32.totalorder %s14, 0
    %p55 = por %p53, %p54
    %p56 = scmp.ne.s32.totalorder %s48, %s50
    %p57 = scmp.eq.s32.totalorder %s19, 1
    %p58 = por %p56, %p57
    %p59 = scmp.ne.s32.totalorder %s50, %s51
    %p60 = scmp.eq.s32.totalorder %s19, 0
    %p61 = por %p59, %p60
    %p62 = scmp.ne.s32.totalorder %s50, %s51
    %p63 = scmp.eq.s32.totalorder %s20, 1
    %p64 = por %p62, %p63
    %p66 = scmp.ne.s32.totalorder %s51, %s65
    %p67 = scmp.eq.s32.totalorder %s20, 0
    %p68 = por %p66, %p67
    %s70 = sadd.s32 %s69, 1
    %p73 = scmp.eq.s32.totalorder %s14, 1
    %p74 = scmp.ne.s32.totalorder %s69, %s71
    %p75 = scmp.eq.s32.totalorder %s14, 0
    %p76 = por %p74, %p75
    %p77 = scmp.ne.s32.totalorder %s69, %s71
    %p78 = scmp.eq.s32.totalorder %s19, 1
    %p79 = por %p77, %p78
    %p80 = scmp.ne.s32.totalorder %s71, %s72
    %p81 = scmp.eq.s32.totalorder %s19, 0
    %p82 = por %p80, %p81
    %p83 = scmp.ne.s32.totalorder %s71, %s72
    %p84 = scmp.eq.s32.totalorder %s20, 1
    %p85 = por %p83, %p84
    %p87 = scmp.ne.s32.totalorder %s72, %s86
    %p88 = scmp.eq.s32.totalorder %s20, 0
    %p89 = por %p87, %p88
    %s91 = sadd.s32 %s90, 1
    %p94 = scmp.eq.s32.totalorder %s14, 1
    %p95 = scmp.ne.s32.totalorder %s90, %s92
    %p96 = scmp.eq.s32.totalorder %s14, 0
    %p97 = por %p95, %p96
    %p98 = scmp.ne.s32.totalorder %s90, %s92
    %p99 = scmp.eq.s32.totalorder %s19, 1
    %p100 = por %p98, %p99
    %p101 = scmp.ne.s32.totalorder %s92, %s93
    %p102 = scmp.eq.s32.totalorder %s19, 0
    %p103 = por %p101, %p102
    %p104 = scmp.ne.s32.totalorder %s92, %s93
    %p105 = scmp.eq.s32.totalorder %s20, 1
    %p106 = por %p104, %p105
    %p108 = scmp.ne.s32.totalorder %s93, %s107
    %p109 = scmp.eq.s32.totalorder %s20, 0
    %p110 = por %p108, %p109
    %s112 = sadd.s32 %s111, 1
    %p115 = scmp.eq.s32.totalorder %s14, 1
    %p116 = scmp.ne.s32.totalorder %s111, %s113
    %p117 = scmp.eq.s32.totalorder %s14, 0
    %p118 = por %p116, %p117
    %p119 = scmp.ne.s32.totalorder %s111, %s113
    %p120 = scmp.eq.s32.totalorder %s19, 1
    %p121 = por %p119, %p120
    %p122 = scmp.ne.s32.totalorder %s113, %s114
    %p123 = scmp.eq.s32.totalorder %s19, 0
    %p124 = por %p122, %p123
    %p125 = scmp.ne.s32.totalorder %s113, %s114
    %p126 = scmp.eq.s32.totalorder %s20, 1
    %p127 = por %p125, %p126
    %p129 = scmp.ne.s32.totalorder %s114, %s128
    %p130 = scmp.eq.s32.totalorder %s20, 0
    %p131 = por %p129, %p130
    %s133 = sadd.s32 %s132, 1
    %p136 = scmp.eq.s32.totalorder %s14, 1
    %p137 = scmp.ne.s32.totalorder %s132, %s134
    %p138 = scmp.eq.s32.totalorder %s14, 0
    %p139 = por %p137, %p138
    %p140 = scmp.ne.s32.totalorder %s132, %s134
    %p141 = scmp.eq.s32.totalorder %s19, 1
    %p142 = por %p140, %p141
    %p143 = scmp.ne.s32.totalorder %s134, %s135
    %p144 = scmp.eq.s32.totalorder %s19, 0
    %p145 = por %p143, %p144
    %p146 = scmp.ne.s32.totalorder %s134, %s135
    %p147 = scmp.eq.s32.totalorder %s20, 1
    %p148 = por %p146, %p147
    %p150 = scmp.ne.s32.totalorder %s135, %s149
    %p151 = scmp.eq.s32.totalorder %s20, 0
    %p152 = por %p150, %p151
    %s153 = ssub.s32 %s14, %s21
    %p154 = scmp.eq.s32.totalorder %s153, 0
    %s156 = sadd.s32 %s155, 1
    %s157 = scalar_select %p154, %s155, %s156
    %p160 = pneg %p154
    %p161 = scmp.eq.s32.totalorder %s14, 1
    %p162 = por %p160, %p161
    %p163 = scmp.ne.s32.totalorder %s155, %s158
    %p164 = scmp.eq.s32.totalorder %s14, 0
    %p165 = por %p163, %p164
    %p166 = scmp.ne.s32.totalorder %s155, %s158
    %p167 = scmp.eq.s32.totalorder %s19, 1
    %p168 = por %p166, %p167
    %p169 = scmp.ne.s32.totalorder %s158, %s159
    %p170 = scmp.eq.s32.totalorder %s19, 0
    %p171 = por %p169, %p170
    %p172 = scmp.ne.s32.totalorder %s158, %s159
    %p173 = scmp.eq.s32.totalorder %s20, 1
    %p174 = por %p172, %p173
    %p176 = scmp.ne.s32.totalorder %s159, %s175
    %p177 = scmp.eq.s32.totalorder %s20, 0
    %p178 = por %p176, %p177
    %s180 = sadd.s32 %s179, 1
    %p183 = scmp.eq.s32.totalorder %s14, 1
    %p184 = scmp.ne.s32.totalorder %s179, %s181
    %p185 = scmp.eq.s32.totalorder %s14, 0
    %p186 = por %p184, %p185
    %p187 = scmp.ne.s32.totalorder %s179, %s181
    %p188 = scmp.eq.s32.totalorder %s19, 1
    %p189 = por %p187, %p188
    %p190 = scmp.ne.s32.totalorder %s181, %s182
    %p191 = scmp.eq.s32.totalorder %s19, 0
    %p192 = por %p190, %p191
    %p193 = scmp.ne.s32.totalorder %s181, %s182
    %p194 = scmp.eq.s32.totalorder %s20, 1
    %p195 = por %p193, %p194
    %p197 = scmp.ne.s32.totalorder %s182, %s196
    %p198 = scmp.eq.s32.totalorder %s20, 0
    %p199 = por %p197, %p198
    %p200 = scmp.le.s32.totalorder 1, %s14
    %p201 = scmp.lt.s32.totalorder %s14, 3
    %p202 = pnand %p200, %p201
    %p203 = pneg %p202
    // Predicated region
    $region9: #{block_forward.5} parent=5 // pred_check
      _
    $region10: #{block_forward.5} parent=5 // pred_check_branch
      %205 = sbr.rel (%p202) target = $region12
    $region11: #{block_forward.5} parent=5 // pred_region
      %s206 = ssub.s32 %s14, 1
      // Predicated region
      $region13: #{block_forward.5} parent=11 // pred_check
        %p207 = pneg %p61
      $region14: #{block_forward.5} parent=11 // pred_check_branch
        %209 = sbr.rel (%p207) target = $region16
      $region15: #{block_forward.5} parent=11 // pred_region
        _
      $region16: #{block_forward.5} parent=11 // pred_fallthru
        _
      // Predicated region
      $region17: #{block_forward.5} parent=11 // pred_check
        %p210 = pneg %p82
      $region18: #{block_forward.5} parent=11 // pred_check_branch
        %212 = sbr.rel (%p210) target = $region20
      $region19: #{block_forward.5} parent=11 // pred_region
        _
      $region20: #{block_forward.5} parent=11 // pred_fallthru
        _
      // Predicated region
      $region21: #{block_forward.5} parent=11 // pred_check
        %p213 = pneg %p103
      $region22: #{block_forward.5} parent=11 // pred_check_branch
        %215 = sbr.rel (%p213) target = $region24
      $region23: #{block_forward.5} parent=11 // pred_region
        _
      $region24: #{block_forward.5} parent=11 // pred_fallthru
        _
      // Predicated region
      $region25: #{block_forward.5} parent=11 // pred_check
        %p216 = pneg %p124
      $region26: #{block_forward.5} parent=11 // pred_check_branch
        %218 = sbr.rel (%p216) target = $region28
      $region27: #{block_forward.5} parent=11 // pred_region
        _
      $region28: #{block_forward.5} parent=11 // pred_fallthru
        _
      // Predicated region
      $region29: #{block_forward.5} parent=11 // pred_check
        %p219 = pneg %p145
      $region30: #{block_forward.5} parent=11 // pred_check_branch
        %221 = sbr.rel (%p219) target = $region32
      $region31: #{block_forward.5} parent=11 // pred_region
        _
      $region32: #{block_forward.5} parent=11 // pred_fallthru
        _
    $region12: #{block_forward.5} parent=5 // pred_fallthru
      _
    %p222 = scmp.lt.s32.totalorder %s14, 2
    // Predicated region
    $region33: #{block_forward.5} parent=5 // pred_check
      %p223 = pneg %p222
    $region34: #{block_forward.5} parent=5 // pred_check_branch
      %225 = sbr.rel (%p223) target = $region36
    $region35: #{block_forward.5} parent=5 // pred_region
      // Predicated region
      $region37: #{block_forward.5} parent=35 // pred_check
        %p226 = pneg %p34
      $region38: #{block_forward.5} parent=35 // pred_check_branch
        %228 = sbr.rel (%p226) target = $region40
      $region39: #{block_forward.5} parent=35 // pred_region
        %p229 = scmp.lt.s32.totalorder %s14, 1
        %s230 = scalar_select %p229, %s14, 1
        %s231 = smul.addr %s230, 32
        %s232 = smul.addr %s231, 8
        %s233 = scalar_lea.vmem %s0, %s232
      $region40: #{block_forward.5} parent=35 // pred_fallthru
        _
    $region36: #{block_forward.5} parent=5 // pred_fallthru
      _
    %p234 = scmp.le.s32.totalorder 1, %s14
    %p235 = scmp.lt.s32.totalorder %s14, 3
    %p236 = pnand %p234, %p235
    %p237 = pneg %p236
    // Predicated region
    $region41: #{block_forward.5} parent=5 // pred_check
      _
    $region42: #{block_forward.5} parent=5 // pred_check_branch
      %239 = sbr.rel (%p236) target = $region44
    $region43: #{block_forward.5} parent=5 // pred_region
      %s240 = ssub.s32 %s14, 1
      %p241 = scmp.lt.s32.totalorder %s19, 1
      %s242 = scalar_select %p241, %s19, 1
      %s243 = smul.addr %s242, 32
      %s244 = smul.addr %s243, 8
      %s245 = scalar_lea.vmem %s0, %s244
      %p246 = pneg %p40
      %p247 = pneg %p37
      %p248 = pneg %p61
      %p249 = pneg %p58
      %p250 = pneg %p82
      %p251 = pneg %p79
      %p252 = pneg %p103
      %p253 = pneg %p100
      %p254 = pneg %p124
      %p255 = pneg %p121
      %p256 = pneg %p145
      %p257 = pneg %p142
      %p258 = pneg %p171
      %p259 = pneg %p168
      %p260 = scmp.lt.s32.totalorder %s19, 1
      %s261 = scalar_select %p260, %s19, 1
      %s262 = smul.addr %s261, 32
      %s263 = smul.addr %s262, 8
      %s264 = scalar_lea.vmem %s6, %s263
      %p265 = pneg %p192
      %p266 = pneg %p189
      %p267 = scmp.lt.s32.totalorder %s19, 1
      %s268 = scalar_select %p267, %s19, 1
      %s269 = smul.addr %s268, 32
      %s270 = smul.addr %s269, 8
      %s271 = scalar_lea.vmem %s0, %s270
      %p272 = scmp.lt.s32.totalorder %s19, 1
      %s273 = scalar_select %p272, %s19, 1
      %s274 = smul.addr %s273, 32
      %s275 = smul.addr %s274, 8
      %s276 = scalar_lea.vmem %s6, %s275
      %p278 = scmp.eq.s32.totalorder %s19, 0
      // Predicated region
      $region45: #{block_forward.5} parent=43 // pred_check
        %p279 = pneg %p278
      $region46: #{block_forward.5} parent=43 // pred_check_branch
        %281 = sbr.rel (%p279) target = $region48
      $region47: #{block_forward.5} parent=43 // pred_region
        %282 = vst [vmem:[#allocation2] sm:$0xff] 0.0
        %283 = vst [vmem:[#allocation2 + $0x8] sm:$0xff] 0.0
        %284 = vst [vmem:[#allocation2 + $0x10] sm:$0x3] 0.0
        %285 = vst [vmem:[#allocation2 + $0x18] sm:$0xff] 0.0
        %286 = vst [vmem:[#allocation2 + $0x20] sm:$0xff] 0.0
        %287 = vst [vmem:[#allocation2 + $0x28] sm:$0x3] 0.0
        %288 = vst [vmem:[#allocation2 + $0x30] sm:$0xff] 0.0
        %289 = vst [vmem:[#allocation2 + $0x38] sm:$0xff] 0.0
        %290 = vst [vmem:[#allocation2 + $0x40] sm:$0x3] 0.0
        %291 = vst [vmem:[#allocation2 + $0x48] sm:$0xff] 0.0
        %292 = vst [vmem:[#allocation2 + $0x50] sm:$0xff] 0.0
        %293 = vst [vmem:[#allocation2 + $0x58] sm:$0x3] 0.0
        %294 = vst [vmem:[#allocation2 + $0x60] sm:$0xff] 0.0
        %295 = vst [vmem:[#allocation2 + $0x68] sm:$0xff] 0.0
        %296 = vst [vmem:[#allocation2 + $0x70] sm:$0x3] 0.0
        %297 = vst [vmem:[#allocation2 + $0x78] sm:$0xff] 0.0
        %298 = vst [vmem:[#allocation2 + $0x80] sm:$0xff] 0.0
        %299 = vst [vmem:[#allocation2 + $0x88] sm:$0x3] 0.0
        %300 = vst [vmem:[#allocation2 + $0x90] sm:$0xff] 0.0
        %301 = vst [vmem:[#allocation2 + $0x98] sm:$0xff] 0.0
        %302 = vst [vmem:[#allocation2 + $0xa0] sm:$0x3] 0.0
        %303 = vst [vmem:[#allocation2 + $0xa8] sm:$0xff] 0.0
        %304 = vst [vmem:[#allocation2 + $0xb0] sm:$0xff] 0.0
        %305 = vst [vmem:[#allocation2 + $0xb8] sm:$0x3] 0.0
        %306 = vst [vmem:[#allocation2 + $0xc0] sm:$0xff] 0.0
        %307 = vst [vmem:[#allocation2 + $0xc8] sm:$0xff] 0.0
        %308 = vst [vmem:[#allocation2 + $0xd0] sm:$0x3] 0.0
        %309 = vst [vmem:[#allocation2 + $0xd8] sm:$0xff] 0.0
        %310 = vst [vmem:[#allocation2 + $0xe0] sm:$0xff] 0.0
        %311 = vst [vmem:[#allocation2 + $0xe8] sm:$0x3] 0.0
        %312 = vst [vmem:[#allocation2 + $0xf0] sm:$0xff] 0.0
        %313 = vst [vmem:[#allocation2 + $0xf8] sm:$0xff] 0.0
        %314 = vst [vmem:[#allocation2 + $0x100] sm:$0x3] 0.0
        %315 = vst [vmem:[#allocation2 + $0x108] sm:$0xff] 0.0
        %316 = vst [vmem:[#allocation2 + $0x110] sm:$0xff] 0.0
        %317 = vst [vmem:[#allocation2 + $0x118] sm:$0x3] 0.0
        %318 = vst [vmem:[#allocation2 + $0x120] sm:$0xff] 0.0
        %319 = vst [vmem:[#allocation2 + $0x128] sm:$0xff] 0.0
        %320 = vst [vmem:[#allocation2 + $0x130] sm:$0x3] 0.0
        %321 = vst [vmem:[#allocation2 + $0x138] sm:$0xff] 0.0
        %322 = vst [vmem:[#allocation2 + $0x140] sm:$0xff] 0.0
        %323 = vst [vmem:[#allocation2 + $0x148] sm:$0x3] 0.0
        %324 = vst [vmem:[#allocation2 + $0x150] sm:$0xff] 0.0
        %325 = vst [vmem:[#allocation2 + $0x158] sm:$0xff] 0.0
        %326 = vst [vmem:[#allocation2 + $0x160] sm:$0x3] 0.0
        %327 = vst [vmem:[#allocation2 + $0x168] sm:$0xff] 0.0
        %328 = vst [vmem:[#allocation2 + $0x170] sm:$0xff] 0.0
        %329 = vst [vmem:[#allocation2 + $0x178] sm:$0x3] 0.0
        %330 = vst [vmem:[#allocation2 + $0x180] sm:$0xff] 0.0
        %331 = vst [vmem:[#allocation2 + $0x188] sm:$0xff] 0.0
        %332 = vst [vmem:[#allocation2 + $0x190] sm:$0x3] 0.0
        %333 = vst [vmem:[#allocation2 + $0x198] sm:$0xff] 0.0
        %334 = vst [vmem:[#allocation2 + $0x1a0] sm:$0xff] 0.0
        %335 = vst [vmem:[#allocation2 + $0x1a8] sm:$0x3] 0.0
      $region48: #{block_forward.5} parent=43 // pred_fallthru
        _
      %v336 = vld [vmem:[%s271] sm:$0xff]
      %v337 = vld [vmem:[%s271 + $0x8] sm:$0xff]
      %v338 = vld [vmem:[%s271 + $0x10] sm:$0xff]
      %v339 = vld [vmem:[%s271 + $0x18] sm:$0xff]
      %v340 = vld [vmem:[%s271 + $0x20] sm:$0xff]
      %v341 = vld [vmem:[%s271 + $0x28] sm:$0xff]
      %v342 = vld [vmem:[%s271 + $0x30] sm:$0xff]
      %v343 = vld [vmem:[%s271 + $0x38] sm:$0xff]
      %v344 = vld [vmem:[%s271 + $0x40] sm:$0xff]
      %v345 = vld [vmem:[%s271 + $0x48] sm:$0xff]
      %v346 = vld [vmem:[%s271 + $0x50] sm:$0xff]
      %v347 = vld [vmem:[%s271 + $0x58] sm:$0xff]
      %v348 = vld [vmem:[%s271 + $0x60] sm:$0xff]
      %v349 = vld [vmem:[%s271 + $0x68] sm:$0xff]
      %v350 = vld [vmem:[%s271 + $0x70] sm:$0xff]
      %v351 = vld [vmem:[%s271 + $0x78] sm:$0xff]
      %v352 = vld [vmem:[%s271 + $0x80] sm:$0xff]
      %v353 = vld [vmem:[%s271 + $0x88] sm:$0xff]
      %v354 = vld [vmem:[%s271 + $0x90] sm:$0xff]
      %v355 = vld [vmem:[%s271 + $0x98] sm:$0xff]
      %v356 = vld [vmem:[%s271 + $0xa0] sm:$0xff]
      %v357 = vld [vmem:[%s271 + $0xa8] sm:$0xff]
      %v358 = vld [vmem:[%s271 + $0xb0] sm:$0xff]
      %v359 = vld [vmem:[%s271 + $0xb8] sm:$0xff]
      %v360 = vld [vmem:[%s271 + $0xc0] sm:$0xff]
      %v361 = vld [vmem:[%s271 + $0xc8] sm:$0xff]
      %v362 = vld [vmem:[%s271 + $0xd0] sm:$0xff]
      %v363 = vld [vmem:[%s271 + $0xd8] sm:$0xff]
      %v364 = vld [vmem:[%s271 + $0xe0] sm:$0xff]
      %v365 = vld [vmem:[%s271 + $0xe8] sm:$0xff]
      %v366 = vld [vmem:[%s271 + $0xf0] sm:$0xff]
      %v367 = vld [vmem:[%s271 + $0xf8] sm:$0xff]
      %v368 = vld [vmem:[%s1] sm:$0x3]
      %v369 = vld [vmem:[%s2] sm:$0x1]
      %v370 = vld [vmem:[%s3] sm:$0x1]
      %v371 = vmul.f32 %v368, 0.001953125
      %v372 = vmul.f32 %v371, %v371
      %v374 = vrot.slane %v372, 7
      %v376 = vsub.f32 %v371, %v374
      %v377 = vadd.f32 %v376, 1e-05
      %v378 = vrsqrt.pop %v377
      %v380 = vlaneseq
      %v381 = vshrl.u32 %v380, 7
      %v382 = vsub.s32 0, %v381
      %v383 = vrot.slane %v369, %v382
      %v385 = vmul.f32 %v378, %v383
      %v386 = vlaneseq
      %v387 = vshrl.u32 %v386, 7
      %v388 = vsub.s32 0, %v387
      %v389 = vrot.slane %v371, %v388
      %v390 = vsub.f32 %v336, %v389
      %v391 = vsub.f32 %v337, %v389
      %v392 = vsub.f32 %v338, %v389
      %v393 = vsub.f32 %v339, %v389
      %v394 = vsub.f32 %v340, %v389
      %v395 = vsub.f32 %v341, %v389
      %v396 = vsub.f32 %v342, %v389
      %v397 = vsub.f32 %v343, %v389
      %v398 = vsub.f32 %v344, %v389
      %v399 = vsub.f32 %v345, %v389
      %v400 = vsub.f32 %v346, %v389
      %v401 = vsub.f32 %v347, %v389
      %v402 = vsub.f32 %v348, %v389
      %v403 = vsub.f32 %v349, %v389
      %v404 = vsub.f32 %v350, %v389
      %v405 = vsub.f32 %v351, %v389
      %v406 = vsub.f32 %v352, %v389
      %v407 = vsub.f32 %v353, %v389
      %v408 = vsub.f32 %v354, %v389
      %v409 = vsub.f32 %v355, %v389
      %v410 = vsub.f32 %v356, %v389
      %v411 = vsub.f32 %v357, %v389
      %v412 = vsub.f32 %v358, %v389
      %v413 = vsub.f32 %v359, %v389
      %v414 = vsub.f32 %v360, %v389
      %v415 = vsub.f32 %v361, %v389
      %v416 = vsub.f32 %v362, %v389
      %v417 = vsub.f32 %v363, %v389
      %v418 = vsub.f32 %v364, %v389
      %v419 = vsub.f32 %v365, %v389
      %v420 = vsub.f32 %v366, %v389
      %v421 = vsub.f32 %v367, %v389
      %v422 = vlaneseq
      %v423 = vshrl.u32 %v422, 7
      %v424 = vsub.s32 1, %v423
      %v425 = vrot.slane %v385, %v424
      %v426 = vmul.f32 %v390, %v425
      %v427 = vmul.f32 %v391, %v425
      %v428 = vmul.f32 %v392, %v425
      %v429 = vmul.f32 %v393, %v425
      %v430 = vmul.f32 %v394, %v425
      %v431 = vmul.f32 %v395, %v425
      %v432 = vmul.f32 %v396, %v425
      %v433 = vmul.f32 %v397, %v425
      %v434 = vmul.f32 %v398, %v425
      %v435 = vmul.f32 %v399, %v425
      %v436 = vmul.f32 %v400, %v425
      %v437 = vmul.f32 %v401, %v425
      %v438 = vmul.f32 %v402, %v425
      %v439 = vmul.f32 %v403, %v425
      %v440 = vmul.f32 %v404, %v425
      %v441 = vmul.f32 %v405, %v425
      %v442 = vmul.f32 %v406, %v425
      %v443 = vmul.f32 %v407, %v425
      %v444 = vmul.f32 %v408, %v425
      %v445 = vmul.f32 %v409, %v425
      %v446 = vmul.f32 %v410, %v425
      %v447 = vmul.f32 %v411, %v425
      %v448 = vmul.f32 %v412, %v425
      %v449 = vmul.f32 %v413, %v425
      %v450 = vmul.f32 %v414, %v425
      %v451 = vmul.f32 %v415, %v425
      %v452 = vmul.f32 %v416, %v425
      %v453 = vmul.f32 %v417, %v425
      %v454 = vmul.f32 %v418, %v425
      %v455 = vmul.f32 %v419, %v425
      %v456 = vmul.f32 %v420, %v425
      %v457 = vmul.f32 %v421, %v425
      %v459 = vlaneseq
      %v460 = vshrl.u32 %v459, 7
      %v461 = vsub.s32 0, %v460
      %v462 = vrot.slane %v370, %v461
      %v464 = vadd.f32 %v426, %v462
      %v465 = vadd.f32 %v427, %v462
      %v466 = vadd.f32 %v428, %v462
      %v467 = vadd.f32 %v429, %v462
      %v468 = vadd.f32 %v430, %v462
      %v469 = vadd.f32 %v431, %v462
      %v470 = vadd.f32 %v432, %v462
      %v471 = vadd.f32 %v433, %v462
      %v472 = vadd.f32 %v434, %v462
      %v473 = vadd.f32 %v435, %v462
      %v474 = vadd.f32 %v436, %v462
      %v475 = vadd.f32 %v437, %v462
      %v476 = vadd.f32 %v438, %v462
      %v477 = vadd.f32 %v439, %v462
      %v478 = vadd.f32 %v440, %v462
      %v479 = vadd.f32 %v441, %v462
      %v480 = vadd.f32 %v442, %v462
      %v481 = vadd.f32 %v443, %v462
      %v482 = vadd.f32 %v444, %v462
      %v483 = vadd.f32 %v445, %v462
      %v484 = vadd.f32 %v446, %v462
      %v485 = vadd.f32 %v447, %v462
      %v486 = vadd.f32 %v448, %v462
      %v487 = vadd.f32 %v449, %v462
      %v488 = vadd.f32 %v450, %v462
      %v489 = vadd.f32 %v451, %v462
      %v490 = vadd.f32 %v452, %v462
      %v491 = vadd.f32 %v453, %v462
      %v492 = vadd.f32 %v454, %v462
      %v493 = vadd.f32 %v455, %v462
      %v494 = vadd.f32 %v456, %v462
      %v495 = vadd.f32 %v457, %v462
      %vm496 = vcmp.ge.f32.partialorder %v464, 0.0
      %vm497 = vcmp.ge.f32.partialorder %v465, 0.0
      %vm498 = vcmp.ge.f32.partialorder %v466, 0.0
      %vm499 = vcmp.ge.f32.partialorder %v467, 0.0
      %vm500 = vcmp.ge.f32.partialorder %v468, 0.0
      %vm501 = vcmp.ge.f32.partialorder %v469, 0.0
      %vm502 = vcmp.ge.f32.partialorder %v470, 0.0
      %vm503 = vcmp.ge.f32.partialorder %v471, 0.0
      %vm504 = vcmp.ge.f32.partialorder %v472, 0.0
      %vm505 = vcmp.ge.f32.partialorder %v473, 0.0
      %vm506 = vcmp.ge.f32.partialorder %v474, 0.0
      %vm507 = vcmp.ge.f32.partialorder %v475, 0.0
      %vm508 = vcmp.ge.f32.partialorder %v476, 0.0
      %vm509 = vcmp.ge.f32.partialorder %v477, 0.0
      %vm510 = vcmp.ge.f32.partialorder %v478, 0.0
      %vm511 = vcmp.ge.f32.partialorder %v479, 0.0
      %vm512 = vcmp.ge.f32.partialorder %v480, 0.0
      %vm513 = vcmp.ge.f32.partialorder %v481, 0.0
      %vm514 = vcmp.ge.f32.partialorder %v482, 0.0
      %vm515 = vcmp.ge.f32.partialorder %v483, 0.0
      %vm516 = vcmp.ge.f32.partialorder %v484, 0.0
      %vm517 = vcmp.ge.f32.partialorder %v485, 0.0
      %vm518 = vcmp.ge.f32.partialorder %v486, 0.0
      %vm519 = vcmp.ge.f32.partialorder %v487, 0.0
      %vm520 = vcmp.ge.f32.partialorder %v488, 0.0
      %vm521 = vcmp.ge.f32.partialorder %v489, 0.0
      %vm522 = vcmp.ge.f32.partialorder %v490, 0.0
      %vm523 = vcmp.ge.f32.partialorder %v491, 0.0
      %vm524 = vcmp.ge.f32.partialorder %v492, 0.0
      %vm525 = vcmp.ge.f32.partialorder %v493, 0.0
      %vm526 = vcmp.ge.f32.partialorder %v494, 0.0
      %vm527 = vcmp.ge.f32.partialorder %v495, 0.0
      %v528 = vmul.f32 %v464, 0.01
      %v529 = vmul.f32 %v465, 0.01
      %v530 = vmul.f32 %v466, 0.01
      %v531 = vmul.f32 %v467, 0.01
      %v532 = vmul.f32 %v468, 0.01
      %v533 = vmul.f32 %v469, 0.01
      %v534 = vmul.f32 %v470, 0.01
      %v535 = vmul.f32 %v471, 0.01
      %v536 = vmul.f32 %v472, 0.01
      %v537 = vmul.f32 %v473, 0.01
      %v538 = vmul.f32 %v474, 0.01
      %v539 = vmul.f32 %v475, 0.01
      %v540 = vmul.f32 %v476, 0.01
      %v541 = vmul.f32 %v477, 0.01
      %v542 = vmul.f32 %v478, 0.01
      %v543 = vmul.f32 %v479, 0.01
      %v544 = vmul.f32 %v480, 0.01
      %v545 = vmul.f32 %v481, 0.01
      %v546 = vmul.f32 %v482, 0.01
      %v547 = vmul.f32 %v483, 0.01
      %v548 = vmul.f32 %v484, 0.01
      %v549 = vmul.f32 %v485, 0.01
      %v550 = vmul.f32 %v486, 0.01
      %v551 = vmul.f32 %v487, 0.01
      %v552 = vmul.f32 %v488, 0.01
      %v553 = vmul.f32 %v489, 0.01
      %v554 = vmul.f32 %v490, 0.01
      %v555 = vmul.f32 %v491, 0.01
      %v556 = vmul.f32 %v492, 0.01
      %v557 = vmul.f32 %v493, 0.01
      %v558 = vmul.f32 %v494, 0.01
      %v559 = vmul.f32 %v495, 0.01
      %v560 = vsel %vm496, %v464, %v528
      %v561 = vsel %vm497, %v465, %v529
      %v562 = vsel %vm498, %v466, %v530
      %v563 = vsel %vm499, %v467, %v531
      %v564 = vsel %vm500, %v468, %v532
      %v565 = vsel %vm501, %v469, %v533
      %v566 = vsel %vm502, %v470, %v534
      %v567 = vsel %vm503, %v471, %v535
      %v568 = vsel %vm504, %v472, %v536
      %v569 = vsel %vm505, %v473, %v537
      %v570 = vsel %vm506, %v474, %v538
      %v571 = vsel %vm507, %v475, %v539
      %v572 = vsel %vm508, %v476, %v540
      %v573 = vsel %vm509, %v477, %v541
      %v574 = vsel %vm510, %v478, %v542
      %v575 = vsel %vm511, %v479, %v543
      %v576 = vsel %vm512, %v480, %v544
      %v577 = vsel %vm513, %v481, %v545
      %v578 = vsel %vm514, %v482, %v546
      %v579 = vsel %vm515, %v483, %v547
      %v580 = vsel %vm516, %v484, %v548
      %v581 = vsel %vm517, %v485, %v549
      %v582 = vsel %vm518, %v486, %v550
      %v583 = vsel %vm519, %v487, %v551
      %v584 = vsel %vm520, %v488, %v552
      %v585 = vsel %vm521, %v489, %v553
      %v586 = vsel %vm522, %v490, %v554
      %v587 = vsel %vm523, %v491, %v555
      %v588 = vsel %vm524, %v492, %v556
      %v589 = vsel %vm525, %v493, %v557
      %v590 = vsel %vm526, %v494, %v558
      %v591 = vsel %vm527, %v495, %v559
      %s592 = scalar_lea.vmem [#allocation2], 24
      %593 = vst [vmem:[%s592 + $0x1] sm:$0xff] %v560
      %594 = vst [vmem:[%s592 + $0x9] sm:$0xff] %v561
      %595 = vst [vmem:[%s592 + $0x19] sm:$0xff] %v562
      %596 = vst [vmem:[%s592 + $0x21] sm:$0xff] %v563
      %597 = vst [vmem:[%s592 + $0x31] sm:$0xff] %v564
      %598 = vst [vmem:[%s592 + $0x39] sm:$0xff] %v565
      %599 = vst [vmem:[%s592 + $0x49] sm:$0xff] %v566
      %600 = vst [vmem:[%s592 + $0x51] sm:$0xff] %v567
      %601 = vst [vmem:[%s592 + $0x61] sm:$0xff] %v568
      %602 = vst [vmem:[%s592 + $0x69] sm:$0xff] %v569
      %603 = vst [vmem:[%s592 + $0x79] sm:$0xff] %v570
      %604 = vst [vmem:[%s592 + $0x81] sm:$0xff] %v571
      %605 = vst [vmem:[%s592 + $0x91] sm:$0xff] %v572
      %606 = vst [vmem:[%s592 + $0x99] sm:$0xff] %v573
      %607 = vst [vmem:[%s592 + $0xa9] sm:$0xff] %v574
      %608 = vst [vmem:[%s592 + $0xb1] sm:$0xff] %v575
      %609 = vst [vmem:[%s592 + $0xc1] sm:$0xff] %v576
      %610 = vst [vmem:[%s592 + $0xc9] sm:$0xff] %v577
      %611 = vst [vmem:[%s592 + $0xd9] sm:$0xff] %v578
      %612 = vst [vmem:[%s592 + $0xe1] sm:$0xff] %v579
      %613 = vst [vmem:[%s592 + $0xf1] sm:$0xff] %v580
      %614 = vst [vmem:[%s592 + $0xf9] sm:$0xff] %v581
      %615 = vst [vmem:[%s592 + $0x109] sm:$0xff] %v582
      %616 = vst [vmem:[%s592 + $0x111] sm:$0xff] %v583
      %617 = vst [vmem:[%s592 + $0x121] sm:$0xff] %v584
      %618 = vst [vmem:[%s592 + $0x129] sm:$0xff] %v585
      %619 = vst [vmem:[%s592 + $0x139] sm:$0xff] %v586
      %620 = vst [vmem:[%s592 + $0x141] sm:$0xff] %v587
      %621 = vst [vmem:[%s592 + $0x151] sm:$0xff] %v588
      %622 = vst [vmem:[%s592 + $0x159] sm:$0xff] %v589
      %623 = vst [vmem:[%s592 + $0x169] sm:$0xff] %v590
      %624 = vst [vmem:[%s592 + $0x171] sm:$0xff] %v591
      %v625 = vld [vmem:[#allocation2] sm:$0xff]
      %v626 = vld [vmem:[#allocation2 + $0x8] sm:$0xff]
      %v627 = vld [vmem:[#allocation2 + $0x18] sm:$0xff]
      %v628 = vld [vmem:[#allocation2 + $0x20] sm:$0xff]
      %v629 = vld [vmem:[#allocation2 + $0x30] sm:$0xff]
      %v630 = vld [vmem:[#allocation2 + $0x38] sm:$0xff]
      %v631 = vld [vmem:[#allocation2 + $0x48] sm:$0xff]
      %v632 = vld [vmem:[#allocation2 + $0x50] sm:$0xff]
      %v633 = vld [vmem:[#allocation2 + $0x60] sm:$0xff]
      %v634 = vld [vmem:[#allocation2 + $0x68] sm:$0xff]
      %v635 = vld [vmem:[#allocation2 + $0x78] sm:$0xff]
      %v636 = vld [vmem:[#allocation2 + $0x80] sm:$0xff]
      %v637 = vld [vmem:[#allocation2 + $0x90] sm:$0xff]
      %v638 = vld [vmem:[#allocation2 + $0x98] sm:$0xff]
      %v639 = vld [vmem:[#allocation2 + $0xa8] sm:$0xff]
      %v640 = vld [vmem:[#allocation2 + $0xb0] sm:$0xff]
      %v641 = vld [vmem:[#allocation2 + $0xc0] sm:$0xff]
      %v642 = vld [vmem:[#allocation2 + $0xc8] sm:$0xff]
      %v643 = vld [vmem:[#allocation2 + $0xd8] sm:$0xff]
      %v644 = vld [vmem:[#allocation2 + $0xe0] sm:$0xff]
      %v645 = vld [vmem:[#allocation2 + $0xf0] sm:$0xff]
      %v646 = vld [vmem:[#allocation2 + $0xf8] sm:$0xff]
      %v647 = vld [vmem:[#allocation2 + $0x108] sm:$0xff]
      %v648 = vld [vmem:[#allocation2 + $0x110] sm:$0xff]
      %v649 = vld [vmem:[#allocation2 + $0x120] sm:$0xff]
      %v650 = vld [vmem:[#allocation2 + $0x128] sm:$0xff]
      %v651 = vld [vmem:[#allocation2 + $0x138] sm:$0xff]
      %v652 = vld [vmem:[#allocation2 + $0x140] sm:$0xff]
      %v653 = vld [vmem:[#allocation2 + $0x150] sm:$0xff]
      %v654 = vld [vmem:[#allocation2 + $0x158] sm:$0xff]
      %v655 = vld [vmem:[#allocation2 + $0x168] sm:$0xff]
      %v656 = vld [vmem:[#allocation2 + $0x170] sm:$0xff]
      %v657 = vpack.c.bf16 %v626, %v625
      %v658 = vpack.c.bf16 %v628, %v627
      %v659 = vpack.c.bf16 %v630, %v629
      %v660 = vpack.c.bf16 %v632, %v631
      %v661 = vpack.c.bf16 %v634, %v633
      %v662 = vpack.c.bf16 %v636, %v635
      %v663 = vpack.c.bf16 %v638, %v637
      %v664 = vpack.c.bf16 %v640, %v639
      %v665 = vpack.c.bf16 %v642, %v641
      %v666 = vpack.c.bf16 %v644, %v643
      %v667 = vpack.c.bf16 %v646, %v645
      %v668 = vpack.c.bf16 %v648, %v647
      %v669 = vpack.c.bf16 %v650, %v649
      %v670 = vpack.c.bf16 %v652, %v651
      %v671 = vpack.c.bf16 %v654, %v653
      %v672 = vpack.c.bf16 %v656, %v655
      %v673 = vld [vmem:[%s4] sm:$0xf]
      %v674 = vld [vmem:[%s4 + $0x4] sm:$0xf]
      %v675 = vld [vmem:[%s4 + $0x8] sm:$0xf]
      %v676 = vld [vmem:[%s4 + $0xc] sm:$0xf]
      %v677 = vld [vmem:[%s4 + $0x10] sm:$0xf]
      %v678 = vld [vmem:[%s4 + $0x14] sm:$0xf]
      %v679 = vld [vmem:[%s4 + $0x18] sm:$0xf]
      %v680 = vld [vmem:[%s4 + $0x1c] sm:$0xf]
      %v681 = vld [vmem:[%s4 + $0x20] sm:$0xf]
      %v682 = vld [vmem:[%s4 + $0x24] sm:$0xf]
      %v683 = vld [vmem:[%s4 + $0x28] sm:$0xf]
      %v684 = vld [vmem:[%s4 + $0x2c] sm:$0xf]
      %v685 = vld [vmem:[%s4 + $0x30] sm:$0xf]
      %v686 = vld [vmem:[%s4 + $0x34] sm:$0xf]
      %v687 = vld [vmem:[%s4 + $0x38] sm:$0xf]
      %v688 = vld [vmem:[%s4 + $0x3c] sm:$0xf]
      %v689 = vld [vmem:[#allocation2 + $0x1] sm:$0xff]
      %v690 = vld [vmem:[#allocation2 + $0x9] sm:$0xff]
      %v691 = vld [vmem:[#allocation2 + $0x19] sm:$0xff]
      %v692 = vld [vmem:[#allocation2 + $0x21] sm:$0xff]
      %v693 = vld [vmem:[#allocation2 + $0x31] sm:$0xff]
      %v694 = vld [vmem:[#allocation2 + $0x39] sm:$0xff]
      %v695 = vld [vmem:[#allocation2 + $0x49] sm:$0xff]
      %v696 = vld [vmem:[#allocation2 + $0x51] sm:$0xff]
      %v697 = vld [vmem:[#allocation2 + $0x61] sm:$0xff]
      %v698 = vld [vmem:[#allocation2 + $0x69] sm:$0xff]
      %v699 = vld [vmem:[#allocation2 + $0x79] sm:$0xff]
      %v700 = vld [vmem:[#allocation2 + $0x81] sm:$0xff]
      %v701 = vld [vmem:[#allocation2 + $0x91] sm:$0xff]
      %v702 = vld [vmem:[#allocation2 + $0x99] sm:$0xff]
      %v703 = vld [vmem:[#allocation2 + $0xa9] sm:$0xff]
      %v704 = vld [vmem:[#allocation2 + $0xb1] sm:$0xff]
      %v705 = vld [vmem:[#allocation2 + $0xc1] sm:$0xff]
      %v706 = vld [vmem:[#allocation2 + $0xc9] sm:$0xff]
      %v707 = vld [vmem:[#allocation2 + $0xd9] sm:$0xff]
      %v708 = vld [vmem:[#allocation2 + $0xe1] sm:$0xff]
      %v709 = vld [vmem:[#allocation2 + $0xf1] sm:$0xff]
      %v710 = vld [vmem:[#allocation2 + $0xf9] sm:$0xff]
      %v711 = vld [vmem:[#allocation2 + $0x109] sm:$0xff]
      %v712 = vld [vmem:[#allocation2 + $0x111] sm:$0xff]
      %v713 = vld [vmem:[#allocation2 + $0x121] sm:$0xff]
      %v714 = vld [vmem:[#allocation2 + $0x129] sm:$0xff]
      %v715 = vld [vmem:[#allocation2 + $0x139] sm:$0xff]
      %v716 = vld [vmem:[#allocation2 + $0x141] sm:$0xff]
      %v717 = vld [vmem:[#allocation2 + $0x151] sm:$0xff]
      %v718 = vld [vmem:[#allocation2 + $0x159] sm:$0xff]
      %v719 = vld [vmem:[#allocation2 + $0x169] sm:$0xff]
      %v720 = vld [vmem:[#allocation2 + $0x171] sm:$0xff]
      %v721 = vpack.c.bf16 %v690, %v689
      %v722 = vpack.c.bf16 %v692, %v691
      %v723 = vpack.c.bf16 %v694, %v693
      %v724 = vpack.c.bf16 %v696, %v695
      %v725 = vpack.c.bf16 %v698, %v697
      %v726 = vpack.c.bf16 %v700, %v699
      %v727 = vpack.c.bf16 %v702, %v701
      %v728 = vpack.c.bf16 %v704, %v703
      %v729 = vpack.c.bf16 %v706, %v705
      %v730 = vpack.c.bf16 %v708, %v707
      %v731 = vpack.c.bf16 %v710, %v709
      %v732 = vpack.c.bf16 %v712, %v711
      %v733 = vpack.c.bf16 %v714, %v713
      %v734 = vpack.c.bf16 %v716, %v715
      %v735 = vpack.c.bf16 %v718, %v717
      %v736 = vpack.c.bf16 %v720, %v719
      %s737 = scalar_lea.vmem %s4, 64
      %v738 = vld [vmem:[%s737] sm:$0xf]
      %v739 = vld [vmem:[%s737 + $0x4] sm:$0xf]
      %v740 = vld [vmem:[%s737 + $0x8] sm:$0xf]
      %v741 = vld [vmem:[%s737 + $0xc] sm:$0xf]
      %v742 = vld [vmem:[%s737 + $0x10] sm:$0xf]
      %v743 = vld [vmem:[%s737 + $0x14] sm:$0xf]
      %v744 = vld [vmem:[%s737 + $0x18] sm:$0xf]
      %v745 = vld [vmem:[%s737 + $0x1c] sm:$0xf]
      %v746 = vld [vmem:[%s737 + $0x20] sm:$0xf]
      %v747 = vld [vmem:[%s737 + $0x24] sm:$0xf]
      %v748 = vld [vmem:[%s737 + $0x28] sm:$0xf]
      %v749 = vld [vmem:[%s737 + $0x2c] sm:$0xf]
      %v750 = vld [vmem:[%s737 + $0x30] sm:$0xf]
      %v751 = vld [vmem:[%s737 + $0x34] sm:$0xf]
      %v752 = vld [vmem:[%s737 + $0x38] sm:$0xf]
      %v753 = vld [vmem:[%s737 + $0x3c] sm:$0xf]
      %v770 = vunpack.c.l.b16 %v738
      %v771 = vunpack.c.l.b16 %v739
      %v772 = vunpack.c.l.b16 %v740
      %v773 = vunpack.c.l.b16 %v741
      %v774 = vunpack.c.l.b16 %v742
      %v775 = vunpack.c.l.b16 %v743
      %v776 = vunpack.c.l.b16 %v744
      %v777 = vunpack.c.l.b16 %v745
      %v778 = vunpack.c.l.b16 %v746
      %v779 = vunpack.c.l.b16 %v747
      %v780 = vunpack.c.l.b16 %v748
      %v781 = vunpack.c.l.b16 %v749
      %v782 = vunpack.c.l.b16 %v750
      %v783 = vunpack.c.l.b16 %v751
      %v784 = vunpack.c.l.b16 %v752
      %v785 = vunpack.c.l.b16 %v753
      %v786 = vpack.c.b16 %v771, %v770
      %v787 = vpack.c.b16 %v773, %v772
      %v788 = vpack.c.b16 %v775, %v774
      %v789 = vpack.c.b16 %v777, %v776
      %v790 = vpack.c.b16 %v779, %v778
      %v791 = vpack.c.b16 %v781, %v780
      %v792 = vpack.c.b16 %v783, %v782
      %v793 = vpack.c.b16 %v785, %v784
      %802 = vmatprep.subr.bf16.mxu0 0
      %803 = vmatpush1.bf16.msra.mxu0 %v786
      %804 = vmatprep.subr.bf16.mxu0 0
      %805 = vmatpush1.bf16.msra.mxu0 %v787
      %806 = vmatprep.subr.bf16.mxu0 0
      %807 = vmatpush1.bf16.msra.mxu0 %v788
      %808 = vmatprep.subr.bf16.mxu0 0
      %809 = vmatpush1.bf16.msra.mxu0 %v789
      %810 = vmatprep.subr.bf16.mxu0 0
      %811 = vmatpush1.bf16.msra.mxu0 %v790
      %812 = vmatprep.subr.bf16.mxu0 0
      %813 = vmatpush1.bf16.msra.mxu0 %v791
      %814 = vmatprep.subr.bf16.mxu0 0
      %815 = vmatpush1.bf16.msra.mxu0 %v792
      %816 = vmatprep.subr.bf16.mxu0 0
      %817 = vmatpush1.bf16.msra.mxu0 %v793
      %818 = vmatprep.subr.bf16.mxu0 0
      %819 = vmatpush1.bf16.msra.mxu0 0
      %820 = vmatprep.subr.bf16.mxu0 0
      %821 = vmatpush1.bf16.msra.mxu0 0
      %822 = vmatprep.subr.bf16.mxu0 0
      %823 = vmatpush1.bf16.msra.mxu0 0
      %824 = vmatprep.subr.bf16.mxu0 0
      %825 = vmatpush1.bf16.msra.mxu0 0
      %826 = vmatprep.subr.bf16.mxu0 0
      %827 = vmatpush1.bf16.msra.mxu0 0
      %828 = vmatprep.subr.bf16.mxu0 0
      %829 = vmatpush1.bf16.msra.mxu0 0
      %830 = vmatprep.subr.bf16.mxu0 0
      %831 = vmatpush1.bf16.msra.mxu0 0
      %832 = vmatprep.subr.bf16.mxu0 0
      %833 = vmatpush1.bf16.msra.mxu0 0
      %834 = vmatprep.mubr.bf16.mxu0 0
      %835 = vmatmul.mubr.bf16.gmra.mrb[0].mxu0 %v721
      %v836 = vpop.f32.mrb[0].mxu0
      %v837 = vadd.f32 0.0, %v836
      %v838 = vpop.f32.mrb[0].mxu0
      %v839 = vpop.f32.mrb[0].mxu0
      %v840 = vadd.f32 0.0, %v839
      %v841 = vpop.f32.mrb[0].mxu0
      %842 = vmatprep.mubr.bf16.mxu0 0
      %843 = vmatmul.mubr.bf16.gmra.mrb[0].mxu0 %v722
      %v844 = vpop.f32.mrb[0].mxu0
      %v845 = vadd.f32 0.0, %v844
      %v846 = vpop.f32.mrb[0].mxu0
      %v847 = vpop.f32.mrb[0].mxu0
      %v848 = vadd.f32 0.0, %v847
      %v849 = vpop.f32.mrb[0].mxu0
      %850 = vmatprep.mubr.bf16.mxu0 0
      %851 = vmatmul.mubr.bf16.gmra.mrb[0].mxu0 %v723
      %v852 = vpop.f32.mrb[0].mxu0
      %v853 = vadd.f32 0.0, %v852
      %v854 = vpop.f32.mrb[0].mxu0
      %v855 = vpop.f32.mrb[0].mxu0
      %v856 = vadd.f32 0.0, %v855
      %v857 = vpop.f32.mrb[0].mxu0
      %858 = vmatprep.mubr.bf16.mxu0 0
      %859 = vmatmul.mubr.bf16.gmra.mrb[0].mxu0 %v724
      %v860 = vpop.f32.mrb[0].mxu0
      %v861 = vadd.f32 0.0, %v860
      %v862 = vpop.f32.mrb[0].mxu0
      %v863 = vpop.f32.mrb[0].mxu0
      %v864 = vadd.f32 0.0, %v863
      %v865 = vpop.f32.mrb[0].mxu0
      %866 = vmatprep.mubr.bf16.mxu0 0
      %867 = vmatmul.mubr.bf16.gmra.mrb[0].mxu0 %v725
      %v868 = vpop.f32.mrb[0].mxu0
      %v869 = vadd.f32 0.0, %v868
      %v870 = vpop.f32.mrb[0].mxu0
      %v871 = vpop.f32.mrb[0].mxu0
      %v872 = vadd.f32 0.0, %v871
      %v873 = vpop.f32.mrb[0].mxu0
      %874 = vmatprep.mubr.bf16.mxu0 0
      %875 = vmatmul.mubr.bf16.gmra.mrb[0].mxu0 %v726
      %v876 = vpop.f32.mrb[0].mxu0
      %v877 = vadd.f32 0.0, %v876
      %v878 = vpop.f32.mrb[0].mxu0
      %v879 = vpop.f32.mrb[0].mxu0
      %v880 = vadd.f32 0.0, %v879
      %v881 = vpop.f32.mrb[0].mxu0
      %882 = vmatprep.mubr.bf16.mxu0 0
      %883 = vmatmul.mubr.bf16.gmra.mrb[0].mxu0 %v727
      %v884 = vpop.f32.mrb[0].mxu0
      %v885 = vadd.f32 0.0, %v884
      %v886 = vpop.f32.mrb[0].mxu0
      %v887 = vpop.f32.mrb[0].mxu0
      %v888 = vadd.f32 0.0, %v887
      %v889 = vpop.f32.mrb[0].mxu0
      %890 = vmatprep.mubr.bf16.mxu0 0
      %891 = vmatmul.mubr.bf16.gmra.mrb[0].mxu0 %v728
      %v892 = vpop.f32.mrb[0].mxu0
      %v893 = vadd.f32 0.0, %v892
      %v894 = vpop.f32.mrb[0].mxu0
      %v895 = vpop.f32.mrb[0].mxu0
      %v896 = vadd.f32 0.0, %v895
      %v897 = vpop.f32.mrb[0].mxu0
      %898 = vmatprep.mubr.bf16.mxu0 0
      %899 = vmatmul.mubr.bf16.gmra.mrb[0].mxu0 %v729
      %v900 = vpop.f32.mrb[0].mxu0
      %v901 = vadd.f32 0.0, %v900
      %v902 = vpop.f32.mrb[0].mxu0
      %v903 = vpop.f32.mrb[0].mxu0
      %v904 = vadd.f32 0.0, %v903
      %v905 = vpop.f32.mrb[0].mxu0
      %906 = vmatprep.mubr.bf16.mxu0 0
      %907 = vmatmul.mubr.bf16.gmra.mrb[0].mxu0 %v730
      %v908 = vpop.f32.mrb[0].mxu0
      %v909 = vadd.f32 0.0, %v908
      %v910 = vpop.f32.mrb[0].mxu0
      %v911 = vpop.f32.mrb[0].mxu0
      %v912 = vadd.f32 0.0, %v911
      %v913 = vpop.f32.mrb[0].mxu0
      %914 = vmatprep.mubr.bf16.mxu0 0
      %915 = vmatmul.mubr.bf16.gmra.mrb[0].mxu0 %v731
      %v916 = vpop.f32.mrb[0].mxu0
      %v917 = vadd.f32 0.0, %v916
      %v918 = vpop.f32.mrb[0].mxu0
      %v919 = vpop.f32.mrb[0].mxu0
      %v920 = vadd.f32 0.0, %v919
      %v921 = vpop.f32.mrb[0].mxu0
      %922 = vmatprep.mubr.bf16.mxu0 0
      %923 = vmatmul.mubr.bf16.gmra.mrb[0].mxu0 %v732
      %v924 = vpop.f32.mrb[0].mxu0
      %v925 = vadd.f32 0.0, %v924
      %v926 = vpop.f32.mrb[0].mxu0
      %v927 = vpop.f32.mrb[0].mxu0
      %v928 = vadd.f32 0.0, %v927
      %v929 = vpop.f32.mrb[0].mxu0
      %930 = vmatprep.mubr.bf16.mxu0 0
      %931 = vmatmul.mubr.bf16.gmra.mrb[0].mxu0 %v733
      %v932 = vpop.f32.mrb[0].mxu0
      %v933 = vadd.f32 0.0, %v932
      %v934 = vpop.f32.mrb[0].mxu0
      %v935 = vpop.f32.mrb[0].mxu0
      %v936 = vadd.f32 0.0, %v935
      %v937 = vpop.f32.mrb[0].mxu0
      %938 = vmatprep.mubr.bf16.mxu0 0
      %939 = vmatmul.mubr.bf16.gmra.mrb[0].mxu0 %v734
      %v940 = vpop.f32.mrb[0].mxu0
      %v941 = vadd.f32 0.0, %v940
      %v942 = vpop.f32.mrb[0].mxu0
      %v943 = vpop.f32.mrb[0].mxu0
      %v944 = vadd.f32 0.0, %v943
      %v945 = vpop.f32.mrb[0].mxu0
      %946 = vmatprep.mubr.bf16.mxu0 0
      %947 = vmatmul.mubr.bf16.gmra.mrb[0].mxu0 %v735
      %v948 = vpop.f32.mrb[0].mxu0
      %v949 = vadd.f32 0.0, %v948
      %v950 = vpop.f32.mrb[0].mxu0
      %v951 = vpop.f32.mrb[0].mxu0
      %v952 = vadd.f32 0.0, %v951
      %v953 = vpop.f32.mrb[0].mxu0
      %954 = vmatprep.mubr.bf16.mxu0 0
      %955 = vmatmul.mubr.bf16.gmra.mrb[0].mxu0 %v736
      %v956 = vpop.f32.mrb[0].mxu0
      %v957 = vadd.f32 0.0, %v956
      %v958 = vpop.f32.mrb[0].mxu0
      %v959 = vpop.f32.mrb[0].mxu0
      %v960 = vadd.f32 0.0, %v959
      %v961 = vpop.f32.mrb[0].mxu0
      %962 = vdwg.mxu0
      %v979 = vunpack.c.l.b16 %v673
      %v980 = vunpack.c.l.b16 %v674
      %v981 = vunpack.c.l.b16 %v675
      %v982 = vunpack.c.l.b16 %v676
      %v983 = vunpack.c.l.b16 %v677
      %v984 = vunpack.c.l.b16 %v678
      %v985 = vunpack.c.l.b16 %v679
      %v986 = vunpack.c.l.b16 %v680
      %v987 = vunpack.c.l.b16 %v681
      %v988 = vunpack.c.l.b16 %v682
      %v989 = vunpack.c.l.b16 %v683
      %v990 = vunpack.c.l.b16 %v684
      %v991 = vunpack.c.l.b16 %v685
      %v992 = vunpack.c.l.b16 %v686
      %v993 = vunpack.c.l.b16 %v687
      %v994 = vunpack.c.l.b16 %v688
      %v995 = vpack.c.b16 %v980, %v979
      %v996 = vpack.c.b16 %v982, %v981
      %v997 = vpack.c.b16 %v984, %v983
      %v998 = vpack.c.b16 %v986, %v985
      %v999 = vpack.c.b16 %v988, %v987
      %v1000 = vpack.c.b16 %v990, %v989
      %v1001 = vpack.c.b16 %v992, %v991
      %v1002 = vpack.c.b16 %v994, %v993
      %1011 = vmatprep.subr.bf16.mxu0 0
      %1012 = vmatpush1.bf16.msra.mxu0 %v995
      %1013 = vmatprep.subr.bf16.mxu0 0
      %1014 = vmatpush1.bf16.msra.mxu0 %v996
      %1015 = vmatprep.subr.bf16.mxu0 0
      %1016 = vmatpush1.bf16.msra.mxu0 %v997
      %1017 = vmatprep.subr.bf16.mxu0 0
      %1018 = vmatpush1.bf16.msra.mxu0 %v998
      %1019 = vmatprep.subr.bf16.mxu0 0
      %1020 = vmatpush1.bf16.msra.mxu0 %v999
      %1021 = vmatprep.subr.bf16.mxu0 0
      %1022 = vmatpush1.bf16.msra.mxu0 %v1000
      %1023 = vmatprep.subr.bf16.mxu0 0
      %1024 = vmatpush1.bf16.msra.mxu0 %v1001
      %1025 = vmatprep.subr.bf16.mxu0 0
      %1026 = vmatpush1.bf16.msra.mxu0 %v1002
      %1027 = vmatprep.subr.bf16.mxu0 0
      %1028 = vmatpush1.bf16.msra.mxu0 0
      %1029 = vmatprep.subr.bf16.mxu0 0
      %1030 = vmatpush1.bf16.msra.mxu0 0
      %1031 = vmatprep.subr.bf16.mxu0 0
      %1032 = vmatpush1.bf16.msra.mxu0 0
      %1033 = vmatprep.subr.bf16.mxu0 0
      %1034 = vmatpush1.bf16.msra.mxu0 0
      %1035 = vmatprep.subr.bf16.mxu0 0
      %1036 = vmatpush1.bf16.msra.mxu0 0
      %1037 = vmatprep.subr.bf16.mxu0 0
      %1038 = vmatpush1.bf16.msra.mxu0 0
      %1039 = vmatprep.subr.bf16.mxu0 0
      %1040 = vmatpush1.bf16.msra.mxu0 0
      %1041 = vmatprep.subr.bf16.mxu0 0
      %1042 = vmatpush1.bf16.msra.mxu0 0
      %1043 = vmatprep.mubr.bf16.mxu0 0
      %1044 = vmatmul.mubr.bf16.gmra.mrb[0].mxu0 %v657
      %v1045 = vpop.f32.mrb[0].mxu0
      %v1046 = vadd.f32 %v837, %v1045
      %v1047 = vpop.f32.mrb[0].mxu0
      %v1048 = vpop.f32.mrb[0].mxu0
      %v1049 = vadd.f32 %v840, %v1048
      %v1050 = vpop.f32.mrb[0].mxu0
      %1051 = vmatprep.mubr.bf16.mxu0 0
      %1052 = vmatmul.mubr.bf16.gmra.mrb[0].mxu0 %v658
      %v1053 = vpop.f32.mrb[0].mxu0
      %v1054 = vadd.f32 %v845, %v1053
      %v1055 = vpop.f32.mrb[0].mxu0
      %v1056 = vpop.f32.mrb[0].mxu0
      %v1057 = vadd.f32 %v848, %v1056
      %v1058 = vpop.f32.mrb[0].mxu0
      %1059 = vmatprep.mubr.bf16.mxu0 0
      %1060 = vmatmul.mubr.bf16.gmra.mrb[0].mxu0 %v659
      %v1061 = vpop.f32.mrb[0].mxu0
      %v1062 = vadd.f32 %v853, %v1061
      %v1063 = vpop.f32.mrb[0].mxu0
      %v1064 = vpop.f32.mrb[0].mxu0
      %v1065 = vadd.f32 %v856, %v1064
      %v1066 = vpop.f32.mrb[0].mxu0
      %1067 = vmatprep.mubr.bf16.mxu0 0
      %1068 = vmatmul.mubr.bf16.gmra.mrb[0].mxu0 %v660
      %v1069 = vpop.f32.mrb[0].mxu0
      %v1070 = vadd.f32 %v861, %v1069
      %v1071 = vpop.f32.mrb[0].mxu0
      %v1072 = vpop.f32.mrb[0].mxu0
      %v1073 = vadd.f32 %v864, %v1072
      %v1074 = vpop.f32.mrb[0].mxu0
      %1075 = vmatprep.mubr.bf16.mxu0 0
      %1076 = vmatmul.mubr.bf16.gmra.mrb[0].mxu0 %v661
      %v1077 = vpop.f32.mrb[0].mxu0
      %v1078 = vadd.f32 %v869, %v1077
      %v1079 = vpop.f32.mrb[0].mxu0
      %v1080 = vpop.f32.mrb[0].mxu0
      %v1081 = vadd.f32 %v872, %v1080
      %v1082 = vpop.f32.mrb[0].mxu0
      %1083 = vmatprep.mubr.bf16.mxu0 0
      %1084 = vmatmul.mubr.bf16.gmra.mrb[0].mxu0 %v662
      %v1085 = vpop.f32.mrb[0].mxu0
      %v1086 = vadd.f32 %v877, %v1085
      %v1087 = vpop.f32.mrb[0].mxu0
      %v1088 = vpop.f32.mrb[0].mxu0
      %v1089 = vadd.f32 %v880, %v1088
      %v1090 = vpop.f32.mrb[0].mxu0
      %1091 = vmatprep.mubr.bf16.mxu0 0
      %1092 = vmatmul.mubr.bf16.gmra.mrb[0].mxu0 %v663
      %v1093 = vpop.f32.mrb[0].mxu0
      %v1094 = vadd.f32 %v885, %v1093
      %v1095 = vpop.f32.mrb[0].mxu0
      %v1096 = vpop.f32.mrb[0].mxu0
      %v1097 = vadd.f32 %v888, %v1096
      %v1098 = vpop.f32.mrb[0].mxu0
      %1099 = vmatprep.mubr.bf16.mxu0 0
      %1100 = vmatmul.mubr.bf16.gmra.mrb[0].mxu0 %v664
      %v1101 = vpop.f32.mrb[0].mxu0
      %v1102 = vadd.f32 %v893, %v1101
      %v1103 = vpop.f32.mrb[0].mxu0
      %v1104 = vpop.f32.mrb[0].mxu0
      %v1105 = vadd.f32 %v896, %v1104
      %v1106 = vpop.f32.mrb[0].mxu0
      %1107 = vmatprep.mubr.bf16.mxu0 0
      %1108 = vmatmul.mubr.bf16.gmra.mrb[0].mxu0 %v665
      %v1109 = vpop.f32.mrb[0].mxu0
      %v1110 = vadd.f32 %v901, %v1109
      %v1111 = vpop.f32.mrb[0].mxu0
      %v1112 = vpop.f32.mrb[0].mxu0
      %v1113 = vadd.f32 %v904, %v1112
      %v1114 = vpop.f32.mrb[0].mxu0
      %1115 = vmatprep.mubr.bf16.mxu0 0
      %1116 = vmatmul.mubr.bf16.gmra.mrb[0].mxu0 %v666
      %v1117 = vpop.f32.mrb[0].mxu0
      %v1118 = vadd.f32 %v909, %v1117
      %v1119 = vpop.f32.mrb[0].mxu0
      %v1120 = vpop.f32.mrb[0].mxu0
      %v1121 = vadd.f32 %v912, %v1120
      %v1122 = vpop.f32.mrb[0].mxu0
      %1123 = vmatprep.mubr.bf16.mxu0 0
      %1124 = vmatmul.mubr.bf16.gmra.mrb[0].mxu0 %v667
      %v1125 = vpop.f32.mrb[0].mxu0
      %v1126 = vadd.f32 %v917, %v1125
      %v1127 = vpop.f32.mrb[0].mxu0
      %v1128 = vpop.f32.mrb[0].mxu0
      %v1129 = vadd.f32 %v920, %v1128
      %v1130 = vpop.f32.mrb[0].mxu0
      %1131 = vmatprep.mubr.bf16.mxu0 0
      %1132 = vmatmul.mubr.bf16.gmra.mrb[0].mxu0 %v668
      %v1133 = vpop.f32.mrb[0].mxu0
      %v1134 = vadd.f32 %v925, %v1133
      %v1135 = vpop.f32.mrb[0].mxu0
      %v1136 = vpop.f32.mrb[0].mxu0
      %v1137 = vadd.f32 %v928, %v1136
      %v1138 = vpop.f32.mrb[0].mxu0
      %1139 = vmatprep.mubr.bf16.mxu0 0
      %1140 = vmatmul.mubr.bf16.gmra.mrb[0].mxu0 %v669
      %v1141 = vpop.f32.mrb[0].mxu0
      %v1142 = vadd.f32 %v933, %v1141
      %v1143 = vpop.f32.mrb[0].mxu0
      %v1144 = vpop.f32.mrb[0].mxu0
      %v1145 = vadd.f32 %v936, %v1144
      %v1146 = vpop.f32.mrb[0].mxu0
      %1147 = vmatprep.mubr.bf16.mxu0 0
      %1148 = vmatmul.mubr.bf16.gmra.mrb[0].mxu0 %v670
      %v1149 = vpop.f32.mrb[0].mxu0
      %v1150 = vadd.f32 %v941, %v1149
      %v1151 = vpop.f32.mrb[0].mxu0
      %v1152 = vpop.f32.mrb[0].mxu0
      %v1153 = vadd.f32 %v944, %v1152
      %v1154 = vpop.f32.mrb[0].mxu0
      %1155 = vmatprep.mubr.bf16.mxu0 0
      %1156 = vmatmul.mubr.bf16.gmra.mrb[0].mxu0 %v671
      %v1157 = vpop.f32.mrb[0].mxu0
      %v1158 = vadd.f32 %v949, %v1157
      %v1159 = vpop.f32.mrb[0].mxu0
      %v1160 = vpop.f32.mrb[0].mxu0
      %v1161 = vadd.f32 %v952, %v1160
      %v1162 = vpop.f32.mrb[0].mxu0
      %1163 = vmatprep.mubr.bf16.mxu0 0
      %1164 = vmatmul.mubr.bf16.gmra.mrb[0].mxu0 %v672
      %v1165 = vpop.f32.mrb[0].mxu0
      %v1166 = vadd.f32 %v957, %v1165
      %v1167 = vpop.f32.mrb[0].mxu0
      %v1168 = vpop.f32.mrb[0].mxu0
      %v1169 = vadd.f32 %v960, %v1168
      %v1170 = vpop.f32.mrb[0].mxu0
      %1171 = vdwg.mxu0
      %v1172 = vld [vmem:[#allocation2 + $0x2] sm:$0xff]
      %v1173 = vld [vmem:[#allocation2 + $0xa] sm:$0xff]
      %v1174 = vld [vmem:[#allocation2 + $0x1a] sm:$0xff]
      %v1175 = vld [vmem:[#allocation2 + $0x22] sm:$0xff]
      %v1176 = vld [vmem:[#allocation2 + $0x32] sm:$0xff]
      %v1177 = vld [vmem:[#allocation2 + $0x3a] sm:$0xff]
      %v1178 = vld [vmem:[#allocation2 + $0x4a] sm:$0xff]
      %v1179 = vld [vmem:[#allocation2 + $0x52] sm:$0xff]
      %v1180 = vld [vmem:[#allocation2 + $0x62] sm:$0xff]
      %v1181 = vld [vmem:[#allocation2 + $0x6a] sm:$0xff]
      %v1182 = vld [vmem:[#allocation2 + $0x7a] sm:$0xff]
      %v1183 = vld [vmem:[#allocation2 + $0x82] sm:$0xff]
      %v1184 = vld [vmem:[#allocation2 + $0x92] sm:$0xff]
      %v1185 = vld [vmem:[#allocation2 + $0x9a] sm:$0xff]
      %v1186 = vld [vmem:[#allocation2 + $0xaa] sm:$0xff]
      %v1187 = vld [vmem:[#allocation2 + $0xb2] sm:$0xff]
      %v1188 = vld [vmem:[#allocation2 + $0xc2] sm:$0xff]
      %v1189 = vld [vmem:[#allocation2 + $0xca] sm:$0xff]
      %v1190 = vld [vmem:[#allocation2 + $0xda] sm:$0xff]
      %v1191 = vld [vmem:[#allocation2 + $0xe2] sm:$0xff]
      %v1192 = vld [vmem:[#allocation2 + $0xf2] sm:$0xff]
      %v1193 = vld [vmem:[#allocation2 + $0xfa] sm:$0xff]
      %v1194 = vld [vmem:[#allocation2 + $0x10a] sm:$0xff]
      %v1195 = vld [vmem:[#allocation2 + $0x112] sm:$0xff]
      %v1196 = vld [vmem:[#allocation2 + $0x122] sm:$0xff]
      %v1197 = vld [vmem:[#allocation2 + $0x12a] sm:$0xff]
      %v1198 = vld [vmem:[#allocation2 + $0x13a] sm:$0xff]
      %v1199 = vld [vmem:[#allocation2 + $0x142] sm:$0xff]
      %v1200 = vld [vmem:[#allocation2 + $0x152] sm:$0xff]
      %v1201 = vld [vmem:[#allocation2 + $0x15a] sm:$0xff]
      %v1202 = vld [vmem:[#allocation2 + $0x16a] sm:$0xff]
      %v1203 = vld [vmem:[#allocation2 + $0x172] sm:$0xff]
      %v1204 = vpack.c.bf16 %v1173, %v1172
      %v1205 = vpack.c.bf16 %v1175, %v1174
      %v1206 = vpack.c.bf16 %v1177, %v1176
      %v1207 = vpack.c.bf16 %v1179, %v1178
      %v1208 = vpack.c.bf16 %v1181, %v1180
      %v1209 = vpack.c.bf16 %v1183, %v1182
      %v1210 = vpack.c.bf16 %v1185, %v1184
      %v1211 = vpack.c.bf16 %v1187, %v1186
      %v1212 = vpack.c.bf16 %v1189, %v1188
      %v1213 = vpack.c.bf16 %v1191, %v1190
      %v1214 = vpack.c.bf16 %v1193, %v1192
      %v1215 = vpack.c.bf16 %v1195, %v1194
      %v1216 = vpack.c.bf16 %v1197, %v1196
      %v1217 = vpack.c.bf16 %v1199, %v1198
      %v1218 = vpack.c.bf16 %v1201, %v1200
      %v1219 = vpack.c.bf16 %v1203, %v1202
      %s1220 = scalar_lea.vmem %s4, 128
      %v1221 = vld [vmem:[%s1220] sm:$0xf]
      %v1222 = vld [vmem:[%s1220 + $0x4] sm:$0xf]
      %v1223 = vld [vmem:[%s1220 + $0x8] sm:$0xf]
      %v1224 = vld [vmem:[%s1220 + $0xc] sm:$0xf]
      %v1225 = vld [vmem:[%s1220 + $0x10] sm:$0xf]
      %v1226 = vld [vmem:[%s1220 + $0x14] sm:$0xf]
      %v1227 = vld [vmem:[%s1220 + $0x18] sm:$0xf]
      %v1228 = vld [vmem:[%s1220 + $0x1c] sm:$0xf]
      %v1229 = vld [vmem:[%s1220 + $0x20] sm:$0xf]
      %v1230 = vld [vmem:[%s1220 + $0x24] sm:$0xf]
      %v1231 = vld [vmem:[%s1220 + $0x28] sm:$0xf]
      %v1232 = vld [vmem:[%s1220 + $0x2c] sm:$0xf]
      %v1233 = vld [vmem:[%s1220 + $0x30] sm:$0xf]
      %v1234 = vld [vmem:[%s1220 + $0x34] sm:$0xf]
      %v1235 = vld [vmem:[%s1220 + $0x38] sm:$0xf]
      %v1236 = vld [vmem:[%s1220 + $0x3c] sm:$0xf]
      %v1253 = vunpack.c.l.b16 %v1221
      %v1254 = vunpack.c.l.b16 %v1222
      %v1255 = vunpack.c.l.b16 %v1223
      %v1256 = vunpack.c.l.b16 %v1224
      %v1257 = vunpack.c.l.b16 %v1225
      %v1258 = vunpack.c.l.b16 %v1226
      %v1259 = vunpack.c.l.b16 %v1227
      %v1260 = vunpack.c.l.b16 %v1228
      %v1261 = vunpack.c.l.b16 %v1229
      %v1262 = vunpack.c.l.b16 %v1230
      %v1263 = vunpack.c.l.b16 %v1231
      %v1264 = vunpack.c.l.b16 %v1232
      %v1265 = vunpack.c.l.b16 %v1233
      %v1266 = vunpack.c.l.b16 %v1234
      %v1267 = vunpack.c.l.b16 %v1235
      %v1268 = vunpack.c.l.b16 %v1236
      %v1269 = vpack.c.b16 %v1254, %v1253
      %v1270 = vpack.c.b16 %v1256, %v1255
      %v1271 = vpack.c.b16 %v1258, %v1257
      %v1272 = vpack.c.b16 %v1260, %v1259
      %v1273 = vpack.c.b16 %v1262, %v1261
      %v1274 = vpack.c.b16 %v1264, %v1263
      %v1275 = vpack.c.b16 %v1266, %v1265
      %v1276 = vpack.c.b16 %v1268, %v1267
      %1285 = vmatprep.subr.bf16.mxu0 0
      %1286 = vmatpush1.bf16.msra.mxu0 %v1269
      %1287 = vmatprep.subr.bf16.mxu0 0
      %1288 = vmatpush1.bf16.msra.mxu0 %v1270
      %1289 = vmatprep.subr.bf16.mxu0 0
      %1290 = vmatpush1.bf16.msra.mxu0 %v1271
      %1291 = vmatprep.subr.bf16.mxu0 0
      %1292 = vmatpush1.bf16.msra.mxu0 %v1272
      %1293 = vmatprep.subr.bf16.mxu0 0
      %1294 = vmatpush1.bf16.msra.mxu0 %v1273
      %1295 = vmatprep.subr.bf16.mxu0 0
      %1296 = vmatpush1.bf16.msra.mxu0 %v1274
      %1297 = vmatprep.subr.bf16.mxu0 0
      %1298 = vmatpush1.bf16.msra.mxu0 %v1275
      %1299 = vmatprep.subr.bf16.mxu0 0
      %1300 = vmatpush1.bf16.msra.mxu0 %v1276
      %1301 = vmatprep.subr.bf16.mxu0 0
      %1302 = vmatpush1.bf16.msra.mxu0 0
      %1303 = vmatprep.subr.bf16.mxu0 0
      %1304 = vmatpush1.bf16.msra.mxu0 0
      %1305 = vmatprep.subr.bf16.mxu0 0
      %1306 = vmatpush1.bf16.msra.mxu0 0
      %1307 = vmatprep.subr.bf16.mxu0 0
      %1308 = vmatpush1.bf16.msra.mxu0 0
      %1309 = vmatprep.subr.bf16.mxu0 0
      %1310 = vmatpush1.bf16.msra.mxu0 0
      %1311 = vmatprep.subr.bf16.mxu0 0
      %1312 = vmatpush1.bf16.msra.mxu0 0
      %1313 = vmatprep.subr.bf16.mxu0 0
      %1314 = vmatpush1.bf16.msra.mxu0 0
      %1315 = vmatprep.subr.bf16.mxu0 0
      %1316 = vmatpush1.bf16.msra.mxu0 0
      %1317 = vmatprep.mubr.bf16.mxu0 0
      %1318 = vmatmul.mubr.bf16.gmra.mrb[0].mxu0 %v1204
      %v1319 = vpop.f32.mrb[0].mxu0
      %v1320 = vadd.f32 0.0, %v1319
      %v1321 = vpop.f32.mrb[0].mxu0
      %v1322 = vpop.f32.mrb[0].mxu0
      %v1323 = vadd.f32 0.0, %v1322
      %v1324 = vpop.f32.mrb[0].mxu0
      %1325 = vmatprep.mubr.bf16.mxu0 0
      %1326 = vmatmul.mubr.bf16.gmra.mrb[0].mxu0 %v1205
      %v1327 = vpop.f32.mrb[0].mxu0
      %v1328 = vadd.f32 0.0, %v1327
      %v1329 = vpop.f32.mrb[0].mxu0
      %v1330 = vpop.f32.mrb[0].mxu0
      %v1331 = vadd.f32 0.0, %v1330
      %v1332 = vpop.f32.mrb[0].mxu0
      %1333 = vmatprep.mubr.bf16.mxu0 0
      %1334 = vmatmul.mubr.bf16.gmra.mrb[0].mxu0 %v1206
      %v1335 = vpop.f32.mrb[0].mxu0
      %v1336 = vadd.f32 0.0, %v1335
      %v1337 = vpop.f32.mrb[0].mxu0
      %v1338 = vpop.f32.mrb[0].mxu0
      %v1339 = vadd.f32 0.0, %v1338
      %v1340 = vpop.f32.mrb[0].mxu0
      %1341 = vmatprep.mubr.bf16.mxu0 0
      %1342 = vmatmul.mubr.bf16.gmra.mrb[0].mxu0 %v1207
      %v1343 = vpop.f32.mrb[0].mxu0
      %v1344 = vadd.f32 0.0, %v1343
      %v1345 = vpop.f32.mrb[0].mxu0
      %v1346 = vpop.f32.mrb[0].mxu0
      %v1347 = vadd.f32 0.0, %v1346
      %v1348 = vpop.f32.mrb[0].mxu0
      %1349 = vmatprep.mubr.bf16.mxu0 0
      %1350 = vmatmul.mubr.bf16.gmra.mrb[0].mxu0 %v1208
      %v1351 = vpop.f32.mrb[0].mxu0
      %v1352 = vadd.f32 0.0, %v1351
      %v1353 = vpop.f32.mrb[0].mxu0
      %v1354 = vpop.f32.mrb[0].mxu0
      %v1355 = vadd.f32 0.0, %v1354
      %v1356 = vpop.f32.mrb[0].mxu0
      %1357 = vmatprep.mubr.bf16.mxu0 0
      %1358 = vmatmul.mubr.bf16.gmra.mrb[0].mxu0 %v1209
      %v1359 = vpop.f32.mrb[0].mxu0
      %v1360 = vadd.f32 0.0, %v1359
      %v1361 = vpop.f32.mrb[0].mxu0
      %v1362 = vpop.f32.mrb[0].mxu0
      %v1363 = vadd.f32 0.0, %v1362
      %v1364 = vpop.f32.mrb[0].mxu0
      %1365 = vmatprep.mubr.bf16.mxu0 0
      %1366 = vmatmul.mubr.bf16.gmra.mrb[0].mxu0 %v1210
      %v1367 = vpop.f32.mrb[0].mxu0
      %v1368 = vadd.f32 0.0, %v1367
      %v1369 = vpop.f32.mrb[0].mxu0
      %v1370 = vpop.f32.mrb[0].mxu0
      %v1371 = vadd.f32 0.0, %v1370
      %v1372 = vpop.f32.mrb[0].mxu0
      %1373 = vmatprep.mubr.bf16.mxu0 0
      %1374 = vmatmul.mubr.bf16.gmra.mrb[0].mxu0 %v1211
      %v1375 = vpop.f32.mrb[0].mxu0
      %v1376 = vadd.f32 0.0, %v1375
      %v1377 = vpop.f32.mrb[0].mxu0
      %v1378 = vpop.f32.mrb[0].mxu0
      %v1379 = vadd.f32 0.0, %v1378
      %v1380 = vpop.f32.mrb[0].mxu0
      %1381 = vmatprep.mubr.bf16.mxu0 0
      %1382 = vmatmul.mubr.bf16.gmra.mrb[0].mxu0 %v1212
      %v1383 = vpop.f32.mrb[0].mxu0
      %v1384 = vadd.f32 0.0, %v1383
      %v1385 = vpop.f32.mrb[0].mxu0
      %v1386 = vpop.f32.mrb[0].mxu0
      %v1387 = vadd.f32 0.0, %v1386
      %v1388 = vpop.f32.mrb[0].mxu0
      %1389 = vmatprep.mubr.bf16.mxu0 0
      %1390 = vmatmul.mubr.bf16.gmra.mrb[0].mxu0 %v1213
      %v1391 = vpop.f32.mrb[0].mxu0
      %v1392 = vadd.f32 0.0, %v1391
      %v1393 = vpop.f32.mrb[0].mxu0
      %v1394 = vpop.f32.mrb[0].mxu0
      %v1395 = vadd.f32 0.0, %v1394
      %v1396 = vpop.f32.mrb[0].mxu0
      %1397 = vmatprep.mubr.bf16.mxu0 0
      %1398 = vmatmul.mubr.bf16.gmra.mrb[0].mxu0 %v1214
      %v1399 = vpop.f32.mrb[0].mxu0
      %v1400 = vadd.f32 0.0, %v1399
      %v1401 = vpop.f32.mrb[0].mxu0
      %v1402 = vpop.f32.mrb[0].mxu0
      %v1403 = vadd.f32 0.0, %v1402
      %v1404 = vpop.f32.mrb[0].mxu0
      %1405 = vmatprep.mubr.bf16.mxu0 0
      %1406 = vmatmul.mubr.bf16.gmra.mrb[0].mxu0 %v1215
      %v1407 = vpop.f32.mrb[0].mxu0
      %v1408 = vadd.f32 0.0, %v1407
      %v1409 = vpop.f32.mrb[0].mxu0
      %v1410 = vpop.f32.mrb[0].mxu0
      %v1411 = vadd.f32 0.0, %v1410
      %v1412 = vpop.f32.mrb[0].mxu0
      %1413 = vmatprep.mubr.bf16.mxu0 0
      %1414 = vmatmul.mubr.bf16.gmra.mrb[0].mxu0 %v1216
      %v1415 = vpop.f32.mrb[0].mxu0
      %v1416 = vadd.f32 0.0, %v1415
      %v1417 = vpop.f32.mrb[0].mxu0
      %v1418 = vpop.f32.mrb[0].mxu0
      %v1419 = vadd.f32 0.0, %v1418
      %v1420 = vpop.f32.mrb[0].mxu0
      %1421 = vmatprep.mubr.bf16.mxu0 0
      %1422 = vmatmul.mubr.bf16.gmra.mrb[0].mxu0 %v1217
      %v1423 = vpop.f32.mrb[0].mxu0
      %v1424 = vadd.f32 0.0, %v1423
      %v1425 = vpop.f32.mrb[0].mxu0
      %v1426 = vpop.f32.mrb[0].mxu0
      %v1427 = vadd.f32 0.0, %v1426
      %v1428 = vpop.f32.mrb[0].mxu0
      %1429 = vmatprep.mubr.bf16.mxu0 0
      %1430 = vmatmul.mubr.bf16.gmra.mrb[0].mxu0 %v1218
      %v1431 = vpop.f32.mrb[0].mxu0
      %v1432 = vadd.f32 0.0, %v1431
      %v1433 = vpop.f32.mrb[0].mxu0
      %v1434 = vpop.f32.mrb[0].mxu0
      %v1435 = vadd.f32 0.0, %v1434
      %v1436 = vpop.f32.mrb[0].mxu0
      %1437 = vmatprep.mubr.bf16.mxu0 0
      %1438 = vmatmul.mubr.bf16.gmra.mrb[0].mxu0 %v1219
      %v1439 = vpop.f32.mrb[0].mxu0
      %v1440 = vadd.f32 0.0, %v1439
      %v1441 = vpop.f32.mrb[0].mxu0
      %v1442 = vpop.f32.mrb[0].mxu0
      %v1443 = vadd.f32 0.0, %v1442
      %v1444 = vpop.f32.mrb[0].mxu0
      %1445 = vdwg.mxu0
      %v1446 = vadd.f32 %v1046, %v1320
      %v1447 = vadd.f32 %v1049, %v1323
      %v1448 = vadd.f32 %v1054, %v1328
      %v1449 = vadd.f32 %v1057, %v1331
      %v1450 = vadd.f32 %v1062, %v1336
      %v1451 = vadd.f32 %v1065, %v1339
      %v1452 = vadd.f32 %v1070, %v1344
      %v1453 = vadd.f32 %v1073, %v1347
      %v1454 = vadd.f32 %v1078, %v1352
      %v1455 = vadd.f32 %v1081, %v1355
      %v1456 = vadd.f32 %v1086, %v1360
      %v1457 = vadd.f32 %v1089, %v1363
      %v1458 = vadd.f32 %v1094, %v1368
      %v1459 = vadd.f32 %v1097, %v1371
      %v1460 = vadd.f32 %v1102, %v1376
      %v1461 = vadd.f32 %v1105, %v1379
      %v1462 = vadd.f32 %v1110, %v1384
      %v1463 = vadd.f32 %v1113, %v1387
      %v1464 = vadd.f32 %v1118, %v1392
      %v1465 = vadd.f32 %v1121, %v1395
      %v1466 = vadd.f32 %v1126, %v1400
      %v1467 = vadd.f32 %v1129, %v1403
      %v1468 = vadd.f32 %v1134, %v1408
      %v1469 = vadd.f32 %v1137, %v1411
      %v1470 = vadd.f32 %v1142, %v1416
      %v1471 = vadd.f32 %v1145, %v1419
      %v1472 = vadd.f32 %v1150, %v1424
      %v1473 = vadd.f32 %v1153, %v1427
      %v1474 = vadd.f32 %v1158, %v1432
      %v1475 = vadd.f32 %v1161, %v1435
      %v1476 = vadd.f32 %v1166, %v1440
      %v1477 = vadd.f32 %v1169, %v1443
      %v1478 = vld [vmem:[%s592] sm:$0xff]
      %v1479 = vld [vmem:[%s592 + $0x8] sm:$0xff]
      %v1480 = vld [vmem:[%s592 + $0x18] sm:$0xff]
      %v1481 = vld [vmem:[%s592 + $0x20] sm:$0xff]
      %v1482 = vld [vmem:[%s592 + $0x30] sm:$0xff]
      %v1483 = vld [vmem:[%s592 + $0x38] sm:$0xff]
      %v1484 = vld [vmem:[%s592 + $0x48] sm:$0xff]
      %v1485 = vld [vmem:[%s592 + $0x50] sm:$0xff]
      %v1486 = vld [vmem:[%s592 + $0x60] sm:$0xff]
      %v1487 = vld [vmem:[%s592 + $0x68] sm:$0xff]
      %v1488 = vld [vmem:[%s592 + $0x78] sm:$0xff]
      %v1489 = vld [vmem:[%s592 + $0x80] sm:$0xff]
      %v1490 = vld [vmem:[%s592 + $0x90] sm:$0xff]
      %v1491 = vld [vmem:[%s592 + $0x98] sm:$0xff]
      %v1492 = vld [vmem:[%s592 + $0xa8] sm:$0xff]
      %v1493 = vld [vmem:[%s592 + $0xb0] sm:$0xff]
      %v1494 = vld [vmem:[%s592 + $0xc0] sm:$0xff]
      %v1495 = vld [vmem:[%s592 + $0xc8] sm:$0xff]
      %v1496 = vld [vmem:[%s592 + $0xd8] sm:$0xff]
      %v1497 = vld [vmem:[%s592 + $0xe0] sm:$0xff]
      %v1498 = vld [vmem:[%s592 + $0xf0] sm:$0xff]
      %v1499 = vld [vmem:[%s592 + $0xf8] sm:$0xff]
      %v1500 = vld [vmem:[%s592 + $0x108] sm:$0xff]
      %v1501 = vld [vmem:[%s592 + $0x110] sm:$0xff]
      %v1502 = vld [vmem:[%s592 + $0x120] sm:$0xff]
      %v1503 = vld [vmem:[%s592 + $0x128] sm:$0xff]
      %v1504 = vld [vmem:[%s592 + $0x138] sm:$0xff]
      %v1505 = vld [vmem:[%s592 + $0x140] sm:$0xff]
      %v1506 = vld [vmem:[%s592 + $0x150] sm:$0xff]
      %v1507 = vld [vmem:[%s592 + $0x158] sm:$0xff]
      %v1508 = vld [vmem:[%s592 + $0x168] sm:$0xff]
      %v1509 = vld [vmem:[%s592 + $0x170] sm:$0xff]
      %v1510 = vpack.c.bf16 %v1479, %v1478
      %v1511 = vpack.c.bf16 %v1481, %v1480
      %v1512 = vpack.c.bf16 %v1483, %v1482
      %v1513 = vpack.c.bf16 %v1485, %v1484
      %v1514 = vpack.c.bf16 %v1487, %v1486
      %v1515 = vpack.c.bf16 %v1489, %v1488
      %v1516 = vpack.c.bf16 %v1491, %v1490
      %v1517 = vpack.c.bf16 %v1493, %v1492
      %v1518 = vpack.c.bf16 %v1495, %v1494
      %v1519 = vpack.c.bf16 %v1497, %v1496
      %v1520 = vpack.c.bf16 %v1499, %v1498
      %v1521 = vpack.c.bf16 %v1501, %v1500
      %v1522 = vpack.c.bf16 %v1503, %v1502
      %v1523 = vpack.c.bf16 %v1505, %v1504
      %v1524 = vpack.c.bf16 %v1507, %v1506
      %v1525 = vpack.c.bf16 %v1509, %v1508
      %s1526 = scalar_lea.vmem %s4, 192
      %v1527 = vld [vmem:[%s1526] sm:$0xf]
      %v1528 = vld [vmem:[%s1526 + $0x4] sm:$0xf]
      %v1529 = vld [vmem:[%s1526 + $0x8] sm:$0xf]
      %v1530 = vld [vmem:[%s1526 + $0xc] sm:$0xf]
      %v1531 = vld [vmem:[%s1526 + $0x10] sm:$0xf]
      %v1532 = vld [vmem:[%s1526 + $0x14] sm:$0xf]
      %v1533 = vld [vmem:[%s1526 + $0x18] sm:$0xf]
      %v1534 = vld [vmem:[%s1526 + $0x1c] sm:$0xf]
      %v1535 = vld [vmem:[%s1526 + $0x20] sm:$0xf]
      %v1536 = vld [vmem:[%s1526 + $0x24] sm:$0xf]
      %v1537 = vld [vmem:[%s1526 + $0x28] sm:$0xf]
      %v1538 = vld [vmem:[%s1526 + $0x2c] sm:$0xf]
      %v1539 = vld [vmem:[%s1526 + $0x30] sm:$0xf]
      %v1540 = vld [vmem:[%s1526 + $0x34] sm:$0xf]
      %v1541 = vld [vmem:[%s1526 + $0x38] sm:$0xf]
      %v1542 = vld [vmem:[%s1526 + $0x3c] sm:$0xf]
      %v1559 = vunpack.c.l.b16 %v1527
      %v1560 = vunpack.c.l.b16 %v1528
      %v1561 = vunpack.c.l.b16 %v1529
      %v1562 = vunpack.c.l.b16 %v1530
      %v1563 = vunpack.c.l.b16 %v1531
      %v1564 = vunpack.c.l.b16 %v1532
      %v1565 = vunpack.c.l.b16 %v1533
      %v1566 = vunpack.c.l.b16 %v1534
      %v1567 = vunpack.c.l.b16 %v1535
      %v1568 = vunpack.c.l.b16 %v1536
      %v1569 = vunpack.c.l.b16 %v1537
      %v1570 = vunpack.c.l.b16 %v1538
      %v1571 = vunpack.c.l.b16 %v1539
      %v1572 = vunpack.c.l.b16 %v1540
      %v1573 = vunpack.c.l.b16 %v1541
      %v1574 = vunpack.c.l.b16 %v1542
      %v1575 = vpack.c.b16 %v1560, %v1559
      %v1576 = vpack.c.b16 %v1562, %v1561
      %v1577 = vpack.c.b16 %v1564, %v1563
      %v1578 = vpack.c.b16 %v1566, %v1565
      %v1579 = vpack.c.b16 %v1568, %v1567
      %v1580 = vpack.c.b16 %v1570, %v1569
      %v1581 = vpack.c.b16 %v1572, %v1571
      %v1582 = vpack.c.b16 %v1574, %v1573
      %1591 = vmatprep.subr.bf16.mxu0 0
      %1592 = vmatpush1.bf16.msra.mxu0 %v1575
      %1593 = vmatprep.subr.bf16.mxu0 0
      %1594 = vmatpush1.bf16.msra.mxu0 %v1576
      %1595 = vmatprep.subr.bf16.mxu0 0
      %1596 = vmatpush1.bf16.msra.mxu0 %v1577
      %1597 = vmatprep.subr.bf16.mxu0 0
      %1598 = vmatpush1.bf16.msra.mxu0 %v1578
      %1599 = vmatprep.subr.bf16.mxu0 0
      %1600 = vmatpush1.bf16.msra.mxu0 %v1579
      %1601 = vmatprep.subr.bf16.mxu0 0
      %1602 = vmatpush1.bf16.msra.mxu0 %v1580
      %1603 = vmatprep.subr.bf16.mxu0 0
      %1604 = vmatpush1.bf16.msra.mxu0 %v1581
      %1605 = vmatprep.subr.bf16.mxu0 0
      %1606 = vmatpush1.bf16.msra.mxu0 %v1582
      %1607 = vmatprep.subr.bf16.mxu0 0
      %1608 = vmatpush1.bf16.msra.mxu0 0
      %1609 = vmatprep.subr.bf16.mxu0 0
      %1610 = vmatpush1.bf16.msra.mxu0 0
      %1611 = vmatprep.subr.bf16.mxu0 0
      %1612 = vmatpush1.bf16.msra.mxu0 0
      %1613 = vmatprep.subr.bf16.mxu0 0
      %1614 = vmatpush1.bf16.msra.mxu0 0
      %1615 = vmatprep.subr.bf16.mxu0 0
      %1616 = vmatpush1.bf16.msra.mxu0 0
      %1617 = vmatprep.subr.bf16.mxu0 0
      %1618 = vmatpush1.bf16.msra.mxu0 0
      %1619 = vmatprep.subr.bf16.mxu0 0
      %1620 = vmatpush1.bf16.msra.mxu0 0
      %1621 = vmatprep.subr.bf16.mxu0 0
      %1622 = vmatpush1.bf16.msra.mxu0 0
      %1623 = vmatprep.mubr.bf16.mxu0 0
      %1624 = vmatmul.mubr.bf16.gmra.mrb[0].mxu0 %v1510
      %v1625 = vpop.f32.mrb[0].mxu0
      %v1626 = vadd.f32 0.0, %v1625
      %v1627 = vpop.f32.mrb[0].mxu0
      %v1628 = vpop.f32.mrb[0].mxu0
      %v1629 = vadd.f32 0.0, %v1628
      %v1630 = vpop.f32.mrb[0].mxu0
      %1631 = vmatprep.mubr.bf16.mxu0 0
      %1632 = vmatmul.mubr.bf16.gmra.mrb[0].mxu0 %v1511
      %v1633 = vpop.f32.mrb[0].mxu0
      %v1634 = vadd.f32 0.0, %v1633
      %v1635 = vpop.f32.mrb[0].mxu0
      %v1636 = vpop.f32.mrb[0].mxu0
      %v1637 = vadd.f32 0.0, %v1636
      %v1638 = vpop.f32.mrb[0].mxu0
      %1639 = vmatprep.mubr.bf16.mxu0 0
      %1640 = vmatmul.mubr.bf16.gmra.mrb[0].mxu0 %v1512
      %v1641 = vpop.f32.mrb[0].mxu0
      %v1642 = vadd.f32 0.0, %v1641
      %v1643 = vpop.f32.mrb[0].mxu0
      %v1644 = vpop.f32.mrb[0].mxu0
      %v1645 = vadd.f32 0.0, %v1644
      %v1646 = vpop.f32.mrb[0].mxu0
      %1647 = vmatprep.mubr.bf16.mxu0 0
      %1648 = vmatmul.mubr.bf16.gmra.mrb[0].mxu0 %v1513
      %v1649 = vpop.f32.mrb[0].mxu0
      %v1650 = vadd.f32 0.0, %v1649
      %v1651 = vpop.f32.mrb[0].mxu0
      %v1652 = vpop.f32.mrb[0].mxu0
      %v1653 = vadd.f32 0.0, %v1652
      %v1654 = vpop.f32.mrb[0].mxu0
      %1655 = vmatprep.mubr.bf16.mxu0 0
      %1656 = vmatmul.mubr.bf16.gmra.mrb[0].mxu0 %v1514
      %v1657 = vpop.f32.mrb[0].mxu0
      %v1658 = vadd.f32 0.0, %v1657
      %v1659 = vpop.f32.mrb[0].mxu0
      %v1660 = vpop.f32.mrb[0].mxu0
      %v1661 = vadd.f32 0.0, %v1660
      %v1662 = vpop.f32.mrb[0].mxu0
      %1663 = vmatprep.mubr.bf16.mxu0 0
      %1664 = vmatmul.mubr.bf16.gmra.mrb[0].mxu0 %v1515
      %v1665 = vpop.f32.mrb[0].mxu0
      %v1666 = vadd.f32 0.0, %v1665
      %v1667 = vpop.f32.mrb[0].mxu0
      %v1668 = vpop.f32.mrb[0].mxu0
      %v1669 = vadd.f32 0.0, %v1668
      %v1670 = vpop.f32.mrb[0].mxu0
      %1671 = vmatprep.mubr.bf16.mxu0 0
      %1672 = vmatmul.mubr.bf16.gmra.mrb[0].mxu0 %v1516
      %v1673 = vpop.f32.mrb[0].mxu0
      %v1674 = vadd.f32 0.0, %v1673
      %v1675 = vpop.f32.mrb[0].mxu0
      %v1676 = vpop.f32.mrb[0].mxu0
      %v1677 = vadd.f32 0.0, %v1676
      %v1678 = vpop.f32.mrb[0].mxu0
      %1679 = vmatprep.mubr.bf16.mxu0 0
      %1680 = vmatmul.mubr.bf16.gmra.mrb[0].mxu0 %v1517
      %v1681 = vpop.f32.mrb[0].mxu0
      %v1682 = vadd.f32 0.0, %v1681
      %v1683 = vpop.f32.mrb[0].mxu0
      %v1684 = vpop.f32.mrb[0].mxu0
      %v1685 = vadd.f32 0.0, %v1684
      %v1686 = vpop.f32.mrb[0].mxu0
      %1687 = vmatprep.mubr.bf16.mxu0 0
      %1688 = vmatmul.mubr.bf16.gmra.mrb[0].mxu0 %v1518
      %v1689 = vpop.f32.mrb[0].mxu0
      %v1690 = vadd.f32 0.0, %v1689
      %v1691 = vpop.f32.mrb[0].mxu0
      %v1692 = vpop.f32.mrb[0].mxu0
      %v1693 = vadd.f32 0.0, %v1692
      %v1694 = vpop.f32.mrb[0].mxu0
      %1695 = vmatprep.mubr.bf16.mxu0 0
      %1696 = vmatmul.mubr.bf16.gmra.mrb[0].mxu0 %v1519
      %v1697 = vpop.f32.mrb[0].mxu0
      %v1698 = vadd.f32 0.0, %v1697
      %v1699 = vpop.f32.mrb[0].mxu0
      %v1700 = vpop.f32.mrb[0].mxu0
      %v1701 = vadd.f32 0.0, %v1700
      %v1702 = vpop.f32.mrb[0].mxu0
      %1703 = vmatprep.mubr.bf16.mxu0 0
      %1704 = vmatmul.mubr.bf16.gmra.mrb[0].mxu0 %v1520
      %v1705 = vpop.f32.mrb[0].mxu0
      %v1706 = vadd.f32 0.0, %v1705
      %v1707 = vpop.f32.mrb[0].mxu0
      %v1708 = vpop.f32.mrb[0].mxu0
      %v1709 = vadd.f32 0.0, %v1708
      %v1710 = vpop.f32.mrb[0].mxu0
      %1711 = vmatprep.mubr.bf16.mxu0 0
      %1712 = vmatmul.mubr.bf16.gmra.mrb[0].mxu0 %v1521
      %v1713 = vpop.f32.mrb[0].mxu0
      %v1714 = vadd.f32 0.0, %v1713
      %v1715 = vpop.f32.mrb[0].mxu0
      %v1716 = vpop.f32.mrb[0].mxu0
      %v1717 = vadd.f32 0.0, %v1716
      %v1718 = vpop.f32.mrb[0].mxu0
      %1719 = vmatprep.mubr.bf16.mxu0 0
      %1720 = vmatmul.mubr.bf16.gmra.mrb[0].mxu0 %v1522
      %v1721 = vpop.f32.mrb[0].mxu0
      %v1722 = vadd.f32 0.0, %v1721
      %v1723 = vpop.f32.mrb[0].mxu0
      %v1724 = vpop.f32.mrb[0].mxu0
      %v1725 = vadd.f32 0.0, %v1724
      %v1726 = vpop.f32.mrb[0].mxu0
      %1727 = vmatprep.mubr.bf16.mxu0 0
      %1728 = vmatmul.mubr.bf16.gmra.mrb[0].mxu0 %v1523
      %v1729 = vpop.f32.mrb[0].mxu0
      %v1730 = vadd.f32 0.0, %v1729
      %v1731 = vpop.f32.mrb[0].mxu0
      %v1732 = vpop.f32.mrb[0].mxu0
      %v1733 = vadd.f32 0.0, %v1732
      %v1734 = vpop.f32.mrb[0].mxu0
      %1735 = vmatprep.mubr.bf16.mxu0 0
      %1736 = vmatmul.mubr.bf16.gmra.mrb[0].mxu0 %v1524
      %v1737 = vpop.f32.mrb[0].mxu0
      %v1738 = vadd.f32 0.0, %v1737
      %v1739 = vpop.f32.mrb[0].mxu0
      %v1740 = vpop.f32.mrb[0].mxu0
      %v1741 = vadd.f32 0.0, %v1740
      %v1742 = vpop.f32.mrb[0].mxu0
      %1743 = vmatprep.mubr.bf16.mxu0 0
      %1744 = vmatmul.mubr.bf16.gmra.mrb[0].mxu0 %v1525
      %v1745 = vpop.f32.mrb[0].mxu0
      %v1746 = vadd.f32 0.0, %v1745
      %v1747 = vpop.f32.mrb[0].mxu0
      %v1748 = vpop.f32.mrb[0].mxu0
      %v1749 = vadd.f32 0.0, %v1748
      %v1750 = vpop.f32.mrb[0].mxu0
      %1751 = vdwg.mxu0
      %v1752 = vadd.f32 %v1446, %v1626
      %v1753 = vadd.f32 %v1447, %v1629
      %v1754 = vadd.f32 %v1448, %v1634
      %v1755 = vadd.f32 %v1449, %v1637
      %v1756 = vadd.f32 %v1450, %v1642
      %v1757 = vadd.f32 %v1451, %v1645
      %v1758 = vadd.f32 %v1452, %v1650
      %v1759 = vadd.f32 %v1453, %v1653
      %v1760 = vadd.f32 %v1454, %v1658
      %v1761 = vadd.f32 %v1455, %v1661
      %v1762 = vadd.f32 %v1456, %v1666
      %v1763 = vadd.f32 %v1457, %v1669
      %v1764 = vadd.f32 %v1458, %v1674
      %v1765 = vadd.f32 %v1459, %v1677
      %v1766 = vadd.f32 %v1460, %v1682
      %v1767 = vadd.f32 %v1461, %v1685
      %v1768 = vadd.f32 %v1462, %v1690
      %v1769 = vadd.f32 %v1463, %v1693
      %v1770 = vadd.f32 %v1464, %v1698
      %v1771 = vadd.f32 %v1465, %v1701
      %v1772 = vadd.f32 %v1466, %v1706
      %v1773 = vadd.f32 %v1467, %v1709
      %v1774 = vadd.f32 %v1468, %v1714
      %v1775 = vadd.f32 %v1469, %v1717
      %v1776 = vadd.f32 %v1470, %v1722
      %v1777 = vadd.f32 %v1471, %v1725
      %v1778 = vadd.f32 %v1472, %v1730
      %v1779 = vadd.f32 %v1473, %v1733
      %v1780 = vadd.f32 %v1474, %v1738
      %v1781 = vadd.f32 %v1475, %v1741
      %v1782 = vadd.f32 %v1476, %v1746
      %v1783 = vadd.f32 %v1477, %v1749
      %v1784 = vld [vmem:[%s592 + $0x1] sm:$0xff]
      %v1785 = vld [vmem:[%s592 + $0x9] sm:$0xff]
      %v1786 = vld [vmem:[%s592 + $0x19] sm:$0xff]
      %v1787 = vld [vmem:[%s592 + $0x21] sm:$0xff]
      %v1788 = vld [vmem:[%s592 + $0x31] sm:$0xff]
      %v1789 = vld [vmem:[%s592 + $0x39] sm:$0xff]
      %v1790 = vld [vmem:[%s592 + $0x49] sm:$0xff]
      %v1791 = vld [vmem:[%s592 + $0x51] sm:$0xff]
      %v1792 = vld [vmem:[%s592 + $0x61] sm:$0xff]
      %v1793 = vld [vmem:[%s592 + $0x69] sm:$0xff]
      %v1794 = vld [vmem:[%s592 + $0x79] sm:$0xff]
      %v1795 = vld [vmem:[%s592 + $0x81] sm:$0xff]
      %v1796 = vld [vmem:[%s592 + $0x91] sm:$0xff]
      %v1797 = vld [vmem:[%s592 + $0x99] sm:$0xff]
      %v1798 = vld [vmem:[%s592 + $0xa9] sm:$0xff]
      %v1799 = vld [vmem:[%s592 + $0xb1] sm:$0xff]
      %v1800 = vld [vmem:[%s592 + $0xc1] sm:$0xff]
      %v1801 = vld [vmem:[%s592 + $0xc9] sm:$0xff]
      %v1802 = vld [vmem:[%s592 + $0xd9] sm:$0xff]
      %v1803 = vld [vmem:[%s592 + $0xe1] sm:$0xff]
      %v1804 = vld [vmem:[%s592 + $0xf1] sm:$0xff]
      %v1805 = vld [vmem:[%s592 + $0xf9] sm:$0xff]
      %v1806 = vld [vmem:[%s592 + $0x109] sm:$0xff]
      %v1807 = vld [vmem:[%s592 + $0x111] sm:$0xff]
      %v1808 = vld [vmem:[%s592 + $0x121] sm:$0xff]
      %v1809 = vld [vmem:[%s592 + $0x129] sm:$0xff]
      %v1810 = vld [vmem:[%s592 + $0x139] sm:$0xff]
      %v1811 = vld [vmem:[%s592 + $0x141] sm:$0xff]
      %v1812 = vld [vmem:[%s592 + $0x151] sm:$0xff]
      %v1813 = vld [vmem:[%s592 + $0x159] sm:$0xff]
      %v1814 = vld [vmem:[%s592 + $0x169] sm:$0xff]
      %v1815 = vld [vmem:[%s592 + $0x171] sm:$0xff]
      %v1816 = vpack.c.bf16 %v1785, %v1784
      %v1817 = vpack.c.bf16 %v1787, %v1786
      %v1818 = vpack.c.bf16 %v1789, %v1788
      %v1819 = vpack.c.bf16 %v1791, %v1790
      %v1820 = vpack.c.bf16 %v1793, %v1792
      %v1821 = vpack.c.bf16 %v1795, %v1794
      %v1822 = vpack.c.bf16 %v1797, %v1796
      %v1823 = vpack.c.bf16 %v1799, %v1798
      %v1824 = vpack.c.bf16 %v1801, %v1800
      %v1825 = vpack.c.bf16 %v1803, %v1802
      %v1826 = vpack.c.bf16 %v1805, %v1804
      %v1827 = vpack.c.bf16 %v1807, %v1806
      %v1828 = vpack.c.bf16 %v1809, %v1808
      %v1829 = vpack.c.bf16 %v1811, %v1810
      %v1830 = vpack.c.bf16 %v1813, %v1812
      %v1831 = vpack.c.bf16 %v1815, %v1814
      %s1832 = scalar_lea.vmem %s4, 256
      %v1833 = vld [vmem:[%s1832] sm:$0xf]
      %v1834 = vld [vmem:[%s1832 + $0x4] sm:$0xf]
      %v1835 = vld [vmem:[%s1832 + $0x8] sm:$0xf]
      %v1836 = vld [vmem:[%s1832 + $0xc] sm:$0xf]
      %v1837 = vld [vmem:[%s1832 + $0x10] sm:$0xf]
      %v1838 = vld [vmem:[%s1832 + $0x14] sm:$0xf]
      %v1839 = vld [vmem:[%s1832 + $0x18] sm:$0xf]
      %v1840 = vld [vmem:[%s1832 + $0x1c] sm:$0xf]
      %v1841 = vld [vmem:[%s1832 + $0x20] sm:$0xf]
      %v1842 = vld [vmem:[%s1832 + $0x24] sm:$0xf]
      %v1843 = vld [vmem:[%s1832 + $0x28] sm:$0xf]
      %v1844 = vld [vmem:[%s1832 + $0x2c] sm:$0xf]
      %v1845 = vld [vmem:[%s1832 + $0x30] sm:$0xf]
      %v1846 = vld [vmem:[%s1832 + $0x34] sm:$0xf]
      %v1847 = vld [vmem:[%s1832 + $0x38] sm:$0xf]
      %v1848 = vld [vmem:[%s1832 + $0x3c] sm:$0xf]
      %v1865 = vunpack.c.l.b16 %v1833
      %v1866 = vunpack.c.l.b16 %v1834
      %v1867 = vunpack.c.l.b16 %v1835
      %v1868 = vunpack.c.l.b16 %v1836
      %v1869 = vunpack.c.l.b16 %v1837
      %v1870 = vunpack.c.l.b16 %v1838
      %v1871 = vunpack.c.l.b16 %v1839
      %v1872 = vunpack.c.l.b16 %v1840
      %v1873 = vunpack.c.l.b16 %v1841
      %v1874 = vunpack.c.l.b16 %v1842
      %v1875 = vunpack.c.l.b16 %v1843
      %v1876 = vunpack.c.l.b16 %v1844
      %v1877 = vunpack.c.l.b16 %v1845
      %v1878 = vunpack.c.l.b16 %v1846
      %v1879 = vunpack.c.l.b16 %v1847
      %v1880 = vunpack.c.l.b16 %v1848
      %v1881 = vpack.c.b16 %v1866, %v1865
      %v1882 = vpack.c.b16 %v1868, %v1867
      %v1883 = vpack.c.b16 %v1870, %v1869
      %v1884 = vpack.c.b16 %v1872, %v1871
      %v1885 = vpack.c.b16 %v1874, %v1873
      %v1886 = vpack.c.b16 %v1876, %v1875
      %v1887 = vpack.c.b16 %v1878, %v1877
      %v1888 = vpack.c.b16 %v1880, %v1879
      %1897 = vmatprep.subr.bf16.mxu0 0
      %1898 = vmatpush1.bf16.msra.mxu0 %v1881
      %1899 = vmatprep.subr.bf16.mxu0 0
      %1900 = vmatpush1.bf16.msra.mxu0 %v1882
      %1901 = vmatprep.subr.bf16.mxu0 0
      %1902 = vmatpush1.bf16.msra.mxu0 %v1883
      %1903 = vmatprep.subr.bf16.mxu0 0
      %1904 = vmatpush1.bf16.msra.mxu0 %v1884
      %1905 = vmatprep.subr.bf16.mxu0 0
      %1906 = vmatpush1.bf16.msra.mxu0 %v1885
      %1907 = vmatprep.subr.bf16.mxu0 0
      %1908 = vmatpush1.bf16.msra.mxu0 %v1886
      %1909 = vmatprep.subr.bf16.mxu0 0
      %1910 = vmatpush1.bf16.msra.mxu0 %v1887
      %1911 = vmatprep.subr.bf16.mxu0 0
      %1912 = vmatpush1.bf16.msra.mxu0 %v1888
      %1913 = vmatprep.subr.bf16.mxu0 0
      %1914 = vmatpush1.bf16.msra.mxu0 0
      %1915 = vmatprep.subr.bf16.mxu0 0
      %1916 = vmatpush1.bf16.msra.mxu0 0
      %1917 = vmatprep.subr.bf16.mxu0 0
      %1918 = vmatpush1.bf16.msra.mxu0 0
      %1919 = vmatprep.subr.bf16.mxu0 0
      %1920 = vmatpush1.bf16.msra.mxu0 0
      %1921 = vmatprep.subr.bf16.mxu0 0
      %1922 = vmatpush1.bf16.msra.mxu0 0
      %1923 = vmatprep.subr.bf16.mxu0 0
      %1924 = vmatpush1.bf16.msra.mxu0 0
      %1925 = vmatprep.subr.bf16.mxu0 0
      %1926 = vmatpush1.bf16.msra.mxu0 0
      %1927 = vmatprep.subr.bf16.mxu0 0
      %1928 = vmatpush1.bf16.msra.mxu0 0
      %1929 = vmatprep.mubr.bf16.mxu0 0
      %1930 = vmatmul.mubr.bf16.gmra.mrb[0].mxu0 %v1816
      %v1931 = vpop.f32.mrb[0].mxu0
      %v1932 = vadd.f32 0.0, %v1931
      %v1933 = vpop.f32.mrb[0].mxu0
      %v1934 = vpop.f32.mrb[0].mxu0
      %v1935 = vadd.f32 0.0, %v1934
      %v1936 = vpop.f32.mrb[0].mxu0
      %1937 = vmatprep.mubr.bf16.mxu0 0
      %1938 = vmatmul.mubr.bf16.gmra.mrb[0].mxu0 %v1817
      %v1939 = vpop.f32.mrb[0].mxu0
      %v1940 = vadd.f32 0.0, %v1939
      %v1941 = vpop.f32.mrb[0].mxu0
      %v1942 = vpop.f32.mrb[0].mxu0
      %v1943 = vadd.f32 0.0, %v1942
      %v1944 = vpop.f32.mrb[0].mxu0
      %1945 = vmatprep.mubr.bf16.mxu0 0
      %1946 = vmatmul.mubr.bf16.gmra.mrb[0].mxu0 %v1818
      %v1947 = vpop.f32.mrb[0].mxu0
      %v1948 = vadd.f32 0.0, %v1947
      %v1949 = vpop.f32.mrb[0].mxu0
      %v1950 = vpop.f32.mrb[0].mxu0
      %v1951 = vadd.f32 0.0, %v1950
      %v1952 = vpop.f32.mrb[0].mxu0
      %1953 = vmatprep.mubr.bf16.mxu0 0
      %1954 = vmatmul.mubr.bf16.gmra.mrb[0].mxu0 %v1819
      %v1955 = vpop.f32.mrb[0].mxu0
      %v1956 = vadd.f32 0.0, %v1955
      %v1957 = vpop.f32.mrb[0].mxu0
      %v1958 = vpop.f32.mrb[0].mxu0
      %v1959 = vadd.f32 0.0, %v1958
      %v1960 = vpop.f32.mrb[0].mxu0
      %1961 = vmatprep.mubr.bf16.mxu0 0
      %1962 = vmatmul.mubr.bf16.gmra.mrb[0].mxu0 %v1820
      %v1963 = vpop.f32.mrb[0].mxu0
      %v1964 = vadd.f32 0.0, %v1963
      %v1965 = vpop.f32.mrb[0].mxu0
      %v1966 = vpop.f32.mrb[0].mxu0
      %v1967 = vadd.f32 0.0, %v1966
      %v1968 = vpop.f32.mrb[0].mxu0
      %1969 = vmatprep.mubr.bf16.mxu0 0
      %1970 = vmatmul.mubr.bf16.gmra.mrb[0].mxu0 %v1821
      %v1971 = vpop.f32.mrb[0].mxu0
      %v1972 = vadd.f32 0.0, %v1971
      %v1973 = vpop.f32.mrb[0].mxu0
      %v1974 = vpop.f32.mrb[0].mxu0
      %v1975 = vadd.f32 0.0, %v1974
      %v1976 = vpop.f32.mrb[0].mxu0
      %1977 = vmatprep.mubr.bf16.mxu0 0
      %1978 = vmatmul.mubr.bf16.gmra.mrb[0].mxu0 %v1822
      %v1979 = vpop.f32.mrb[0].mxu0
      %v1980 = vadd.f32 0.0, %v1979
      %v1981 = vpop.f32.mrb[0].mxu0
      %v1982 = vpop.f32.mrb[0].mxu0
      %v1983 = vadd.f32 0.0, %v1982
      %v1984 = vpop.f32.mrb[0].mxu0
      %1985 = vmatprep.mubr.bf16.mxu0 0
      %1986 = vmatmul.mubr.bf16.gmra.mrb[0].mxu0 %v1823
      %v1987 = vpop.f32.mrb[0].mxu0
      %v1988 = vadd.f32 0.0, %v1987
      %v1989 = vpop.f32.mrb[0].mxu0
      %v1990 = vpop.f32.mrb[0].mxu0
      %v1991 = vadd.f32 0.0, %v1990
      %v1992 = vpop.f32.mrb[0].mxu0
      %1993 = vmatprep.mubr.bf16.mxu0 0
      %1994 = vmatmul.mubr.bf16.gmra.mrb[0].mxu0 %v1824
      %v1995 = vpop.f32.mrb[0].mxu0
      %v1996 = vadd.f32 0.0, %v1995
      %v1997 = vpop.f32.mrb[0].mxu0
      %v1998 = vpop.f32.mrb[0].mxu0
      %v1999 = vadd.f32 0.0, %v1998
      %v2000 = vpop.f32.mrb[0].mxu0
      %2001 = vmatprep.mubr.bf16.mxu0 0
      %2002 = vmatmul.mubr.bf16.gmra.mrb[0].mxu0 %v1825
      %v2003 = vpop.f32.mrb[0].mxu0
      %v2004 = vadd.f32 0.0, %v2003
      %v2005 = vpop.f32.mrb[0].mxu0
      %v2006 = vpop.f32.mrb[0].mxu0
      %v2007 = vadd.f32 0.0, %v2006
      %v2008 = vpop.f32.mrb[0].mxu0
      %2009 = vmatprep.mubr.bf16.mxu0 0
      %2010 = vmatmul.mubr.bf16.gmra.mrb[0].mxu0 %v1826
      %v2011 = vpop.f32.mrb[0].mxu0
      %v2012 = vadd.f32 0.0, %v2011
      %v2013 = vpop.f32.mrb[0].mxu0
      %v2014 = vpop.f32.mrb[0].mxu0
      %v2015 = vadd.f32 0.0, %v2014
      %v2016 = vpop.f32.mrb[0].mxu0
      %2017 = vmatprep.mubr.bf16.mxu0 0
      %2018 = vmatmul.mubr.bf16.gmra.mrb[0].mxu0 %v1827
      %v2019 = vpop.f32.mrb[0].mxu0
      %v2020 = vadd.f32 0.0, %v2019
      %v2021 = vpop.f32.mrb[0].mxu0
      %v2022 = vpop.f32.mrb[0].mxu0
      %v2023 = vadd.f32 0.0, %v2022
      %v2024 = vpop.f32.mrb[0].mxu0
      %2025 = vmatprep.mubr.bf16.mxu0 0
      %2026 = vmatmul.mubr.bf16.gmra.mrb[0].mxu0 %v1828
      %v2027 = vpop.f32.mrb[0].mxu0
      %v2028 = vadd.f32 0.0, %v2027
      %v2029 = vpop.f32.mrb[0].mxu0
      %v2030 = vpop.f32.mrb[0].mxu0
      %v2031 = vadd.f32 0.0, %v2030
      %v2032 = vpop.f32.mrb[0].mxu0
      %2033 = vmatprep.mubr.bf16.mxu0 0
      %2034 = vmatmul.mubr.bf16.gmra.mrb[0].mxu0 %v1829
      %v2035 = vpop.f32.mrb[0].mxu0
      %v2036 = vadd.f32 0.0, %v2035
      %v2037 = vpop.f32.mrb[0].mxu0
      %v2038 = vpop.f32.mrb[0].mxu0
      %v2039 = vadd.f32 0.0, %v2038
      %v2040 = vpop.f32.mrb[0].mxu0
      %2041 = vmatprep.mubr.bf16.mxu0 0
      %2042 = vmatmul.mubr.bf16.gmra.mrb[0].mxu0 %v1830
      %v2043 = vpop.f32.mrb[0].mxu0
      %v2044 = vadd.f32 0.0, %v2043
      %v2045 = vpop.f32.mrb[0].mxu0
      %v2046 = vpop.f32.mrb[0].mxu0
      %v2047 = vadd.f32 0.0, %v2046
      %v2048 = vpop.f32.mrb[0].mxu0
      %2049 = vmatprep.mubr.bf16.mxu0 0
      %2050 = vmatmul.mubr.bf16.gmra.mrb[0].mxu0 %v1831
      %v2051 = vpop.f32.mrb[0].mxu0
      %v2052 = vadd.f32 0.0, %v2051
      %v2053 = vpop.f32.mrb[0].mxu0
      %v2054 = vpop.f32.mrb[0].mxu0
      %v2055 = vadd.f32 0.0, %v2054
      %v2056 = vpop.f32.mrb[0].mxu0
      %2057 = vdwg.mxu0
      %v2058 = vadd.f32 %v1752, %v1932
      %v2059 = vadd.f32 %v1753, %v1935
      %v2060 = vadd.f32 %v1754, %v1940
      %v2061 = vadd.f32 %v1755, %v1943
      %v2062 = vadd.f32 %v1756, %v1948
      %v2063 = vadd.f32 %v1757, %v1951
      %v2064 = vadd.f32 %v1758, %v1956
      %v2065 = vadd.f32 %v1759, %v1959
      %v2066 = vadd.f32 %v1760, %v1964
      %v2067 = vadd.f32 %v1761, %v1967
      %v2068 = vadd.f32 %v1762, %v1972
      %v2069 = vadd.f32 %v1763, %v1975
      %v2070 = vadd.f32 %v1764, %v1980
      %v2071 = vadd.f32 %v1765, %v1983
      %v2072 = vadd.f32 %v1766, %v1988
      %v2073 = vadd.f32 %v1767, %v1991
      %v2074 = vadd.f32 %v1768, %v1996
      %v2075 = vadd.f32 %v1769, %v1999
      %v2076 = vadd.f32 %v1770, %v2004
      %v2077 = vadd.f32 %v1771, %v2007
      %v2078 = vadd.f32 %v1772, %v2012
      %v2079 = vadd.f32 %v1773, %v2015
      %v2080 = vadd.f32 %v1774, %v2020
      %v2081 = vadd.f32 %v1775, %v2023
      %v2082 = vadd.f32 %v1776, %v2028
      %v2083 = vadd.f32 %v1777, %v2031
      %v2084 = vadd.f32 %v1778, %v2036
      %v2085 = vadd.f32 %v1779, %v2039
      %v2086 = vadd.f32 %v1780, %v2044
      %v2087 = vadd.f32 %v1781, %v2047
      %v2088 = vadd.f32 %v1782, %v2052
      %v2089 = vadd.f32 %v1783, %v2055
      %v2090 = vld [vmem:[%s592 + $0x2] sm:$0xff]
      %v2091 = vld [vmem:[%s592 + $0xa] sm:$0xff]
      %v2092 = vld [vmem:[%s592 + $0x1a] sm:$0xff]
      %v2093 = vld [vmem:[%s592 + $0x22] sm:$0xff]
      %v2094 = vld [vmem:[%s592 + $0x32] sm:$0xff]
      %v2095 = vld [vmem:[%s592 + $0x3a] sm:$0xff]
      %v2096 = vld [vmem:[%s592 + $0x4a] sm:$0xff]
      %v2097 = vld [vmem:[%s592 + $0x52] sm:$0xff]
      %v2098 = vld [vmem:[%s592 + $0x62] sm:$0xff]
      %v2099 = vld [vmem:[%s592 + $0x6a] sm:$0xff]
      %v2100 = vld [vmem:[%s592 + $0x7a] sm:$0xff]
      %v2101 = vld [vmem:[%s592 + $0x82] sm:$0xff]
      %v2102 = vld [vmem:[%s592 + $0x92] sm:$0xff]
      %v2103 = vld [vmem:[%s592 + $0x9a] sm:$0xff]
      %v2104 = vld [vmem:[%s592 + $0xaa] sm:$0xff]
      %v2105 = vld [vmem:[%s592 + $0xb2] sm:$0xff]
      %v2106 = vld [vmem:[%s592 + $0xc2] sm:$0xff]
      %v2107 = vld [vmem:[%s592 + $0xca] sm:$0xff]
      %v2108 = vld [vmem:[%s592 + $0xda] sm:$0xff]
      %v2109 = vld [vmem:[%s592 + $0xe2] sm:$0xff]
      %v2110 = vld [vmem:[%s592 + $0xf2] sm:$0xff]
      %v2111 = vld [vmem:[%s592 + $0xfa] sm:$0xff]
      %v2112 = vld [vmem:[%s592 + $0x10a] sm:$0xff]
      %v2113 = vld [vmem:[%s592 + $0x112] sm:$0xff]
      %v2114 = vld [vmem:[%s592 + $0x122] sm:$0xff]
      %v2115 = vld [vmem:[%s592 + $0x12a] sm:$0xff]
      %v2116 = vld [vmem:[%s592 + $0x13a] sm:$0xff]
      %v2117 = vld [vmem:[%s592 + $0x142] sm:$0xff]
      %v2118 = vld [vmem:[%s592 + $0x152] sm:$0xff]
      %v2119 = vld [vmem:[%s592 + $0x15a] sm:$0xff]
      %v2120 = vld [vmem:[%s592 + $0x16a] sm:$0xff]
      %v2121 = vld [vmem:[%s592 + $0x172] sm:$0xff]
      %v2122 = vpack.c.bf16 %v2091, %v2090
      %v2123 = vpack.c.bf16 %v2093, %v2092
      %v2124 = vpack.c.bf16 %v2095, %v2094
      %v2125 = vpack.c.bf16 %v2097, %v2096
      %v2126 = vpack.c.bf16 %v2099, %v2098
      %v2127 = vpack.c.bf16 %v2101, %v2100
      %v2128 = vpack.c.bf16 %v2103, %v2102
      %v2129 = vpack.c.bf16 %v2105, %v2104
      %v2130 = vpack.c.bf16 %v2107, %v2106
      %v2131 = vpack.c.bf16 %v2109, %v2108
      %v2132 = vpack.c.bf16 %v2111, %v2110
      %v2133 = vpack.c.bf16 %v2113, %v2112
      %v2134 = vpack.c.bf16 %v2115, %v2114
      %v2135 = vpack.c.bf16 %v2117, %v2116
      %v2136 = vpack.c.bf16 %v2119, %v2118
      %v2137 = vpack.c.bf16 %v2121, %v2120
      %s2138 = scalar_lea.vmem %s4, 320
      %v2139 = vld [vmem:[%s2138] sm:$0xf]
      %v2140 = vld [vmem:[%s2138 + $0x4] sm:$0xf]
      %v2141 = vld [vmem:[%s2138 + $0x8] sm:$0xf]
      %v2142 = vld [vmem:[%s2138 + $0xc] sm:$0xf]
      %v2143 = vld [vmem:[%s2138 + $0x10] sm:$0xf]
      %v2144 = vld [vmem:[%s2138 + $0x14] sm:$0xf]
      %v2145 = vld [vmem:[%s2138 + $0x18] sm:$0xf]
      %v2146 = vld [vmem:[%s2138 + $0x1c] sm:$0xf]
      %v2147 = vld [vmem:[%s2138 + $0x20] sm:$0xf]
      %v2148 = vld [vmem:[%s2138 + $0x24] sm:$0xf]
      %v2149 = vld [vmem:[%s2138 + $0x28] sm:$0xf]
      %v2150 = vld [vmem:[%s2138 + $0x2c] sm:$0xf]
      %v2151 = vld [vmem:[%s2138 + $0x30] sm:$0xf]
      %v2152 = vld [vmem:[%s2138 + $0x34] sm:$0xf]
      %v2153 = vld [vmem:[%s2138 + $0x38] sm:$0xf]
      %v2154 = vld [vmem:[%s2138 + $0x3c] sm:$0xf]
      %v2171 = vunpack.c.l.b16 %v2139
      %v2172 = vunpack.c.l.b16 %v2140
      %v2173 = vunpack.c.l.b16 %v2141
      %v2174 = vunpack.c.l.b16 %v2142
      %v2175 = vunpack.c.l.b16 %v2143
      %v2176 = vunpack.c.l.b16 %v2144
      %v2177 = vunpack.c.l.b16 %v2145
      %v2178 = vunpack.c.l.b16 %v2146
      %v2179 = vunpack.c.l.b16 %v2147
      %v2180 = vunpack.c.l.b16 %v2148
      %v2181 = vunpack.c.l.b16 %v2149
      %v2182 = vunpack.c.l.b16 %v2150
      %v2183 = vunpack.c.l.b16 %v2151
      %v2184 = vunpack.c.l.b16 %v2152
      %v2185 = vunpack.c.l.b16 %v2153
      %v2186 = vunpack.c.l.b16 %v2154
      %v2187 = vpack.c.b16 %v2172, %v2171
      %v2188 = vpack.c.b16 %v2174, %v2173
      %v2189 = vpack.c.b16 %v2176, %v2175
      %v2190 = vpack.c.b16 %v2178, %v2177
      %v2191 = vpack.c.b16 %v2180, %v2179
      %v2192 = vpack.c.b16 %v2182, %v2181
      %v2193 = vpack.c.b16 %v2184, %v2183
      %v2194 = vpack.c.b16 %v2186, %v2185
      %2203 = vmatprep.subr.bf16.mxu0 0
      %2204 = vmatpush1.bf16.msra.mxu0 %v2187
      %2205 = vmatprep.subr.bf16.mxu0 0
      %2206 = vmatpush1.bf16.msra.mxu0 %v2188
      %2207 = vmatprep.subr.bf16.mxu0 0
      %2208 = vmatpush1.bf16.msra.mxu0 %v2189
      %2209 = vmatprep.subr.bf16.mxu0 0
      %2210 = vmatpush1.bf16.msra.mxu0 %v2190
      %2211 = vmatprep.subr.bf16.mxu0 0
      %2212 = vmatpush1.bf16.msra.mxu0 %v2191
      %2213 = vmatprep.subr.bf16.mxu0 0
      %2214 = vmatpush1.bf16.msra.mxu0 %v2192
      %2215 = vmatprep.subr.bf16.mxu0 0
      %2216 = vmatpush1.bf16.msra.mxu0 %v2193
      %2217 = vmatprep.subr.bf16.mxu0 0
      %2218 = vmatpush1.bf16.msra.mxu0 %v2194
      %2219 = vmatprep.subr.bf16.mxu0 0
      %2220 = vmatpush1.bf16.msra.mxu0 0
      %2221 = vmatprep.subr.bf16.mxu0 0
      %2222 = vmatpush1.bf16.msra.mxu0 0
      %2223 = vmatprep.subr.bf16.mxu0 0
      %2224 = vmatpush1.bf16.msra.mxu0 0
      %2225 = vmatprep.subr.bf16.mxu0 0
      %2226 = vmatpush1.bf16.msra.mxu0 0
      %2227 = vmatprep.subr.bf16.mxu0 0
      %2228 = vmatpush1.bf16.msra.mxu0 0
      %2229 = vmatprep.subr.bf16.mxu0 0
      %2230 = vmatpush1.bf16.msra.mxu0 0
      %2231 = vmatprep.subr.bf16.mxu0 0
      %2232 = vmatpush1.bf16.msra.mxu0 0
      %2233 = vmatprep.subr.bf16.mxu0 0
      %2234 = vmatpush1.bf16.msra.mxu0 0
      %2235 = vmatprep.mubr.bf16.mxu0 0
      %2236 = vmatmul.mubr.bf16.gmra.mrb[0].mxu0 %v2122
      %v2237 = vpop.f32.mrb[0].mxu0
      %v2238 = vadd.f32 0.0, %v2237
      %v2239 = vpop.f32.mrb[0].mxu0
      %v2240 = vpop.f32.mrb[0].mxu0
      %v2241 = vadd.f32 0.0, %v2240
      %v2242 = vpop.f32.mrb[0].mxu0
      %2243 = vmatprep.mubr.bf16.mxu0 0
      %2244 = vmatmul.mubr.bf16.gmra.mrb[0].mxu0 %v2123
      %v2245 = vpop.f32.mrb[0].mxu0
      %v2246 = vadd.f32 0.0, %v2245
      %v2247 = vpop.f32.mrb[0].mxu0
      %v2248 = vpop.f32.mrb[0].mxu0
      %v2249 = vadd.f32 0.0, %v2248
      %v2250 = vpop.f32.mrb[0].mxu0
      %2251 = vmatprep.mubr.bf16.mxu0 0
      %2252 = vmatmul.mubr.bf16.gmra.mrb[0].mxu0 %v2124
      %v2253 = vpop.f32.mrb[0].mxu0
      %v2254 = vadd.f32 0.0, %v2253
      %v2255 = vpop.f32.mrb[0].mxu0
      %v2256 = vpop.f32.mrb[0].mxu0
      %v2257 = vadd.f32 0.0, %v2256
      %v2258 = vpop.f32.mrb[0].mxu0
      %2259 = vmatprep.mubr.bf16.mxu0 0
      %2260 = vmatmul.mubr.bf16.gmra.mrb[0].mxu0 %v2125
      %v2261 = vpop.f32.mrb[0].mxu0
      %v2262 = vadd.f32 0.0, %v2261
      %v2263 = vpop.f32.mrb[0].mxu0
      %v2264 = vpop.f32.mrb[0].mxu0
      %v2265 = vadd.f32 0.0, %v2264
      %v2266 = vpop.f32.mrb[0].mxu0
      %2267 = vmatprep.mubr.bf16.mxu0 0
      %2268 = vmatmul.mubr.bf16.gmra.mrb[0].mxu0 %v2126
      %v2269 = vpop.f32.mrb[0].mxu0
      %v2270 = vadd.f32 0.0, %v2269
      %v2271 = vpop.f32.mrb[0].mxu0
      %v2272 = vpop.f32.mrb[0].mxu0
      %v2273 = vadd.f32 0.0, %v2272
      %v2274 = vpop.f32.mrb[0].mxu0
      %2275 = vmatprep.mubr.bf16.mxu0 0
      %2276 = vmatmul.mubr.bf16.gmra.mrb[0].mxu0 %v2127
      %v2277 = vpop.f32.mrb[0].mxu0
      %v2278 = vadd.f32 0.0, %v2277
      %v2279 = vpop.f32.mrb[0].mxu0
      %v2280 = vpop.f32.mrb[0].mxu0
      %v2281 = vadd.f32 0.0, %v2280
      %v2282 = vpop.f32.mrb[0].mxu0
      %2283 = vmatprep.mubr.bf16.mxu0 0
      %2284 = vmatmul.mubr.bf16.gmra.mrb[0].mxu0 %v2128
      %v2285 = vpop.f32.mrb[0].mxu0
      %v2286 = vadd.f32 0.0, %v2285
      %v2287 = vpop.f32.mrb[0].mxu0
      %v2288 = vpop.f32.mrb[0].mxu0
      %v2289 = vadd.f32 0.0, %v2288
      %v2290 = vpop.f32.mrb[0].mxu0
      %2291 = vmatprep.mubr.bf16.mxu0 0
      %2292 = vmatmul.mubr.bf16.gmra.mrb[0].mxu0 %v2129
      %v2293 = vpop.f32.mrb[0].mxu0
      %v2294 = vadd.f32 0.0, %v2293
      %v2295 = vpop.f32.mrb[0].mxu0
      %v2296 = vpop.f32.mrb[0].mxu0
      %v2297 = vadd.f32 0.0, %v2296
      %v2298 = vpop.f32.mrb[0].mxu0
      %2299 = vmatprep.mubr.bf16.mxu0 0
      %2300 = vmatmul.mubr.bf16.gmra.mrb[0].mxu0 %v2130
      %v2301 = vpop.f32.mrb[0].mxu0
      %v2302 = vadd.f32 0.0, %v2301
      %v2303 = vpop.f32.mrb[0].mxu0
      %v2304 = vpop.f32.mrb[0].mxu0
      %v2305 = vadd.f32 0.0, %v2304
      %v2306 = vpop.f32.mrb[0].mxu0
      %2307 = vmatprep.mubr.bf16.mxu0 0
      %2308 = vmatmul.mubr.bf16.gmra.mrb[0].mxu0 %v2131
      %v2309 = vpop.f32.mrb[0].mxu0
      %v2310 = vadd.f32 0.0, %v2309
      %v2311 = vpop.f32.mrb[0].mxu0
      %v2312 = vpop.f32.mrb[0].mxu0
      %v2313 = vadd.f32 0.0, %v2312
      %v2314 = vpop.f32.mrb[0].mxu0
      %2315 = vmatprep.mubr.bf16.mxu0 0
      %2316 = vmatmul.mubr.bf16.gmra.mrb[0].mxu0 %v2132
      %v2317 = vpop.f32.mrb[0].mxu0
      %v2318 = vadd.f32 0.0, %v2317
      %v2319 = vpop.f32.mrb[0].mxu0
      %v2320 = vpop.f32.mrb[0].mxu0
      %v2321 = vadd.f32 0.0, %v2320
      %v2322 = vpop.f32.mrb[0].mxu0
      %2323 = vmatprep.mubr.bf16.mxu0 0
      %2324 = vmatmul.mubr.bf16.gmra.mrb[0].mxu0 %v2133
      %v2325 = vpop.f32.mrb[0].mxu0
      %v2326 = vadd.f32 0.0, %v2325
      %v2327 = vpop.f32.mrb[0].mxu0
      %v2328 = vpop.f32.mrb[0].mxu0
      %v2329 = vadd.f32 0.0, %v2328
      %v2330 = vpop.f32.mrb[0].mxu0
      %2331 = vmatprep.mubr.bf16.mxu0 0
      %2332 = vmatmul.mubr.bf16.gmra.mrb[0].mxu0 %v2134
      %v2333 = vpop.f32.mrb[0].mxu0
      %v2334 = vadd.f32 0.0, %v2333
      %v2335 = vpop.f32.mrb[0].mxu0
      %v2336 = vpop.f32.mrb[0].mxu0
      %v2337 = vadd.f32 0.0, %v2336
      %v2338 = vpop.f32.mrb[0].mxu0
      %2339 = vmatprep.mubr.bf16.mxu0 0
      %2340 = vmatmul.mubr.bf16.gmra.mrb[0].mxu0 %v2135
      %v2341 = vpop.f32.mrb[0].mxu0
      %v2342 = vadd.f32 0.0, %v2341
      %v2343 = vpop.f32.mrb[0].mxu0
      %v2344 = vpop.f32.mrb[0].mxu0
      %v2345 = vadd.f32 0.0, %v2344
      %v2346 = vpop.f32.mrb[0].mxu0
      %2347 = vmatprep.mubr.bf16.mxu0 0
      %2348 = vmatmul.mubr.bf16.gmra.mrb[0].mxu0 %v2136
      %v2349 = vpop.f32.mrb[0].mxu0
      %v2350 = vadd.f32 0.0, %v2349
      %v2351 = vpop.f32.mrb[0].mxu0
      %v2352 = vpop.f32.mrb[0].mxu0
      %v2353 = vadd.f32 0.0, %v2352
      %v2354 = vpop.f32.mrb[0].mxu0
      %2355 = vmatprep.mubr.bf16.mxu0 0
      %2356 = vmatmul.mubr.bf16.gmra.mrb[0].mxu0 %v2137
      %v2357 = vpop.f32.mrb[0].mxu0
      %v2358 = vadd.f32 0.0, %v2357
      %v2359 = vpop.f32.mrb[0].mxu0
      %v2360 = vpop.f32.mrb[0].mxu0
      %v2361 = vadd.f32 0.0, %v2360
      %v2362 = vpop.f32.mrb[0].mxu0
      %2363 = vdwg.mxu0
      %v2364 = vadd.f32 %v2058, %v2238
      %v2365 = vadd.f32 %v2059, %v2241
      %v2366 = vadd.f32 %v2060, %v2246
      %v2367 = vadd.f32 %v2061, %v2249
      %v2368 = vadd.f32 %v2062, %v2254
      %v2369 = vadd.f32 %v2063, %v2257
      %v2370 = vadd.f32 %v2064, %v2262
      %v2371 = vadd.f32 %v2065, %v2265
      %v2372 = vadd.f32 %v2066, %v2270
      %v2373 = vadd.f32 %v2067, %v2273
      %v2374 = vadd.f32 %v2068, %v2278
      %v2375 = vadd.f32 %v2069, %v2281
      %v2376 = vadd.f32 %v2070, %v2286
      %v2377 = vadd.f32 %v2071, %v2289
      %v2378 = vadd.f32 %v2072, %v2294
      %v2379 = vadd.f32 %v2073, %v2297
      %v2380 = vadd.f32 %v2074, %v2302
      %v2381 = vadd.f32 %v2075, %v2305
      %v2382 = vadd.f32 %v2076, %v2310
      %v2383 = vadd.f32 %v2077, %v2313
      %v2384 = vadd.f32 %v2078, %v2318
      %v2385 = vadd.f32 %v2079, %v2321
      %v2386 = vadd.f32 %v2080, %v2326
      %v2387 = vadd.f32 %v2081, %v2329
      %v2388 = vadd.f32 %v2082, %v2334
      %v2389 = vadd.f32 %v2083, %v2337
      %v2390 = vadd.f32 %v2084, %v2342
      %v2391 = vadd.f32 %v2085, %v2345
      %v2392 = vadd.f32 %v2086, %v2350
      %v2393 = vadd.f32 %v2087, %v2353
      %v2394 = vadd.f32 %v2088, %v2358
      %v2395 = vadd.f32 %v2089, %v2361
      %s2396 = scalar_lea.vmem [#allocation2], 48
      %v2397 = vld [vmem:[%s2396] sm:$0xff]
      %v2398 = vld [vmem:[%s2396 + $0x8] sm:$0xff]
      %v2399 = vld [vmem:[%s2396 + $0x18] sm:$0xff]
      %v2400 = vld [vmem:[%s2396 + $0x20] sm:$0xff]
      %v2401 = vld [vmem:[%s2396 + $0x30] sm:$0xff]
      %v2402 = vld [vmem:[%s2396 + $0x38] sm:$0xff]
      %v2403 = vld [vmem:[%s2396 + $0x48] sm:$0xff]
      %v2404 = vld [vmem:[%s2396 + $0x50] sm:$0xff]
      %v2405 = vld [vmem:[%s2396 + $0x60] sm:$0xff]
      %v2406 = vld [vmem:[%s2396 + $0x68] sm:$0xff]
      %v2407 = vld [vmem:[%s2396 + $0x78] sm:$0xff]
      %v2408 = vld [vmem:[%s2396 + $0x80] sm:$0xff]
      %v2409 = vld [vmem:[%s2396 + $0x90] sm:$0xff]
      %v2410 = vld [vmem:[%s2396 + $0x98] sm:$0xff]
      %v2411 = vld [vmem:[%s2396 + $0xa8] sm:$0xff]
      %v2412 = vld [vmem:[%s2396 + $0xb0] sm:$0xff]
      %v2413 = vld [vmem:[%s2396 + $0xc0] sm:$0xff]
      %v2414 = vld [vmem:[%s2396 + $0xc8] sm:$0xff]
      %v2415 = vld [vmem:[%s2396 + $0xd8] sm:$0xff]
      %v2416 = vld [vmem:[%s2396 + $0xe0] sm:$0xff]
      %v2417 = vld [vmem:[%s2396 + $0xf0] sm:$0xff]
      %v2418 = vld [vmem:[%s2396 + $0xf8] sm:$0xff]
      %v2419 = vld [vmem:[%s2396 + $0x108] sm:$0xff]
      %v2420 = vld [vmem:[%s2396 + $0x110] sm:$0xff]
      %v2421 = vld [vmem:[%s2396 + $0x120] sm:$0xff]
      %v2422 = vld [vmem:[%s2396 + $0x128] sm:$0xff]
      %v2423 = vld [vmem:[%s2396 + $0x138] sm:$0xff]
      %v2424 = vld [vmem:[%s2396 + $0x140] sm:$0xff]
      %v2425 = vld [vmem:[%s2396 + $0x150] sm:$0xff]
      %v2426 = vld [vmem:[%s2396 + $0x158] sm:$0xff]
      %v2427 = vld [vmem:[%s2396 + $0x168] sm:$0xff]
      %v2428 = vld [vmem:[%s2396 + $0x170] sm:$0xff]
      %v2429 = vpack.c.bf16 %v2398, %v2397
      %v2430 = vpack.c.bf16 %v2400, %v2399
      %v2431 = vpack.c.bf16 %v2402, %v2401
      %v2432 = vpack.c.bf16 %v2404, %v2403
      %v2433 = vpack.c.bf16 %v2406, %v2405
      %v2434 = vpack.c.bf16 %v2408, %v2407
      %v2435 = vpack.c.bf16 %v2410, %v2409
      %v2436 = vpack.c.bf16 %v2412, %v2411
      %v2437 = vpack.c.bf16 %v2414, %v2413
      %v2438 = vpack.c.bf16 %v2416, %v2415
      %v2439 = vpack.c.bf16 %v2418, %v2417
      %v2440 = vpack.c.bf16 %v2420, %v2419
      %v2441 = vpack.c.bf16 %v2422, %v2421
      %v2442 = vpack.c.bf16 %v2424, %v2423
      %v2443 = vpack.c.bf16 %v2426, %v2425
      %v2444 = vpack.c.bf16 %v2428, %v2427
      %s2445 = scalar_lea.vmem %s4, 384
      %v2446 = vld [vmem:[%s2445] sm:$0xf]
      %v2447 = vld [vmem:[%s2445 + $0x4] sm:$0xf]
      %v2448 = vld [vmem:[%s2445 + $0x8] sm:$0xf]
      %v2449 = vld [vmem:[%s2445 + $0xc] sm:$0xf]
      %v2450 = vld [vmem:[%s2445 + $0x10] sm:$0xf]
      %v2451 = vld [vmem:[%s2445 + $0x14] sm:$0xf]
      %v2452 = vld [vmem:[%s2445 + $0x18] sm:$0xf]
      %v2453 = vld [vmem:[%s2445 + $0x1c] sm:$0xf]
      %v2454 = vld [vmem:[%s2445 + $0x20] sm:$0xf]
      %v2455 = vld [vmem:[%s2445 + $0x24] sm:$0xf]
      %v2456 = vld [vmem:[%s2445 + $0x28] sm:$0xf]
      %v2457 = vld [vmem:[%s2445 + $0x2c] sm:$0xf]
      %v2458 = vld [vmem:[%s2445 + $0x30] sm:$0xf]
      %v2459 = vld [vmem:[%s2445 + $0x34] sm:$0xf]
      %v2460 = vld [vmem:[%s2445 + $0x38] sm:$0xf]
      %v2461 = vld [vmem:[%s2445 + $0x3c] sm:$0xf]
      %v2478 = vunpack.c.l.b16 %v2446
      %v2479 = vunpack.c.l.b16 %v2447
      %v2480 = vunpack.c.l.b16 %v2448
      %v2481 = vunpack.c.l.b16 %v2449
      %v2482 = vunpack.c.l.b16 %v2450
      %v2483 = vunpack.c.l.b16 %v2451
      %v2484 = vunpack.c.l.b16 %v2452
      %v2485 = vunpack.c.l.b16 %v2453
      %v2486 = vunpack.c.l.b16 %v2454
      %v2487 = vunpack.c.l.b16 %v2455
      %v2488 = vunpack.c.l.b16 %v2456
      %v2489 = vunpack.c.l.b16 %v2457
      %v2490 = vunpack.c.l.b16 %v2458
      %v2491 = vunpack.c.l.b16 %v2459
      %v2492 = vunpack.c.l.b16 %v2460
      %v2493 = vunpack.c.l.b16 %v2461
      %v2494 = vpack.c.b16 %v2479, %v2478
      %v2495 = vpack.c.b16 %v2481, %v2480
      %v2496 = vpack.c.b16 %v2483, %v2482
      %v2497 = vpack.c.b16 %v2485, %v2484
      %v2498 = vpack.c.b16 %v2487, %v2486
      %v2499 = vpack.c.b16 %v2489, %v2488
      %v2500 = vpack.c.b16 %v2491, %v2490
      %v2501 = vpack.c.b16 %v2493, %v2492
      %2510 = vmatprep.subr.bf16.mxu0 0
      %2511 = vmatpush1.bf16.msra.mxu0 %v2494
      %2512 = vmatprep.subr.bf16.mxu0 0
      %2513 = vmatpush1.bf16.msra.mxu0 %v2495
      %2514 = vmatprep.subr.bf16.mxu0 0
      %2515 = vmatpush1.bf16.msra.mxu0 %v2496
      %2516 = vmatprep.subr.bf16.mxu0 0
      %2517 = vmatpush1.bf16.msra.mxu0 %v2497
      %2518 = vmatprep.subr.bf16.mxu0 0
      %2519 = vmatpush1.bf16.msra.mxu0 %v2498
      %2520 = vmatprep.subr.bf16.mxu0 0
      %2521 = vmatpush1.bf16.msra.mxu0 %v2499
      %2522 = vmatprep.subr.bf16.mxu0 0
      %2523 = vmatpush1.bf16.msra.mxu0 %v2500
      %2524 = vmatprep.subr.bf16.mxu0 0
      %2525 = vmatpush1.bf16.msra.mxu0 %v2501
      %2526 = vmatprep.subr.bf16.mxu0 0
      %2527 = vmatpush1.bf16.msra.mxu0 0
      %2528 = vmatprep.subr.bf16.mxu0 0
      %2529 = vmatpush1.bf16.msra.mxu0 0
      %2530 = vmatprep.subr.bf16.mxu0 0
      %2531 = vmatpush1.bf16.msra.mxu0 0
      %2532 = vmatprep.subr.bf16.mxu0 0
      %2533 = vmatpush1.bf16.msra.mxu0 0
      %2534 = vmatprep.subr.bf16.mxu0 0
      %2535 = vmatpush1.bf16.msra.mxu0 0
      %2536 = vmatprep.subr.bf16.mxu0 0
      %2537 = vmatpush1.bf16.msra.mxu0 0
      %2538 = vmatprep.subr.bf16.mxu0 0
      %2539 = vmatpush1.bf16.msra.mxu0 0
      %2540 = vmatprep.subr.bf16.mxu0 0
      %2541 = vmatpush1.bf16.msra.mxu0 0
      %2542 = vmatprep.mubr.bf16.mxu0 0
      %2543 = vmatmul.mubr.bf16.gmra.mrb[0].mxu0 %v2429
      %v2544 = vpop.f32.mrb[0].mxu0
      %v2545 = vadd.f32 0.0, %v2544
      %v2546 = vpop.f32.mrb[0].mxu0
      %v2547 = vpop.f32.mrb[0].mxu0
      %v2548 = vadd.f32 0.0, %v2547
      %v2549 = vpop.f32.mrb[0].mxu0
      %2550 = vmatprep.mubr.bf16.mxu0 0
      %2551 = vmatmul.mubr.bf16.gmra.mrb[0].mxu0 %v2430
      %v2552 = vpop.f32.mrb[0].mxu0
      %v2553 = vadd.f32 0.0, %v2552
      %v2554 = vpop.f32.mrb[0].mxu0
      %v2555 = vpop.f32.mrb[0].mxu0
      %v2556 = vadd.f32 0.0, %v2555
      %v2557 = vpop.f32.mrb[0].mxu0
      %2558 = vmatprep.mubr.bf16.mxu0 0
      %2559 = vmatmul.mubr.bf16.gmra.mrb[0].mxu0 %v2431
      %v2560 = vpop.f32.mrb[0].mxu0
      %v2561 = vadd.f32 0.0, %v2560
      %v2562 = vpop.f32.mrb[0].mxu0
      %v2563 = vpop.f32.mrb[0].mxu0
      %v2564 = vadd.f32 0.0, %v2563
      %v2565 = vpop.f32.mrb[0].mxu0
      %2566 = vmatprep.mubr.bf16.mxu0 0
      %2567 = vmatmul.mubr.bf16.gmra.mrb[0].mxu0 %v2432
      %v2568 = vpop.f32.mrb[0].mxu0
      %v2569 = vadd.f32 0.0, %v2568
      %v2570 = vpop.f32.mrb[0].mxu0
      %v2571 = vpop.f32.mrb[0].mxu0
      %v2572 = vadd.f32 0.0, %v2571
      %v2573 = vpop.f32.mrb[0].mxu0
      %2574 = vmatprep.mubr.bf16.mxu0 0
      %2575 = vmatmul.mubr.bf16.gmra.mrb[0].mxu0 %v2433
      %v2576 = vpop.f32.mrb[0].mxu0
      %v2577 = vadd.f32 0.0, %v2576
      %v2578 = vpop.f32.mrb[0].mxu0
      %v2579 = vpop.f32.mrb[0].mxu0
      %v2580 = vadd.f32 0.0, %v2579
      %v2581 = vpop.f32.mrb[0].mxu0
      %2582 = vmatprep.mubr.bf16.mxu0 0
      %2583 = vmatmul.mubr.bf16.gmra.mrb[0].mxu0 %v2434
      %v2584 = vpop.f32.mrb[0].mxu0
      %v2585 = vadd.f32 0.0, %v2584
      %v2586 = vpop.f32.mrb[0].mxu0
      %v2587 = vpop.f32.mrb[0].mxu0
      %v2588 = vadd.f32 0.0, %v2587
      %v2589 = vpop.f32.mrb[0].mxu0
      %2590 = vmatprep.mubr.bf16.mxu0 0
      %2591 = vmatmul.mubr.bf16.gmra.mrb[0].mxu0 %v2435
      %v2592 = vpop.f32.mrb[0].mxu0
      %v2593 = vadd.f32 0.0, %v2592
      %v2594 = vpop.f32.mrb[0].mxu0
      %v2595 = vpop.f32.mrb[0].mxu0
      %v2596 = vadd.f32 0.0, %v2595
      %v2597 = vpop.f32.mrb[0].mxu0
      %2598 = vmatprep.mubr.bf16.mxu0 0
      %2599 = vmatmul.mubr.bf16.gmra.mrb[0].mxu0 %v2436
      %v2600 = vpop.f32.mrb[0].mxu0
      %v2601 = vadd.f32 0.0, %v2600
      %v2602 = vpop.f32.mrb[0].mxu0
      %v2603 = vpop.f32.mrb[0].mxu0
      %v2604 = vadd.f32 0.0, %v2603
      %v2605 = vpop.f32.mrb[0].mxu0
      %2606 = vmatprep.mubr.bf16.mxu0 0
      %2607 = vmatmul.mubr.bf16.gmra.mrb[0].mxu0 %v2437
      %v2608 = vpop.f32.mrb[0].mxu0
      %v2609 = vadd.f32 0.0, %v2608
      %v2610 = vpop.f32.mrb[0].mxu0
      %v2611 = vpop.f32.mrb[0].mxu0
      %v2612 = vadd.f32 0.0, %v2611
      %v2613 = vpop.f32.mrb[0].mxu0
      %2614 = vmatprep.mubr.bf16.mxu0 0
      %2615 = vmatmul.mubr.bf16.gmra.mrb[0].mxu0 %v2438
      %v2616 = vpop.f32.mrb[0].mxu0
      %v2617 = vadd.f32 0.0, %v2616
      %v2618 = vpop.f32.mrb[0].mxu0
      %v2619 = vpop.f32.mrb[0].mxu0
      %v2620 = vadd.f32 0.0, %v2619
      %v2621 = vpop.f32.mrb[0].mxu0
      %2622 = vmatprep.mubr.bf16.mxu0 0
      %2623 = vmatmul.mubr.bf16.gmra.mrb[0].mxu0 %v2439
      %v2624 = vpop.f32.mrb[0].mxu0
      %v2625 = vadd.f32 0.0, %v2624
      %v2626 = vpop.f32.mrb[0].mxu0
      %v2627 = vpop.f32.mrb[0].mxu0
      %v2628 = vadd.f32 0.0, %v2627
      %v2629 = vpop.f32.mrb[0].mxu0
      %2630 = vmatprep.mubr.bf16.mxu0 0
      %2631 = vmatmul.mubr.bf16.gmra.mrb[0].mxu0 %v2440
      %v2632 = vpop.f32.mrb[0].mxu0
      %v2633 = vadd.f32 0.0, %v2632
      %v2634 = vpop.f32.mrb[0].mxu0
      %v2635 = vpop.f32.mrb[0].mxu0
      %v2636 = vadd.f32 0.0, %v2635
      %v2637 = vpop.f32.mrb[0].mxu0
      %2638 = vmatprep.mubr.bf16.mxu0 0
      %2639 = vmatmul.mubr.bf16.gmra.mrb[0].mxu0 %v2441
      %v2640 = vpop.f32.mrb[0].mxu0
      %v2641 = vadd.f32 0.0, %v2640
      %v2642 = vpop.f32.mrb[0].mxu0
      %v2643 = vpop.f32.mrb[0].mxu0
      %v2644 = vadd.f32 0.0, %v2643
      %v2645 = vpop.f32.mrb[0].mxu0
      %2646 = vmatprep.mubr.bf16.mxu0 0
      %2647 = vmatmul.mubr.bf16.gmra.mrb[0].mxu0 %v2442
      %v2648 = vpop.f32.mrb[0].mxu0
      %v2649 = vadd.f32 0.0, %v2648
      %v2650 = vpop.f32.mrb[0].mxu0
      %v2651 = vpop.f32.mrb[0].mxu0
      %v2652 = vadd.f32 0.0, %v2651
      %v2653 = vpop.f32.mrb[0].mxu0
      %2654 = vmatprep.mubr.bf16.mxu0 0
      %2655 = vmatmul.mubr.bf16.gmra.mrb[0].mxu0 %v2443
      %v2656 = vpop.f32.mrb[0].mxu0
      %v2657 = vadd.f32 0.0, %v2656
      %v2658 = vpop.f32.mrb[0].mxu0
      %v2659 = vpop.f32.mrb[0].mxu0
      %v2660 = vadd.f32 0.0, %v2659
      %v2661 = vpop.f32.mrb[0].mxu0
      %2662 = vmatprep.mubr.bf16.mxu0 0
      %2663 = vmatmul.mubr.bf16.gmra.mrb[0].mxu0 %v2444
      %v2664 = vpop.f32.mrb[0].mxu0
      %v2665 = vadd.f32 0.0, %v2664
      %v2666 = vpop.f32.mrb[0].mxu0
      %v2667 = vpop.f32.mrb[0].mxu0
      %v2668 = vadd.f32 0.0, %v2667
      %v2669 = vpop.f32.mrb[0].mxu0
      %2670 = vdwg.mxu0
      %v2671 = vadd.f32 %v2364, %v2545
      %v2672 = vadd.f32 %v2365, %v2548
      %v2673 = vadd.f32 %v2366, %v2553
      %v2674 = vadd.f32 %v2367, %v2556
      %v2675 = vadd.f32 %v2368, %v2561
      %v2676 = vadd.f32 %v2369, %v2564
      %v2677 = vadd.f32 %v2370, %v2569
      %v2678 = vadd.f32 %v2371, %v2572
      %v2679 = vadd.f32 %v2372, %v2577
      %v2680 = vadd.f32 %v2373, %v2580
      %v2681 = vadd.f32 %v2374, %v2585
      %v2682 = vadd.f32 %v2375, %v2588
      %v2683 = vadd.f32 %v2376, %v2593
      %v2684 = vadd.f32 %v2377, %v2596
      %v2685 = vadd.f32 %v2378, %v2601
      %v2686 = vadd.f32 %v2379, %v2604
      %v2687 = vadd.f32 %v2380, %v2609
      %v2688 = vadd.f32 %v2381, %v2612
      %v2689 = vadd.f32 %v2382, %v2617
      %v2690 = vadd.f32 %v2383, %v2620
      %v2691 = vadd.f32 %v2384, %v2625
      %v2692 = vadd.f32 %v2385, %v2628
      %v2693 = vadd.f32 %v2386, %v2633
      %v2694 = vadd.f32 %v2387, %v2636
      %v2695 = vadd.f32 %v2388, %v2641
      %v2696 = vadd.f32 %v2389, %v2644
      %v2697 = vadd.f32 %v2390, %v2649
      %v2698 = vadd.f32 %v2391, %v2652
      %v2699 = vadd.f32 %v2392, %v2657
      %v2700 = vadd.f32 %v2393, %v2660
      %v2701 = vadd.f32 %v2394, %v2665
      %v2702 = vadd.f32 %v2395, %v2668
      %v2703 = vld [vmem:[%s2396 + $0x1] sm:$0xff]
      %v2704 = vld [vmem:[%s2396 + $0x9] sm:$0xff]
      %v2705 = vld [vmem:[%s2396 + $0x19] sm:$0xff]
      %v2706 = vld [vmem:[%s2396 + $0x21] sm:$0xff]
      %v2707 = vld [vmem:[%s2396 + $0x31] sm:$0xff]
      %v2708 = vld [vmem:[%s2396 + $0x39] sm:$0xff]
      %v2709 = vld [vmem:[%s2396 + $0x49] sm:$0xff]
      %v2710 = vld [vmem:[%s2396 + $0x51] sm:$0xff]
      %v2711 = vld [vmem:[%s2396 + $0x61] sm:$0xff]
      %v2712 = vld [vmem:[%s2396 + $0x69] sm:$0xff]
      %v2713 = vld [vmem:[%s2396 + $0x79] sm:$0xff]
      %v2714 = vld [vmem:[%s2396 + $0x81] sm:$0xff]
      %v2715 = vld [vmem:[%s2396 + $0x91] sm:$0xff]
      %v2716 = vld [vmem:[%s2396 + $0x99] sm:$0xff]
      %v2717 = vld [vmem:[%s2396 + $0xa9] sm:$0xff]
      %v2718 = vld [vmem:[%s2396 + $0xb1] sm:$0xff]
      %v2719 = vld [vmem:[%s2396 + $0xc1] sm:$0xff]
      %v2720 = vld [vmem:[%s2396 + $0xc9] sm:$0xff]
      %v2721 = vld [vmem:[%s2396 + $0xd9] sm:$0xff]
      %v2722 = vld [vmem:[%s2396 + $0xe1] sm:$0xff]
      %v2723 = vld [vmem:[%s2396 + $0xf1] sm:$0xff]
      %v2724 = vld [vmem:[%s2396 + $0xf9] sm:$0xff]
      %v2725 = vld [vmem:[%s2396 + $0x109] sm:$0xff]
      %v2726 = vld [vmem:[%s2396 + $0x111] sm:$0xff]
      %v2727 = vld [vmem:[%s2396 + $0x121] sm:$0xff]
      %v2728 = vld [vmem:[%s2396 + $0x129] sm:$0xff]
      %v2729 = vld [vmem:[%s2396 + $0x139] sm:$0xff]
      %v2730 = vld [vmem:[%s2396 + $0x141] sm:$0xff]
      %v2731 = vld [vmem:[%s2396 + $0x151] sm:$0xff]
      %v2732 = vld [vmem:[%s2396 + $0x159] sm:$0xff]
      %v2733 = vld [vmem:[%s2396 + $0x169] sm:$0xff]
      %v2734 = vld [vmem:[%s2396 + $0x171] sm:$0xff]
      %v2735 = vpack.c.bf16 %v2704, %v2703
      %v2736 = vpack.c.bf16 %v2706, %v2705
      %v2737 = vpack.c.bf16 %v2708, %v2707
      %v2738 = vpack.c.bf16 %v2710, %v2709
      %v2739 = vpack.c.bf16 %v2712, %v2711
      %v2740 = vpack.c.bf16 %v2714, %v2713
      %v2741 = vpack.c.bf16 %v2716, %v2715
      %v2742 = vpack.c.bf16 %v2718, %v2717
      %v2743 = vpack.c.bf16 %v2720, %v2719
      %v2744 = vpack.c.bf16 %v2722, %v2721
      %v2745 = vpack.c.bf16 %v2724, %v2723
      %v2746 = vpack.c.bf16 %v2726, %v2725
      %v2747 = vpack.c.bf16 %v2728, %v2727
      %v2748 = vpack.c.bf16 %v2730, %v2729
      %v2749 = vpack.c.bf16 %v2732, %v2731
      %v2750 = vpack.c.bf16 %v2734, %v2733
      %s2751 = scalar_lea.vmem %s4, 448
      %v2752 = vld [vmem:[%s2751] sm:$0xf]
      %v2753 = vld [vmem:[%s2751 + $0x4] sm:$0xf]
      %v2754 = vld [vmem:[%s2751 + $0x8] sm:$0xf]
      %v2755 = vld [vmem:[%s2751 + $0xc] sm:$0xf]
      %v2756 = vld [vmem:[%s2751 + $0x10] sm:$0xf]
      %v2757 = vld [vmem:[%s2751 + $0x14] sm:$0xf]
      %v2758 = vld [vmem:[%s2751 + $0x18] sm:$0xf]
      %v2759 = vld [vmem:[%s2751 + $0x1c] sm:$0xf]
      %v2760 = vld [vmem:[%s2751 + $0x20] sm:$0xf]
      %v2761 = vld [vmem:[%s2751 + $0x24] sm:$0xf]
      %v2762 = vld [vmem:[%s2751 + $0x28] sm:$0xf]
      %v2763 = vld [vmem:[%s2751 + $0x2c] sm:$0xf]
      %v2764 = vld [vmem:[%s2751 + $0x30] sm:$0xf]
      %v2765 = vld [vmem:[%s2751 + $0x34] sm:$0xf]
      %v2766 = vld [vmem:[%s2751 + $0x38] sm:$0xf]
      %v2767 = vld [vmem:[%s2751 + $0x3c] sm:$0xf]
      %v2784 = vunpack.c.l.b16 %v2752
      %v2785 = vunpack.c.l.b16 %v2753
      %v2786 = vunpack.c.l.b16 %v2754
      %v2787 = vunpack.c.l.b16 %v2755
      %v2788 = vunpack.c.l.b16 %v2756
      %v2789 = vunpack.c.l.b16 %v2757
      %v2790 = vunpack.c.l.b16 %v2758
      %v2791 = vunpack.c.l.b16 %v2759
      %v2792 = vunpack.c.l.b16 %v2760
      %v2793 = vunpack.c.l.b16 %v2761
      %v2794 = vunpack.c.l.b16 %v2762
      %v2795 = vunpack.c.l.b16 %v2763
      %v2796 = vunpack.c.l.b16 %v2764
      %v2797 = vunpack.c.l.b16 %v2765
      %v2798 = vunpack.c.l.b16 %v2766
      %v2799 = vunpack.c.l.b16 %v2767
      %v2800 = vpack.c.b16 %v2785, %v2784
      %v2801 = vpack.c.b16 %v2787, %v2786
      %v2802 = vpack.c.b16 %v2789, %v2788
      %v2803 = vpack.c.b16 %v2791, %v2790
      %v2804 = vpack.c.b16 %v2793, %v2792
      %v2805 = vpack.c.b16 %v2795, %v2794
      %v2806 = vpack.c.b16 %v2797, %v2796
      %v2807 = vpack.c.b16 %v2799, %v2798
      %2816 = vmatprep.subr.bf16.mxu0 0
      %2817 = vmatpush1.bf16.msra.mxu0 %v2800
      %2818 = vmatprep.subr.bf16.mxu0 0
      %2819 = vmatpush1.bf16.msra.mxu0 %v2801
      %2820 = vmatprep.subr.bf16.mxu0 0
      %2821 = vmatpush1.bf16.msra.mxu0 %v2802
      %2822 = vmatprep.subr.bf16.mxu0 0
      %2823 = vmatpush1.bf16.msra.mxu0 %v2803
      %2824 = vmatprep.subr.bf16.mxu0 0
      %2825 = vmatpush1.bf16.msra.mxu0 %v2804
      %2826 = vmatprep.subr.bf16.mxu0 0
      %2827 = vmatpush1.bf16.msra.mxu0 %v2805
      %2828 = vmatprep.subr.bf16.mxu0 0
      %2829 = vmatpush1.bf16.msra.mxu0 %v2806
      %2830 = vmatprep.subr.bf16.mxu0 0
      %2831 = vmatpush1.bf16.msra.mxu0 %v2807
      %2832 = vmatprep.subr.bf16.mxu0 0
      %2833 = vmatpush1.bf16.msra.mxu0 0
      %2834 = vmatprep.subr.bf16.mxu0 0
      %2835 = vmatpush1.bf16.msra.mxu0 0
      %2836 = vmatprep.subr.bf16.mxu0 0
      %2837 = vmatpush1.bf16.msra.mxu0 0
      %2838 = vmatprep.subr.bf16.mxu0 0
      %2839 = vmatpush1.bf16.msra.mxu0 0
      %2840 = vmatprep.subr.bf16.mxu0 0
      %2841 = vmatpush1.bf16.msra.mxu0 0
      %2842 = vmatprep.subr.bf16.mxu0 0
      %2843 = vmatpush1.bf16.msra.mxu0 0
      %2844 = vmatprep.subr.bf16.mxu0 0
      %2845 = vmatpush1.bf16.msra.mxu0 0
      %2846 = vmatprep.subr.bf16.mxu0 0
      %2847 = vmatpush1.bf16.msra.mxu0 0
      %2848 = vmatprep.mubr.bf16.mxu0 0
      %2849 = vmatmul.mubr.bf16.gmra.mrb[0].mxu0 %v2735
      %v2850 = vpop.f32.mrb[0].mxu0
      %v2851 = vadd.f32 0.0, %v2850
      %v2852 = vpop.f32.mrb[0].mxu0
      %v2853 = vpop.f32.mrb[0].mxu0
      %v2854 = vadd.f32 0.0, %v2853
      %v2855 = vpop.f32.mrb[0].mxu0
      %2856 = vmatprep.mubr.bf16.mxu0 0
      %2857 = vmatmul.mubr.bf16.gmra.mrb[0].mxu0 %v2736
      %v2858 = vpop.f32.mrb[0].mxu0
      %v2859 = vadd.f32 0.0, %v2858
      %v2860 = vpop.f32.mrb[0].mxu0
      %v2861 = vpop.f32.mrb[0].mxu0
      %v2862 = vadd.f32 0.0, %v2861
      %v2863 = vpop.f32.mrb[0].mxu0
      %2864 = vmatprep.mubr.bf16.mxu0 0
      %2865 = vmatmul.mubr.bf16.gmra.mrb[0].mxu0 %v2737
      %v2866 = vpop.f32.mrb[0].mxu0
      %v2867 = vadd.f32 0.0, %v2866
      %v2868 = vpop.f32.mrb[0].mxu0
      %v2869 = vpop.f32.mrb[0].mxu0
      %v2870 = vadd.f32 0.0, %v2869
      %v2871 = vpop.f32.mrb[0].mxu0
      %2872 = vmatprep.mubr.bf16.mxu0 0
      %2873 = vmatmul.mubr.bf16.gmra.mrb[0].mxu0 %v2738
      %v2874 = vpop.f32.mrb[0].mxu0
      %v2875 = vadd.f32 0.0, %v2874
      %v2876 = vpop.f32.mrb[0].mxu0
      %v2877 = vpop.f32.mrb[0].mxu0
      %v2878 = vadd.f32 0.0, %v2877
      %v2879 = vpop.f32.mrb[0].mxu0
      %2880 = vmatprep.mubr.bf16.mxu0 0
      %2881 = vmatmul.mubr.bf16.gmra.mrb[0].mxu0 %v2739
      %v2882 = vpop.f32.mrb[0].mxu0
      %v2883 = vadd.f32 0.0, %v2882
      %v2884 = vpop.f32.mrb[0].mxu0
      %v2885 = vpop.f32.mrb[0].mxu0
      %v2886 = vadd.f32 0.0, %v2885
      %v2887 = vpop.f32.mrb[0].mxu0
      %2888 = vmatprep.mubr.bf16.mxu0 0
      %2889 = vmatmul.mubr.bf16.gmra.mrb[0].mxu0 %v2740
      %v2890 = vpop.f32.mrb[0].mxu0
      %v2891 = vadd.f32 0.0, %v2890
      %v2892 = vpop.f32.mrb[0].mxu0
      %v2893 = vpop.f32.mrb[0].mxu0
      %v2894 = vadd.f32 0.0, %v2893
      %v2895 = vpop.f32.mrb[0].mxu0
      %2896 = vmatprep.mubr.bf16.mxu0 0
      %2897 = vmatmul.mubr.bf16.gmra.mrb[0].mxu0 %v2741
      %v2898 = vpop.f32.mrb[0].mxu0
      %v2899 = vadd.f32 0.0, %v2898
      %v2900 = vpop.f32.mrb[0].mxu0
      %v2901 = vpop.f32.mrb[0].mxu0
      %v2902 = vadd.f32 0.0, %v2901
      %v2903 = vpop.f32.mrb[0].mxu0
      %2904 = vmatprep.mubr.bf16.mxu0 0
      %2905 = vmatmul.mubr.bf16.gmra.mrb[0].mxu0 %v2742
      %v2906 = vpop.f32.mrb[0].mxu0
      %v2907 = vadd.f32 0.0, %v2906
      %v2908 = vpop.f32.mrb[0].mxu0
      %v2909 = vpop.f32.mrb[0].mxu0
      %v2910 = vadd.f32 0.0, %v2909
      %v2911 = vpop.f32.mrb[0].mxu0
      %2912 = vmatprep.mubr.bf16.mxu0 0
      %2913 = vmatmul.mubr.bf16.gmra.mrb[0].mxu0 %v2743
      %v2914 = vpop.f32.mrb[0].mxu0
      %v2915 = vadd.f32 0.0, %v2914
      %v2916 = vpop.f32.mrb[0].mxu0
      %v2917 = vpop.f32.mrb[0].mxu0
      %v2918 = vadd.f32 0.0, %v2917
      %v2919 = vpop.f32.mrb[0].mxu0
      %2920 = vmatprep.mubr.bf16.mxu0 0
      %2921 = vmatmul.mubr.bf16.gmra.mrb[0].mxu0 %v2744
      %v2922 = vpop.f32.mrb[0].mxu0
      %v2923 = vadd.f32 0.0, %v2922
      %v2924 = vpop.f32.mrb[0].mxu0
      %v2925 = vpop.f32.mrb[0].mxu0
      %v2926 = vadd.f32 0.0, %v2925
      %v2927 = vpop.f32.mrb[0].mxu0
      %2928 = vmatprep.mubr.bf16.mxu0 0
      %2929 = vmatmul.mubr.bf16.gmra.mrb[0].mxu0 %v2745
      %v2930 = vpop.f32.mrb[0].mxu0
      %v2931 = vadd.f32 0.0, %v2930
      %v2932 = vpop.f32.mrb[0].mxu0
      %v2933 = vpop.f32.mrb[0].mxu0
      %v2934 = vadd.f32 0.0, %v2933
      %v2935 = vpop.f32.mrb[0].mxu0
      %2936 = vmatprep.mubr.bf16.mxu0 0
      %2937 = vmatmul.mubr.bf16.gmra.mrb[0].mxu0 %v2746
      %v2938 = vpop.f32.mrb[0].mxu0
      %v2939 = vadd.f32 0.0, %v2938
      %v2940 = vpop.f32.mrb[0].mxu0
      %v2941 = vpop.f32.mrb[0].mxu0
      %v2942 = vadd.f32 0.0, %v2941
      %v2943 = vpop.f32.mrb[0].mxu0
      %2944 = vmatprep.mubr.bf16.mxu0 0
      %2945 = vmatmul.mubr.bf16.gmra.mrb[0].mxu0 %v2747
      %v2946 = vpop.f32.mrb[0].mxu0
      %v2947 = vadd.f32 0.0, %v2946
      %v2948 = vpop.f32.mrb[0].mxu0
      %v2949 = vpop.f32.mrb[0].mxu0
      %v2950 = vadd.f32 0.0, %v2949
      %v2951 = vpop.f32.mrb[0].mxu0
      %2952 = vmatprep.mubr.bf16.mxu0 0
      %2953 = vmatmul.mubr.bf16.gmra.mrb[0].mxu0 %v2748
      %v2954 = vpop.f32.mrb[0].mxu0
      %v2955 = vadd.f32 0.0, %v2954
      %v2956 = vpop.f32.mrb[0].mxu0
      %v2957 = vpop.f32.mrb[0].mxu0
      %v2958 = vadd.f32 0.0, %v2957
      %v2959 = vpop.f32.mrb[0].mxu0
      %2960 = vmatprep.mubr.bf16.mxu0 0
      %2961 = vmatmul.mubr.bf16.gmra.mrb[0].mxu0 %v2749
      %v2962 = vpop.f32.mrb[0].mxu0
      %v2963 = vadd.f32 0.0, %v2962
      %v2964 = vpop.f32.mrb[0].mxu0
      %v2965 = vpop.f32.mrb[0].mxu0
      %v2966 = vadd.f32 0.0, %v2965
      %v2967 = vpop.f32.mrb[0].mxu0
      %2968 = vmatprep.mubr.bf16.mxu0 0
      %2969 = vmatmul.mubr.bf16.gmra.mrb[0].mxu0 %v2750
      %v2970 = vpop.f32.mrb[0].mxu0
      %v2971 = vadd.f32 0.0, %v2970
      %v2972 = vpop.f32.mrb[0].mxu0
      %v2973 = vpop.f32.mrb[0].mxu0
      %v2974 = vadd.f32 0.0, %v2973
      %v2975 = vpop.f32.mrb[0].mxu0
      %2976 = vdwg.mxu0
      %v2977 = vadd.f32 %v2671, %v2851
      %v2978 = vadd.f32 %v2672, %v2854
      %v2979 = vadd.f32 %v2673, %v2859
      %v2980 = vadd.f32 %v2674, %v2862
      %v2981 = vadd.f32 %v2675, %v2867
      %v2982 = vadd.f32 %v2676, %v2870
      %v2983 = vadd.f32 %v2677, %v2875
      %v2984 = vadd.f32 %v2678, %v2878
      %v2985 = vadd.f32 %v2679, %v2883
      %v2986 = vadd.f32 %v2680, %v2886
      %v2987 = vadd.f32 %v2681, %v2891
      %v2988 = vadd.f32 %v2682, %v2894
      %v2989 = vadd.f32 %v2683, %v2899
      %v2990 = vadd.f32 %v2684, %v2902
      %v2991 = vadd.f32 %v2685, %v2907
      %v2992 = vadd.f32 %v2686, %v2910
      %v2993 = vadd.f32 %v2687, %v2915
      %v2994 = vadd.f32 %v2688, %v2918
      %v2995 = vadd.f32 %v2689, %v2923
      %v2996 = vadd.f32 %v2690, %v2926
      %v2997 = vadd.f32 %v2691, %v2931
      %v2998 = vadd.f32 %v2692, %v2934
      %v2999 = vadd.f32 %v2693, %v2939
      %v3000 = vadd.f32 %v2694, %v2942
      %v3001 = vadd.f32 %v2695, %v2947
      %v3002 = vadd.f32 %v2696, %v2950
      %v3003 = vadd.f32 %v2697, %v2955
      %v3004 = vadd.f32 %v2698, %v2958
      %v3005 = vadd.f32 %v2699, %v2963
      %v3006 = vadd.f32 %v2700, %v2966
      %v3007 = vadd.f32 %v2701, %v2971
      %v3008 = vadd.f32 %v2702, %v2974
      %v3009 = vld [vmem:[%s2396 + $0x2] sm:$0xff]
      %v3010 = vld [vmem:[%s2396 + $0xa] sm:$0xff]
      %v3011 = vld [vmem:[%s2396 + $0x1a] sm:$0xff]
      %v3012 = vld [vmem:[%s2396 + $0x22] sm:$0xff]
      %v3013 = vld [vmem:[%s2396 + $0x32] sm:$0xff]
      %v3014 = vld [vmem:[%s2396 + $0x3a] sm:$0xff]
      %v3015 = vld [vmem:[%s2396 + $0x4a] sm:$0xff]
      %v3016 = vld [vmem:[%s2396 + $0x52] sm:$0xff]
      %v3017 = vld [vmem:[%s2396 + $0x62] sm:$0xff]
      %v3018 = vld [vmem:[%s2396 + $0x6a] sm:$0xff]
      %v3019 = vld [vmem:[%s2396 + $0x7a] sm:$0xff]
      %v3020 = vld [vmem:[%s2396 + $0x82] sm:$0xff]
      %v3021 = vld [vmem:[%s2396 + $0x92] sm:$0xff]
      %v3022 = vld [vmem:[%s2396 + $0x9a] sm:$0xff]
      %v3023 = vld [vmem:[%s2396 + $0xaa] sm:$0xff]
      %v3024 = vld [vmem:[%s2396 + $0xb2] sm:$0xff]
      %v3025 = vld [vmem:[%s2396 + $0xc2] sm:$0xff]
      %v3026 = vld [vmem:[%s2396 + $0xca] sm:$0xff]
      %v3027 = vld [vmem:[%s2396 + $0xda] sm:$0xff]
      %v3028 = vld [vmem:[%s2396 + $0xe2] sm:$0xff]
      %v3029 = vld [vmem:[%s2396 + $0xf2] sm:$0xff]
      %v3030 = vld [vmem:[%s2396 + $0xfa] sm:$0xff]
      %v3031 = vld [vmem:[%s2396 + $0x10a] sm:$0xff]
      %v3032 = vld [vmem:[%s2396 + $0x112] sm:$0xff]
      %v3033 = vld [vmem:[%s2396 + $0x122] sm:$0xff]
      %v3034 = vld [vmem:[%s2396 + $0x12a] sm:$0xff]
      %v3035 = vld [vmem:[%s2396 + $0x13a] sm:$0xff]
      %v3036 = vld [vmem:[%s2396 + $0x142] sm:$0xff]
      %v3037 = vld [vmem:[%s2396 + $0x152] sm:$0xff]
      %v3038 = vld [vmem:[%s2396 + $0x15a] sm:$0xff]
      %v3039 = vld [vmem:[%s2396 + $0x16a] sm:$0xff]
      %v3040 = vld [vmem:[%s2396 + $0x172] sm:$0xff]
      %v3041 = vpack.c.bf16 %v3010, %v3009
      %v3042 = vpack.c.bf16 %v3012, %v3011
      %v3043 = vpack.c.bf16 %v3014, %v3013
      %v3044 = vpack.c.bf16 %v3016, %v3015
      %v3045 = vpack.c.bf16 %v3018, %v3017
      %v3046 = vpack.c.bf16 %v3020, %v3019
      %v3047 = vpack.c.bf16 %v3022, %v3021
      %v3048 = vpack.c.bf16 %v3024, %v3023
      %v3049 = vpack.c.bf16 %v3026, %v3025
      %v3050 = vpack.c.bf16 %v3028, %v3027
      %v3051 = vpack.c.bf16 %v3030, %v3029
      %v3052 = vpack.c.bf16 %v3032, %v3031
      %v3053 = vpack.c.bf16 %v3034, %v3033
      %v3054 = vpack.c.bf16 %v3036, %v3035
      %v3055 = vpack.c.bf16 %v3038, %v3037
      %v3056 = vpack.c.bf16 %v3040, %v3039
      %s3057 = scalar_lea.vmem %s4, 512
      %v3058 = vld [vmem:[%s3057] sm:$0xf]
      %v3059 = vld [vmem:[%s3057 + $0x4] sm:$0xf]
      %v3060 = vld [vmem:[%s3057 + $0x8] sm:$0xf]
      %v3061 = vld [vmem:[%s3057 + $0xc] sm:$0xf]
      %v3062 = vld [vmem:[%s3057 + $0x10] sm:$0xf]
      %v3063 = vld [vmem:[%s3057 + $0x14] sm:$0xf]
      %v3064 = vld [vmem:[%s3057 + $0x18] sm:$0xf]
      %v3065 = vld [vmem:[%s3057 + $0x1c] sm:$0xf]
      %v3066 = vld [vmem:[%s3057 + $0x20] sm:$0xf]
      %v3067 = vld [vmem:[%s3057 + $0x24] sm:$0xf]
      %v3068 = vld [vmem:[%s3057 + $0x28] sm:$0xf]
      %v3069 = vld [vmem:[%s3057 + $0x2c] sm:$0xf]
      %v3070 = vld [vmem:[%s3057 + $0x30] sm:$0xf]
      %v3071 = vld [vmem:[%s3057 + $0x34] sm:$0xf]
      %v3072 = vld [vmem:[%s3057 + $0x38] sm:$0xf]
      %v3073 = vld [vmem:[%s3057 + $0x3c] sm:$0xf]
      %v3090 = vunpack.c.l.b16 %v3058
      %v3091 = vunpack.c.l.b16 %v3059
      %v3092 = vunpack.c.l.b16 %v3060
      %v3093 = vunpack.c.l.b16 %v3061
      %v3094 = vunpack.c.l.b16 %v3062
      %v3095 = vunpack.c.l.b16 %v3063
      %v3096 = vunpack.c.l.b16 %v3064
      %v3097 = vunpack.c.l.b16 %v3065
      %v3098 = vunpack.c.l.b16 %v3066
      %v3099 = vunpack.c.l.b16 %v3067
      %v3100 = vunpack.c.l.b16 %v3068
      %v3101 = vunpack.c.l.b16 %v3069
      %v3102 = vunpack.c.l.b16 %v3070
      %v3103 = vunpack.c.l.b16 %v3071
      %v3104 = vunpack.c.l.b16 %v3072
      %v3105 = vunpack.c.l.b16 %v3073
      %v3106 = vpack.c.b16 %v3091, %v3090
      %v3107 = vpack.c.b16 %v3093, %v3092
      %v3108 = vpack.c.b16 %v3095, %v3094
      %v3109 = vpack.c.b16 %v3097, %v3096
      %v3110 = vpack.c.b16 %v3099, %v3098
      %v3111 = vpack.c.b16 %v3101, %v3100
      %v3112 = vpack.c.b16 %v3103, %v3102
      %v3113 = vpack.c.b16 %v3105, %v3104
      %3122 = vmatprep.subr.bf16.mxu0 0
      %3123 = vmatpush1.bf16.msra.mxu0 %v3106
      %3124 = vmatprep.subr.bf16.mxu0 0
      %3125 = vmatpush1.bf16.msra.mxu0 %v3107
      %3126 = vmatprep.subr.bf16.mxu0 0
      %3127 = vmatpush1.bf16.msra.mxu0 %v3108
      %3128 = vmatprep.subr.bf16.mxu0 0
      %3129 = vmatpush1.bf16.msra.mxu0 %v3109
      %3130 = vmatprep.subr.bf16.mxu0 0
      %3131 = vmatpush1.bf16.msra.mxu0 %v3110
      %3132 = vmatprep.subr.bf16.mxu0 0
      %3133 = vmatpush1.bf16.msra.mxu0 %v3111
      %3134 = vmatprep.subr.bf16.mxu0 0
      %3135 = vmatpush1.bf16.msra.mxu0 %v3112
      %3136 = vmatprep.subr.bf16.mxu0 0
      %3137 = vmatpush1.bf16.msra.mxu0 %v3113
      %3138 = vmatprep.subr.bf16.mxu0 0
      %3139 = vmatpush1.bf16.msra.mxu0 0
      %3140 = vmatprep.subr.bf16.mxu0 0
      %3141 = vmatpush1.bf16.msra.mxu0 0
      %3142 = vmatprep.subr.bf16.mxu0 0
      %3143 = vmatpush1.bf16.msra.mxu0 0
      %3144 = vmatprep.subr.bf16.mxu0 0
      %3145 = vmatpush1.bf16.msra.mxu0 0
      %3146 = vmatprep.subr.bf16.mxu0 0
      %3147 = vmatpush1.bf16.msra.mxu0 0
      %3148 = vmatprep.subr.bf16.mxu0 0
      %3149 = vmatpush1.bf16.msra.mxu0 0
      %3150 = vmatprep.subr.bf16.mxu0 0
      %3151 = vmatpush1.bf16.msra.mxu0 0
      %3152 = vmatprep.subr.bf16.mxu0 0
      %3153 = vmatpush1.bf16.msra.mxu0 0
      %3154 = vmatprep.mubr.bf16.mxu0 0
      %3155 = vmatmul.mubr.bf16.gmra.mrb[0].mxu0 %v3041
      %v3156 = vpop.f32.mrb[0].mxu0
      %v3157 = vadd.f32 0.0, %v3156
      %v3158 = vpop.f32.mrb[0].mxu0
      %v3159 = vpop.f32.mrb[0].mxu0
      %v3160 = vadd.f32 0.0, %v3159
      %v3161 = vpop.f32.mrb[0].mxu0
      %3162 = vmatprep.mubr.bf16.mxu0 0
      %3163 = vmatmul.mubr.bf16.gmra.mrb[0].mxu0 %v3042
      %v3164 = vpop.f32.mrb[0].mxu0
      %v3165 = vadd.f32 0.0, %v3164
      %v3166 = vpop.f32.mrb[0].mxu0
      %v3167 = vpop.f32.mrb[0].mxu0
      %v3168 = vadd.f32 0.0, %v3167
      %v3169 = vpop.f32.mrb[0].mxu0
      %3170 = vmatprep.mubr.bf16.mxu0 0
      %3171 = vmatmul.mubr.bf16.gmra.mrb[0].mxu0 %v3043
      %v3172 = vpop.f32.mrb[0].mxu0
      %v3173 = vadd.f32 0.0, %v3172
      %v3174 = vpop.f32.mrb[0].mxu0
      %v3175 = vpop.f32.mrb[0].mxu0
      %v3176 = vadd.f32 0.0, %v3175
      %v3177 = vpop.f32.mrb[0].mxu0
      %3178 = vmatprep.mubr.bf16.mxu0 0
      %3179 = vmatmul.mubr.bf16.gmra.mrb[0].mxu0 %v3044
      %v3180 = vpop.f32.mrb[0].mxu0
      %v3181 = vadd.f32 0.0, %v3180
      %v3182 = vpop.f32.mrb[0].mxu0
      %v3183 = vpop.f32.mrb[0].mxu0
      %v3184 = vadd.f32 0.0, %v3183
      %v3185 = vpop.f32.mrb[0].mxu0
      %3186 = vmatprep.mubr.bf16.mxu0 0
      %3187 = vmatmul.mubr.bf16.gmra.mrb[0].mxu0 %v3045
      %v3188 = vpop.f32.mrb[0].mxu0
      %v3189 = vadd.f32 0.0, %v3188
      %v3190 = vpop.f32.mrb[0].mxu0
      %v3191 = vpop.f32.mrb[0].mxu0
      %v3192 = vadd.f32 0.0, %v3191
      %v3193 = vpop.f32.mrb[0].mxu0
      %3194 = vmatprep.mubr.bf16.mxu0 0
      %3195 = vmatmul.mubr.bf16.gmra.mrb[0].mxu0 %v3046
      %v3196 = vpop.f32.mrb[0].mxu0
      %v3197 = vadd.f32 0.0, %v3196
      %v3198 = vpop.f32.mrb[0].mxu0
      %v3199 = vpop.f32.mrb[0].mxu0
      %v3200 = vadd.f32 0.0, %v3199
      %v3201 = vpop.f32.mrb[0].mxu0
      %3202 = vmatprep.mubr.bf16.mxu0 0
      %3203 = vmatmul.mubr.bf16.gmra.mrb[0].mxu0 %v3047
      %v3204 = vpop.f32.mrb[0].mxu0
      %v3205 = vadd.f32 0.0, %v3204
      %v3206 = vpop.f32.mrb[0].mxu0
      %v3207 = vpop.f32.mrb[0].mxu0
      %v3208 = vadd.f32 0.0, %v3207
      %v3209 = vpop.f32.mrb[0].mxu0
      %3210 = vmatprep.mubr.bf16.mxu0 0
      %3211 = vmatmul.mubr.bf16.gmra.mrb[0].mxu0 %v3048
      %v3212 = vpop.f32.mrb[0].mxu0
      %v3213 = vadd.f32 0.0, %v3212
      %v3214 = vpop.f32.mrb[0].mxu0
      %v3215 = vpop.f32.mrb[0].mxu0
      %v3216 = vadd.f32 0.0, %v3215
      %v3217 = vpop.f32.mrb[0].mxu0
      %3218 = vmatprep.mubr.bf16.mxu0 0
      %3219 = vmatmul.mubr.bf16.gmra.mrb[0].mxu0 %v3049
      %v3220 = vpop.f32.mrb[0].mxu0
      %v3221 = vadd.f32 0.0, %v3220
      %v3222 = vpop.f32.mrb[0].mxu0
      %v3223 = vpop.f32.mrb[0].mxu0
      %v3224 = vadd.f32 0.0, %v3223
      %v3225 = vpop.f32.mrb[0].mxu0
      %3226 = vmatprep.mubr.bf16.mxu0 0
      %3227 = vmatmul.mubr.bf16.gmra.mrb[0].mxu0 %v3050
      %v3228 = vpop.f32.mrb[0].mxu0
      %v3229 = vadd.f32 0.0, %v3228
      %v3230 = vpop.f32.mrb[0].mxu0
      %v3231 = vpop.f32.mrb[0].mxu0
      %v3232 = vadd.f32 0.0, %v3231
      %v3233 = vpop.f32.mrb[0].mxu0
      %3234 = vmatprep.mubr.bf16.mxu0 0
      %3235 = vmatmul.mubr.bf16.gmra.mrb[0].mxu0 %v3051
      %v3236 = vpop.f32.mrb[0].mxu0
      %v3237 = vadd.f32 0.0, %v3236
      %v3238 = vpop.f32.mrb[0].mxu0
      %v3239 = vpop.f32.mrb[0].mxu0
      %v3240 = vadd.f32 0.0, %v3239
      %v3241 = vpop.f32.mrb[0].mxu0
      %3242 = vmatprep.mubr.bf16.mxu0 0
      %3243 = vmatmul.mubr.bf16.gmra.mrb[0].mxu0 %v3052
      %v3244 = vpop.f32.mrb[0].mxu0
      %v3245 = vadd.f32 0.0, %v3244
      %v3246 = vpop.f32.mrb[0].mxu0
      %v3247 = vpop.f32.mrb[0].mxu0
      %v3248 = vadd.f32 0.0, %v3247
      %v3249 = vpop.f32.mrb[0].mxu0
      %3250 = vmatprep.mubr.bf16.mxu0 0
      %3251 = vmatmul.mubr.bf16.gmra.mrb[0].mxu0 %v3053
      %v3252 = vpop.f32.mrb[0].mxu0
      %v3253 = vadd.f32 0.0, %v3252
      %v3254 = vpop.f32.mrb[0].mxu0
      %v3255 = vpop.f32.mrb[0].mxu0
      %v3256 = vadd.f32 0.0, %v3255
      %v3257 = vpop.f32.mrb[0].mxu0
      %3258 = vmatprep.mubr.bf16.mxu0 0
      %3259 = vmatmul.mubr.bf16.gmra.mrb[0].mxu0 %v3054
      %v3260 = vpop.f32.mrb[0].mxu0
      %v3261 = vadd.f32 0.0, %v3260
      %v3262 = vpop.f32.mrb[0].mxu0
      %v3263 = vpop.f32.mrb[0].mxu0
      %v3264 = vadd.f32 0.0, %v3263
      %v3265 = vpop.f32.mrb[0].mxu0
      %3266 = vmatprep.mubr.bf16.mxu0 0
      %3267 = vmatmul.mubr.bf16.gmra.mrb[0].mxu0 %v3055
      %v3268 = vpop.f32.mrb[0].mxu0
      %v3269 = vadd.f32 0.0, %v3268
      %v3270 = vpop.f32.mrb[0].mxu0
      %v3271 = vpop.f32.mrb[0].mxu0
      %v3272 = vadd.f32 0.0, %v3271
      %v3273 = vpop.f32.mrb[0].mxu0
      %3274 = vmatprep.mubr.bf16.mxu0 0
      %3275 = vmatmul.mubr.bf16.gmra.mrb[0].mxu0 %v3056
      %v3276 = vpop.f32.mrb[0].mxu0
      %v3277 = vadd.f32 0.0, %v3276
      %v3278 = vpop.f32.mrb[0].mxu0
      %v3279 = vpop.f32.mrb[0].mxu0
      %v3280 = vadd.f32 0.0, %v3279
      %v3281 = vpop.f32.mrb[0].mxu0
      %3282 = vdwg.mxu0
      %v3283 = vadd.f32 %v2977, %v3157
      %v3284 = vadd.f32 %v2978, %v3160
      %v3285 = vadd.f32 %v2979, %v3165
      %v3286 = vadd.f32 %v2980, %v3168
      %v3287 = vadd.f32 %v2981, %v3173
      %v3288 = vadd.f32 %v2982, %v3176
      %v3289 = vadd.f32 %v2983, %v3181
      %v3290 = vadd.f32 %v2984, %v3184
      %v3291 = vadd.f32 %v2985, %v3189
      %v3292 = vadd.f32 %v2986, %v3192
      %v3293 = vadd.f32 %v2987, %v3197
      %v3294 = vadd.f32 %v2988, %v3200
      %v3295 = vadd.f32 %v2989, %v3205
      %v3296 = vadd.f32 %v2990, %v3208
      %v3297 = vadd.f32 %v2991, %v3213
      %v3298 = vadd.f32 %v2992, %v3216
      %v3299 = vadd.f32 %v2993, %v3221
      %v3300 = vadd.f32 %v2994, %v3224
      %v3301 = vadd.f32 %v2995, %v3229
      %v3302 = vadd.f32 %v2996, %v3232
      %v3303 = vadd.f32 %v2997, %v3237
      %v3304 = vadd.f32 %v2998, %v3240
      %v3305 = vadd.f32 %v2999, %v3245
      %v3306 = vadd.f32 %v3000, %v3248
      %v3307 = vadd.f32 %v3001, %v3253
      %v3308 = vadd.f32 %v3002, %v3256
      %v3309 = vadd.f32 %v3003, %v3261
      %v3310 = vadd.f32 %v3004, %v3264
      %v3311 = vadd.f32 %v3005, %v3269
      %v3312 = vadd.f32 %v3006, %v3272
      %v3313 = vadd.f32 %v3007, %v3277
      %v3314 = vadd.f32 %v3008, %v3280
      %v3315 = vld [vmem:[%s5] sm:$0x1]
      %v3317 = vlaneseq
      %v3318 = vshrl.u32 %v3317, 7
      %v3319 = vsub.s32 0, %v3318
      %v3320 = vrot.slane %v3315, %v3319
      %v3322 = vadd.f32 %v3283, %v3320
      %v3323 = vadd.f32 %v3284, %v3320
      %v3324 = vadd.f32 %v3285, %v3320
      %v3325 = vadd.f32 %v3286, %v3320
      %v3326 = vadd.f32 %v3287, %v3320
      %v3327 = vadd.f32 %v3288, %v3320
      %v3328 = vadd.f32 %v3289, %v3320
      %v3329 = vadd.f32 %v3290, %v3320
      %v3330 = vadd.f32 %v3291, %v3320
      %v3331 = vadd.f32 %v3292, %v3320
      %v3332 = vadd.f32 %v3293, %v3320
      %v3333 = vadd.f32 %v3294, %v3320
      %v3334 = vadd.f32 %v3295, %v3320
      %v3335 = vadd.f32 %v3296, %v3320
      %v3336 = vadd.f32 %v3297, %v3320
      %v3337 = vadd.f32 %v3298, %v3320
      %v3338 = vadd.f32 %v3299, %v3320
      %v3339 = vadd.f32 %v3300, %v3320
      %v3340 = vadd.f32 %v3301, %v3320
      %v3341 = vadd.f32 %v3302, %v3320
      %v3342 = vadd.f32 %v3303, %v3320
      %v3343 = vadd.f32 %v3304, %v3320
      %v3344 = vadd.f32 %v3305, %v3320
      %v3345 = vadd.f32 %v3306, %v3320
      %v3346 = vadd.f32 %v3307, %v3320
      %v3347 = vadd.f32 %v3308, %v3320
      %v3348 = vadd.f32 %v3309, %v3320
      %v3349 = vadd.f32 %v3310, %v3320
      %v3350 = vadd.f32 %v3311, %v3320
      %v3351 = vadd.f32 %v3312, %v3320
      %v3352 = vadd.f32 %v3313, %v3320
      %v3353 = vadd.f32 %v3314, %v3320
      %3354 = vst [vmem:[%s276] sm:$0xff] %v3322
      %3355 = vst [vmem:[%s276 + $0x8] sm:$0xff] %v3323
      %3356 = vst [vmem:[%s276 + $0x10] sm:$0xff] %v3324
      %3357 = vst [vmem:[%s276 + $0x18] sm:$0xff] %v3325
      %3358 = vst [vmem:[%s276 + $0x20] sm:$0xff] %v3326
      %3359 = vst [vmem:[%s276 + $0x28] sm:$0xff] %v3327
      %3360 = vst [vmem:[%s276 + $0x30] sm:$0xff] %v3328
      %3361 = vst [vmem:[%s276 + $0x38] sm:$0xff] %v3329
      %3362 = vst [vmem:[%s276 + $0x40] sm:$0xff] %v3330
      %3363 = vst [vmem:[%s276 + $0x48] sm:$0xff] %v3331
      %3364 = vst [vmem:[%s276 + $0x50] sm:$0xff] %v3332
      %3365 = vst [vmem:[%s276 + $0x58] sm:$0xff] %v3333
      %3366 = vst [vmem:[%s276 + $0x60] sm:$0xff] %v3334
      %3367 = vst [vmem:[%s276 + $0x68] sm:$0xff] %v3335
      %3368 = vst [vmem:[%s276 + $0x70] sm:$0xff] %v3336
      %3369 = vst [vmem:[%s276 + $0x78] sm:$0xff] %v3337
      %3370 = vst [vmem:[%s276 + $0x80] sm:$0xff] %v3338
      %3371 = vst [vmem:[%s276 + $0x88] sm:$0xff] %v3339
      %3372 = vst [vmem:[%s276 + $0x90] sm:$0xff] %v3340
      %3373 = vst [vmem:[%s276 + $0x98] sm:$0xff] %v3341
      %3374 = vst [vmem:[%s276 + $0xa0] sm:$0xff] %v3342
      %3375 = vst [vmem:[%s276 + $0xa8] sm:$0xff] %v3343
      %3376 = vst [vmem:[%s276 + $0xb0] sm:$0xff] %v3344
      %3377 = vst [vmem:[%s276 + $0xb8] sm:$0xff] %v3345
      %3378 = vst [vmem:[%s276 + $0xc0] sm:$0xff] %v3346
      %3379 = vst [vmem:[%s276 + $0xc8] sm:$0xff] %v3347
      %3380 = vst [vmem:[%s276 + $0xd0] sm:$0xff] %v3348
      %3381 = vst [vmem:[%s276 + $0xd8] sm:$0xff] %v3349
      %3382 = vst [vmem:[%s276 + $0xe0] sm:$0xff] %v3350
      %3383 = vst [vmem:[%s276 + $0xe8] sm:$0xff] %v3351
      %3384 = vst [vmem:[%s276 + $0xf0] sm:$0xff] %v3352
      %3385 = vst [vmem:[%s276 + $0xf8] sm:$0xff] %v3353
      // Predicated region
      $region49: #{block_forward.5} parent=43 // pred_check
        %p3386 = pneg %p278
      $region50: #{block_forward.5} parent=43 // pred_check_branch
        %3388 = sbr.rel (%p3386) target = $region52
      $region51: #{block_forward.5} parent=43 // pred_region
        %3389 = vst [vmem:[%s7] sm:$0x3] 0.0
      $region52: #{block_forward.5} parent=43 // pred_fallthru
        _
      %v3390 = vld [vmem:[%s7] sm:$0x1]
      %v3391 = vadd.f32 %v3322, %v3323
      %v3392 = vadd.f32 %v3391, %v3324
      %v3393 = vadd.f32 %v3392, %v3325
      %v3394 = vadd.f32 %v3393, %v3326
      %v3395 = vadd.f32 %v3394, %v3327
      %v3396 = vadd.f32 %v3395, %v3328
      %v3397 = vadd.f32 %v3396, %v3329
      %v3398 = vadd.f32 %v3397, %v3330
      %v3399 = vadd.f32 %v3398, %v3331
      %v3400 = vadd.f32 %v3399, %v3332
      %v3401 = vadd.f32 %v3400, %v3333
      %v3402 = vadd.f32 %v3401, %v3334
      %v3403 = vadd.f32 %v3402, %v3335
      %v3404 = vadd.f32 %v3403, %v3336
      %v3405 = vadd.f32 %v3404, %v3337
      %v3406 = vadd.f32 %v3405, %v3338
      %v3407 = vadd.f32 %v3406, %v3339
      %v3408 = vadd.f32 %v3407, %v3340
      %v3409 = vadd.f32 %v3408, %v3341
      %v3410 = vadd.f32 %v3409, %v3342
      %v3411 = vadd.f32 %v3410, %v3343
      %v3412 = vadd.f32 %v3411, %v3344
      %v3413 = vadd.f32 %v3412, %v3345
      %v3414 = vadd.f32 %v3413, %v3346
      %v3415 = vadd.f32 %v3414, %v3347
      %v3416 = vadd.f32 %v3415, %v3348
      %v3417 = vadd.f32 %v3416, %v3349
      %v3418 = vadd.f32 %v3417, %v3350
      %v3419 = vadd.f32 %v3418, %v3351
      %v3420 = vadd.f32 %v3419, %v3352
      %v3421 = vadd.f32 %v3420, %v3353
      %v3422 = vrot.slane %v3421, 4
      %v3423 = vadd.f32 %v3421, %v3422
      %v3424 = vrot.slane %v3423, 2
      %v3425 = vadd.f32 %v3423, %v3424
      %v3426 = vrot.slane %v3425, 1
      %v3427 = vadd.f32 %v3425, %v3426
      %v3428 = vadd.f32 %v3390, %v3427
      %3429 = vst [vmem:[%s7] sm:$0x1] %v3428
      %v3430 = vld [vmem:[%s7 + $0x1] sm:$0x1]
      %v3431 = vmul.f32 %v3322, %v3322
      %v3432 = vmul.f32 %v3323, %v3323
      %v3433 = vmul.f32 %v3324, %v3324
      %v3434 = vmul.f32 %v3325, %v3325
      %v3435 = vmul.f32 %v3326, %v3326
      %v3436 = vmul.f32 %v3327, %v3327
      %v3437 = vmul.f32 %v3328, %v3328
      %v3438 = vmul.f32 %v3329, %v3329
      %v3439 = vmul.f32 %v3330, %v3330
      %v3440 = vmul.f32 %v3331, %v3331
      %v3441 = vmul.f32 %v3332, %v3332
      %v3442 = vmul.f32 %v3333, %v3333
      %v3443 = vmul.f32 %v3334, %v3334
      %v3444 = vmul.f32 %v3335, %v3335
      %v3445 = vmul.f32 %v3336, %v3336
      %v3446 = vmul.f32 %v3337, %v3337
      %v3447 = vmul.f32 %v3338, %v3338
      %v3448 = vmul.f32 %v3339, %v3339
      %v3449 = vmul.f32 %v3340, %v3340
      %v3450 = vmul.f32 %v3341, %v3341
      %v3451 = vmul.f32 %v3342, %v3342
      %v3452 = vmul.f32 %v3343, %v3343
      %v3453 = vmul.f32 %v3344, %v3344
      %v3454 = vmul.f32 %v3345, %v3345
      %v3455 = vmul.f32 %v3346, %v3346
      %v3456 = vmul.f32 %v3347, %v3347
      %v3457 = vmul.f32 %v3348, %v3348
      %v3458 = vmul.f32 %v3349, %v3349
      %v3459 = vmul.f32 %v3350, %v3350
      %v3460 = vmul.f32 %v3351, %v3351
      %v3461 = vmul.f32 %v3352, %v3352
      %v3462 = vmul.f32 %v3353, %v3353
      %v3463 = vadd.f32 %v3431, %v3432
      %v3464 = vadd.f32 %v3463, %v3433
      %v3465 = vadd.f32 %v3464, %v3434
      %v3466 = vadd.f32 %v3465, %v3435
      %v3467 = vadd.f32 %v3466, %v3436
      %v3468 = vadd.f32 %v3467, %v3437
      %v3469 = vadd.f32 %v3468, %v3438
      %v3470 = vadd.f32 %v3469, %v3439
      %v3471 = vadd.f32 %v3470, %v3440
      %v3472 = vadd.f32 %v3471, %v3441
      %v3473 = vadd.f32 %v3472, %v3442
      %v3474 = vadd.f32 %v3473, %v3443
      %v3475 = vadd.f32 %v3474, %v3444
      %v3476 = vadd.f32 %v3475, %v3445
      %v3477 = vadd.f32 %v3476, %v3446
      %v3478 = vadd.f32 %v3477, %v3447
      %v3479 = vadd.f32 %v3478, %v3448
      %v3480 = vadd.f32 %v3479, %v3449
      %v3481 = vadd.f32 %v3480, %v3450
      %v3482 = vadd.f32 %v3481, %v3451
      %v3483 = vadd.f32 %v3482, %v3452
      %v3484 = vadd.f32 %v3483, %v3453
      %v3485 = vadd.f32 %v3484, %v3454
      %v3486 = vadd.f32 %v3485, %v3455
      %v3487 = vadd.f32 %v3486, %v3456
      %v3488 = vadd.f32 %v3487, %v3457
      %v3489 = vadd.f32 %v3488, %v3458
      %v3490 = vadd.f32 %v3489, %v3459
      %v3491 = vadd.f32 %v3490, %v3460
      %v3492 = vadd.f32 %v3491, %v3461
      %v3493 = vadd.f32 %v3492, %v3462
      %v3494 = vrot.slane %v3493, 4
      %v3495 = vadd.f32 %v3493, %v3494
      %v3496 = vrot.slane %v3495, 2
      %v3497 = vadd.f32 %v3495, %v3496
      %v3498 = vrot.slane %v3497, 1
      %v3499 = vadd.f32 %v3497, %v3498
      %v3500 = vadd.f32 %v3430, %v3499
      %3501 = vst [vmem:[%s7 + $0x1] sm:$0x1] %v3500
      %p3502 = scmp.lt.s32.totalorder %s19, 1
      %s3503 = scalar_select %p3502, %s19, 1
      %s3504 = smul.addr %s3503, 32
      %s3505 = smul.addr %s3504, 8
      %s3506 = scalar_lea.vmem %s6, %s3505
      // Predicated region
      $region53: #{block_forward.5} parent=43 // pred_check
        %p3507 = pneg %p168
      $region54: #{block_forward.5} parent=43 // pred_check_branch
        %3509 = sbr.rel (%p3507) target = $region56
      $region55: #{block_forward.5} parent=43 // pred_region
        _
      $region56: #{block_forward.5} parent=43 // pred_fallthru
        _
      // Predicated region
      $region57: #{block_forward.5} parent=43 // pred_check
        %p3510 = pneg %p189
      $region58: #{block_forward.5} parent=43 // pred_check_branch
        %3512 = sbr.rel (%p3510) target = $region60
      $region59: #{block_forward.5} parent=43 // pred_region
        _
      $region60: #{block_forward.5} parent=43 // pred_fallthru
        _
      // Predicated region
      $region61: #{block_forward.5} parent=43 // pred_check
        %p3513 = pneg %p189
      $region62: #{block_forward.5} parent=43 // pred_check_branch
        %3515 = sbr.rel (%p3513) target = $region64
      $region63: #{block_forward.5} parent=43 // pred_region
        _
      $region64: #{block_forward.5} parent=43 // pred_fallthru
        _
    $region44: #{block_forward.5} parent=5 // pred_fallthru
      _
    %p3516 = scmp.le.s32.totalorder 2, %s14
    // Predicated region
    $region65: #{block_forward.5} parent=5 // pred_check
      %p3517 = pneg %p3516
    $region66: #{block_forward.5} parent=5 // pred_check_branch
      %3519 = sbr.rel (%p3517) target = $region68
    $region67: #{block_forward.5} parent=5 // pred_region
      %s3520 = ssub.s32 %s14, 2
      // Predicated region
      $region69: #{block_forward.5} parent=67 // pred_check
        %p3521 = pneg %p174
      $region70: #{block_forward.5} parent=67 // pred_check_branch
        %3523 = sbr.rel (%p3521) target = $region72
      $region71: #{block_forward.5} parent=67 // pred_region
        %p3524 = scmp.lt.s32.totalorder %s20, 1
        %s3525 = scalar_select %p3524, %s20, 1
        %s3526 = smul.addr %s3525, 32
        %s3527 = smul.addr %s3526, 8
        %s3528 = scalar_lea.vmem %s6, %s3527
      $region72: #{block_forward.5} parent=67 // pred_fallthru
        _
    $region68: #{block_forward.5} parent=5 // pred_fallthru
      _
  $region6: #{block_forward.5} parent=0 // loop_footer
    %s18 = sadd.s32 1, %s14
  $region7: #{block_forward.5} parent=0 // loop_footer_branch
    %13 = sbr.rel target = $region3
  $region8: #{block_forward.5} parent=0 // loop_exit
    _

</llo_original>
